<compile_context>
chip_gen: v5e
topology: v5e:2x2
jax: 0.10.0
libtpu: 0.0.40
codegen_flags: <defaults>
</compile_context>

<pallas_src>
import functools

import numpy as np
import jax
import jax.numpy as jnp
from jax import lax
from jax.experimental import pallas as pl
from jax.experimental.pallas import tpu as pltpu

LEAKY_SLOPE = 0.01   # nn.LeakyReLU() default
BN_EPS = 1e-5        # nn.BatchNorm2d default
KSIZE = 4
STRIDE = 2


def _round_up(x, m):
    return (x + m - 1) // m * m


# ---------------------------------------------------------------------------
# Fused whole-network Pallas kernel
# ---------------------------------------------------------------------------
def _fused_dcdisc_kernel(*refs, cfgs, n_in, batch):
    ins = refs[:n_in]
    out_ref = refs[n_in]
    scratches = refs[n_in + 1:]

    # Zero-init the inter-layer activation buffers once: this provides the
    # conv zero-padding rows / lanes for every subsequent layer.
    for s in scratches:
        s[...] = jnp.zeros(s.shape, s.dtype)

    a = ins[0][...]                      # layer-0 padded input, (rows0, D0pad)
    pos = 1
    for l, cfg in enumerate(cfgs):
        sh_ref = ins[pos]                # (4, R_out, rows_in_alloc)
        bw_ref = ins[pos + 1]            # (4, Din_pad, Lpad)
        pos += 2

        # stride-2 4x4 conv as 4 pairs of dense GEMMs (MXU):
        #   z = sum_i (SH_i @ A) @ BW_i
        z = jnp.zeros((cfg["R_out"], cfg["Lpad"]), jnp.float32)
        for i in range(KSIZE):
            t = jnp.dot(sh_ref[i], a, preferred_element_type=jnp.float32)
            z = z + jnp.dot(t, bw_ref[i], preferred_element_type=jnp.float32)

        if cfg["has_bn"]:
            # Training-mode BatchNorm over (N, H, W).  Conv bias is skipped:
            # mean subtraction cancels it exactly.  Per-channel stats are
            # gathered from the lane-flattened (ow, cout) layout via the tiny
            # precomputed selection matrices G / G^T (pad lanes excluded and
            # forced back to exactly 0 by the affine step).
            g_ref, gt_ref, gamma_ref, beta_ref = ins[pos:pos + 4]
            pos += 4
            m = float(cfg["M_valid"])
            s1 = jnp.sum(z, axis=0, keepdims=True)
            s2 = jnp.sum(z * z, axis=0, keepdims=True)
            csum = jnp.dot(s1, g_ref[...], preferred_element_type=jnp.float32)
            csq = jnp.dot(s2, g_ref[...], preferred_element_type=jnp.float32)
            mean = csum / m
            var = jnp.maximum(csq / m - mean * mean, 0.0)
            scale = gamma_ref[...] * lax.rsqrt(var + BN_EPS)
            shift = beta_ref[...] - mean * scale
            scale_l = jnp.dot(scale, gt_ref[...],
                              preferred_element_type=jnp.float32)
            shift_l = jnp.dot(shift, gt_ref[...],
                              preferred_element_type=jnp.float32)
            z = z * scale_l + shift_l
        else:
            bias_ref = ins[pos]          # (1, Lpad); zero at pad lanes
            pos += 1
            z = z + bias_ref[...]

        if cfg["act"] == "leaky":
            z = jnp.where(z > 0, z, LEAKY_SLOPE * z)
        else:
            z = jax.nn.sigmoid(z)

        if cfg["is_last"]:
            out_ref[...] = z
        else:
            # Write into the interior rows of the next layer's padded layout.
            nxt = scratches[l]
            Ho = cfg["Ho"]
            Hp_next = cfg["Hp_next"]
            pn = cfg["pad_next"]
            for n in range(batch):
                nxt[pl.ds(n * Hp_next + pn, Ho), :] = z[n * Ho:(n + 1) * Ho, :]
            a = nxt[...]


# ---------------------------------------------------------------------------
# Host-side construction of the structured GEMM operands
# ---------------------------------------------------------------------------
def make_params(key, image_channels, hidden_channels):
    h = hidden_channels
    defs = [
        # (Cin, Cout, pad, has_bn, act)
        (image_channels, h,     1, False, "leaky"),
        (h,              2 * h, 1, True,  "leaky"),
        (2 * h,          4 * h, 1, True,  "leaky"),
        (4 * h,          8 * h, 1, True,  "leaky"),
        (8 * h,          1,     0, False, "sigmoid"),
    ]
    params = []
    for cin, cout, pad, has_bn, act in defs:
        key, kw, kb, kg, kbe = jax.random.split(key, 5)
        w = 0.02 * jax.random.normal(kw, (cout, cin, KSIZE, KSIZE), jnp.float32)
        b = 0.02 * jax.random.normal(kb, (cout,), jnp.float32)
        gamma = 1.0 + 0.1 * jax.random.normal(kg, (cout,), jnp.float32)
        beta = 0.1 * jax.random.normal(kbe, (cout,), jnp.float32)
        params.append(dict(w=w, b=b, gamma=gamma, beta=beta,
                           pad=pad, has_bn=has_bn, act=act))
    return params


def build_network_operands(params, batch, in_h, in_w, in_c):
    nlayers = len(params)

    # Geometry of each layer's (padded) input layout.
    layouts = []
    Hc, Wc, Cc = in_h, in_w, in_c
    for p in params:
        pad = p["pad"]
        Hp, Wp = Hc + 2 * pad, Wc + 2 * pad
        Ho = (Hp - KSIZE) // STRIDE + 1
        Wo = (Wp - KSIZE) // STRIDE + 1
        layouts.append(dict(pad=pad, Hp=Hp, Wp=Wp, C=Cc, Ho=Ho, Wo=Wo,
                            D=Wp * Cc, Dpad=_round_up(Wp * Cc, 128),
                            rows=batch * Hp,
                            rows_alloc=_round_up(batch * Hp, 8)))
        Hc, Wc, Cc = Ho, Wo, p["w"].shape[0]

    operands, cfgs, scratch_shapes = [], [], []
    for l, p in enumerate(params):
        L = layouts[l]
        W = np.asarray(p["w"], np.float32)            # (Cout, Cin, kh, kw)
        Cout, Cin = W.shape[0], W.shape[1]
        Hp, Wp, Ho, Wo = L["Hp"], L["Wp"], L["Ho"], L["Wo"]
        is_last = l == nlayers - 1
        pn = 0 if is_last else params[l + 1]["pad"]
        Wn = Wo + 2 * pn
        Lout = Wn * Cout
        Lpad = _round_up(Lout, 128)
        if not is_last:
            NL = layouts[l + 1]
            assert Lout == NL["D"] and Lpad == NL["Dpad"]

        R_out = batch * Ho

        # SH_i: row selection (picks input rows h = 2*oh + i, block-diag in n)
        SH = np.zeros((KSIZE, R_out, L["rows_alloc"]), np.float32)
        for i in range(KSIZE):
            for n in range(batch):
                for oh in range(Ho):
                    SH[i, n * Ho + oh, n * Hp + STRIDE * oh + i] = 1.0

        # BW_i: banded weight matrix.  Applies the 4 kernel columns + stride-2
        # width subsampling and maps directly into the NEXT layer's padded,
        # lane-flattened layout (pad lanes stay all-zero columns).
        BW = np.zeros((KSIZE, L["Dpad"], Lpad), np.float32)
        for i in range(KSIZE):
            for j in range(KSIZE):
                wij = W[:, :, i, j].T                 # (Cin, Cout)
                for ow in range(Wo):
                    w_in = STRIDE * ow + j
                    r0 = w_in * Cin
                    c0 = (ow + pn) * Cout
                    BW[i, r0:r0 + Cin, c0:c0 + Cout] = wij

        operands += [jnp.asarray(SH), jnp.asarray(BW)]

        if p["has_bn"]:
            G = np.zeros((Lpad, Cout), np.float32)
            for ow in range(Wo):
                for co in range(Cout):
                    G[(ow + pn) * Cout + co, co] = 1.0
            operands += [jnp.asarray(G),
                         jnp.asarray(np.ascontiguousarray(G.T)),
                         jnp.asarray(p["gamma"]).reshape(1, Cout),
                         jnp.asarray(p["beta"]).reshape(1, Cout)]
        else:
            bias_lane = np.zeros((1, Lpad), np.float32)
            b = np.asarray(p["b"], np.float32)
            for ow in range(Wo):
                c0 = (ow + pn) * Cout
                bias_lane[0, c0:c0 + Cout] = b
            operands.append(jnp.asarray(bias_lane))

        cfgs.append(dict(has_bn=p["has_bn"], act=p["act"], Ho=Ho, Wo=Wo,
                         R_out=R_out, Lpad=Lpad, pad_next=pn,
                         Hp_next=Ho + 2 * pn, M_valid=batch * Ho * Wo,
                         is_last=is_last))
        if not is_last:
            NL = layouts[l + 1]
            scratch_shapes.append((NL["rows_alloc"], NL["Dpad"]))

    return operands, cfgs, scratch_shapes, layouts[0]


def to_input_layout(x_nchw, layout0):
    # NCHW -> padded, channels-last, lane-flattened 2-D layout (one-time glue).
    N, C, H, W = x_nchw.shape
    pad = layout0["pad"]
    xp = jnp.pad(x_nchw, ((0, 0), (0, 0), (pad, pad), (pad, pad)))
    Hp, Wp = H + 2 * pad, W + 2 * pad
    a = jnp.transpose(xp, (0, 2, 3, 1)).reshape(N * Hp, Wp * C)
    return jnp.pad(a, ((0, layout0["rows_alloc"] - N * Hp),
                       (0, layout0["Dpad"] - Wp * C)))


# ---------------------------------------------------------------------------
# Forward pass: one pallas_call, everything VMEM-resident
# ---------------------------------------------------------------------------
def dc_discriminator_forward(x, operands, cfgs, scratch_shapes, layout0):
    batch = x.shape[0]
    a0 = to_input_layout(x, layout0)
    n_in = 1 + len(operands)
    kernel = functools.partial(_fused_dcdisc_kernel, cfgs=cfgs, n_in=n_in,
                               batch=batch)
    out = pl.pallas_call(
        kernel,
        out_shape=jax.ShapeDtypeStruct(
            (cfgs[-1]["R_out"], cfgs[-1]["Lpad"]), jnp.float32),
        in_specs=[pl.BlockSpec(memory_space=pltpu.MemorySpace.VMEM)] * n_in,
        out_specs=pl.BlockSpec(memory_space=pltpu.MemorySpace.VMEM),
        scratch_shapes=[pltpu.VMEM(s, jnp.float32) for s in scratch_shapes],
        compiler_params=pltpu.CompilerParams(
            vmem_limit_bytes=60 * 1024 * 1024),
    )(a0, *operands)
    # lane 0 holds the single sigmoid output channel; matches x.reshape(-1, 1)
    return out[:, :1]


# ---------------------------------------------------------------------------
# Pure-JAX reference (same semantics as the PyTorch module in train() mode)
# ---------------------------------------------------------------------------
def ref_forward(x, params):
    h = x
    for p in params:
        h = lax.conv_general_dilated(
            h, p["w"], window_strides=(STRIDE, STRIDE),
            padding=[(p["pad"], p["pad"]), (p["pad"], p["pad"])],
            dimension_numbers=("NCHW", "OIHW", "NCHW"),
            precision=lax.Precision.HIGHEST)
        h = h + p["b"].reshape(1, -1, 1, 1)
        if p["has_bn"]:
            mean = jnp.mean(h, axis=(0, 2, 3), keepdims=True)
            var = jnp.mean(jnp.square(h - mean), axis=(0, 2, 3), keepdims=True)
            h = (h - mean) * lax.rsqrt(var + BN_EPS)
            h = h * p["gamma"].reshape(1, -1, 1, 1) + p["beta"].reshape(1, -1, 1, 1)
        if p["act"] == "leaky":
            h = jnp.where(h > 0, h, LEAKY_SLOPE * h)
        else:
            h = jax.nn.sigmoid(h)
    return h.reshape(-1, 1)


if __name__ == "__main__":
    key = jax.random.PRNGKey(0)
    key, kx = jax.random.split(key)

    image_channels = 3
    hidden_channels = 8
    batch = 2
    # DCGAN geometry: 64 -> 32 -> 16 -> 8 -> 4 -> 1
    x = jax.random.normal(kx, (batch, image_channels, 64, 64), jnp.float32)

    params = make_params(key, image_channels, hidden_channels)
    operands, cfgs, scratch_shapes, layout0 = build_network_operands(
        params, batch, 64, 64, image_channels)

    out = dc_discriminator_forward(x, operands, cfgs, scratch_shapes, layout0)
    out = jax.block_until_ready(out)

    assert out.shape == (batch, 1), out.shape
    assert bool(jnp.all(jnp.isfinite(out)))
    assert bool(jnp.all((out > 0.0) & (out < 1.0)))   # sigmoid output

    ref = jax.block_until_ready(ref_forward(x, params))
    max_err = float(jnp.max(jnp.abs(out - ref)))
    assert max_err < 1e-2, f"mismatch vs reference: max|diff|={max_err}"

    print("KERNEL_OK")
</pallas_src>

<mosaic_0001>
module attributes {stable_mosaic.version = 11 : i64} {
  func.func @_fused_dcdisc_kernel(%arg0: memref<136x256xf32, #tpu.memory_space<vmem>>, %arg1: memref<4x64x136xf32, #tpu.memory_space<vmem>>, %arg2: memref<4x256x384xf32, #tpu.memory_space<vmem>>, %arg3: memref<1x384xf32, #tpu.memory_space<vmem>>, %arg4: memref<4x32x72xf32, #tpu.memory_space<vmem>>, %arg5: memref<4x384x384xf32, #tpu.memory_space<vmem>>, %arg6: memref<384x16xf32, #tpu.memory_space<vmem>>, %arg7: memref<16x384xf32, #tpu.memory_space<vmem>>, %arg8: memref<1x16xf32, #tpu.memory_space<vmem>>, %arg9: memref<1x16xf32, #tpu.memory_space<vmem>>, %arg10: memref<4x16x40xf32, #tpu.memory_space<vmem>>, %arg11: memref<4x384x384xf32, #tpu.memory_space<vmem>>, %arg12: memref<384x32xf32, #tpu.memory_space<vmem>>, %arg13: memref<32x384xf32, #tpu.memory_space<vmem>>, %arg14: memref<1x32xf32, #tpu.memory_space<vmem>>, %arg15: memref<1x32xf32, #tpu.memory_space<vmem>>, %arg16: memref<4x8x24xf32, #tpu.memory_space<vmem>>, %arg17: memref<4x384x256xf32, #tpu.memory_space<vmem>>, %arg18: memref<256x64xf32, #tpu.memory_space<vmem>>, %arg19: memref<64x256xf32, #tpu.memory_space<vmem>>, %arg20: memref<1x64xf32, #tpu.memory_space<vmem>>, %arg21: memref<1x64xf32, #tpu.memory_space<vmem>>, %arg22: memref<4x2x8xf32, #tpu.memory_space<vmem>>, %arg23: memref<4x256x128xf32, #tpu.memory_space<vmem>>, %arg24: memref<1x128xf32, #tpu.memory_space<vmem>>, %arg25: memref<2x128xf32, #tpu.memory_space<vmem>>, %arg26: memref<72x384xf32, #tpu.memory_space<vmem>>, %arg27: memref<40x384xf32, #tpu.memory_space<vmem>>, %arg28: memref<24x384xf32, #tpu.memory_space<vmem>>, %arg29: memref<8x256xf32, #tpu.memory_space<vmem>>) attributes {dimension_semantics = [], scalar_prefetch = 0 : i64, scratch_operands = 4 : i64, tpu.core_type = #tpu.core_type<tc>} {
    %cst = arith.constant 0.000000e+00 : f32
    %0 = vector.broadcast %cst : f32 to vector<72x384xf32>
    %c0 = arith.constant 0 : index
    %c0_0 = arith.constant 0 : index
    %1 = vector.load %arg26[%c0, %c0_0] : memref<72x384xf32, #tpu.memory_space<vmem>>, vector<72x384xf32>
    tpu.vector_store %arg26[%c0, %c0_0], %0 {strides = array<i32>} : memref<72x384xf32, #tpu.memory_space<vmem>>, vector<72x384xf32>,
    %cst_1 = arith.constant 0.000000e+00 : f32
    %2 = vector.broadcast %cst_1 : f32 to vector<40x384xf32>
    %c0_2 = arith.constant 0 : index
    %c0_3 = arith.constant 0 : index
    %3 = vector.load %arg27[%c0_2, %c0_3] : memref<40x384xf32, #tpu.memory_space<vmem>>, vector<40x384xf32>
    tpu.vector_store %arg27[%c0_2, %c0_3], %2 {strides = array<i32>} : memref<40x384xf32, #tpu.memory_space<vmem>>, vector<40x384xf32>,
    %cst_4 = arith.constant 0.000000e+00 : f32
    %4 = vector.broadcast %cst_4 : f32 to vector<24x384xf32>
    %c0_5 = arith.constant 0 : index
    %c0_6 = arith.constant 0 : index
    %5 = vector.load %arg28[%c0_5, %c0_6] : memref<24x384xf32, #tpu.memory_space<vmem>>, vector<24x384xf32>
    tpu.vector_store %arg28[%c0_5, %c0_6], %4 {strides = array<i32>} : memref<24x384xf32, #tpu.memory_space<vmem>>, vector<24x384xf32>,
    %cst_7 = arith.constant 0.000000e+00 : f32
    %6 = vector.broadcast %cst_7 : f32 to vector<8x256xf32>
    %c0_8 = arith.constant 0 : index
    %c0_9 = arith.constant 0 : index
    %7 = vector.load %arg29[%c0_8, %c0_9] : memref<8x256xf32, #tpu.memory_space<vmem>>, vector<8x256xf32>
    tpu.vector_store %arg29[%c0_8, %c0_9], %6 {strides = array<i32>} : memref<8x256xf32, #tpu.memory_space<vmem>>, vector<8x256xf32>,
    %c0_10 = arith.constant 0 : index
    %c0_11 = arith.constant 0 : index
    %8 = vector.load %arg0[%c0_10, %c0_11] : memref<136x256xf32, #tpu.memory_space<vmem>>, vector<136x256xf32>
    %cst_12 = arith.constant 0.000000e+00 : f32
    %9 = vector.broadcast %cst_12 : f32 to vector<64x384xf32>
    %c0_13 = arith.constant 0 : index
    %c0_14 = arith.constant 0 : index
    %c0_15 = arith.constant 0 : index
    %10 = vector.load %arg1[%c0_13, %c0_14, %c0_15] : memref<4x64x136xf32, #tpu.memory_space<vmem>>, vector<1x64x136xf32>
    %11 = vector.shape_cast %10 : vector<1x64x136xf32> to vector<64x136xf32>
    %cst_16 = arith.constant dense<0.000000e+00> : vector<64x256xf32>
    %12 = tpu.matmul %11, %8, %cst_16 {dimension_numbers = #tpu.dot_dimension_numbers<[1], [0], [0], [1], [0, 0, 1, 1], [], []>} : vector<64x136xf32>, vector<136x256xf32>, vector<64x256xf32> -> vector<64x256xf32>
    %c0_17 = arith.constant 0 : index
    %c0_18 = arith.constant 0 : index
    %c0_19 = arith.constant 0 : index
    %13 = vector.load %arg2[%c0_17, %c0_18, %c0_19] : memref<4x256x384xf32, #tpu.memory_space<vmem>>, vector<1x256x384xf32>
    %14 = vector.shape_cast %13 : vector<1x256x384xf32> to vector<256x384xf32>
    %cst_20 = arith.constant dense<0.000000e+00> : vector<64x384xf32>
    %15 = tpu.matmul %12, %14, %cst_20 {dimension_numbers = #tpu.dot_dimension_numbers<[1], [0], [0], [1], [0, 0, 1, 1], [], []>} : vector<64x256xf32>, vector<256x384xf32>, vector<64x384xf32> -> vector<64x384xf32>
    %16 = arith.addf %9, %15 : vector<64x384xf32>
    %c1 = arith.constant 1 : index
    %c0_21 = arith.constant 0 : index
    %c0_22 = arith.constant 0 : index
    %17 = vector.load %arg1[%c1, %c0_21, %c0_22] : memref<4x64x136xf32, #tpu.memory_space<vmem>>, vector<1x64x136xf32>
    %18 = vector.shape_cast %17 : vector<1x64x136xf32> to vector<64x136xf32>
    %cst_23 = arith.constant dense<0.000000e+00> : vector<64x256xf32>
    %19 = tpu.matmul %18, %8, %cst_23 {dimension_numbers = #tpu.dot_dimension_numbers<[1], [0], [0], [1], [0, 0, 1, 1], [], []>} : vector<64x136xf32>, vector<136x256xf32>, vector<64x256xf32> -> vector<64x256xf32>
    %c1_24 = arith.constant 1 : index
    %c0_25 = arith.constant 0 : index
    %c0_26 = arith.constant 0 : index
    %20 = vector.load %arg2[%c1_24, %c0_25, %c0_26] : memref<4x256x384xf32, #tpu.memory_space<vmem>>, vector<1x256x384xf32>
    %21 = vector.shape_cast %20 : vector<1x256x384xf32> to vector<256x384xf32>
    %cst_27 = arith.constant dense<0.000000e+00> : vector<64x384xf32>
    %22 = tpu.matmul %19, %21, %cst_27 {dimension_numbers = #tpu.dot_dimension_numbers<[1], [0], [0], [1], [0, 0, 1, 1], [], []>} : vector<64x256xf32>, vector<256x384xf32>, vector<64x384xf32> -> vector<64x384xf32>
    %23 = arith.addf %16, %22 : vector<64x384xf32>
    %c2 = arith.constant 2 : index
    %c0_28 = arith.constant 0 : index
    %c0_29 = arith.constant 0 : index
    %24 = vector.load %arg1[%c2, %c0_28, %c0_29] : memref<4x64x136xf32, #tpu.memory_space<vmem>>, vector<1x64x136xf32>
    %25 = vector.shape_cast %24 : vector<1x64x136xf32> to vector<64x136xf32>
    %cst_30 = arith.constant dense<0.000000e+00> : vector<64x256xf32>
    %26 = tpu.matmul %25, %8, %cst_30 {dimension_numbers = #tpu.dot_dimension_numbers<[1], [0], [0], [1], [0, 0, 1, 1], [], []>} : vector<64x136xf32>, vector<136x256xf32>, vector<64x256xf32> -> vector<64x256xf32>
    %c2_31 = arith.constant 2 : index
    %c0_32 = arith.constant 0 : index
    %c0_33 = arith.constant 0 : index
    %27 = vector.load %arg2[%c2_31, %c0_32, %c0_33] : memref<4x256x384xf32, #tpu.memory_space<vmem>>, vector<1x256x384xf32>
    %28 = vector.shape_cast %27 : vector<1x256x384xf32> to vector<256x384xf32>
    %cst_34 = arith.constant dense<0.000000e+00> : vector<64x384xf32>
    %29 = tpu.matmul %26, %28, %cst_34 {dimension_numbers = #tpu.dot_dimension_numbers<[1], [0], [0], [1], [0, 0, 1, 1], [], []>} : vector<64x256xf32>, vector<256x384xf32>, vector<64x384xf32> -> vector<64x384xf32>
    %30 = arith.addf %23, %29 : vector<64x384xf32>
    %c3 = arith.constant 3 : index
    %c0_35 = arith.constant 0 : index
    %c0_36 = arith.constant 0 : index
    %31 = vector.load %arg1[%c3, %c0_35, %c0_36] : memref<4x64x136xf32, #tpu.memory_space<vmem>>, vector<1x64x136xf32>
    %32 = vector.shape_cast %31 : vector<1x64x136xf32> to vector<64x136xf32>
    %cst_37 = arith.constant dense<0.000000e+00> : vector<64x256xf32>
    %33 = tpu.matmul %32, %8, %cst_37 {dimension_numbers = #tpu.dot_dimension_numbers<[1], [0], [0], [1], [0, 0, 1, 1], [], []>} : vector<64x136xf32>, vector<136x256xf32>, vector<64x256xf32> -> vector<64x256xf32>
    %c3_38 = arith.constant 3 : index
    %c0_39 = arith.constant 0 : index
    %c0_40 = arith.constant 0 : index
    %34 = vector.load %arg2[%c3_38, %c0_39, %c0_40] : memref<4x256x384xf32, #tpu.memory_space<vmem>>, vector<1x256x384xf32>
    %35 = vector.shape_cast %34 : vector<1x256x384xf32> to vector<256x384xf32>
    %cst_41 = arith.constant dense<0.000000e+00> : vector<64x384xf32>
    %36 = tpu.matmul %33, %35, %cst_41 {dimension_numbers = #tpu.dot_dimension_numbers<[1], [0], [0], [1], [0, 0, 1, 1], [], []>} : vector<64x256xf32>, vector<256x384xf32>, vector<64x384xf32> -> vector<64x384xf32>
    %37 = arith.addf %30, %36 : vector<64x384xf32>
    %c0_42 = arith.constant 0 : index
    %c0_43 = arith.constant 0 : index
    %38 = vector.load %arg3[%c0_42, %c0_43] : memref<1x384xf32, #tpu.memory_space<vmem>>, vector<1x384xf32>
    %39 = vector.broadcast %38 : vector<1x384xf32> to vector<64x384xf32>
    %40 = arith.addf %37, %39 : vector<64x384xf32>
    %cst_44 = arith.constant 0.000000e+00 : f32
    %41 = vector.broadcast %cst_44 : f32 to vector<64x384xf32>
    %42 = arith.cmpf ogt, %40, %41 : vector<64x384xf32>
    %cst_45 = arith.constant 0.00999999977 : f32
    %43 = vector.broadcast %cst_45 : f32 to vector<64x384xf32>
    %44 = arith.mulf %43, %40 : vector<64x384xf32>
    %45 = arith.select %42, %40, %44 : vector<64x384xi1>, vector<64x384xf32>
    %46 = vector.extract_strided_slice %45 {offsets = [0, 0], sizes = [32, 384], strides = [1, 1]} : vector<64x384xf32> to vector<32x384xf32>
    %c1_46 = arith.constant 1 : index
    %c0_47 = arith.constant 0 : index
    %47 = vector.load %arg26[%c1_46, %c0_47] : memref<72x384xf32, #tpu.memory_space<vmem>>, vector<32x384xf32>
    tpu.vector_store %arg26[%c1_46, %c0_47], %46 {strides = array<i32>} : memref<72x384xf32, #tpu.memory_space<vmem>>, vector<32x384xf32>,
    %48 = vector.extract_strided_slice %45 {offsets = [32, 0], sizes = [32, 384], strides = [1, 1]} : vector<64x384xf32> to vector<32x384xf32>
    %c35 = arith.constant 35 : index
    %c0_48 = arith.constant 0 : index
    %49 = vector.load %arg26[%c35, %c0_48] : memref<72x384xf32, #tpu.memory_space<vmem>>, vector<32x384xf32>
    tpu.vector_store %arg26[%c35, %c0_48], %48 {strides = array<i32>} : memref<72x384xf32, #tpu.memory_space<vmem>>, vector<32x384xf32>,
    %c0_49 = arith.constant 0 : index
    %c0_50 = arith.constant 0 : index
    %50 = vector.load %arg26[%c0_49, %c0_50] : memref<72x384xf32, #tpu.memory_space<vmem>>, vector<72x384xf32>
    %cst_51 = arith.constant 0.000000e+00 : f32
    %51 = vector.broadcast %cst_51 : f32 to vector<32x384xf32>
    %c0_52 = arith.constant 0 : index
    %c0_53 = arith.constant 0 : index
    %c0_54 = arith.constant 0 : index
    %52 = vector.load %arg4[%c0_52, %c0_53, %c0_54] : memref<4x32x72xf32, #tpu.memory_space<vmem>>, vector<1x32x72xf32>
    %53 = vector.shape_cast %52 : vector<1x32x72xf32> to vector<32x72xf32>
    %cst_55 = arith.constant dense<0.000000e+00> : vector<32x384xf32>
    %54 = tpu.matmul %53, %50, %cst_55 {dimension_numbers = #tpu.dot_dimension_numbers<[1], [0], [0], [1], [0, 0, 1, 1], [], []>} : vector<32x72xf32>, vector<72x384xf32>, vector<32x384xf32> -> vector<32x384xf32>
    %c0_56 = arith.constant 0 : index
    %c0_57 = arith.constant 0 : index
    %c0_58 = arith.constant 0 : index
    %55 = vector.load %arg5[%c0_56, %c0_57, %c0_58] : memref<4x384x384xf32, #tpu.memory_space<vmem>>, vector<1x384x384xf32>
    %56 = vector.shape_cast %55 : vector<1x384x384xf32> to vector<384x384xf32>
    %cst_59 = arith.constant dense<0.000000e+00> : vector<32x384xf32>
    %57 = tpu.matmul %54, %56, %cst_59 {dimension_numbers = #tpu.dot_dimension_numbers<[1], [0], [0], [1], [0, 0, 1, 1], [], []>} : vector<32x384xf32>, vector<384x384xf32>, vector<32x384xf32> -> vector<32x384xf32>
    %58 = arith.addf %51, %57 : vector<32x384xf32>
    %c1_60 = arith.constant 1 : index
    %c0_61 = arith.constant 0 : index
    %c0_62 = arith.constant 0 : index
    %59 = vector.load %arg4[%c1_60, %c0_61, %c0_62] : memref<4x32x72xf32, #tpu.memory_space<vmem>>, vector<1x32x72xf32>
    %60 = vector.shape_cast %59 : vector<1x32x72xf32> to vector<32x72xf32>
    %cst_63 = arith.constant dense<0.000000e+00> : vector<32x384xf32>
    %61 = tpu.matmul %60, %50, %cst_63 {dimension_numbers = #tpu.dot_dimension_numbers<[1], [0], [0], [1], [0, 0, 1, 1], [], []>} : vector<32x72xf32>, vector<72x384xf32>, vector<32x384xf32> -> vector<32x384xf32>
    %c1_64 = arith.constant 1 : index
    %c0_65 = arith.constant 0 : index
    %c0_66 = arith.constant 0 : index
    %62 = vector.load %arg5[%c1_64, %c0_65, %c0_66] : memref<4x384x384xf32, #tpu.memory_space<vmem>>, vector<1x384x384xf32>
    %63 = vector.shape_cast %62 : vector<1x384x384xf32> to vector<384x384xf32>
    %cst_67 = arith.constant dense<0.000000e+00> : vector<32x384xf32>
    %64 = tpu.matmul %61, %63, %cst_67 {dimension_numbers = #tpu.dot_dimension_numbers<[1], [0], [0], [1], [0, 0, 1, 1], [], []>} : vector<32x384xf32>, vector<384x384xf32>, vector<32x384xf32> -> vector<32x384xf32>
    %65 = arith.addf %58, %64 : vector<32x384xf32>
    %c2_68 = arith.constant 2 : index
    %c0_69 = arith.constant 0 : index
    %c0_70 = arith.constant 0 : index
    %66 = vector.load %arg4[%c2_68, %c0_69, %c0_70] : memref<4x32x72xf32, #tpu.memory_space<vmem>>, vector<1x32x72xf32>
    %67 = vector.shape_cast %66 : vector<1x32x72xf32> to vector<32x72xf32>
    %cst_71 = arith.constant dense<0.000000e+00> : vector<32x384xf32>
    %68 = tpu.matmul %67, %50, %cst_71 {dimension_numbers = #tpu.dot_dimension_numbers<[1], [0], [0], [1], [0, 0, 1, 1], [], []>} : vector<32x72xf32>, vector<72x384xf32>, vector<32x384xf32> -> vector<32x384xf32>
    %c2_72 = arith.constant 2 : index
    %c0_73 = arith.constant 0 : index
    %c0_74 = arith.constant 0 : index
    %69 = vector.load %arg5[%c2_72, %c0_73, %c0_74] : memref<4x384x384xf32, #tpu.memory_space<vmem>>, vector<1x384x384xf32>
    %70 = vector.shape_cast %69 : vector<1x384x384xf32> to vector<384x384xf32>
    %cst_75 = arith.constant dense<0.000000e+00> : vector<32x384xf32>
    %71 = tpu.matmul %68, %70, %cst_75 {dimension_numbers = #tpu.dot_dimension_numbers<[1], [0], [0], [1], [0, 0, 1, 1], [], []>} : vector<32x384xf32>, vector<384x384xf32>, vector<32x384xf32> -> vector<32x384xf32>
    %72 = arith.addf %65, %71 : vector<32x384xf32>
    %c3_76 = arith.constant 3 : index
    %c0_77 = arith.constant 0 : index
    %c0_78 = arith.constant 0 : index
    %73 = vector.load %arg4[%c3_76, %c0_77, %c0_78] : memref<4x32x72xf32, #tpu.memory_space<vmem>>, vector<1x32x72xf32>
    %74 = vector.shape_cast %73 : vector<1x32x72xf32> to vector<32x72xf32>
    %cst_79 = arith.constant dense<0.000000e+00> : vector<32x384xf32>
    %75 = tpu.matmul %74, %50, %cst_79 {dimension_numbers = #tpu.dot_dimension_numbers<[1], [0], [0], [1], [0, 0, 1, 1], [], []>} : vector<32x72xf32>, vector<72x384xf32>, vector<32x384xf32> -> vector<32x384xf32>
    %c3_80 = arith.constant 3 : index
    %c0_81 = arith.constant 0 : index
    %c0_82 = arith.constant 0 : index
    %76 = vector.load %arg5[%c3_80, %c0_81, %c0_82] : memref<4x384x384xf32, #tpu.memory_space<vmem>>, vector<1x384x384xf32>
    %77 = vector.shape_cast %76 : vector<1x384x384xf32> to vector<384x384xf32>
    %cst_83 = arith.constant dense<0.000000e+00> : vector<32x384xf32>
    %78 = tpu.matmul %75, %77, %cst_83 {dimension_numbers = #tpu.dot_dimension_numbers<[1], [0], [0], [1], [0, 0, 1, 1], [], []>} : vector<32x384xf32>, vector<384x384xf32>, vector<32x384xf32> -> vector<32x384xf32>
    %79 = arith.addf %72, %78 : vector<32x384xf32>
    %cst_84 = arith.constant dense<0.000000e+00> : vector<384xf32>
    %80 = vector.multi_reduction <add>, %79, %cst_84 [0] : vector<32x384xf32> to vector<384xf32>
    %81 = vector.shape_cast %80 : vector<384xf32> to vector<1x384xf32>
    %82 = arith.mulf %79, %79 : vector<32x384xf32>
    %cst_85 = arith.constant dense<0.000000e+00> : vector<384xf32>
    %83 = vector.multi_reduction <add>, %82, %cst_85 [0] : vector<32x384xf32> to vector<384xf32>
    %84 = vector.shape_cast %83 : vector<384xf32> to vector<1x384xf32>
    %c0_86 = arith.constant 0 : index
    %c0_87 = arith.constant 0 : index
    %85 = vector.load %arg6[%c0_86, %c0_87] : memref<384x16xf32, #tpu.memory_space<vmem>>, vector<384x16xf32>
    %cst_88 = arith.constant dense<0.000000e+00> : vector<1x16xf32>
    %86 = tpu.matmul %81, %85, %cst_88 {dimension_numbers = #tpu.dot_dimension_numbers<[1], [0], [0], [1], [0, 0, 1, 1], [], []>} : vector<1x384xf32>, vector<384x16xf32>, vector<1x16xf32> -> vector<1x16xf32>
    %c0_89 = arith.constant 0 : index
    %c0_90 = arith.constant 0 : index
    %87 = vector.load %arg6[%c0_89, %c0_90] : memref<384x16xf32, #tpu.memory_space<vmem>>, vector<384x16xf32>
    %cst_91 = arith.constant dense<0.000000e+00> : vector<1x16xf32>
    %88 = tpu.matmul %84, %87, %cst_91 {dimension_numbers = #tpu.dot_dimension_numbers<[1], [0], [0], [1], [0, 0, 1, 1], [], []>} : vector<1x384xf32>, vector<384x16xf32>, vector<1x16xf32> -> vector<1x16xf32>
    %cst_92 = arith.constant 5.120000e+02 : f32
    %89 = vector.broadcast %cst_92 : f32 to vector<1x16xf32>
    %90 = arith.divf %86, %89 : vector<1x16xf32>
    %cst_93 = arith.constant 5.120000e+02 : f32
    %91 = vector.broadcast %cst_93 : f32 to vector<1x16xf32>
    %92 = arith.divf %88, %91 : vector<1x16xf32>
    %93 = arith.mulf %90, %90 : vector<1x16xf32>
    %94 = arith.subf %92, %93 : vector<1x16xf32>
    %cst_94 = arith.constant 0.000000e+00 : f32
    %95 = vector.broadcast %cst_94 : f32 to vector<1x16xf32>
    %96 = arith.maximumf %94, %95 : vector<1x16xf32>
    %c0_95 = arith.constant 0 : index
    %c0_96 = arith.constant 0 : index
    %97 = vector.load %arg8[%c0_95, %c0_96] : memref<1x16xf32, #tpu.memory_space<vmem>>, vector<1x16xf32>
    %cst_97 = arith.constant 9.99999974E-6 : f32
    %98 = vector.broadcast %cst_97 : f32 to vector<1x16xf32>
    %99 = arith.addf %96, %98 : vector<1x16xf32>
    %100 = math.rsqrt %99 : vector<1x16xf32>
    %101 = arith.mulf %97, %100 : vector<1x16xf32>
    %c0_98 = arith.constant 0 : index
    %c0_99 = arith.constant 0 : index
    %102 = vector.load %arg9[%c0_98, %c0_99] : memref<1x16xf32, #tpu.memory_space<vmem>>, vector<1x16xf32>
    %103 = arith.mulf %90, %101 : vector<1x16xf32>
    %104 = arith.subf %102, %103 : vector<1x16xf32>
    %c0_100 = arith.constant 0 : index
    %c0_101 = arith.constant 0 : index
    %105 = vector.load %arg7[%c0_100, %c0_101] : memref<16x384xf32, #tpu.memory_space<vmem>>, vector<16x384xf32>
    %cst_102 = arith.constant dense<0.000000e+00> : vector<1x384xf32>
    %106 = tpu.matmul %101, %105, %cst_102 {dimension_numbers = #tpu.dot_dimension_numbers<[1], [0], [0], [1], [0, 0, 1, 1], [], []>} : vector<1x16xf32>, vector<16x384xf32>, vector<1x384xf32> -> vector<1x384xf32>
    %c0_103 = arith.constant 0 : index
    %c0_104 = arith.constant 0 : index
    %107 = vector.load %arg7[%c0_103, %c0_104] : memref<16x384xf32, #tpu.memory_space<vmem>>, vector<16x384xf32>
    %cst_105 = arith.constant dense<0.000000e+00> : vector<1x384xf32>
    %108 = tpu.matmul %104, %107, %cst_105 {dimension_numbers = #tpu.dot_dimension_numbers<[1], [0], [0], [1], [0, 0, 1, 1], [], []>} : vector<1x16xf32>, vector<16x384xf32>, vector<1x384xf32> -> vector<1x384xf32>
    %109 = vector.broadcast %106 : vector<1x384xf32> to vector<32x384xf32>
    %110 = arith.mulf %79, %109 : vector<32x384xf32>
    %111 = vector.broadcast %108 : vector<1x384xf32> to vector<32x384xf32>
    %112 = arith.addf %110, %111 : vector<32x384xf32>
    %cst_106 = arith.constant 0.000000e+00 : f32
    %113 = vector.broadcast %cst_106 : f32 to vector<32x384xf32>
    %114 = arith.cmpf ogt, %112, %113 : vector<32x384xf32>
    %cst_107 = arith.constant 0.00999999977 : f32
    %115 = vector.broadcast %cst_107 : f32 to vector<32x384xf32>
    %116 = arith.mulf %115, %112 : vector<32x384xf32>
    %117 = arith.select %114, %112, %116 : vector<32x384xi1>, vector<32x384xf32>
    %118 = vector.extract_strided_slice %117 {offsets = [0, 0], sizes = [16, 384], strides = [1, 1]} : vector<32x384xf32> to vector<16x384xf32>
    %c1_108 = arith.constant 1 : index
    %c0_109 = arith.constant 0 : index
    %119 = vector.load %arg27[%c1_108, %c0_109] : memref<40x384xf32, #tpu.memory_space<vmem>>, vector<16x384xf32>
    tpu.vector_store %arg27[%c1_108, %c0_109], %118 {strides = array<i32>} : memref<40x384xf32, #tpu.memory_space<vmem>>, vector<16x384xf32>,
    %120 = vector.extract_strided_slice %117 {offsets = [16, 0], sizes = [16, 384], strides = [1, 1]} : vector<32x384xf32> to vector<16x384xf32>
    %c19 = arith.constant 19 : index
    %c0_110 = arith.constant 0 : index
    %121 = vector.load %arg27[%c19, %c0_110] : memref<40x384xf32, #tpu.memory_space<vmem>>, vector<16x384xf32>
    tpu.vector_store %arg27[%c19, %c0_110], %120 {strides = array<i32>} : memref<40x384xf32, #tpu.memory_space<vmem>>, vector<16x384xf32>,
    %c0_111 = arith.constant 0 : index
    %c0_112 = arith.constant 0 : index
    %122 = vector.load %arg27[%c0_111, %c0_112] : memref<40x384xf32, #tpu.memory_space<vmem>>, vector<40x384xf32>
    %cst_113 = arith.constant 0.000000e+00 : f32
    %123 = vector.broadcast %cst_113 : f32 to vector<16x384xf32>
    %c0_114 = arith.constant 0 : index
    %c0_115 = arith.constant 0 : index
    %c0_116 = arith.constant 0 : index
    %124 = vector.load %arg10[%c0_114, %c0_115, %c0_116] : memref<4x16x40xf32, #tpu.memory_space<vmem>>, vector<1x16x40xf32>
    %125 = vector.shape_cast %124 : vector<1x16x40xf32> to vector<16x40xf32>
    %cst_117 = arith.constant dense<0.000000e+00> : vector<16x384xf32>
    %126 = tpu.matmul %125, %122, %cst_117 {dimension_numbers = #tpu.dot_dimension_numbers<[1], [0], [0], [1], [0, 0, 1, 1], [], []>} : vector<16x40xf32>, vector<40x384xf32>, vector<16x384xf32> -> vector<16x384xf32>
    %c0_118 = arith.constant 0 : index
    %c0_119 = arith.constant 0 : index
    %c0_120 = arith.constant 0 : index
    %127 = vector.load %arg11[%c0_118, %c0_119, %c0_120] : memref<4x384x384xf32, #tpu.memory_space<vmem>>, vector<1x384x384xf32>
    %128 = vector.shape_cast %127 : vector<1x384x384xf32> to vector<384x384xf32>
    %cst_121 = arith.constant dense<0.000000e+00> : vector<16x384xf32>
    %129 = tpu.matmul %126, %128, %cst_121 {dimension_numbers = #tpu.dot_dimension_numbers<[1], [0], [0], [1], [0, 0, 1, 1], [], []>} : vector<16x384xf32>, vector<384x384xf32>, vector<16x384xf32> -> vector<16x384xf32>
    %130 = arith.addf %123, %129 : vector<16x384xf32>
    %c1_122 = arith.constant 1 : index
    %c0_123 = arith.constant 0 : index
    %c0_124 = arith.constant 0 : index
    %131 = vector.load %arg10[%c1_122, %c0_123, %c0_124] : memref<4x16x40xf32, #tpu.memory_space<vmem>>, vector<1x16x40xf32>
    %132 = vector.shape_cast %131 : vector<1x16x40xf32> to vector<16x40xf32>
    %cst_125 = arith.constant dense<0.000000e+00> : vector<16x384xf32>
    %133 = tpu.matmul %132, %122, %cst_125 {dimension_numbers = #tpu.dot_dimension_numbers<[1], [0], [0], [1], [0, 0, 1, 1], [], []>} : vector<16x40xf32>, vector<40x384xf32>, vector<16x384xf32> -> vector<16x384xf32>
    %c1_126 = arith.constant 1 : index
    %c0_127 = arith.constant 0 : index
    %c0_128 = arith.constant 0 : index
    %134 = vector.load %arg11[%c1_126, %c0_127, %c0_128] : memref<4x384x384xf32, #tpu.memory_space<vmem>>, vector<1x384x384xf32>
    %135 = vector.shape_cast %134 : vector<1x384x384xf32> to vector<384x384xf32>
    %cst_129 = arith.constant dense<0.000000e+00> : vector<16x384xf32>
    %136 = tpu.matmul %133, %135, %cst_129 {dimension_numbers = #tpu.dot_dimension_numbers<[1], [0], [0], [1], [0, 0, 1, 1], [], []>} : vector<16x384xf32>, vector<384x384xf32>, vector<16x384xf32> -> vector<16x384xf32>
    %137 = arith.addf %130, %136 : vector<16x384xf32>
    %c2_130 = arith.constant 2 : index
    %c0_131 = arith.constant 0 : index
    %c0_132 = arith.constant 0 : index
    %138 = vector.load %arg10[%c2_130, %c0_131, %c0_132] : memref<4x16x40xf32, #tpu.memory_space<vmem>>, vector<1x16x40xf32>
    %139 = vector.shape_cast %138 : vector<1x16x40xf32> to vector<16x40xf32>
    %cst_133 = arith.constant dense<0.000000e+00> : vector<16x384xf32>
    %140 = tpu.matmul %139, %122, %cst_133 {dimension_numbers = #tpu.dot_dimension_numbers<[1], [0], [0], [1], [0, 0, 1, 1], [], []>} : vector<16x40xf32>, vector<40x384xf32>, vector<16x384xf32> -> vector<16x384xf32>
    %c2_134 = arith.constant 2 : index
    %c0_135 = arith.constant 0 : index
    %c0_136 = arith.constant 0 : index
    %141 = vector.load %arg11[%c2_134, %c0_135, %c0_136] : memref<4x384x384xf32, #tpu.memory_space<vmem>>, vector<1x384x384xf32>
    %142 = vector.shape_cast %141 : vector<1x384x384xf32> to vector<384x384xf32>
    %cst_137 = arith.constant dense<0.000000e+00> : vector<16x384xf32>
    %143 = tpu.matmul %140, %142, %cst_137 {dimension_numbers = #tpu.dot_dimension_numbers<[1], [0], [0], [1], [0, 0, 1, 1], [], []>} : vector<16x384xf32>, vector<384x384xf32>, vector<16x384xf32> -> vector<16x384xf32>
    %144 = arith.addf %137, %143 : vector<16x384xf32>
    %c3_138 = arith.constant 3 : index
    %c0_139 = arith.constant 0 : index
    %c0_140 = arith.constant 0 : index
    %145 = vector.load %arg10[%c3_138, %c0_139, %c0_140] : memref<4x16x40xf32, #tpu.memory_space<vmem>>, vector<1x16x40xf32>
    %146 = vector.shape_cast %145 : vector<1x16x40xf32> to vector<16x40xf32>
    %cst_141 = arith.constant dense<0.000000e+00> : vector<16x384xf32>
    %147 = tpu.matmul %146, %122, %cst_141 {dimension_numbers = #tpu.dot_dimension_numbers<[1], [0], [0], [1], [0, 0, 1, 1], [], []>} : vector<16x40xf32>, vector<40x384xf32>, vector<16x384xf32> -> vector<16x384xf32>
    %c3_142 = arith.constant 3 : index
    %c0_143 = arith.constant 0 : index
    %c0_144 = arith.constant 0 : index
    %148 = vector.load %arg11[%c3_142, %c0_143, %c0_144] : memref<4x384x384xf32, #tpu.memory_space<vmem>>, vector<1x384x384xf32>
    %149 = vector.shape_cast %148 : vector<1x384x384xf32> to vector<384x384xf32>
    %cst_145 = arith.constant dense<0.000000e+00> : vector<16x384xf32>
    %150 = tpu.matmul %147, %149, %cst_145 {dimension_numbers = #tpu.dot_dimension_numbers<[1], [0], [0], [1], [0, 0, 1, 1], [], []>} : vector<16x384xf32>, vector<384x384xf32>, vector<16x384xf32> -> vector<16x384xf32>
    %151 = arith.addf %144, %150 : vector<16x384xf32>
    %cst_146 = arith.constant dense<0.000000e+00> : vector<384xf32>
    %152 = vector.multi_reduction <add>, %151, %cst_146 [0] : vector<16x384xf32> to vector<384xf32>
    %153 = vector.shape_cast %152 : vector<384xf32> to vector<1x384xf32>
    %154 = arith.mulf %151, %151 : vector<16x384xf32>
    %cst_147 = arith.constant dense<0.000000e+00> : vector<384xf32>
    %155 = vector.multi_reduction <add>, %154, %cst_147 [0] : vector<16x384xf32> to vector<384xf32>
    %156 = vector.shape_cast %155 : vector<384xf32> to vector<1x384xf32>
    %c0_148 = arith.constant 0 : index
    %c0_149 = arith.constant 0 : index
    %157 = vector.load %arg12[%c0_148, %c0_149] : memref<384x32xf32, #tpu.memory_space<vmem>>, vector<384x32xf32>
    %cst_150 = arith.constant dense<0.000000e+00> : vector<1x32xf32>
    %158 = tpu.matmul %153, %157, %cst_150 {dimension_numbers = #tpu.dot_dimension_numbers<[1], [0], [0], [1], [0, 0, 1, 1], [], []>} : vector<1x384xf32>, vector<384x32xf32>, vector<1x32xf32> -> vector<1x32xf32>
    %c0_151 = arith.constant 0 : index
    %c0_152 = arith.constant 0 : index
    %159 = vector.load %arg12[%c0_151, %c0_152] : memref<384x32xf32, #tpu.memory_space<vmem>>, vector<384x32xf32>
    %cst_153 = arith.constant dense<0.000000e+00> : vector<1x32xf32>
    %160 = tpu.matmul %156, %159, %cst_153 {dimension_numbers = #tpu.dot_dimension_numbers<[1], [0], [0], [1], [0, 0, 1, 1], [], []>} : vector<1x384xf32>, vector<384x32xf32>, vector<1x32xf32> -> vector<1x32xf32>
    %cst_154 = arith.constant 1.280000e+02 : f32
    %161 = vector.broadcast %cst_154 : f32 to vector<1x32xf32>
    %162 = arith.divf %158, %161 : vector<1x32xf32>
    %cst_155 = arith.constant 1.280000e+02 : f32
    %163 = vector.broadcast %cst_155 : f32 to vector<1x32xf32>
    %164 = arith.divf %160, %163 : vector<1x32xf32>
    %165 = arith.mulf %162, %162 : vector<1x32xf32>
    %166 = arith.subf %164, %165 : vector<1x32xf32>
    %cst_156 = arith.constant 0.000000e+00 : f32
    %167 = vector.broadcast %cst_156 : f32 to vector<1x32xf32>
    %168 = arith.maximumf %166, %167 : vector<1x32xf32>
    %c0_157 = arith.constant 0 : index
    %c0_158 = arith.constant 0 : index
    %169 = vector.load %arg14[%c0_157, %c0_158] : memref<1x32xf32, #tpu.memory_space<vmem>>, vector<1x32xf32>
    %cst_159 = arith.constant 9.99999974E-6 : f32
    %170 = vector.broadcast %cst_159 : f32 to vector<1x32xf32>
    %171 = arith.addf %168, %170 : vector<1x32xf32>
    %172 = math.rsqrt %171 : vector<1x32xf32>
    %173 = arith.mulf %169, %172 : vector<1x32xf32>
    %c0_160 = arith.constant 0 : index
    %c0_161 = arith.constant 0 : index
    %174 = vector.load %arg15[%c0_160, %c0_161] : memref<1x32xf32, #tpu.memory_space<vmem>>, vector<1x32xf32>
    %175 = arith.mulf %162, %173 : vector<1x32xf32>
    %176 = arith.subf %174, %175 : vector<1x32xf32>
    %c0_162 = arith.constant 0 : index
    %c0_163 = arith.constant 0 : index
    %177 = vector.load %arg13[%c0_162, %c0_163] : memref<32x384xf32, #tpu.memory_space<vmem>>, vector<32x384xf32>
    %cst_164 = arith.constant dense<0.000000e+00> : vector<1x384xf32>
    %178 = tpu.matmul %173, %177, %cst_164 {dimension_numbers = #tpu.dot_dimension_numbers<[1], [0], [0], [1], [0, 0, 1, 1], [], []>} : vector<1x32xf32>, vector<32x384xf32>, vector<1x384xf32> -> vector<1x384xf32>
    %c0_165 = arith.constant 0 : index
    %c0_166 = arith.constant 0 : index
    %179 = vector.load %arg13[%c0_165, %c0_166] : memref<32x384xf32, #tpu.memory_space<vmem>>, vector<32x384xf32>
    %cst_167 = arith.constant dense<0.000000e+00> : vector<1x384xf32>
    %180 = tpu.matmul %176, %179, %cst_167 {dimension_numbers = #tpu.dot_dimension_numbers<[1], [0], [0], [1], [0, 0, 1, 1], [], []>} : vector<1x32xf32>, vector<32x384xf32>, vector<1x384xf32> -> vector<1x384xf32>
    %181 = vector.broadcast %178 : vector<1x384xf32> to vector<16x384xf32>
    %182 = arith.mulf %151, %181 : vector<16x384xf32>
    %183 = vector.broadcast %180 : vector<1x384xf32> to vector<16x384xf32>
    %184 = arith.addf %182, %183 : vector<16x384xf32>
    %cst_168 = arith.constant 0.000000e+00 : f32
    %185 = vector.broadcast %cst_168 : f32 to vector<16x384xf32>
    %186 = arith.cmpf ogt, %184, %185 : vector<16x384xf32>
    %cst_169 = arith.constant 0.00999999977 : f32
    %187 = vector.broadcast %cst_169 : f32 to vector<16x384xf32>
    %188 = arith.mulf %187, %184 : vector<16x384xf32>
    %189 = arith.select %186, %184, %188 : vector<16x384xi1>, vector<16x384xf32>
    %190 = vector.extract_strided_slice %189 {offsets = [0, 0], sizes = [8, 384], strides = [1, 1]} : vector<16x384xf32> to vector<8x384xf32>
    %c1_170 = arith.constant 1 : index
    %c0_171 = arith.constant 0 : index
    %191 = vector.load %arg28[%c1_170, %c0_171] : memref<24x384xf32, #tpu.memory_space<vmem>>, vector<8x384xf32>
    tpu.vector_store %arg28[%c1_170, %c0_171], %190 {strides = array<i32>} : memref<24x384xf32, #tpu.memory_space<vmem>>, vector<8x384xf32>,
    %192 = vector.extract_strided_slice %189 {offsets = [8, 0], sizes = [8, 384], strides = [1, 1]} : vector<16x384xf32> to vector<8x384xf32>
    %c11 = arith.constant 11 : index
    %c0_172 = arith.constant 0 : index
    %193 = vector.load %arg28[%c11, %c0_172] : memref<24x384xf32, #tpu.memory_space<vmem>>, vector<8x384xf32>
    tpu.vector_store %arg28[%c11, %c0_172], %192 {strides = array<i32>} : memref<24x384xf32, #tpu.memory_space<vmem>>, vector<8x384xf32>,
    %c0_173 = arith.constant 0 : index
    %c0_174 = arith.constant 0 : index
    %194 = vector.load %arg28[%c0_173, %c0_174] : memref<24x384xf32, #tpu.memory_space<vmem>>, vector<24x384xf32>
    %cst_175 = arith.constant 0.000000e+00 : f32
    %195 = vector.broadcast %cst_175 : f32 to vector<8x256xf32>
    %c0_176 = arith.constant 0 : index
    %c0_177 = arith.constant 0 : index
    %c0_178 = arith.constant 0 : index
    %196 = vector.load %arg16[%c0_176, %c0_177, %c0_178] : memref<4x8x24xf32, #tpu.memory_space<vmem>>, vector<1x8x24xf32>
    %197 = vector.shape_cast %196 : vector<1x8x24xf32> to vector<8x24xf32>
    %cst_179 = arith.constant dense<0.000000e+00> : vector<8x384xf32>
    %198 = tpu.matmul %197, %194, %cst_179 {dimension_numbers = #tpu.dot_dimension_numbers<[1], [0], [0], [1], [0, 0, 1, 1], [], []>} : vector<8x24xf32>, vector<24x384xf32>, vector<8x384xf32> -> vector<8x384xf32>
    %c0_180 = arith.constant 0 : index
    %c0_181 = arith.constant 0 : index
    %c0_182 = arith.constant 0 : index
    %199 = vector.load %arg17[%c0_180, %c0_181, %c0_182] : memref<4x384x256xf32, #tpu.memory_space<vmem>>, vector<1x384x256xf32>
    %200 = vector.shape_cast %199 : vector<1x384x256xf32> to vector<384x256xf32>
    %cst_183 = arith.constant dense<0.000000e+00> : vector<8x256xf32>
    %201 = tpu.matmul %198, %200, %cst_183 {dimension_numbers = #tpu.dot_dimension_numbers<[1], [0], [0], [1], [0, 0, 1, 1], [], []>} : vector<8x384xf32>, vector<384x256xf32>, vector<8x256xf32> -> vector<8x256xf32>
    %202 = arith.addf %195, %201 : vector<8x256xf32>
    %c1_184 = arith.constant 1 : index
    %c0_185 = arith.constant 0 : index
    %c0_186 = arith.constant 0 : index
    %203 = vector.load %arg16[%c1_184, %c0_185, %c0_186] : memref<4x8x24xf32, #tpu.memory_space<vmem>>, vector<1x8x24xf32>
    %204 = vector.shape_cast %203 : vector<1x8x24xf32> to vector<8x24xf32>
    %cst_187 = arith.constant dense<0.000000e+00> : vector<8x384xf32>
    %205 = tpu.matmul %204, %194, %cst_187 {dimension_numbers = #tpu.dot_dimension_numbers<[1], [0], [0], [1], [0, 0, 1, 1], [], []>} : vector<8x24xf32>, vector<24x384xf32>, vector<8x384xf32> -> vector<8x384xf32>
    %c1_188 = arith.constant 1 : index
    %c0_189 = arith.constant 0 : index
    %c0_190 = arith.constant 0 : index
    %206 = vector.load %arg17[%c1_188, %c0_189, %c0_190] : memref<4x384x256xf32, #tpu.memory_space<vmem>>, vector<1x384x256xf32>
    %207 = vector.shape_cast %206 : vector<1x384x256xf32> to vector<384x256xf32>
    %cst_191 = arith.constant dense<0.000000e+00> : vector<8x256xf32>
    %208 = tpu.matmul %205, %207, %cst_191 {dimension_numbers = #tpu.dot_dimension_numbers<[1], [0], [0], [1], [0, 0, 1, 1], [], []>} : vector<8x384xf32>, vector<384x256xf32>, vector<8x256xf32> -> vector<8x256xf32>
    %209 = arith.addf %202, %208 : vector<8x256xf32>
    %c2_192 = arith.constant 2 : index
    %c0_193 = arith.constant 0 : index
    %c0_194 = arith.constant 0 : index
    %210 = vector.load %arg16[%c2_192, %c0_193, %c0_194] : memref<4x8x24xf32, #tpu.memory_space<vmem>>, vector<1x8x24xf32>
    %211 = vector.shape_cast %210 : vector<1x8x24xf32> to vector<8x24xf32>
    %cst_195 = arith.constant dense<0.000000e+00> : vector<8x384xf32>
    %212 = tpu.matmul %211, %194, %cst_195 {dimension_numbers = #tpu.dot_dimension_numbers<[1], [0], [0], [1], [0, 0, 1, 1], [], []>} : vector<8x24xf32>, vector<24x384xf32>, vector<8x384xf32> -> vector<8x384xf32>
    %c2_196 = arith.constant 2 : index
    %c0_197 = arith.constant 0 : index
    %c0_198 = arith.constant 0 : index
    %213 = vector.load %arg17[%c2_196, %c0_197, %c0_198] : memref<4x384x256xf32, #tpu.memory_space<vmem>>, vector<1x384x256xf32>
    %214 = vector.shape_cast %213 : vector<1x384x256xf32> to vector<384x256xf32>
    %cst_199 = arith.constant dense<0.000000e+00> : vector<8x256xf32>
    %215 = tpu.matmul %212, %214, %cst_199 {dimension_numbers = #tpu.dot_dimension_numbers<[1], [0], [0], [1], [0, 0, 1, 1], [], []>} : vector<8x384xf32>, vector<384x256xf32>, vector<8x256xf32> -> vector<8x256xf32>
    %216 = arith.addf %209, %215 : vector<8x256xf32>
    %c3_200 = arith.constant 3 : index
    %c0_201 = arith.constant 0 : index
    %c0_202 = arith.constant 0 : index
    %217 = vector.load %arg16[%c3_200, %c0_201, %c0_202] : memref<4x8x24xf32, #tpu.memory_space<vmem>>, vector<1x8x24xf32>
    %218 = vector.shape_cast %217 : vector<1x8x24xf32> to vector<8x24xf32>
    %cst_203 = arith.constant dense<0.000000e+00> : vector<8x384xf32>
    %219 = tpu.matmul %218, %194, %cst_203 {dimension_numbers = #tpu.dot_dimension_numbers<[1], [0], [0], [1], [0, 0, 1, 1], [], []>} : vector<8x24xf32>, vector<24x384xf32>, vector<8x384xf32> -> vector<8x384xf32>
    %c3_204 = arith.constant 3 : index
    %c0_205 = arith.constant 0 : index
    %c0_206 = arith.constant 0 : index
    %220 = vector.load %arg17[%c3_204, %c0_205, %c0_206] : memref<4x384x256xf32, #tpu.memory_space<vmem>>, vector<1x384x256xf32>
    %221 = vector.shape_cast %220 : vector<1x384x256xf32> to vector<384x256xf32>
    %cst_207 = arith.constant dense<0.000000e+00> : vector<8x256xf32>
    %222 = tpu.matmul %219, %221, %cst_207 {dimension_numbers = #tpu.dot_dimension_numbers<[1], [0], [0], [1], [0, 0, 1, 1], [], []>} : vector<8x384xf32>, vector<384x256xf32>, vector<8x256xf32> -> vector<8x256xf32>
    %223 = arith.addf %216, %222 : vector<8x256xf32>
    %cst_208 = arith.constant dense<0.000000e+00> : vector<256xf32>
    %224 = vector.multi_reduction <add>, %223, %cst_208 [0] : vector<8x256xf32> to vector<256xf32>
    %225 = vector.shape_cast %224 : vector<256xf32> to vector<1x256xf32>
    %226 = arith.mulf %223, %223 : vector<8x256xf32>
    %cst_209 = arith.constant dense<0.000000e+00> : vector<256xf32>
    %227 = vector.multi_reduction <add>, %226, %cst_209 [0] : vector<8x256xf32> to vector<256xf32>
    %228 = vector.shape_cast %227 : vector<256xf32> to vector<1x256xf32>
    %c0_210 = arith.constant 0 : index
    %c0_211 = arith.constant 0 : index
    %229 = vector.load %arg18[%c0_210, %c0_211] : memref<256x64xf32, #tpu.memory_space<vmem>>, vector<256x64xf32>
    %cst_212 = arith.constant dense<0.000000e+00> : vector<1x64xf32>
    %230 = tpu.matmul %225, %229, %cst_212 {dimension_numbers = #tpu.dot_dimension_numbers<[1], [0], [0], [1], [0, 0, 1, 1], [], []>} : vector<1x256xf32>, vector<256x64xf32>, vector<1x64xf32> -> vector<1x64xf32>
    %c0_213 = arith.constant 0 : index
    %c0_214 = arith.constant 0 : index
    %231 = vector.load %arg18[%c0_213, %c0_214] : memref<256x64xf32, #tpu.memory_space<vmem>>, vector<256x64xf32>
    %cst_215 = arith.constant dense<0.000000e+00> : vector<1x64xf32>
    %232 = tpu.matmul %228, %231, %cst_215 {dimension_numbers = #tpu.dot_dimension_numbers<[1], [0], [0], [1], [0, 0, 1, 1], [], []>} : vector<1x256xf32>, vector<256x64xf32>, vector<1x64xf32> -> vector<1x64xf32>
    %cst_216 = arith.constant 3.200000e+01 : f32
    %233 = vector.broadcast %cst_216 : f32 to vector<1x64xf32>
    %234 = arith.divf %230, %233 : vector<1x64xf32>
    %cst_217 = arith.constant 3.200000e+01 : f32
    %235 = vector.broadcast %cst_217 : f32 to vector<1x64xf32>
    %236 = arith.divf %232, %235 : vector<1x64xf32>
    %237 = arith.mulf %234, %234 : vector<1x64xf32>
    %238 = arith.subf %236, %237 : vector<1x64xf32>
    %cst_218 = arith.constant 0.000000e+00 : f32
    %239 = vector.broadcast %cst_218 : f32 to vector<1x64xf32>
    %240 = arith.maximumf %238, %239 : vector<1x64xf32>
    %c0_219 = arith.constant 0 : index
    %c0_220 = arith.constant 0 : index
    %241 = vector.load %arg20[%c0_219, %c0_220] : memref<1x64xf32, #tpu.memory_space<vmem>>, vector<1x64xf32>
    %cst_221 = arith.constant 9.99999974E-6 : f32
    %242 = vector.broadcast %cst_221 : f32 to vector<1x64xf32>
    %243 = arith.addf %240, %242 : vector<1x64xf32>
    %244 = math.rsqrt %243 : vector<1x64xf32>
    %245 = arith.mulf %241, %244 : vector<1x64xf32>
    %c0_222 = arith.constant 0 : index
    %c0_223 = arith.constant 0 : index
    %246 = vector.load %arg21[%c0_222, %c0_223] : memref<1x64xf32, #tpu.memory_space<vmem>>, vector<1x64xf32>
    %247 = arith.mulf %234, %245 : vector<1x64xf32>
    %248 = arith.subf %246, %247 : vector<1x64xf32>
    %c0_224 = arith.constant 0 : index
    %c0_225 = arith.constant 0 : index
    %249 = vector.load %arg19[%c0_224, %c0_225] : memref<64x256xf32, #tpu.memory_space<vmem>>, vector<64x256xf32>
    %cst_226 = arith.constant dense<0.000000e+00> : vector<1x256xf32>
    %250 = tpu.matmul %245, %249, %cst_226 {dimension_numbers = #tpu.dot_dimension_numbers<[1], [0], [0], [1], [0, 0, 1, 1], [], []>} : vector<1x64xf32>, vector<64x256xf32>, vector<1x256xf32> -> vector<1x256xf32>
    %c0_227 = arith.constant 0 : index
    %c0_228 = arith.constant 0 : index
    %251 = vector.load %arg19[%c0_227, %c0_228] : memref<64x256xf32, #tpu.memory_space<vmem>>, vector<64x256xf32>
    %cst_229 = arith.constant dense<0.000000e+00> : vector<1x256xf32>
    %252 = tpu.matmul %248, %251, %cst_229 {dimension_numbers = #tpu.dot_dimension_numbers<[1], [0], [0], [1], [0, 0, 1, 1], [], []>} : vector<1x64xf32>, vector<64x256xf32>, vector<1x256xf32> -> vector<1x256xf32>
    %253 = vector.broadcast %250 : vector<1x256xf32> to vector<8x256xf32>
    %254 = arith.mulf %223, %253 : vector<8x256xf32>
    %255 = vector.broadcast %252 : vector<1x256xf32> to vector<8x256xf32>
    %256 = arith.addf %254, %255 : vector<8x256xf32>
    %cst_230 = arith.constant 0.000000e+00 : f32
    %257 = vector.broadcast %cst_230 : f32 to vector<8x256xf32>
    %258 = arith.cmpf ogt, %256, %257 : vector<8x256xf32>
    %cst_231 = arith.constant 0.00999999977 : f32
    %259 = vector.broadcast %cst_231 : f32 to vector<8x256xf32>
    %260 = arith.mulf %259, %256 : vector<8x256xf32>
    %261 = arith.select %258, %256, %260 : vector<8x256xi1>, vector<8x256xf32>
    %262 = vector.extract_strided_slice %261 {offsets = [0, 0], sizes = [4, 256], strides = [1, 1]} : vector<8x256xf32> to vector<4x256xf32>
    %c0_232 = arith.constant 0 : index
    %c0_233 = arith.constant 0 : index
    %263 = vector.load %arg29[%c0_232, %c0_233] : memref<8x256xf32, #tpu.memory_space<vmem>>, vector<4x256xf32>
    tpu.vector_store %arg29[%c0_232, %c0_233], %262 {strides = array<i32>} : memref<8x256xf32, #tpu.memory_space<vmem>>, vector<4x256xf32>,
    %264 = vector.extract_strided_slice %261 {offsets = [4, 0], sizes = [4, 256], strides = [1, 1]} : vector<8x256xf32> to vector<4x256xf32>
    %c4 = arith.constant 4 : index
    %c0_234 = arith.constant 0 : index
    %265 = vector.load %arg29[%c4, %c0_234] : memref<8x256xf32, #tpu.memory_space<vmem>>, vector<4x256xf32>
    tpu.vector_store %arg29[%c4, %c0_234], %264 {strides = array<i32>} : memref<8x256xf32, #tpu.memory_space<vmem>>, vector<4x256xf32>,
    %c0_235 = arith.constant 0 : index
    %c0_236 = arith.constant 0 : index
    %266 = vector.load %arg29[%c0_235, %c0_236] : memref<8x256xf32, #tpu.memory_space<vmem>>, vector<8x256xf32>
    %cst_237 = arith.constant 0.000000e+00 : f32
    %267 = vector.broadcast %cst_237 : f32 to vector<2x128xf32>
    %c0_238 = arith.constant 0 : index
    %c0_239 = arith.constant 0 : index
    %c0_240 = arith.constant 0 : index
    %268 = vector.load %arg22[%c0_238, %c0_239, %c0_240] : memref<4x2x8xf32, #tpu.memory_space<vmem>>, vector<1x2x8xf32>
    %269 = vector.shape_cast %268 : vector<1x2x8xf32> to vector<2x8xf32>
    %cst_241 = arith.constant dense<0.000000e+00> : vector<2x256xf32>
    %270 = tpu.matmul %269, %266, %cst_241 {dimension_numbers = #tpu.dot_dimension_numbers<[1], [0], [0], [1], [0, 0, 1, 1], [], []>} : vector<2x8xf32>, vector<8x256xf32>, vector<2x256xf32> -> vector<2x256xf32>
    %c0_242 = arith.constant 0 : index
    %c0_243 = arith.constant 0 : index
    %c0_244 = arith.constant 0 : index
    %271 = vector.load %arg23[%c0_242, %c0_243, %c0_244] : memref<4x256x128xf32, #tpu.memory_space<vmem>>, vector<1x256x128xf32>
    %272 = vector.shape_cast %271 : vector<1x256x128xf32> to vector<256x128xf32>
    %cst_245 = arith.constant dense<0.000000e+00> : vector<2x128xf32>
    %273 = tpu.matmul %270, %272, %cst_245 {dimension_numbers = #tpu.dot_dimension_numbers<[1], [0], [0], [1], [0, 0, 1, 1], [], []>} : vector<2x256xf32>, vector<256x128xf32>, vector<2x128xf32> -> vector<2x128xf32>
    %274 = arith.addf %267, %273 : vector<2x128xf32>
    %c1_246 = arith.constant 1 : index
    %c0_247 = arith.constant 0 : index
    %c0_248 = arith.constant 0 : index
    %275 = vector.load %arg22[%c1_246, %c0_247, %c0_248] : memref<4x2x8xf32, #tpu.memory_space<vmem>>, vector<1x2x8xf32>
    %276 = vector.shape_cast %275 : vector<1x2x8xf32> to vector<2x8xf32>
    %cst_249 = arith.constant dense<0.000000e+00> : vector<2x256xf32>
    %277 = tpu.matmul %276, %266, %cst_249 {dimension_numbers = #tpu.dot_dimension_numbers<[1], [0], [0], [1], [0, 0, 1, 1], [], []>} : vector<2x8xf32>, vector<8x256xf32>, vector<2x256xf32> -> vector<2x256xf32>
    %c1_250 = arith.constant 1 : index
    %c0_251 = arith.constant 0 : index
    %c0_252 = arith.constant 0 : index
    %278 = vector.load %arg23[%c1_250, %c0_251, %c0_252] : memref<4x256x128xf32, #tpu.memory_space<vmem>>, vector<1x256x128xf32>
    %279 = vector.shape_cast %278 : vector<1x256x128xf32> to vector<256x128xf32>
    %cst_253 = arith.constant dense<0.000000e+00> : vector<2x128xf32>
    %280 = tpu.matmul %277, %279, %cst_253 {dimension_numbers = #tpu.dot_dimension_numbers<[1], [0], [0], [1], [0, 0, 1, 1], [], []>} : vector<2x256xf32>, vector<256x128xf32>, vector<2x128xf32> -> vector<2x128xf32>
    %281 = arith.addf %274, %280 : vector<2x128xf32>
    %c2_254 = arith.constant 2 : index
    %c0_255 = arith.constant 0 : index
    %c0_256 = arith.constant 0 : index
    %282 = vector.load %arg22[%c2_254, %c0_255, %c0_256] : memref<4x2x8xf32, #tpu.memory_space<vmem>>, vector<1x2x8xf32>
    %283 = vector.shape_cast %282 : vector<1x2x8xf32> to vector<2x8xf32>
    %cst_257 = arith.constant dense<0.000000e+00> : vector<2x256xf32>
    %284 = tpu.matmul %283, %266, %cst_257 {dimension_numbers = #tpu.dot_dimension_numbers<[1], [0], [0], [1], [0, 0, 1, 1], [], []>} : vector<2x8xf32>, vector<8x256xf32>, vector<2x256xf32> -> vector<2x256xf32>
    %c2_258 = arith.constant 2 : index
    %c0_259 = arith.constant 0 : index
    %c0_260 = arith.constant 0 : index
    %285 = vector.load %arg23[%c2_258, %c0_259, %c0_260] : memref<4x256x128xf32, #tpu.memory_space<vmem>>, vector<1x256x128xf32>
    %286 = vector.shape_cast %285 : vector<1x256x128xf32> to vector<256x128xf32>
    %cst_261 = arith.constant dense<0.000000e+00> : vector<2x128xf32>
    %287 = tpu.matmul %284, %286, %cst_261 {dimension_numbers = #tpu.dot_dimension_numbers<[1], [0], [0], [1], [0, 0, 1, 1], [], []>} : vector<2x256xf32>, vector<256x128xf32>, vector<2x128xf32> -> vector<2x128xf32>
    %288 = arith.addf %281, %287 : vector<2x128xf32>
    %c3_262 = arith.constant 3 : index
    %c0_263 = arith.constant 0 : index
    %c0_264 = arith.constant 0 : index
    %289 = vector.load %arg22[%c3_262, %c0_263, %c0_264] : memref<4x2x8xf32, #tpu.memory_space<vmem>>, vector<1x2x8xf32>
    %290 = vector.shape_cast %289 : vector<1x2x8xf32> to vector<2x8xf32>
    %cst_265 = arith.constant dense<0.000000e+00> : vector<2x256xf32>
    %291 = tpu.matmul %290, %266, %cst_265 {dimension_numbers = #tpu.dot_dimension_numbers<[1], [0], [0], [1], [0, 0, 1, 1], [], []>} : vector<2x8xf32>, vector<8x256xf32>, vector<2x256xf32> -> vector<2x256xf32>
    %c3_266 = arith.constant 3 : index
    %c0_267 = arith.constant 0 : index
    %c0_268 = arith.constant 0 : index
    %292 = vector.load %arg23[%c3_266, %c0_267, %c0_268] : memref<4x256x128xf32, #tpu.memory_space<vmem>>, vector<1x256x128xf32>
    %293 = vector.shape_cast %292 : vector<1x256x128xf32> to vector<256x128xf32>
    %cst_269 = arith.constant dense<0.000000e+00> : vector<2x128xf32>
    %294 = tpu.matmul %291, %293, %cst_269 {dimension_numbers = #tpu.dot_dimension_numbers<[1], [0], [0], [1], [0, 0, 1, 1], [], []>} : vector<2x256xf32>, vector<256x128xf32>, vector<2x128xf32> -> vector<2x128xf32>
    %295 = arith.addf %288, %294 : vector<2x128xf32>
    %c0_270 = arith.constant 0 : index
    %c0_271 = arith.constant 0 : index
    %296 = vector.load %arg24[%c0_270, %c0_271] : memref<1x128xf32, #tpu.memory_space<vmem>>, vector<1x128xf32>
    %297 = vector.broadcast %296 : vector<1x128xf32> to vector<2x128xf32>
    %298 = arith.addf %295, %297 : vector<2x128xf32>
    %299 = arith.negf %298 : vector<2x128xf32>
    %300 = math.exp %299 : vector<2x128xf32>
    %cst_272 = arith.constant 1.000000e+00 : f32
    %301 = vector.broadcast %cst_272 : f32 to vector<2x128xf32>
    %302 = arith.addf %301, %300 : vector<2x128xf32>
    %303 = arith.divf %301, %302 : vector<2x128xf32>
    %c0_273 = arith.constant 0 : index
    %c0_274 = arith.constant 0 : index
    %304 = vector.load %arg25[%c0_273, %c0_274] : memref<2x128xf32, #tpu.memory_space<vmem>>, vector<2x128xf32>
    tpu.vector_store %arg25[%c0_273, %c0_274], %303 {strides = array<i32>} : memref<2x128xf32, #tpu.memory_space<vmem>>, vector<2x128xf32>,
    return
  }
}

</mosaic_0001>

<llo_original>
// kernel: tpu_custom_call.1
$region0: #{tpu_custom_call.1}
  #allocation0 [shape = 'u32[]', space=smem, size = 0x4, offset = 0x4, fixed_abs, tag = 'smem constant byte address 0x4 - core index']
  #allocation1 [shape = 'u32[72,128]{1,0:T(1,128)}', space=vmem, size = 0x9000, scoped, tag = 'internal scratch']
  #allocation2 [shape = 'f32[72,384]{1,0:T(8,128)}', space=vmem, size = 0x1b000, scoped, tag = 'scratch operand']
  #allocation3 [shape = 'f32[40,384]{1,0:T(8,128)}', space=vmem, size = 0xf000, scoped, tag = 'scratch operand']
  #allocation4 [shape = 'f32[24,384]{1,0:T(8,128)}', space=vmem, size = 0x9000, scoped, tag = 'scratch operand']
  #allocation5 [shape = 'f32[8,256]{1,0:T(8,128)}', space=vmem, size = 0x2000, scoped, tag = 'scratch operand']
  %s0 = inlined_call_operand.hbm [shape: f32[136,256], index: 0, kind: input, shape index: {}]
  %s1 = inlined_call_operand.hbm [shape: f32[4,64,136], index: 1, kind: input, shape index: {}]
  %s2 = inlined_call_operand.hbm [shape: f32[4,256,384], index: 2, kind: input, shape index: {}]
  %s3 = inlined_call_operand.hbm [shape: f32[1,384], index: 3, kind: input, shape index: {}]
  %s4 = inlined_call_operand.hbm [shape: f32[4,32,72], index: 4, kind: input, shape index: {}]
  %s5 = inlined_call_operand.hbm [shape: f32[4,384,384], index: 5, kind: input, shape index: {}]
  %s6 = inlined_call_operand.vmem [shape: f32[384,16], index: 6, kind: input, shape index: {}]
  %s7 = inlined_call_operand.hbm [shape: f32[16,384], index: 7, kind: input, shape index: {}]
  %s8 = inlined_call_operand.hbm [shape: f32[1,16], index: 8, kind: input, shape index: {}]
  %s9 = inlined_call_operand.hbm [shape: f32[1,16], index: 9, kind: input, shape index: {}]
  %s10 = inlined_call_operand.hbm [shape: f32[4,16,40], index: 10, kind: input, shape index: {}]
  %s11 = inlined_call_operand.hbm [shape: f32[4,384,384], index: 11, kind: input, shape index: {}]
  %s12 = inlined_call_operand.vmem [shape: f32[384,32], index: 12, kind: input, shape index: {}]
  %s13 = inlined_call_operand.hbm [shape: f32[32,384], index: 13, kind: input, shape index: {}]
  %s14 = inlined_call_operand.hbm [shape: f32[1,32], index: 14, kind: input, shape index: {}]
  %s15 = inlined_call_operand.hbm [shape: f32[1,32], index: 15, kind: input, shape index: {}]
  %s16 = inlined_call_operand.hbm [shape: f32[4,8,24], index: 16, kind: input, shape index: {}]
  %s17 = inlined_call_operand.hbm [shape: f32[4,384,256], index: 17, kind: input, shape index: {}]
  %s18 = inlined_call_operand.vmem [shape: f32[256,64], index: 18, kind: input, shape index: {}]
  %s19 = inlined_call_operand.hbm [shape: f32[64,256], index: 19, kind: input, shape index: {}]
  %s20 = inlined_call_operand.hbm [shape: f32[1,64], index: 20, kind: input, shape index: {}]
  %s21 = inlined_call_operand.hbm [shape: f32[1,64], index: 21, kind: input, shape index: {}]
  %s22 = inlined_call_operand.hbm [shape: f32[4,2,8], index: 22, kind: input, shape index: {}]
  %s23 = inlined_call_operand.hbm [shape: f32[4,256,128], index: 23, kind: input, shape index: {}]
  %s24 = inlined_call_operand.hbm [shape: f32[1,128], index: 24, kind: input, shape index: {}]
  %s25 = inlined_call_operand.hbm [shape: f32[2,128], index: 25, kind: output, shape index: {}]
  %s26 = sld [smem:[#allocation0]]
  $region198: #{tpu_custom_call.1} parent=0
    _
  %s28 = ssub.s32 1, %s26
  %s29 = scalar_select 0, %s28, %s26
  $region1: #{tpu_custom_call.1} parent=0
    #allocation6 [shape = 'u8[139264]{0}', space=vmem, size = 0x22000, scoped, tag = 'input window, operand 0, single buffered']
    #allocation7 [shape = 's32[1]{0}', space=sflag, size = 0x4, scoped, tag = 'scoped memory for tpu_custom_call.1']
    #allocation8 [shape = 's32[1]{0}', space=sflag, size = 0x4, scoped, tag = 'scoped memory for tpu_custom_call.1']
    #allocation9 [shape = 'u8[262144]{0}', space=vmem, size = 0x40000, scoped, tag = 'input window, operand 1, single buffered']
    #allocation10 [shape = 's32[1]{0}', space=sflag, size = 0x4, scoped, tag = 'scoped memory for tpu_custom_call.1']
    #allocation11 [shape = 'u8[1572864]{0}', space=vmem, size = 0x180000, scoped, tag = 'input window, operand 2, single buffered']
    #allocation12 [shape = 'u8[1536]{0}', space=vmem, size = 0x800, scoped, tag = 'input window, operand 3, single buffered']
    #allocation13 [shape = 's32[1]{0}', space=sflag, size = 0x4, scoped, tag = 'scoped memory for tpu_custom_call.1']
    #allocation14 [shape = 'u8[65536]{0}', space=vmem, size = 0x10000, scoped, tag = 'input window, operand 4, single buffered']
    #allocation15 [shape = 'u8[2359296]{0}', space=vmem, size = 0x240000, scoped, tag = 'input window, operand 5, single buffered']
    #allocation16 [shape = 's32[1]{0}', space=sflag, size = 0x4, scoped, tag = 'scoped memory for tpu_custom_call.1']
    #allocation17 [shape = 'u8[24576]{0}', space=vmem, size = 0x6000, scoped, tag = 'input window, operand 7, single buffered']
    #allocation18 [shape = 'u8[512]{0}', space=vmem, size = 0x400, scoped, tag = 'input window, operand 8, single buffered']
    #allocation19 [shape = 's32[1]{0}', space=sflag, size = 0x4, scoped, tag = 'scoped memory for tpu_custom_call.1']
    #allocation20 [shape = 'u8[512]{0}', space=vmem, size = 0x400, scoped, tag = 'input window, operand 9, single buffered']
    #allocation21 [shape = 'u8[32768]{0}', space=vmem, size = 0x8000, scoped, tag = 'input window, operand 10, single buffered']
    #allocation22 [shape = 's32[1]{0}', space=sflag, size = 0x4, scoped, tag = 'scoped memory for tpu_custom_call.1']
    #allocation23 [shape = 'u8[2359296]{0}', space=vmem, size = 0x240000, scoped, tag = 'input window, operand 11, single buffered']
    #allocation24 [shape = 'u8[49152]{0}', space=vmem, size = 0xc000, scoped, tag = 'input window, operand 13, single buffered']
    #allocation25 [shape = 's32[1]{0}', space=sflag, size = 0x4, scoped, tag = 'scoped memory for tpu_custom_call.1']
    #allocation26 [shape = 'u8[512]{0}', space=vmem, size = 0x400, scoped, tag = 'input window, operand 14, single buffered']
    #allocation27 [shape = 'u8[512]{0}', space=vmem, size = 0x400, scoped, tag = 'input window, operand 15, single buffered']
    #allocation28 [shape = 's32[1]{0}', space=sflag, size = 0x4, scoped, tag = 'scoped memory for tpu_custom_call.1']
    #allocation29 [shape = 'u8[16384]{0}', space=vmem, size = 0x4000, scoped, tag = 'input window, operand 16, single buffered']
    #allocation30 [shape = 'u8[1572864]{0}', space=vmem, size = 0x180000, scoped, tag = 'input window, operand 17, single buffered']
    #allocation31 [shape = 's32[1]{0}', space=sflag, size = 0x4, scoped, tag = 'scoped memory for tpu_custom_call.1']
    #allocation32 [shape = 'u8[65536]{0}', space=vmem, size = 0x10000, scoped, tag = 'input window, operand 19, single buffered']
    #allocation33 [shape = 'u8[512]{0}', space=vmem, size = 0x400, scoped, tag = 'input window, operand 20, single buffered']
    #allocation34 [shape = 's32[1]{0}', space=sflag, size = 0x4, scoped, tag = 'scoped memory for tpu_custom_call.1']
    #allocation35 [shape = 'u8[512]{0}', space=vmem, size = 0x400, scoped, tag = 'input window, operand 21, single buffered']
    #allocation36 [shape = 'u8[4096]{0}', space=vmem, size = 0x1000, scoped, tag = 'input window, operand 22, single buffered']
    #allocation37 [shape = 's32[1]{0}', space=sflag, size = 0x4, scoped, tag = 'scoped memory for tpu_custom_call.1']
    #allocation38 [shape = 'u8[524288]{0}', space=vmem, size = 0x80000, scoped, tag = 'input window, operand 23, single buffered']
    #allocation39 [shape = 'u8[512]{0}', space=vmem, size = 0x400, scoped, tag = 'input window, operand 24, single buffered']
    #allocation40 [shape = 's32[1]{0}', space=sflag, size = 0x4, scoped, tag = 'scoped memory for tpu_custom_call.1']
    #allocation41 [shape = 'u8[1024]{0}', space=vmem, size = 0x400, scoped, tag = 'output window, operand 0, single buffered']
    %30 = vsyncpa [#allocation7], 0
    %31 = vsyncpa [#allocation10], 0
    %32 = vsyncpa [#allocation13], 0
    %33 = vsyncpa [#allocation16], 0
    %34 = vsyncpa [#allocation19], 0
    %35 = vsyncpa [#allocation22], 0
    %36 = vsyncpa [#allocation25], 0
    %37 = vsyncpa [#allocation28], 0
    %38 = vsyncpa [#allocation31], 0
    %39 = vsyncpa [#allocation34], 0
    %40 = vsyncpa [#allocation37], 0
    %41 = vsyncpa [#allocation40], 0
    %42 = vsyncpa [#allocation8], 0
    // Predicated region
    $region2: #{tpu_custom_call.1} parent=1 // pred_check
      _
    $region3: #{tpu_custom_call.1} parent=1 // pred_check_branch
      %44 = sbr.rel (0) target = $region5
    $region4: #{tpu_custom_call.1} parent=1 // pred_region
      %46 = vsyncadd [#allocation7], 0
      %s47 = sshll.u32 %s0, 4
      %s48 = int_to_ptr.hbm [resolvable:$true] %s47
      %s49 = sshll.u32 [#allocation6], 4
      %s50 = int_to_ptr.vmem [resolvable:$true] %s49
      %55 = dma.hbm_to_vmem [thread:$0]  %s48, 4352, %s50, [#allocation7], 256, 256, 16
    $region5: #{tpu_custom_call.1} parent=1 // pred_fallthru
      _
    // Predicated region
    $region6: #{tpu_custom_call.1} parent=1 // pred_check
      _
    $region7: #{tpu_custom_call.1} parent=1 // pred_check_branch
      %57 = sbr.rel (0) target = $region9
    $region8: #{tpu_custom_call.1} parent=1 // pred_region
      %59 = vsyncadd [#allocation10], 0
      %s60 = sshll.u32 %s1, 4
      %s61 = int_to_ptr.hbm [resolvable:$true] %s60
      %s62 = sshll.u32 [#allocation9], 4
      %s63 = int_to_ptr.vmem [resolvable:$true] %s62
      %68 = dma.hbm_to_vmem [thread:$0]  %s61, 8192, %s63, [#allocation10], 256, 256, 16
    $region9: #{tpu_custom_call.1} parent=1 // pred_fallthru
      _
    // Predicated region
    $region10: #{tpu_custom_call.1} parent=1 // pred_check
      _
    $region11: #{tpu_custom_call.1} parent=1 // pred_check_branch
      %70 = sbr.rel (0) target = $region13
    $region12: #{tpu_custom_call.1} parent=1 // pred_region
      %72 = vsyncadd [#allocation10], 0
      %s73 = sshll.u32 %s2, 4
      %s74 = int_to_ptr.hbm [resolvable:$true] %s73
      %s75 = sshll.u32 [#allocation11], 4
      %s76 = int_to_ptr.vmem [resolvable:$true] %s75
      %81 = dma.hbm_to_vmem [thread:$0]  %s74, 49152, %s76, [#allocation10], 384, 384, 24
    $region13: #{tpu_custom_call.1} parent=1 // pred_fallthru
      _
    // Predicated region
    $region14: #{tpu_custom_call.1} parent=1 // pred_check
      _
    $region15: #{tpu_custom_call.1} parent=1 // pred_check_branch
      %83 = sbr.rel (0) target = $region17
    $region16: #{tpu_custom_call.1} parent=1 // pred_region
      %85 = vsyncadd [#allocation13], 0
      %s87 = sshll.u32 %s3, 4
      %s88 = int_to_ptr.hbm [resolvable:$true] %s87
      %s89 = sshll.u32 [#allocation12], 4
      %s90 = int_to_ptr.vmem [resolvable:$true] %s89
      %92 = dma.hbm_to_vmem [thread:$0]  %s88, 48, %s90, [#allocation13]
    $region17: #{tpu_custom_call.1} parent=1 // pred_fallthru
      _
    // Predicated region
    $region18: #{tpu_custom_call.1} parent=1 // pred_check
      _
    $region19: #{tpu_custom_call.1} parent=1 // pred_check_branch
      %94 = sbr.rel (0) target = $region21
    $region20: #{tpu_custom_call.1} parent=1 // pred_region
      %96 = vsyncadd [#allocation13], 0
      %s97 = sshll.u32 %s4, 4
      %s98 = int_to_ptr.hbm [resolvable:$true] %s97
      %s99 = sshll.u32 [#allocation14], 4
      %s100 = int_to_ptr.vmem [resolvable:$true] %s99
      %105 = dma.hbm_to_vmem [thread:$0]  %s98, 2048, %s100, [#allocation13], 128, 128, 8
    $region21: #{tpu_custom_call.1} parent=1 // pred_fallthru
      _
    // Predicated region
    $region22: #{tpu_custom_call.1} parent=1 // pred_check
      _
    $region23: #{tpu_custom_call.1} parent=1 // pred_check_branch
      %107 = sbr.rel (0) target = $region25
    $region24: #{tpu_custom_call.1} parent=1 // pred_region
      %109 = vsyncadd [#allocation16], 0
      %s110 = sshll.u32 %s5, 4
      %s111 = int_to_ptr.hbm [resolvable:$true] %s110
      %s112 = sshll.u32 [#allocation15], 4
      %s113 = int_to_ptr.vmem [resolvable:$true] %s112
      %118 = dma.hbm_to_vmem [thread:$0]  %s111, 73728, %s113, [#allocation16], 384, 384, 24
    $region25: #{tpu_custom_call.1} parent=1 // pred_fallthru
      _
    // Predicated region
    $region26: #{tpu_custom_call.1} parent=1 // pred_check
      _
    $region27: #{tpu_custom_call.1} parent=1 // pred_check_branch
      %120 = sbr.rel (0) target = $region29
    $region28: #{tpu_custom_call.1} parent=1 // pred_region
      _
    $region29: #{tpu_custom_call.1} parent=1 // pred_fallthru
      _
    // Predicated region
    $region30: #{tpu_custom_call.1} parent=1 // pred_check
      _
    $region31: #{tpu_custom_call.1} parent=1 // pred_check_branch
      %122 = sbr.rel (0) target = $region33
    $region32: #{tpu_custom_call.1} parent=1 // pred_region
      %124 = vsyncadd [#allocation16], 0
      %s125 = sshll.u32 %s7, 4
      %s126 = int_to_ptr.hbm [resolvable:$true] %s125
      %s127 = sshll.u32 [#allocation17], 4
      %s128 = int_to_ptr.vmem [resolvable:$true] %s127
      %133 = dma.hbm_to_vmem [thread:$0]  %s126, 768, %s128, [#allocation16], 384, 384, 24
    $region33: #{tpu_custom_call.1} parent=1 // pred_fallthru
      _
    // Predicated region
    $region34: #{tpu_custom_call.1} parent=1 // pred_check
      _
    $region35: #{tpu_custom_call.1} parent=1 // pred_check_branch
      %135 = sbr.rel (0) target = $region37
    $region36: #{tpu_custom_call.1} parent=1 // pred_region
      %137 = vsyncadd [#allocation19], 0
      %s139 = sshll.u32 %s8, 4
      %s140 = int_to_ptr.hbm [resolvable:$true] %s139
      %s141 = sshll.u32 [#allocation18], 4
      %s142 = int_to_ptr.vmem [resolvable:$true] %s141
      %144 = dma.hbm_to_vmem [thread:$0]  %s140, 16, %s142, [#allocation19]
    $region37: #{tpu_custom_call.1} parent=1 // pred_fallthru
      _
    // Predicated region
    $region38: #{tpu_custom_call.1} parent=1 // pred_check
      _
    $region39: #{tpu_custom_call.1} parent=1 // pred_check_branch
      %146 = sbr.rel (0) target = $region41
    $region40: #{tpu_custom_call.1} parent=1 // pred_region
      %148 = vsyncadd [#allocation19], 0
      %s150 = sshll.u32 %s9, 4
      %s151 = int_to_ptr.hbm [resolvable:$true] %s150
      %s152 = sshll.u32 [#allocation20], 4
      %s153 = int_to_ptr.vmem [resolvable:$true] %s152
      %155 = dma.hbm_to_vmem [thread:$0]  %s151, 16, %s153, [#allocation19]
    $region41: #{tpu_custom_call.1} parent=1 // pred_fallthru
      _
    // Predicated region
    $region42: #{tpu_custom_call.1} parent=1 // pred_check
      _
    $region43: #{tpu_custom_call.1} parent=1 // pred_check_branch
      %157 = sbr.rel (0) target = $region45
    $region44: #{tpu_custom_call.1} parent=1 // pred_region
      %159 = vsyncadd [#allocation22], 0
      %s160 = sshll.u32 %s10, 4
      %s161 = int_to_ptr.hbm [resolvable:$true] %s160
      %s162 = sshll.u32 [#allocation21], 4
      %s163 = int_to_ptr.vmem [resolvable:$true] %s162
      %168 = dma.hbm_to_vmem [thread:$0]  %s161, 1024, %s163, [#allocation22], 128, 128, 8
    $region45: #{tpu_custom_call.1} parent=1 // pred_fallthru
      _
    // Predicated region
    $region46: #{tpu_custom_call.1} parent=1 // pred_check
      _
    $region47: #{tpu_custom_call.1} parent=1 // pred_check_branch
      %170 = sbr.rel (0) target = $region49
    $region48: #{tpu_custom_call.1} parent=1 // pred_region
      %172 = vsyncadd [#allocation22], 0
      %s173 = sshll.u32 %s11, 4
      %s174 = int_to_ptr.hbm [resolvable:$true] %s173
      %s175 = sshll.u32 [#allocation23], 4
      %s176 = int_to_ptr.vmem [resolvable:$true] %s175
      %181 = dma.hbm_to_vmem [thread:$0]  %s174, 73728, %s176, [#allocation22], 384, 384, 24
    $region49: #{tpu_custom_call.1} parent=1 // pred_fallthru
      _
    // Predicated region
    $region50: #{tpu_custom_call.1} parent=1 // pred_check
      _
    $region51: #{tpu_custom_call.1} parent=1 // pred_check_branch
      %183 = sbr.rel (0) target = $region53
    $region52: #{tpu_custom_call.1} parent=1 // pred_region
      _
    $region53: #{tpu_custom_call.1} parent=1 // pred_fallthru
      _
    // Predicated region
    $region54: #{tpu_custom_call.1} parent=1 // pred_check
      _
    $region55: #{tpu_custom_call.1} parent=1 // pred_check_branch
      %185 = sbr.rel (0) target = $region57
    $region56: #{tpu_custom_call.1} parent=1 // pred_region
      %187 = vsyncadd [#allocation25], 0
      %s188 = sshll.u32 %s13, 4
      %s189 = int_to_ptr.hbm [resolvable:$true] %s188
      %s190 = sshll.u32 [#allocation24], 4
      %s191 = int_to_ptr.vmem [resolvable:$true] %s190
      %196 = dma.hbm_to_vmem [thread:$0]  %s189, 1536, %s191, [#allocation25], 384, 384, 24
    $region57: #{tpu_custom_call.1} parent=1 // pred_fallthru
      _
    // Predicated region
    $region58: #{tpu_custom_call.1} parent=1 // pred_check
      _
    $region59: #{tpu_custom_call.1} parent=1 // pred_check_branch
      %198 = sbr.rel (0) target = $region61
    $region60: #{tpu_custom_call.1} parent=1 // pred_region
      %200 = vsyncadd [#allocation25], 0
      %s202 = sshll.u32 %s14, 4
      %s203 = int_to_ptr.hbm [resolvable:$true] %s202
      %s204 = sshll.u32 [#allocation26], 4
      %s205 = int_to_ptr.vmem [resolvable:$true] %s204
      %207 = dma.hbm_to_vmem [thread:$0]  %s203, 16, %s205, [#allocation25]
    $region61: #{tpu_custom_call.1} parent=1 // pred_fallthru
      _
    // Predicated region
    $region62: #{tpu_custom_call.1} parent=1 // pred_check
      _
    $region63: #{tpu_custom_call.1} parent=1 // pred_check_branch
      %209 = sbr.rel (0) target = $region65
    $region64: #{tpu_custom_call.1} parent=1 // pred_region
      %211 = vsyncadd [#allocation28], 0
      %s213 = sshll.u32 %s15, 4
      %s214 = int_to_ptr.hbm [resolvable:$true] %s213
      %s215 = sshll.u32 [#allocation27], 4
      %s216 = int_to_ptr.vmem [resolvable:$true] %s215
      %218 = dma.hbm_to_vmem [thread:$0]  %s214, 16, %s216, [#allocation28]
    $region65: #{tpu_custom_call.1} parent=1 // pred_fallthru
      _
    // Predicated region
    $region66: #{tpu_custom_call.1} parent=1 // pred_check
      _
    $region67: #{tpu_custom_call.1} parent=1 // pred_check_branch
      %220 = sbr.rel (0) target = $region69
    $region68: #{tpu_custom_call.1} parent=1 // pred_region
      %222 = vsyncadd [#allocation28], 0
      %s223 = sshll.u32 %s16, 4
      %s224 = int_to_ptr.hbm [resolvable:$true] %s223
      %s225 = sshll.u32 [#allocation29], 4
      %s226 = int_to_ptr.vmem [resolvable:$true] %s225
      %231 = dma.hbm_to_vmem [thread:$0]  %s224, 512, %s226, [#allocation28], 128, 128, 8
    $region69: #{tpu_custom_call.1} parent=1 // pred_fallthru
      _
    // Predicated region
    $region70: #{tpu_custom_call.1} parent=1 // pred_check
      _
    $region71: #{tpu_custom_call.1} parent=1 // pred_check_branch
      %233 = sbr.rel (0) target = $region73
    $region72: #{tpu_custom_call.1} parent=1 // pred_region
      %235 = vsyncadd [#allocation31], 0
      %s236 = sshll.u32 %s17, 4
      %s237 = int_to_ptr.hbm [resolvable:$true] %s236
      %s238 = sshll.u32 [#allocation30], 4
      %s239 = int_to_ptr.vmem [resolvable:$true] %s238
      %244 = dma.hbm_to_vmem [thread:$0]  %s237, 49152, %s239, [#allocation31], 256, 256, 16
    $region73: #{tpu_custom_call.1} parent=1 // pred_fallthru
      _
    // Predicated region
    $region74: #{tpu_custom_call.1} parent=1 // pred_check
      _
    $region75: #{tpu_custom_call.1} parent=1 // pred_check_branch
      %246 = sbr.rel (0) target = $region77
    $region76: #{tpu_custom_call.1} parent=1 // pred_region
      _
    $region77: #{tpu_custom_call.1} parent=1 // pred_fallthru
      _
    // Predicated region
    $region78: #{tpu_custom_call.1} parent=1 // pred_check
      _
    $region79: #{tpu_custom_call.1} parent=1 // pred_check_branch
      %248 = sbr.rel (0) target = $region81
    $region80: #{tpu_custom_call.1} parent=1 // pred_region
      %250 = vsyncadd [#allocation31], 0
      %s251 = sshll.u32 %s19, 4
      %s252 = int_to_ptr.hbm [resolvable:$true] %s251
      %s253 = sshll.u32 [#allocation32], 4
      %s254 = int_to_ptr.vmem [resolvable:$true] %s253
      %259 = dma.hbm_to_vmem [thread:$0]  %s252, 2048, %s254, [#allocation31], 256, 256, 16
    $region81: #{tpu_custom_call.1} parent=1 // pred_fallthru
      _
    // Predicated region
    $region82: #{tpu_custom_call.1} parent=1 // pred_check
      _
    $region83: #{tpu_custom_call.1} parent=1 // pred_check_branch
      %261 = sbr.rel (0) target = $region85
    $region84: #{tpu_custom_call.1} parent=1 // pred_region
      %263 = vsyncadd [#allocation34], 0
      %s265 = sshll.u32 %s20, 4
      %s266 = int_to_ptr.hbm [resolvable:$true] %s265
      %s267 = sshll.u32 [#allocation33], 4
      %s268 = int_to_ptr.vmem [resolvable:$true] %s267
      %270 = dma.hbm_to_vmem [thread:$0]  %s266, 16, %s268, [#allocation34]
    $region85: #{tpu_custom_call.1} parent=1 // pred_fallthru
      _
    // Predicated region
    $region86: #{tpu_custom_call.1} parent=1 // pred_check
      _
    $region87: #{tpu_custom_call.1} parent=1 // pred_check_branch
      %272 = sbr.rel (0) target = $region89
    $region88: #{tpu_custom_call.1} parent=1 // pred_region
      %274 = vsyncadd [#allocation34], 0
      %s276 = sshll.u32 %s21, 4
      %s277 = int_to_ptr.hbm [resolvable:$true] %s276
      %s278 = sshll.u32 [#allocation35], 4
      %s279 = int_to_ptr.vmem [resolvable:$true] %s278
      %281 = dma.hbm_to_vmem [thread:$0]  %s277, 16, %s279, [#allocation34]
    $region89: #{tpu_custom_call.1} parent=1 // pred_fallthru
      _
    // Predicated region
    $region90: #{tpu_custom_call.1} parent=1 // pred_check
      _
    $region91: #{tpu_custom_call.1} parent=1 // pred_check_branch
      %283 = sbr.rel (0) target = $region93
    $region92: #{tpu_custom_call.1} parent=1 // pred_region
      %285 = vsyncadd [#allocation37], 0
      %s286 = sshll.u32 %s22, 4
      %s287 = int_to_ptr.hbm [resolvable:$true] %s286
      %s288 = sshll.u32 [#allocation36], 4
      %s289 = int_to_ptr.vmem [resolvable:$true] %s288
      %294 = dma.hbm_to_vmem [thread:$0]  %s287, 128, %s289, [#allocation37], 32, 32, 2
    $region93: #{tpu_custom_call.1} parent=1 // pred_fallthru
      _
    // Predicated region
    $region94: #{tpu_custom_call.1} parent=1 // pred_check
      _
    $region95: #{tpu_custom_call.1} parent=1 // pred_check_branch
      %296 = sbr.rel (0) target = $region97
    $region96: #{tpu_custom_call.1} parent=1 // pred_region
      %298 = vsyncadd [#allocation37], 0
      %s299 = sshll.u32 %s23, 4
      %s300 = int_to_ptr.hbm [resolvable:$true] %s299
      %s301 = sshll.u32 [#allocation38], 4
      %s302 = int_to_ptr.vmem [resolvable:$true] %s301
      %307 = dma.hbm_to_vmem [thread:$0]  %s300, 16384, %s302, [#allocation37], 128, 128, 8
    $region97: #{tpu_custom_call.1} parent=1 // pred_fallthru
      _
    // Predicated region
    $region98: #{tpu_custom_call.1} parent=1 // pred_check
      _
    $region99: #{tpu_custom_call.1} parent=1 // pred_check_branch
      %309 = sbr.rel (0) target = $region101
    $region100: #{tpu_custom_call.1} parent=1 // pred_region
      %311 = vsyncadd [#allocation40], 0
      %s313 = sshll.u32 %s24, 4
      %s314 = int_to_ptr.hbm [resolvable:$true] %s313
      %s315 = sshll.u32 [#allocation39], 4
      %s316 = int_to_ptr.vmem [resolvable:$true] %s315
      %318 = dma.hbm_to_vmem [thread:$0]  %s314, 16, %s316, [#allocation40]
    $region101: #{tpu_custom_call.1} parent=1 // pred_fallthru
      _
    // Predicated region
    $region102: #{tpu_custom_call.1} parent=1 // pred_check
      _
    $region103: #{tpu_custom_call.1} parent=1 // pred_check_branch
      %320 = sbr.rel (0) target = $region105
    $region104: #{tpu_custom_call.1} parent=1 // pred_region
      %322 = dma.done [#allocation7], 4352
    $region105: #{tpu_custom_call.1} parent=1 // pred_fallthru
      _
    // Predicated region
    $region106: #{tpu_custom_call.1} parent=1 // pred_check
      _
    $region107: #{tpu_custom_call.1} parent=1 // pred_check_branch
      %324 = sbr.rel (0) target = $region109
    $region108: #{tpu_custom_call.1} parent=1 // pred_region
      %326 = dma.done [#allocation10], 8192
    $region109: #{tpu_custom_call.1} parent=1 // pred_fallthru
      _
    // Predicated region
    $region110: #{tpu_custom_call.1} parent=1 // pred_check
      _
    $region111: #{tpu_custom_call.1} parent=1 // pred_check_branch
      %328 = sbr.rel (0) target = $region113
    $region112: #{tpu_custom_call.1} parent=1 // pred_region
      %330 = dma.done [#allocation10], 49152
    $region113: #{tpu_custom_call.1} parent=1 // pred_fallthru
      _
    // Predicated region
    $region114: #{tpu_custom_call.1} parent=1 // pred_check
      _
    $region115: #{tpu_custom_call.1} parent=1 // pred_check_branch
      %332 = sbr.rel (0) target = $region117
    $region116: #{tpu_custom_call.1} parent=1 // pred_region
      %334 = dma.done [#allocation13], 48
    $region117: #{tpu_custom_call.1} parent=1 // pred_fallthru
      _
    // Predicated region
    $region118: #{tpu_custom_call.1} parent=1 // pred_check
      _
    $region119: #{tpu_custom_call.1} parent=1 // pred_check_branch
      %336 = sbr.rel (0) target = $region121
    $region120: #{tpu_custom_call.1} parent=1 // pred_region
      %338 = dma.done [#allocation13], 2048
    $region121: #{tpu_custom_call.1} parent=1 // pred_fallthru
      _
    // Predicated region
    $region122: #{tpu_custom_call.1} parent=1 // pred_check
      _
    $region123: #{tpu_custom_call.1} parent=1 // pred_check_branch
      %340 = sbr.rel (0) target = $region125
    $region124: #{tpu_custom_call.1} parent=1 // pred_region
      %342 = dma.done [#allocation16], 73728
    $region125: #{tpu_custom_call.1} parent=1 // pred_fallthru
      _
    // Predicated region
    $region126: #{tpu_custom_call.1} parent=1 // pred_check
      _
    $region127: #{tpu_custom_call.1} parent=1 // pred_check_branch
      %344 = sbr.rel (0) target = $region129
    $region128: #{tpu_custom_call.1} parent=1 // pred_region
      %346 = dma.done [#allocation16], 768
    $region129: #{tpu_custom_call.1} parent=1 // pred_fallthru
      _
    // Predicated region
    $region130: #{tpu_custom_call.1} parent=1 // pred_check
      _
    $region131: #{tpu_custom_call.1} parent=1 // pred_check_branch
      %348 = sbr.rel (0) target = $region133
    $region132: #{tpu_custom_call.1} parent=1 // pred_region
      %350 = dma.done [#allocation19], 16
    $region133: #{tpu_custom_call.1} parent=1 // pred_fallthru
      _
    // Predicated region
    $region134: #{tpu_custom_call.1} parent=1 // pred_check
      _
    $region135: #{tpu_custom_call.1} parent=1 // pred_check_branch
      %352 = sbr.rel (0) target = $region137
    $region136: #{tpu_custom_call.1} parent=1 // pred_region
      %354 = dma.done [#allocation19], 16
    $region137: #{tpu_custom_call.1} parent=1 // pred_fallthru
      _
    // Predicated region
    $region138: #{tpu_custom_call.1} parent=1 // pred_check
      _
    $region139: #{tpu_custom_call.1} parent=1 // pred_check_branch
      %356 = sbr.rel (0) target = $region141
    $region140: #{tpu_custom_call.1} parent=1 // pred_region
      %358 = dma.done [#allocation22], 1024
    $region141: #{tpu_custom_call.1} parent=1 // pred_fallthru
      _
    // Predicated region
    $region142: #{tpu_custom_call.1} parent=1 // pred_check
      _
    $region143: #{tpu_custom_call.1} parent=1 // pred_check_branch
      %360 = sbr.rel (0) target = $region145
    $region144: #{tpu_custom_call.1} parent=1 // pred_region
      %362 = dma.done [#allocation22], 73728
    $region145: #{tpu_custom_call.1} parent=1 // pred_fallthru
      _
    // Predicated region
    $region146: #{tpu_custom_call.1} parent=1 // pred_check
      _
    $region147: #{tpu_custom_call.1} parent=1 // pred_check_branch
      %364 = sbr.rel (0) target = $region149
    $region148: #{tpu_custom_call.1} parent=1 // pred_region
      %366 = dma.done [#allocation25], 1536
    $region149: #{tpu_custom_call.1} parent=1 // pred_fallthru
      _
    // Predicated region
    $region150: #{tpu_custom_call.1} parent=1 // pred_check
      _
    $region151: #{tpu_custom_call.1} parent=1 // pred_check_branch
      %368 = sbr.rel (0) target = $region153
    $region152: #{tpu_custom_call.1} parent=1 // pred_region
      %370 = dma.done [#allocation25], 16
    $region153: #{tpu_custom_call.1} parent=1 // pred_fallthru
      _
    // Predicated region
    $region154: #{tpu_custom_call.1} parent=1 // pred_check
      _
    $region155: #{tpu_custom_call.1} parent=1 // pred_check_branch
      %372 = sbr.rel (0) target = $region157
    $region156: #{tpu_custom_call.1} parent=1 // pred_region
      %374 = dma.done [#allocation28], 16
    $region157: #{tpu_custom_call.1} parent=1 // pred_fallthru
      _
    // Predicated region
    $region158: #{tpu_custom_call.1} parent=1 // pred_check
      _
    $region159: #{tpu_custom_call.1} parent=1 // pred_check_branch
      %376 = sbr.rel (0) target = $region161
    $region160: #{tpu_custom_call.1} parent=1 // pred_region
      %378 = dma.done [#allocation28], 512
    $region161: #{tpu_custom_call.1} parent=1 // pred_fallthru
      _
    // Predicated region
    $region162: #{tpu_custom_call.1} parent=1 // pred_check
      _
    $region163: #{tpu_custom_call.1} parent=1 // pred_check_branch
      %380 = sbr.rel (0) target = $region165
    $region164: #{tpu_custom_call.1} parent=1 // pred_region
      %382 = dma.done [#allocation31], 49152
    $region165: #{tpu_custom_call.1} parent=1 // pred_fallthru
      _
    // Predicated region
    $region166: #{tpu_custom_call.1} parent=1 // pred_check
      _
    $region167: #{tpu_custom_call.1} parent=1 // pred_check_branch
      %384 = sbr.rel (0) target = $region169
    $region168: #{tpu_custom_call.1} parent=1 // pred_region
      %386 = dma.done [#allocation31], 2048
    $region169: #{tpu_custom_call.1} parent=1 // pred_fallthru
      _
    // Predicated region
    $region170: #{tpu_custom_call.1} parent=1 // pred_check
      _
    $region171: #{tpu_custom_call.1} parent=1 // pred_check_branch
      %388 = sbr.rel (0) target = $region173
    $region172: #{tpu_custom_call.1} parent=1 // pred_region
      %390 = dma.done [#allocation34], 16
    $region173: #{tpu_custom_call.1} parent=1 // pred_fallthru
      _
    // Predicated region
    $region174: #{tpu_custom_call.1} parent=1 // pred_check
      _
    $region175: #{tpu_custom_call.1} parent=1 // pred_check_branch
      %392 = sbr.rel (0) target = $region177
    $region176: #{tpu_custom_call.1} parent=1 // pred_region
      %394 = dma.done [#allocation34], 16
    $region177: #{tpu_custom_call.1} parent=1 // pred_fallthru
      _
    // Predicated region
    $region178: #{tpu_custom_call.1} parent=1 // pred_check
      _
    $region179: #{tpu_custom_call.1} parent=1 // pred_check_branch
      %396 = sbr.rel (0) target = $region181
    $region180: #{tpu_custom_call.1} parent=1 // pred_region
      %398 = dma.done [#allocation37], 128
    $region181: #{tpu_custom_call.1} parent=1 // pred_fallthru
      _
    // Predicated region
    $region182: #{tpu_custom_call.1} parent=1 // pred_check
      _
    $region183: #{tpu_custom_call.1} parent=1 // pred_check_branch
      %400 = sbr.rel (0) target = $region185
    $region184: #{tpu_custom_call.1} parent=1 // pred_region
      %402 = dma.done [#allocation37], 16384
    $region185: #{tpu_custom_call.1} parent=1 // pred_fallthru
      _
    // Predicated region
    $region186: #{tpu_custom_call.1} parent=1 // pred_check
      _
    $region187: #{tpu_custom_call.1} parent=1 // pred_check_branch
      %404 = sbr.rel (0) target = $region189
    $region188: #{tpu_custom_call.1} parent=1 // pred_region
      %406 = dma.done [#allocation40], 16
    $region189: #{tpu_custom_call.1} parent=1 // pred_fallthru
      _
    %407 = vst [vmem:[#allocation2] sm:$0xff] 0.0
    %408 = vst [vmem:[#allocation2 + $0x8] sm:$0xff] 0.0
    %409 = vst [vmem:[#allocation2 + $0x10] sm:$0xff] 0.0
    %410 = vst [vmem:[#allocation2 + $0x18] sm:$0xff] 0.0
    %411 = vst [vmem:[#allocation2 + $0x20] sm:$0xff] 0.0
    %412 = vst [vmem:[#allocation2 + $0x28] sm:$0xff] 0.0
    %413 = vst [vmem:[#allocation2 + $0x30] sm:$0xff] 0.0
    %414 = vst [vmem:[#allocation2 + $0x38] sm:$0xff] 0.0
    %415 = vst [vmem:[#allocation2 + $0x40] sm:$0xff] 0.0
    %416 = vst [vmem:[#allocation2 + $0x48] sm:$0xff] 0.0
    %417 = vst [vmem:[#allocation2 + $0x50] sm:$0xff] 0.0
    %418 = vst [vmem:[#allocation2 + $0x58] sm:$0xff] 0.0
    %419 = vst [vmem:[#allocation2 + $0x60] sm:$0xff] 0.0
    %420 = vst [vmem:[#allocation2 + $0x68] sm:$0xff] 0.0
    %421 = vst [vmem:[#allocation2 + $0x70] sm:$0xff] 0.0
    %422 = vst [vmem:[#allocation2 + $0x78] sm:$0xff] 0.0
    %423 = vst [vmem:[#allocation2 + $0x80] sm:$0xff] 0.0
    %424 = vst [vmem:[#allocation2 + $0x88] sm:$0xff] 0.0
    %425 = vst [vmem:[#allocation2 + $0x90] sm:$0xff] 0.0
    %426 = vst [vmem:[#allocation2 + $0x98] sm:$0xff] 0.0
    %427 = vst [vmem:[#allocation2 + $0xa0] sm:$0xff] 0.0
    %428 = vst [vmem:[#allocation2 + $0xa8] sm:$0xff] 0.0
    %429 = vst [vmem:[#allocation2 + $0xb0] sm:$0xff] 0.0
    %430 = vst [vmem:[#allocation2 + $0xb8] sm:$0xff] 0.0
    %431 = vst [vmem:[#allocation2 + $0xc0] sm:$0xff] 0.0
    %432 = vst [vmem:[#allocation2 + $0xc8] sm:$0xff] 0.0
    %433 = vst [vmem:[#allocation2 + $0xd0] sm:$0xff] 0.0
    %434 = vst [vmem:[#allocation3] sm:$0xff] 0.0
    %435 = vst [vmem:[#allocation3 + $0x8] sm:$0xff] 0.0
    %436 = vst [vmem:[#allocation3 + $0x10] sm:$0xff] 0.0
    %437 = vst [vmem:[#allocation3 + $0x18] sm:$0xff] 0.0
    %438 = vst [vmem:[#allocation3 + $0x20] sm:$0xff] 0.0
    %439 = vst [vmem:[#allocation3 + $0x28] sm:$0xff] 0.0
    %440 = vst [vmem:[#allocation3 + $0x30] sm:$0xff] 0.0
    %441 = vst [vmem:[#allocation3 + $0x38] sm:$0xff] 0.0
    %442 = vst [vmem:[#allocation3 + $0x40] sm:$0xff] 0.0
    %443 = vst [vmem:[#allocation3 + $0x48] sm:$0xff] 0.0
    %444 = vst [vmem:[#allocation3 + $0x50] sm:$0xff] 0.0
    %445 = vst [vmem:[#allocation3 + $0x58] sm:$0xff] 0.0
    %446 = vst [vmem:[#allocation3 + $0x60] sm:$0xff] 0.0
    %447 = vst [vmem:[#allocation3 + $0x68] sm:$0xff] 0.0
    %448 = vst [vmem:[#allocation3 + $0x70] sm:$0xff] 0.0
    %449 = vst [vmem:[#allocation4] sm:$0xff] 0.0
    %450 = vst [vmem:[#allocation4 + $0x8] sm:$0xff] 0.0
    %451 = vst [vmem:[#allocation4 + $0x10] sm:$0xff] 0.0
    %452 = vst [vmem:[#allocation4 + $0x18] sm:$0xff] 0.0
    %453 = vst [vmem:[#allocation4 + $0x20] sm:$0xff] 0.0
    %454 = vst [vmem:[#allocation4 + $0x28] sm:$0xff] 0.0
    %455 = vst [vmem:[#allocation4 + $0x30] sm:$0xff] 0.0
    %456 = vst [vmem:[#allocation4 + $0x38] sm:$0xff] 0.0
    %457 = vst [vmem:[#allocation4 + $0x40] sm:$0xff] 0.0
    %458 = vst [vmem:[#allocation5] sm:$0xff] 0.0
    %459 = vst [vmem:[#allocation5 + $0x8] sm:$0xff] 0.0
    %v460 = vld [vmem:[#allocation6] sm:$0xff]
    %v461 = vld [vmem:[#allocation6 + $0x8] sm:$0xff]
    %v462 = vld [vmem:[#allocation6 + $0x10] sm:$0xff]
    %v463 = vld [vmem:[#allocation6 + $0x18] sm:$0xff]
    %v464 = vld [vmem:[#allocation6 + $0x20] sm:$0xff]
    %v465 = vld [vmem:[#allocation6 + $0x28] sm:$0xff]
    %v466 = vld [vmem:[#allocation6 + $0x30] sm:$0xff]
    %v467 = vld [vmem:[#allocation6 + $0x38] sm:$0xff]
    %v468 = vld [vmem:[#allocation6 + $0x40] sm:$0xff]
    %v469 = vld [vmem:[#allocation6 + $0x48] sm:$0xff]
    %v470 = vld [vmem:[#allocation6 + $0x50] sm:$0xff]
    %v471 = vld [vmem:[#allocation6 + $0x58] sm:$0xff]
    %v472 = vld [vmem:[#allocation6 + $0x60] sm:$0xff]
    %v473 = vld [vmem:[#allocation6 + $0x68] sm:$0xff]
    %v474 = vld [vmem:[#allocation6 + $0x70] sm:$0xff]
    %v475 = vld [vmem:[#allocation6 + $0x78] sm:$0xff]
    %v476 = vld [vmem:[#allocation6 + $0x80] sm:$0xff]
    %v477 = vld [vmem:[#allocation6 + $0x88] sm:$0xff]
    %v478 = vld [vmem:[#allocation6 + $0x90] sm:$0xff]
    %v479 = vld [vmem:[#allocation6 + $0x98] sm:$0xff]
    %v480 = vld [vmem:[#allocation6 + $0xa0] sm:$0xff]
    %v481 = vld [vmem:[#allocation6 + $0xa8] sm:$0xff]
    %v482 = vld [vmem:[#allocation6 + $0xb0] sm:$0xff]
    %v483 = vld [vmem:[#allocation6 + $0xb8] sm:$0xff]
    %v484 = vld [vmem:[#allocation6 + $0xc0] sm:$0xff]
    %v485 = vld [vmem:[#allocation6 + $0xc8] sm:$0xff]
    %v486 = vld [vmem:[#allocation6 + $0xd0] sm:$0xff]
    %v487 = vld [vmem:[#allocation6 + $0xd8] sm:$0xff]
    %v488 = vld [vmem:[#allocation6 + $0xe0] sm:$0xff]
    %v489 = vld [vmem:[#allocation6 + $0xe8] sm:$0xff]
    %v490 = vld [vmem:[#allocation6 + $0xf0] sm:$0xff]
    %v491 = vld [vmem:[#allocation6 + $0xf8] sm:$0xff]
    %v492 = vld [vmem:[#allocation6 + $0x100] sm:$0xff]
    %v493 = vld [vmem:[#allocation6 + $0x108] sm:$0xff]
    %v494 = vld [vmem:[#allocation9] sm:$0xff]
    %v495 = vld [vmem:[#allocation9 + $0x8] sm:$0xff]
    %v496 = vld [vmem:[#allocation9 + $0x10] sm:$0xff]
    %v497 = vld [vmem:[#allocation9 + $0x18] sm:$0xff]
    %v498 = vld [vmem:[#allocation9 + $0x20] sm:$0xff]
    %v499 = vld [vmem:[#allocation9 + $0x28] sm:$0xff]
    %v500 = vld [vmem:[#allocation9 + $0x30] sm:$0xff]
    %v501 = vld [vmem:[#allocation9 + $0x38] sm:$0xff]
    %v502 = vld [vmem:[#allocation9 + $0x40] sm:$0xff]
    %v503 = vld [vmem:[#allocation9 + $0x48] sm:$0xff]
    %v504 = vld [vmem:[#allocation9 + $0x50] sm:$0xff]
    %v505 = vld [vmem:[#allocation9 + $0x58] sm:$0xff]
    %v506 = vld [vmem:[#allocation9 + $0x60] sm:$0xff]
    %v507 = vld [vmem:[#allocation9 + $0x68] sm:$0xff]
    %v508 = vld [vmem:[#allocation9 + $0x70] sm:$0xff]
    %v509 = vld [vmem:[#allocation9 + $0x78] sm:$0xff]
    %vm510 = vcmask 64512
    %v512 = vsel %vm510, %v495, 0
    %v515 = vsel %vm510, %v497, 0
    %v518 = vsel %vm510, %v499, 0
    %v521 = vsel %vm510, %v501, 0
    %v524 = vsel %vm510, %v503, 0
    %v527 = vsel %vm510, %v505, 0
    %v530 = vsel %vm510, %v507, 0
    %v533 = vsel %vm510, %v509, 0
    %535 = vmatpush.msra.mxu0 %v490
    %536 = vmatpush.msra.mxu0 %v488
    %537 = vmatpush.msra.mxu0 %v486
    %538 = vmatpush.msra.mxu0 %v484
    %539 = vmatpush.msra.mxu0 %v482
    %540 = vmatpush.msra.mxu0 %v480
    %541 = vmatpush.msra.mxu0 %v478
    %542 = vmatpush.msra.mxu0 %v476
    %543 = vmatpush.msra.mxu0 %v474
    %544 = vmatpush.msra.mxu0 %v472
    %545 = vmatpush.msra.mxu0 %v470
    %546 = vmatpush.msra.mxu0 %v468
    %547 = vmatpush.msra.mxu0 %v466
    %548 = vmatpush.msra.mxu0 %v464
    %549 = vmatpush.msra.mxu0 %v462
    %550 = vmatpush.msra.mxu0 %v460
    %551 = vmatmul.f32.gmra.mxu0 %v494
    %v552 = vpop.f32.mrf.mxu0
    %v553 = vadd.f32 0.0, %v552
    %554 = vmatmul.f32.gmra.mxu0 %v496
    %v555 = vpop.f32.mrf.mxu0
    %v556 = vadd.f32 0.0, %v555
    %557 = vmatmul.f32.gmra.mxu0 %v498
    %v558 = vpop.f32.mrf.mxu0
    %v559 = vadd.f32 0.0, %v558
    %560 = vmatmul.f32.gmra.mxu0 %v500
    %v561 = vpop.f32.mrf.mxu0
    %v562 = vadd.f32 0.0, %v561
    %563 = vmatmul.f32.gmra.mxu0 %v502
    %v564 = vpop.f32.mrf.mxu0
    %v565 = vadd.f32 0.0, %v564
    %566 = vmatmul.f32.gmra.mxu0 %v504
    %v567 = vpop.f32.mrf.mxu0
    %v568 = vadd.f32 0.0, %v567
    %569 = vmatmul.f32.gmra.mxu0 %v506
    %v570 = vpop.f32.mrf.mxu0
    %v571 = vadd.f32 0.0, %v570
    %572 = vmatmul.f32.gmra.mxu0 %v508
    %v573 = vpop.f32.mrf.mxu0
    %v574 = vadd.f32 0.0, %v573
    %575 = vdwg.mxu0
    %576 = vmatpush.msra.mxu0 0.0
    %577 = vmatpush.msra.mxu0 0.0
    %578 = vmatpush.msra.mxu0 0.0
    %579 = vmatpush.msra.mxu0 0.0
    %580 = vmatpush.msra.mxu0 0.0
    %581 = vmatpush.msra.mxu0 0.0
    %582 = vmatpush.msra.mxu0 0.0
    %583 = vmatpush.msra.mxu0 0.0
    %584 = vmatpush.msra.mxu0 0.0
    %585 = vmatpush.msra.mxu0 0.0
    %586 = vmatpush.msra.mxu0 0.0
    %587 = vmatpush.msra.mxu0 0.0
    %588 = vmatpush.msra.mxu0 0.0
    %589 = vmatpush.msra.mxu0 0.0
    %590 = vmatpush.msra.mxu0 0.0
    %591 = vmatpush.msra.mxu0 %v492
    %592 = vmatmul.f32.gmra.mxu0 %v512
    %v593 = vpop.f32.mrf.mxu0
    %v594 = vadd.f32 %v553, %v593
    %595 = vmatmul.f32.gmra.mxu0 %v515
    %v596 = vpop.f32.mrf.mxu0
    %v597 = vadd.f32 %v556, %v596
    %598 = vmatmul.f32.gmra.mxu0 %v518
    %v599 = vpop.f32.mrf.mxu0
    %v600 = vadd.f32 %v559, %v599
    %601 = vmatmul.f32.gmra.mxu0 %v521
    %v602 = vpop.f32.mrf.mxu0
    %v603 = vadd.f32 %v562, %v602
    %604 = vmatmul.f32.gmra.mxu0 %v524
    %v605 = vpop.f32.mrf.mxu0
    %v606 = vadd.f32 %v565, %v605
    %607 = vmatmul.f32.gmra.mxu0 %v527
    %v608 = vpop.f32.mrf.mxu0
    %v609 = vadd.f32 %v568, %v608
    %610 = vmatmul.f32.gmra.mxu0 %v530
    %v611 = vpop.f32.mrf.mxu0
    %v612 = vadd.f32 %v571, %v611
    %613 = vmatmul.f32.gmra.mxu0 %v533
    %v614 = vpop.f32.mrf.mxu0
    %v615 = vadd.f32 %v574, %v614
    %616 = vdwg.mxu0
    %617 = vmatpush.msra.mxu0 %v491
    %618 = vmatpush.msra.mxu0 %v489
    %619 = vmatpush.msra.mxu0 %v487
    %620 = vmatpush.msra.mxu0 %v485
    %621 = vmatpush.msra.mxu0 %v483
    %622 = vmatpush.msra.mxu0 %v481
    %623 = vmatpush.msra.mxu0 %v479
    %624 = vmatpush.msra.mxu0 %v477
    %625 = vmatpush.msra.mxu0 %v475
    %626 = vmatpush.msra.mxu0 %v473
    %627 = vmatpush.msra.mxu0 %v471
    %628 = vmatpush.msra.mxu0 %v469
    %629 = vmatpush.msra.mxu0 %v467
    %630 = vmatpush.msra.mxu0 %v465
    %631 = vmatpush.msra.mxu0 %v463
    %632 = vmatpush.msra.mxu0 %v461
    %633 = vmatmul.f32.gmra.mxu0 %v494
    %v634 = vpop.f32.mrf.mxu0
    %v635 = vadd.f32 0.0, %v634
    %636 = vmatmul.f32.gmra.mxu0 %v496
    %v637 = vpop.f32.mrf.mxu0
    %v638 = vadd.f32 0.0, %v637
    %639 = vmatmul.f32.gmra.mxu0 %v498
    %v640 = vpop.f32.mrf.mxu0
    %v641 = vadd.f32 0.0, %v640
    %642 = vmatmul.f32.gmra.mxu0 %v500
    %v643 = vpop.f32.mrf.mxu0
    %v644 = vadd.f32 0.0, %v643
    %645 = vmatmul.f32.gmra.mxu0 %v502
    %v646 = vpop.f32.mrf.mxu0
    %v647 = vadd.f32 0.0, %v646
    %648 = vmatmul.f32.gmra.mxu0 %v504
    %v649 = vpop.f32.mrf.mxu0
    %v650 = vadd.f32 0.0, %v649
    %651 = vmatmul.f32.gmra.mxu0 %v506
    %v652 = vpop.f32.mrf.mxu0
    %v653 = vadd.f32 0.0, %v652
    %654 = vmatmul.f32.gmra.mxu0 %v508
    %v655 = vpop.f32.mrf.mxu0
    %v656 = vadd.f32 0.0, %v655
    %657 = vdwg.mxu0
    %658 = vmatpush.msra.mxu0 0.0
    %659 = vmatpush.msra.mxu0 0.0
    %660 = vmatpush.msra.mxu0 0.0
    %661 = vmatpush.msra.mxu0 0.0
    %662 = vmatpush.msra.mxu0 0.0
    %663 = vmatpush.msra.mxu0 0.0
    %664 = vmatpush.msra.mxu0 0.0
    %665 = vmatpush.msra.mxu0 0.0
    %666 = vmatpush.msra.mxu0 0.0
    %667 = vmatpush.msra.mxu0 0.0
    %668 = vmatpush.msra.mxu0 0.0
    %669 = vmatpush.msra.mxu0 0.0
    %670 = vmatpush.msra.mxu0 0.0
    %671 = vmatpush.msra.mxu0 0.0
    %672 = vmatpush.msra.mxu0 0.0
    %673 = vmatpush.msra.mxu0 %v493
    %674 = vmatmul.f32.gmra.mxu0 %v512
    %v675 = vpop.f32.mrf.mxu0
    %v676 = vadd.f32 %v635, %v675
    %677 = vmatmul.f32.gmra.mxu0 %v515
    %v678 = vpop.f32.mrf.mxu0
    %v679 = vadd.f32 %v638, %v678
    %680 = vmatmul.f32.gmra.mxu0 %v518
    %v681 = vpop.f32.mrf.mxu0
    %v682 = vadd.f32 %v641, %v681
    %683 = vmatmul.f32.gmra.mxu0 %v521
    %v684 = vpop.f32.mrf.mxu0
    %v685 = vadd.f32 %v644, %v684
    %686 = vmatmul.f32.gmra.mxu0 %v524
    %v687 = vpop.f32.mrf.mxu0
    %v688 = vadd.f32 %v647, %v687
    %689 = vmatmul.f32.gmra.mxu0 %v527
    %v690 = vpop.f32.mrf.mxu0
    %v691 = vadd.f32 %v650, %v690
    %692 = vmatmul.f32.gmra.mxu0 %v530
    %v693 = vpop.f32.mrf.mxu0
    %v694 = vadd.f32 %v653, %v693
    %695 = vmatmul.f32.gmra.mxu0 %v533
    %v696 = vpop.f32.mrf.mxu0
    %v697 = vadd.f32 %v656, %v696
    %698 = vdwg.mxu0
    %v699 = vld [vmem:[#allocation11] sm:$0xff]
    %v700 = vld [vmem:[#allocation11 + $0x8] sm:$0xff]
    %v701 = vld [vmem:[#allocation11 + $0x10] sm:$0xff]
    %v702 = vld [vmem:[#allocation11 + $0x18] sm:$0xff]
    %v703 = vld [vmem:[#allocation11 + $0x20] sm:$0xff]
    %v704 = vld [vmem:[#allocation11 + $0x28] sm:$0xff]
    %v705 = vld [vmem:[#allocation11 + $0x30] sm:$0xff]
    %v706 = vld [vmem:[#allocation11 + $0x38] sm:$0xff]
    %v707 = vld [vmem:[#allocation11 + $0x40] sm:$0xff]
    %v708 = vld [vmem:[#allocation11 + $0x48] sm:$0xff]
    %v709 = vld [vmem:[#allocation11 + $0x50] sm:$0xff]
    %v710 = vld [vmem:[#allocation11 + $0x58] sm:$0xff]
    %v711 = vld [vmem:[#allocation11 + $0x60] sm:$0xff]
    %v712 = vld [vmem:[#allocation11 + $0x68] sm:$0xff]
    %v713 = vld [vmem:[#allocation11 + $0x70] sm:$0xff]
    %v714 = vld [vmem:[#allocation11 + $0x78] sm:$0xff]
    %v715 = vld [vmem:[#allocation11 + $0x80] sm:$0xff]
    %v716 = vld [vmem:[#allocation11 + $0x88] sm:$0xff]
    %v717 = vld [vmem:[#allocation11 + $0x90] sm:$0xff]
    %v718 = vld [vmem:[#allocation11 + $0x98] sm:$0xff]
    %v719 = vld [vmem:[#allocation11 + $0xa0] sm:$0xff]
    %v720 = vld [vmem:[#allocation11 + $0xa8] sm:$0xff]
    %v721 = vld [vmem:[#allocation11 + $0xb0] sm:$0xff]
    %v722 = vld [vmem:[#allocation11 + $0xb8] sm:$0xff]
    %v723 = vld [vmem:[#allocation11 + $0xc0] sm:$0xff]
    %v724 = vld [vmem:[#allocation11 + $0xc8] sm:$0xff]
    %v725 = vld [vmem:[#allocation11 + $0xd0] sm:$0xff]
    %v726 = vld [vmem:[#allocation11 + $0xd8] sm:$0xff]
    %v727 = vld [vmem:[#allocation11 + $0xe0] sm:$0xff]
    %v728 = vld [vmem:[#allocation11 + $0xe8] sm:$0xff]
    %v729 = vld [vmem:[#allocation11 + $0xf0] sm:$0xff]
    %v730 = vld [vmem:[#allocation11 + $0xf8] sm:$0xff]
    %v731 = vld [vmem:[#allocation11 + $0x100] sm:$0xff]
    %v732 = vld [vmem:[#allocation11 + $0x108] sm:$0xff]
    %v733 = vld [vmem:[#allocation11 + $0x110] sm:$0xff]
    %v734 = vld [vmem:[#allocation11 + $0x118] sm:$0xff]
    %v735 = vld [vmem:[#allocation11 + $0x120] sm:$0xff]
    %v736 = vld [vmem:[#allocation11 + $0x128] sm:$0xff]
    %v737 = vld [vmem:[#allocation11 + $0x130] sm:$0xff]
    %v738 = vld [vmem:[#allocation11 + $0x138] sm:$0xff]
    %v739 = vld [vmem:[#allocation11 + $0x140] sm:$0xff]
    %v740 = vld [vmem:[#allocation11 + $0x148] sm:$0xff]
    %v741 = vld [vmem:[#allocation11 + $0x150] sm:$0xff]
    %v742 = vld [vmem:[#allocation11 + $0x158] sm:$0xff]
    %v743 = vld [vmem:[#allocation11 + $0x160] sm:$0xff]
    %v744 = vld [vmem:[#allocation11 + $0x168] sm:$0xff]
    %v745 = vld [vmem:[#allocation11 + $0x170] sm:$0xff]
    %v746 = vld [vmem:[#allocation11 + $0x178] sm:$0xff]
    %v747 = vld [vmem:[#allocation11 + $0x180] sm:$0xff]
    %v748 = vld [vmem:[#allocation11 + $0x188] sm:$0xff]
    %v749 = vld [vmem:[#allocation11 + $0x190] sm:$0xff]
    %v750 = vld [vmem:[#allocation11 + $0x198] sm:$0xff]
    %v751 = vld [vmem:[#allocation11 + $0x1a0] sm:$0xff]
    %v752 = vld [vmem:[#allocation11 + $0x1a8] sm:$0xff]
    %v753 = vld [vmem:[#allocation11 + $0x1b0] sm:$0xff]
    %v754 = vld [vmem:[#allocation11 + $0x1b8] sm:$0xff]
    %v755 = vld [vmem:[#allocation11 + $0x1c0] sm:$0xff]
    %v756 = vld [vmem:[#allocation11 + $0x1c8] sm:$0xff]
    %v757 = vld [vmem:[#allocation11 + $0x1d0] sm:$0xff]
    %v758 = vld [vmem:[#allocation11 + $0x1d8] sm:$0xff]
    %v759 = vld [vmem:[#allocation11 + $0x1e0] sm:$0xff]
    %v760 = vld [vmem:[#allocation11 + $0x1e8] sm:$0xff]
    %v761 = vld [vmem:[#allocation11 + $0x1f0] sm:$0xff]
    %v762 = vld [vmem:[#allocation11 + $0x1f8] sm:$0xff]
    %v763 = vld [vmem:[#allocation11 + $0x200] sm:$0xff]
    %v764 = vld [vmem:[#allocation11 + $0x208] sm:$0xff]
    %v765 = vld [vmem:[#allocation11 + $0x210] sm:$0xff]
    %v766 = vld [vmem:[#allocation11 + $0x218] sm:$0xff]
    %v767 = vld [vmem:[#allocation11 + $0x220] sm:$0xff]
    %v768 = vld [vmem:[#allocation11 + $0x228] sm:$0xff]
    %v769 = vld [vmem:[#allocation11 + $0x230] sm:$0xff]
    %v770 = vld [vmem:[#allocation11 + $0x238] sm:$0xff]
    %v771 = vld [vmem:[#allocation11 + $0x240] sm:$0xff]
    %v772 = vld [vmem:[#allocation11 + $0x248] sm:$0xff]
    %v773 = vld [vmem:[#allocation11 + $0x250] sm:$0xff]
    %v774 = vld [vmem:[#allocation11 + $0x258] sm:$0xff]
    %v775 = vld [vmem:[#allocation11 + $0x260] sm:$0xff]
    %v776 = vld [vmem:[#allocation11 + $0x268] sm:$0xff]
    %v777 = vld [vmem:[#allocation11 + $0x270] sm:$0xff]
    %v778 = vld [vmem:[#allocation11 + $0x278] sm:$0xff]
    %v779 = vld [vmem:[#allocation11 + $0x280] sm:$0xff]
    %v780 = vld [vmem:[#allocation11 + $0x288] sm:$0xff]
    %v781 = vld [vmem:[#allocation11 + $0x290] sm:$0xff]
    %v782 = vld [vmem:[#allocation11 + $0x298] sm:$0xff]
    %v783 = vld [vmem:[#allocation11 + $0x2a0] sm:$0xff]
    %v784 = vld [vmem:[#allocation11 + $0x2a8] sm:$0xff]
    %v785 = vld [vmem:[#allocation11 + $0x2b0] sm:$0xff]
    %v786 = vld [vmem:[#allocation11 + $0x2b8] sm:$0xff]
    %v787 = vld [vmem:[#allocation11 + $0x2c0] sm:$0xff]
    %v788 = vld [vmem:[#allocation11 + $0x2c8] sm:$0xff]
    %v789 = vld [vmem:[#allocation11 + $0x2d0] sm:$0xff]
    %v790 = vld [vmem:[#allocation11 + $0x2d8] sm:$0xff]
    %v791 = vld [vmem:[#allocation11 + $0x2e0] sm:$0xff]
    %v792 = vld [vmem:[#allocation11 + $0x2e8] sm:$0xff]
    %v793 = vld [vmem:[#allocation11 + $0x2f0] sm:$0xff]
    %v794 = vld [vmem:[#allocation11 + $0x2f8] sm:$0xff]
    %s795 = scalar_lea.vmem [#allocation9], 128
    %v796 = vld [vmem:[%s795] sm:$0xff]
    %v797 = vld [vmem:[%s795 + $0x8] sm:$0xff]
    %v798 = vld [vmem:[%s795 + $0x10] sm:$0xff]
    %v799 = vld [vmem:[%s795 + $0x18] sm:$0xff]
    %v800 = vld [vmem:[%s795 + $0x20] sm:$0xff]
    %v801 = vld [vmem:[%s795 + $0x28] sm:$0xff]
    %v802 = vld [vmem:[%s795 + $0x30] sm:$0xff]
    %v803 = vld [vmem:[%s795 + $0x38] sm:$0xff]
    %v804 = vld [vmem:[%s795 + $0x40] sm:$0xff]
    %v805 = vld [vmem:[%s795 + $0x48] sm:$0xff]
    %v806 = vld [vmem:[%s795 + $0x50] sm:$0xff]
    %v807 = vld [vmem:[%s795 + $0x58] sm:$0xff]
    %v808 = vld [vmem:[%s795 + $0x60] sm:$0xff]
    %v809 = vld [vmem:[%s795 + $0x68] sm:$0xff]
    %v810 = vld [vmem:[%s795 + $0x70] sm:$0xff]
    %v811 = vld [vmem:[%s795 + $0x78] sm:$0xff]
    %v813 = vsel %vm510, %v797, 0
    %v816 = vsel %vm510, %v799, 0
    %v819 = vsel %vm510, %v801, 0
    %v822 = vsel %vm510, %v803, 0
    %v825 = vsel %vm510, %v805, 0
    %v828 = vsel %vm510, %v807, 0
    %v831 = vsel %vm510, %v809, 0
    %v834 = vsel %vm510, %v811, 0
    %836 = vmatpush.msra.mxu0 %v490
    %837 = vmatpush.msra.mxu0 %v488
    %838 = vmatpush.msra.mxu0 %v486
    %839 = vmatpush.msra.mxu0 %v484
    %840 = vmatpush.msra.mxu0 %v482
    %841 = vmatpush.msra.mxu0 %v480
    %842 = vmatpush.msra.mxu0 %v478
    %843 = vmatpush.msra.mxu0 %v476
    %844 = vmatpush.msra.mxu0 %v474
    %845 = vmatpush.msra.mxu0 %v472
    %846 = vmatpush.msra.mxu0 %v470
    %847 = vmatpush.msra.mxu0 %v468
    %848 = vmatpush.msra.mxu0 %v466
    %849 = vmatpush.msra.mxu0 %v464
    %850 = vmatpush.msra.mxu0 %v462
    %851 = vmatpush.msra.mxu0 %v460
    %852 = vmatmul.f32.gmra.mxu0 %v796
    %v853 = vpop.f32.mrf.mxu0
    %v854 = vadd.f32 0.0, %v853
    %855 = vmatmul.f32.gmra.mxu0 %v798
    %v856 = vpop.f32.mrf.mxu0
    %v857 = vadd.f32 0.0, %v856
    %858 = vmatmul.f32.gmra.mxu0 %v800
    %v859 = vpop.f32.mrf.mxu0
    %v860 = vadd.f32 0.0, %v859
    %861 = vmatmul.f32.gmra.mxu0 %v802
    %v862 = vpop.f32.mrf.mxu0
    %v863 = vadd.f32 0.0, %v862
    %864 = vmatmul.f32.gmra.mxu0 %v804
    %v865 = vpop.f32.mrf.mxu0
    %v866 = vadd.f32 0.0, %v865
    %867 = vmatmul.f32.gmra.mxu0 %v806
    %v868 = vpop.f32.mrf.mxu0
    %v869 = vadd.f32 0.0, %v868
    %870 = vmatmul.f32.gmra.mxu0 %v808
    %v871 = vpop.f32.mrf.mxu0
    %v872 = vadd.f32 0.0, %v871
    %873 = vmatmul.f32.gmra.mxu0 %v810
    %v874 = vpop.f32.mrf.mxu0
    %v875 = vadd.f32 0.0, %v874
    %876 = vdwg.mxu0
    %877 = vmatpush.msra.mxu0 0.0
    %878 = vmatpush.msra.mxu0 0.0
    %879 = vmatpush.msra.mxu0 0.0
    %880 = vmatpush.msra.mxu0 0.0
    %881 = vmatpush.msra.mxu0 0.0
    %882 = vmatpush.msra.mxu0 0.0
    %883 = vmatpush.msra.mxu0 0.0
    %884 = vmatpush.msra.mxu0 0.0
    %885 = vmatpush.msra.mxu0 0.0
    %886 = vmatpush.msra.mxu0 0.0
    %887 = vmatpush.msra.mxu0 0.0
    %888 = vmatpush.msra.mxu0 0.0
    %889 = vmatpush.msra.mxu0 0.0
    %890 = vmatpush.msra.mxu0 0.0
    %891 = vmatpush.msra.mxu0 0.0
    %892 = vmatpush.msra.mxu0 %v492
    %893 = vmatmul.f32.gmra.mxu0 %v813
    %v894 = vpop.f32.mrf.mxu0
    %v895 = vadd.f32 %v854, %v894
    %896 = vmatmul.f32.gmra.mxu0 %v816
    %v897 = vpop.f32.mrf.mxu0
    %v898 = vadd.f32 %v857, %v897
    %899 = vmatmul.f32.gmra.mxu0 %v819
    %v900 = vpop.f32.mrf.mxu0
    %v901 = vadd.f32 %v860, %v900
    %902 = vmatmul.f32.gmra.mxu0 %v822
    %v903 = vpop.f32.mrf.mxu0
    %v904 = vadd.f32 %v863, %v903
    %905 = vmatmul.f32.gmra.mxu0 %v825
    %v906 = vpop.f32.mrf.mxu0
    %v907 = vadd.f32 %v866, %v906
    %908 = vmatmul.f32.gmra.mxu0 %v828
    %v909 = vpop.f32.mrf.mxu0
    %v910 = vadd.f32 %v869, %v909
    %911 = vmatmul.f32.gmra.mxu0 %v831
    %v912 = vpop.f32.mrf.mxu0
    %v913 = vadd.f32 %v872, %v912
    %914 = vmatmul.f32.gmra.mxu0 %v834
    %v915 = vpop.f32.mrf.mxu0
    %v916 = vadd.f32 %v875, %v915
    %917 = vdwg.mxu0
    %918 = vmatpush.msra.mxu0 %v491
    %919 = vmatpush.msra.mxu0 %v489
    %920 = vmatpush.msra.mxu0 %v487
    %921 = vmatpush.msra.mxu0 %v485
    %922 = vmatpush.msra.mxu0 %v483
    %923 = vmatpush.msra.mxu0 %v481
    %924 = vmatpush.msra.mxu0 %v479
    %925 = vmatpush.msra.mxu0 %v477
    %926 = vmatpush.msra.mxu0 %v475
    %927 = vmatpush.msra.mxu0 %v473
    %928 = vmatpush.msra.mxu0 %v471
    %929 = vmatpush.msra.mxu0 %v469
    %930 = vmatpush.msra.mxu0 %v467
    %931 = vmatpush.msra.mxu0 %v465
    %932 = vmatpush.msra.mxu0 %v463
    %933 = vmatpush.msra.mxu0 %v461
    %934 = vmatmul.f32.gmra.mxu0 %v796
    %v935 = vpop.f32.mrf.mxu0
    %v936 = vadd.f32 0.0, %v935
    %937 = vmatmul.f32.gmra.mxu0 %v798
    %v938 = vpop.f32.mrf.mxu0
    %v939 = vadd.f32 0.0, %v938
    %940 = vmatmul.f32.gmra.mxu0 %v800
    %v941 = vpop.f32.mrf.mxu0
    %v942 = vadd.f32 0.0, %v941
    %943 = vmatmul.f32.gmra.mxu0 %v802
    %v944 = vpop.f32.mrf.mxu0
    %v945 = vadd.f32 0.0, %v944
    %946 = vmatmul.f32.gmra.mxu0 %v804
    %v947 = vpop.f32.mrf.mxu0
    %v948 = vadd.f32 0.0, %v947
    %949 = vmatmul.f32.gmra.mxu0 %v806
    %v950 = vpop.f32.mrf.mxu0
    %v951 = vadd.f32 0.0, %v950
    %952 = vmatmul.f32.gmra.mxu0 %v808
    %v953 = vpop.f32.mrf.mxu0
    %v954 = vadd.f32 0.0, %v953
    %955 = vmatmul.f32.gmra.mxu0 %v810
    %v956 = vpop.f32.mrf.mxu0
    %v957 = vadd.f32 0.0, %v956
    %958 = vdwg.mxu0
    %959 = vmatpush.msra.mxu0 0.0
    %960 = vmatpush.msra.mxu0 0.0
    %961 = vmatpush.msra.mxu0 0.0
    %962 = vmatpush.msra.mxu0 0.0
    %963 = vmatpush.msra.mxu0 0.0
    %964 = vmatpush.msra.mxu0 0.0
    %965 = vmatpush.msra.mxu0 0.0
    %966 = vmatpush.msra.mxu0 0.0
    %967 = vmatpush.msra.mxu0 0.0
    %968 = vmatpush.msra.mxu0 0.0
    %969 = vmatpush.msra.mxu0 0.0
    %970 = vmatpush.msra.mxu0 0.0
    %971 = vmatpush.msra.mxu0 0.0
    %972 = vmatpush.msra.mxu0 0.0
    %973 = vmatpush.msra.mxu0 0.0
    %974 = vmatpush.msra.mxu0 %v493
    %975 = vmatmul.f32.gmra.mxu0 %v813
    %v976 = vpop.f32.mrf.mxu0
    %v977 = vadd.f32 %v936, %v976
    %978 = vmatmul.f32.gmra.mxu0 %v816
    %v979 = vpop.f32.mrf.mxu0
    %v980 = vadd.f32 %v939, %v979
    %981 = vmatmul.f32.gmra.mxu0 %v819
    %v982 = vpop.f32.mrf.mxu0
    %v983 = vadd.f32 %v942, %v982
    %984 = vmatmul.f32.gmra.mxu0 %v822
    %v985 = vpop.f32.mrf.mxu0
    %v986 = vadd.f32 %v945, %v985
    %987 = vmatmul.f32.gmra.mxu0 %v825
    %v988 = vpop.f32.mrf.mxu0
    %v989 = vadd.f32 %v948, %v988
    %990 = vmatmul.f32.gmra.mxu0 %v828
    %v991 = vpop.f32.mrf.mxu0
    %v992 = vadd.f32 %v951, %v991
    %993 = vmatmul.f32.gmra.mxu0 %v831
    %v994 = vpop.f32.mrf.mxu0
    %v995 = vadd.f32 %v954, %v994
    %996 = vmatmul.f32.gmra.mxu0 %v834
    %v997 = vpop.f32.mrf.mxu0
    %v998 = vadd.f32 %v957, %v997
    %999 = vdwg.mxu0
    %s1000 = scalar_lea.vmem [#allocation11], 768
    %v1001 = vld [vmem:[%s1000] sm:$0xff]
    %v1002 = vld [vmem:[%s1000 + $0x8] sm:$0xff]
    %v1003 = vld [vmem:[%s1000 + $0x10] sm:$0xff]
    %v1004 = vld [vmem:[%s1000 + $0x18] sm:$0xff]
    %v1005 = vld [vmem:[%s1000 + $0x20] sm:$0xff]
    %v1006 = vld [vmem:[%s1000 + $0x28] sm:$0xff]
    %v1007 = vld [vmem:[%s1000 + $0x30] sm:$0xff]
    %v1008 = vld [vmem:[%s1000 + $0x38] sm:$0xff]
    %v1009 = vld [vmem:[%s1000 + $0x40] sm:$0xff]
    %v1010 = vld [vmem:[%s1000 + $0x48] sm:$0xff]
    %v1011 = vld [vmem:[%s1000 + $0x50] sm:$0xff]
    %v1012 = vld [vmem:[%s1000 + $0x58] sm:$0xff]
    %v1013 = vld [vmem:[%s1000 + $0x60] sm:$0xff]
    %v1014 = vld [vmem:[%s1000 + $0x68] sm:$0xff]
    %v1015 = vld [vmem:[%s1000 + $0x70] sm:$0xff]
    %v1016 = vld [vmem:[%s1000 + $0x78] sm:$0xff]
    %v1017 = vld [vmem:[%s1000 + $0x80] sm:$0xff]
    %v1018 = vld [vmem:[%s1000 + $0x88] sm:$0xff]
    %v1019 = vld [vmem:[%s1000 + $0x90] sm:$0xff]
    %v1020 = vld [vmem:[%s1000 + $0x98] sm:$0xff]
    %v1021 = vld [vmem:[%s1000 + $0xa0] sm:$0xff]
    %v1022 = vld [vmem:[%s1000 + $0xa8] sm:$0xff]
    %v1023 = vld [vmem:[%s1000 + $0xb0] sm:$0xff]
    %v1024 = vld [vmem:[%s1000 + $0xb8] sm:$0xff]
    %v1025 = vld [vmem:[%s1000 + $0xc0] sm:$0xff]
    %v1026 = vld [vmem:[%s1000 + $0xc8] sm:$0xff]
    %v1027 = vld [vmem:[%s1000 + $0xd0] sm:$0xff]
    %v1028 = vld [vmem:[%s1000 + $0xd8] sm:$0xff]
    %v1029 = vld [vmem:[%s1000 + $0xe0] sm:$0xff]
    %v1030 = vld [vmem:[%s1000 + $0xe8] sm:$0xff]
    %v1031 = vld [vmem:[%s1000 + $0xf0] sm:$0xff]
    %v1032 = vld [vmem:[%s1000 + $0xf8] sm:$0xff]
    %v1033 = vld [vmem:[%s1000 + $0x100] sm:$0xff]
    %v1034 = vld [vmem:[%s1000 + $0x108] sm:$0xff]
    %v1035 = vld [vmem:[%s1000 + $0x110] sm:$0xff]
    %v1036 = vld [vmem:[%s1000 + $0x118] sm:$0xff]
    %v1037 = vld [vmem:[%s1000 + $0x120] sm:$0xff]
    %v1038 = vld [vmem:[%s1000 + $0x128] sm:$0xff]
    %v1039 = vld [vmem:[%s1000 + $0x130] sm:$0xff]
    %v1040 = vld [vmem:[%s1000 + $0x138] sm:$0xff]
    %v1041 = vld [vmem:[%s1000 + $0x140] sm:$0xff]
    %v1042 = vld [vmem:[%s1000 + $0x148] sm:$0xff]
    %v1043 = vld [vmem:[%s1000 + $0x150] sm:$0xff]
    %v1044 = vld [vmem:[%s1000 + $0x158] sm:$0xff]
    %v1045 = vld [vmem:[%s1000 + $0x160] sm:$0xff]
    %v1046 = vld [vmem:[%s1000 + $0x168] sm:$0xff]
    %v1047 = vld [vmem:[%s1000 + $0x170] sm:$0xff]
    %v1048 = vld [vmem:[%s1000 + $0x178] sm:$0xff]
    %v1049 = vld [vmem:[%s1000 + $0x180] sm:$0xff]
    %v1050 = vld [vmem:[%s1000 + $0x188] sm:$0xff]
    %v1051 = vld [vmem:[%s1000 + $0x190] sm:$0xff]
    %v1052 = vld [vmem:[%s1000 + $0x198] sm:$0xff]
    %v1053 = vld [vmem:[%s1000 + $0x1a0] sm:$0xff]
    %v1054 = vld [vmem:[%s1000 + $0x1a8] sm:$0xff]
    %v1055 = vld [vmem:[%s1000 + $0x1b0] sm:$0xff]
    %v1056 = vld [vmem:[%s1000 + $0x1b8] sm:$0xff]
    %v1057 = vld [vmem:[%s1000 + $0x1c0] sm:$0xff]
    %v1058 = vld [vmem:[%s1000 + $0x1c8] sm:$0xff]
    %v1059 = vld [vmem:[%s1000 + $0x1d0] sm:$0xff]
    %v1060 = vld [vmem:[%s1000 + $0x1d8] sm:$0xff]
    %v1061 = vld [vmem:[%s1000 + $0x1e0] sm:$0xff]
    %v1062 = vld [vmem:[%s1000 + $0x1e8] sm:$0xff]
    %v1063 = vld [vmem:[%s1000 + $0x1f0] sm:$0xff]
    %v1064 = vld [vmem:[%s1000 + $0x1f8] sm:$0xff]
    %v1065 = vld [vmem:[%s1000 + $0x200] sm:$0xff]
    %v1066 = vld [vmem:[%s1000 + $0x208] sm:$0xff]
    %v1067 = vld [vmem:[%s1000 + $0x210] sm:$0xff]
    %v1068 = vld [vmem:[%s1000 + $0x218] sm:$0xff]
    %v1069 = vld [vmem:[%s1000 + $0x220] sm:$0xff]
    %v1070 = vld [vmem:[%s1000 + $0x228] sm:$0xff]
    %v1071 = vld [vmem:[%s1000 + $0x230] sm:$0xff]
    %v1072 = vld [vmem:[%s1000 + $0x238] sm:$0xff]
    %v1073 = vld [vmem:[%s1000 + $0x240] sm:$0xff]
    %v1074 = vld [vmem:[%s1000 + $0x248] sm:$0xff]
    %v1075 = vld [vmem:[%s1000 + $0x250] sm:$0xff]
    %v1076 = vld [vmem:[%s1000 + $0x258] sm:$0xff]
    %v1077 = vld [vmem:[%s1000 + $0x260] sm:$0xff]
    %v1078 = vld [vmem:[%s1000 + $0x268] sm:$0xff]
    %v1079 = vld [vmem:[%s1000 + $0x270] sm:$0xff]
    %v1080 = vld [vmem:[%s1000 + $0x278] sm:$0xff]
    %v1081 = vld [vmem:[%s1000 + $0x280] sm:$0xff]
    %v1082 = vld [vmem:[%s1000 + $0x288] sm:$0xff]
    %v1083 = vld [vmem:[%s1000 + $0x290] sm:$0xff]
    %v1084 = vld [vmem:[%s1000 + $0x298] sm:$0xff]
    %v1085 = vld [vmem:[%s1000 + $0x2a0] sm:$0xff]
    %v1086 = vld [vmem:[%s1000 + $0x2a8] sm:$0xff]
    %v1087 = vld [vmem:[%s1000 + $0x2b0] sm:$0xff]
    %v1088 = vld [vmem:[%s1000 + $0x2b8] sm:$0xff]
    %v1089 = vld [vmem:[%s1000 + $0x2c0] sm:$0xff]
    %v1090 = vld [vmem:[%s1000 + $0x2c8] sm:$0xff]
    %v1091 = vld [vmem:[%s1000 + $0x2d0] sm:$0xff]
    %v1092 = vld [vmem:[%s1000 + $0x2d8] sm:$0xff]
    %v1093 = vld [vmem:[%s1000 + $0x2e0] sm:$0xff]
    %v1094 = vld [vmem:[%s1000 + $0x2e8] sm:$0xff]
    %v1095 = vld [vmem:[%s1000 + $0x2f0] sm:$0xff]
    %v1096 = vld [vmem:[%s1000 + $0x2f8] sm:$0xff]
    %1097 = vmatpush.msra.mxu0 %v1046
    %1098 = vmatpush.msra.mxu0 %v1043
    %1099 = vmatpush.msra.mxu0 %v1040
    %1100 = vmatpush.msra.mxu0 %v1037
    %1101 = vmatpush.msra.mxu0 %v1034
    %1102 = vmatpush.msra.mxu0 %v1031
    %1103 = vmatpush.msra.mxu0 %v1028
    %1104 = vmatpush.msra.mxu0 %v1025
    %1105 = vmatpush.msra.mxu0 %v1022
    %1106 = vmatpush.msra.mxu0 %v1019
    %1107 = vmatpush.msra.mxu0 %v1016
    %1108 = vmatpush.msra.mxu0 %v1013
    %1109 = vmatpush.msra.mxu0 %v1010
    %1110 = vmatpush.msra.mxu0 %v1007
    %1111 = vmatpush.msra.mxu0 %v1004
    %1112 = vmatpush.msra.mxu0 %v1001
    %1113 = vmatmul.f32.gmra.mxu0 %v895
    %v1114 = vpop.f32.mrf.mxu0
    %v1115 = vadd.f32 0.0, %v1114
    %1116 = vmatmul.f32.gmra.mxu0 %v898
    %v1117 = vpop.f32.mrf.mxu0
    %v1118 = vadd.f32 0.0, %v1117
    %1119 = vmatmul.f32.gmra.mxu0 %v901
    %v1120 = vpop.f32.mrf.mxu0
    %v1121 = vadd.f32 0.0, %v1120
    %1122 = vmatmul.f32.gmra.mxu0 %v904
    %v1123 = vpop.f32.mrf.mxu0
    %v1124 = vadd.f32 0.0, %v1123
    %1125 = vmatmul.f32.gmra.mxu0 %v907
    %v1126 = vpop.f32.mrf.mxu0
    %v1127 = vadd.f32 0.0, %v1126
    %1128 = vmatmul.f32.gmra.mxu0 %v910
    %v1129 = vpop.f32.mrf.mxu0
    %v1130 = vadd.f32 0.0, %v1129
    %1131 = vmatmul.f32.gmra.mxu0 %v913
    %v1132 = vpop.f32.mrf.mxu0
    %v1133 = vadd.f32 0.0, %v1132
    %1134 = vmatmul.f32.gmra.mxu0 %v916
    %v1135 = vpop.f32.mrf.mxu0
    %v1136 = vadd.f32 0.0, %v1135
    %1137 = vdwg.mxu0
    %1138 = vmatpush.msra.mxu0 %v1094
    %1139 = vmatpush.msra.mxu0 %v1091
    %1140 = vmatpush.msra.mxu0 %v1088
    %1141 = vmatpush.msra.mxu0 %v1085
    %1142 = vmatpush.msra.mxu0 %v1082
    %1143 = vmatpush.msra.mxu0 %v1079
    %1144 = vmatpush.msra.mxu0 %v1076
    %1145 = vmatpush.msra.mxu0 %v1073
    %1146 = vmatpush.msra.mxu0 %v1070
    %1147 = vmatpush.msra.mxu0 %v1067
    %1148 = vmatpush.msra.mxu0 %v1064
    %1149 = vmatpush.msra.mxu0 %v1061
    %1150 = vmatpush.msra.mxu0 %v1058
    %1151 = vmatpush.msra.mxu0 %v1055
    %1152 = vmatpush.msra.mxu0 %v1052
    %1153 = vmatpush.msra.mxu0 %v1049
    %1154 = vmatmul.f32.gmra.mxu0 %v977
    %v1155 = vpop.f32.mrf.mxu0
    %v1156 = vadd.f32 %v1115, %v1155
    %1157 = vmatmul.f32.gmra.mxu0 %v980
    %v1158 = vpop.f32.mrf.mxu0
    %v1159 = vadd.f32 %v1118, %v1158
    %1160 = vmatmul.f32.gmra.mxu0 %v983
    %v1161 = vpop.f32.mrf.mxu0
    %v1162 = vadd.f32 %v1121, %v1161
    %1163 = vmatmul.f32.gmra.mxu0 %v986
    %v1164 = vpop.f32.mrf.mxu0
    %v1165 = vadd.f32 %v1124, %v1164
    %1166 = vmatmul.f32.gmra.mxu0 %v989
    %v1167 = vpop.f32.mrf.mxu0
    %v1168 = vadd.f32 %v1127, %v1167
    %1169 = vmatmul.f32.gmra.mxu0 %v992
    %v1170 = vpop.f32.mrf.mxu0
    %v1171 = vadd.f32 %v1130, %v1170
    %1172 = vmatmul.f32.gmra.mxu0 %v995
    %v1173 = vpop.f32.mrf.mxu0
    %v1174 = vadd.f32 %v1133, %v1173
    %1175 = vmatmul.f32.gmra.mxu0 %v998
    %v1176 = vpop.f32.mrf.mxu0
    %v1177 = vadd.f32 %v1136, %v1176
    %1178 = vdwg.mxu0
    %1179 = vmatpush.msra.mxu0 %v1047
    %1180 = vmatpush.msra.mxu0 %v1044
    %1181 = vmatpush.msra.mxu0 %v1041
    %1182 = vmatpush.msra.mxu0 %v1038
    %1183 = vmatpush.msra.mxu0 %v1035
    %1184 = vmatpush.msra.mxu0 %v1032
    %1185 = vmatpush.msra.mxu0 %v1029
    %1186 = vmatpush.msra.mxu0 %v1026
    %1187 = vmatpush.msra.mxu0 %v1023
    %1188 = vmatpush.msra.mxu0 %v1020
    %1189 = vmatpush.msra.mxu0 %v1017
    %1190 = vmatpush.msra.mxu0 %v1014
    %1191 = vmatpush.msra.mxu0 %v1011
    %1192 = vmatpush.msra.mxu0 %v1008
    %1193 = vmatpush.msra.mxu0 %v1005
    %1194 = vmatpush.msra.mxu0 %v1002
    %1195 = vmatmul.f32.gmra.mxu0 %v895
    %v1196 = vpop.f32.mrf.mxu0
    %v1197 = vadd.f32 0.0, %v1196
    %1198 = vmatmul.f32.gmra.mxu0 %v898
    %v1199 = vpop.f32.mrf.mxu0
    %v1200 = vadd.f32 0.0, %v1199
    %1201 = vmatmul.f32.gmra.mxu0 %v901
    %v1202 = vpop.f32.mrf.mxu0
    %v1203 = vadd.f32 0.0, %v1202
    %1204 = vmatmul.f32.gmra.mxu0 %v904
    %v1205 = vpop.f32.mrf.mxu0
    %v1206 = vadd.f32 0.0, %v1205
    %1207 = vmatmul.f32.gmra.mxu0 %v907
    %v1208 = vpop.f32.mrf.mxu0
    %v1209 = vadd.f32 0.0, %v1208
    %1210 = vmatmul.f32.gmra.mxu0 %v910
    %v1211 = vpop.f32.mrf.mxu0
    %v1212 = vadd.f32 0.0, %v1211
    %1213 = vmatmul.f32.gmra.mxu0 %v913
    %v1214 = vpop.f32.mrf.mxu0
    %v1215 = vadd.f32 0.0, %v1214
    %1216 = vmatmul.f32.gmra.mxu0 %v916
    %v1217 = vpop.f32.mrf.mxu0
    %v1218 = vadd.f32 0.0, %v1217
    %1219 = vdwg.mxu0
    %1220 = vmatpush.msra.mxu0 %v1095
    %1221 = vmatpush.msra.mxu0 %v1092
    %1222 = vmatpush.msra.mxu0 %v1089
    %1223 = vmatpush.msra.mxu0 %v1086
    %1224 = vmatpush.msra.mxu0 %v1083
    %1225 = vmatpush.msra.mxu0 %v1080
    %1226 = vmatpush.msra.mxu0 %v1077
    %1227 = vmatpush.msra.mxu0 %v1074
    %1228 = vmatpush.msra.mxu0 %v1071
    %1229 = vmatpush.msra.mxu0 %v1068
    %1230 = vmatpush.msra.mxu0 %v1065
    %1231 = vmatpush.msra.mxu0 %v1062
    %1232 = vmatpush.msra.mxu0 %v1059
    %1233 = vmatpush.msra.mxu0 %v1056
    %1234 = vmatpush.msra.mxu0 %v1053
    %1235 = vmatpush.msra.mxu0 %v1050
    %1236 = vmatmul.f32.gmra.mxu0 %v977
    %v1237 = vpop.f32.mrf.mxu0
    %v1238 = vadd.f32 %v1197, %v1237
    %1239 = vmatmul.f32.gmra.mxu0 %v980
    %v1240 = vpop.f32.mrf.mxu0
    %v1241 = vadd.f32 %v1200, %v1240
    %1242 = vmatmul.f32.gmra.mxu0 %v983
    %v1243 = vpop.f32.mrf.mxu0
    %v1244 = vadd.f32 %v1203, %v1243
    %1245 = vmatmul.f32.gmra.mxu0 %v986
    %v1246 = vpop.f32.mrf.mxu0
    %v1247 = vadd.f32 %v1206, %v1246
    %1248 = vmatmul.f32.gmra.mxu0 %v989
    %v1249 = vpop.f32.mrf.mxu0
    %v1250 = vadd.f32 %v1209, %v1249
    %1251 = vmatmul.f32.gmra.mxu0 %v992
    %v1252 = vpop.f32.mrf.mxu0
    %v1253 = vadd.f32 %v1212, %v1252
    %1254 = vmatmul.f32.gmra.mxu0 %v995
    %v1255 = vpop.f32.mrf.mxu0
    %v1256 = vadd.f32 %v1215, %v1255
    %1257 = vmatmul.f32.gmra.mxu0 %v998
    %v1258 = vpop.f32.mrf.mxu0
    %v1259 = vadd.f32 %v1218, %v1258
    %1260 = vdwg.mxu0
    %1261 = vmatpush.msra.mxu0 %v1048
    %1262 = vmatpush.msra.mxu0 %v1045
    %1263 = vmatpush.msra.mxu0 %v1042
    %1264 = vmatpush.msra.mxu0 %v1039
    %1265 = vmatpush.msra.mxu0 %v1036
    %1266 = vmatpush.msra.mxu0 %v1033
    %1267 = vmatpush.msra.mxu0 %v1030
    %1268 = vmatpush.msra.mxu0 %v1027
    %1269 = vmatpush.msra.mxu0 %v1024
    %1270 = vmatpush.msra.mxu0 %v1021
    %1271 = vmatpush.msra.mxu0 %v1018
    %1272 = vmatpush.msra.mxu0 %v1015
    %1273 = vmatpush.msra.mxu0 %v1012
    %1274 = vmatpush.msra.mxu0 %v1009
    %1275 = vmatpush.msra.mxu0 %v1006
    %1276 = vmatpush.msra.mxu0 %v1003
    %1277 = vmatmul.f32.gmra.mxu0 %v895
    %v1278 = vpop.f32.mrf.mxu0
    %v1279 = vadd.f32 0.0, %v1278
    %1280 = vmatmul.f32.gmra.mxu0 %v898
    %v1281 = vpop.f32.mrf.mxu0
    %v1282 = vadd.f32 0.0, %v1281
    %1283 = vmatmul.f32.gmra.mxu0 %v901
    %v1284 = vpop.f32.mrf.mxu0
    %v1285 = vadd.f32 0.0, %v1284
    %1286 = vmatmul.f32.gmra.mxu0 %v904
    %v1287 = vpop.f32.mrf.mxu0
    %v1288 = vadd.f32 0.0, %v1287
    %1289 = vmatmul.f32.gmra.mxu0 %v907
    %v1290 = vpop.f32.mrf.mxu0
    %v1291 = vadd.f32 0.0, %v1290
    %1292 = vmatmul.f32.gmra.mxu0 %v910
    %v1293 = vpop.f32.mrf.mxu0
    %v1294 = vadd.f32 0.0, %v1293
    %1295 = vmatmul.f32.gmra.mxu0 %v913
    %v1296 = vpop.f32.mrf.mxu0
    %v1297 = vadd.f32 0.0, %v1296
    %1298 = vmatmul.f32.gmra.mxu0 %v916
    %v1299 = vpop.f32.mrf.mxu0
    %v1300 = vadd.f32 0.0, %v1299
    %1301 = vdwg.mxu0
    %1302 = vmatpush.msra.mxu0 %v1096
    %1303 = vmatpush.msra.mxu0 %v1093
    %1304 = vmatpush.msra.mxu0 %v1090
    %1305 = vmatpush.msra.mxu0 %v1087
    %1306 = vmatpush.msra.mxu0 %v1084
    %1307 = vmatpush.msra.mxu0 %v1081
    %1308 = vmatpush.msra.mxu0 %v1078
    %1309 = vmatpush.msra.mxu0 %v1075
    %1310 = vmatpush.msra.mxu0 %v1072
    %1311 = vmatpush.msra.mxu0 %v1069
    %1312 = vmatpush.msra.mxu0 %v1066
    %1313 = vmatpush.msra.mxu0 %v1063
    %1314 = vmatpush.msra.mxu0 %v1060
    %1315 = vmatpush.msra.mxu0 %v1057
    %1316 = vmatpush.msra.mxu0 %v1054
    %1317 = vmatpush.msra.mxu0 %v1051
    %1318 = vmatmul.f32.gmra.mxu0 %v977
    %v1319 = vpop.f32.mrf.mxu0
    %v1320 = vadd.f32 %v1279, %v1319
    %1321 = vmatmul.f32.gmra.mxu0 %v980
    %v1322 = vpop.f32.mrf.mxu0
    %v1323 = vadd.f32 %v1282, %v1322
    %1324 = vmatmul.f32.gmra.mxu0 %v983
    %v1325 = vpop.f32.mrf.mxu0
    %v1326 = vadd.f32 %v1285, %v1325
    %1327 = vmatmul.f32.gmra.mxu0 %v986
    %v1328 = vpop.f32.mrf.mxu0
    %v1329 = vadd.f32 %v1288, %v1328
    %1330 = vmatmul.f32.gmra.mxu0 %v989
    %v1331 = vpop.f32.mrf.mxu0
    %v1332 = vadd.f32 %v1291, %v1331
    %1333 = vmatmul.f32.gmra.mxu0 %v992
    %v1334 = vpop.f32.mrf.mxu0
    %v1335 = vadd.f32 %v1294, %v1334
    %1336 = vmatmul.f32.gmra.mxu0 %v995
    %v1337 = vpop.f32.mrf.mxu0
    %v1338 = vadd.f32 %v1297, %v1337
    %1339 = vmatmul.f32.gmra.mxu0 %v998
    %v1340 = vpop.f32.mrf.mxu0
    %v1341 = vadd.f32 %v1300, %v1340
    %1342 = vdwg.mxu0
    %1343 = vmatpush.msra.mxu0 %v744
    %1344 = vmatpush.msra.mxu0 %v741
    %1345 = vmatpush.msra.mxu0 %v738
    %1346 = vmatpush.msra.mxu0 %v735
    %1347 = vmatpush.msra.mxu0 %v732
    %1348 = vmatpush.msra.mxu0 %v729
    %1349 = vmatpush.msra.mxu0 %v726
    %1350 = vmatpush.msra.mxu0 %v723
    %1351 = vmatpush.msra.mxu0 %v720
    %1352 = vmatpush.msra.mxu0 %v717
    %1353 = vmatpush.msra.mxu0 %v714
    %1354 = vmatpush.msra.mxu0 %v711
    %1355 = vmatpush.msra.mxu0 %v708
    %1356 = vmatpush.msra.mxu0 %v705
    %1357 = vmatpush.msra.mxu0 %v702
    %1358 = vmatpush.msra.mxu0 %v699
    %1359 = vmatmul.f32.gmra.mxu0 %v594
    %v1360 = vpop.f32.mrf.mxu0
    %v1361 = vadd.f32 %v1156, %v1360
    %1362 = vmatmul.f32.gmra.mxu0 %v597
    %v1363 = vpop.f32.mrf.mxu0
    %v1364 = vadd.f32 %v1159, %v1363
    %1365 = vmatmul.f32.gmra.mxu0 %v600
    %v1366 = vpop.f32.mrf.mxu0
    %v1367 = vadd.f32 %v1162, %v1366
    %1368 = vmatmul.f32.gmra.mxu0 %v603
    %v1369 = vpop.f32.mrf.mxu0
    %v1370 = vadd.f32 %v1165, %v1369
    %1371 = vmatmul.f32.gmra.mxu0 %v606
    %v1372 = vpop.f32.mrf.mxu0
    %v1373 = vadd.f32 %v1168, %v1372
    %1374 = vmatmul.f32.gmra.mxu0 %v609
    %v1375 = vpop.f32.mrf.mxu0
    %v1376 = vadd.f32 %v1171, %v1375
    %1377 = vmatmul.f32.gmra.mxu0 %v612
    %v1378 = vpop.f32.mrf.mxu0
    %v1379 = vadd.f32 %v1174, %v1378
    %1380 = vmatmul.f32.gmra.mxu0 %v615
    %v1381 = vpop.f32.mrf.mxu0
    %v1382 = vadd.f32 %v1177, %v1381
    %1383 = vdwg.mxu0
    %1384 = vmatpush.msra.mxu0 %v792
    %1385 = vmatpush.msra.mxu0 %v789
    %1386 = vmatpush.msra.mxu0 %v786
    %1387 = vmatpush.msra.mxu0 %v783
    %1388 = vmatpush.msra.mxu0 %v780
    %1389 = vmatpush.msra.mxu0 %v777
    %1390 = vmatpush.msra.mxu0 %v774
    %1391 = vmatpush.msra.mxu0 %v771
    %1392 = vmatpush.msra.mxu0 %v768
    %1393 = vmatpush.msra.mxu0 %v765
    %1394 = vmatpush.msra.mxu0 %v762
    %1395 = vmatpush.msra.mxu0 %v759
    %1396 = vmatpush.msra.mxu0 %v756
    %1397 = vmatpush.msra.mxu0 %v753
    %1398 = vmatpush.msra.mxu0 %v750
    %1399 = vmatpush.msra.mxu0 %v747
    %1400 = vmatmul.f32.gmra.mxu0 %v676
    %v1401 = vpop.f32.mrf.mxu0
    %v1402 = vadd.f32 %v1361, %v1401
    %1403 = vmatmul.f32.gmra.mxu0 %v679
    %v1404 = vpop.f32.mrf.mxu0
    %v1405 = vadd.f32 %v1364, %v1404
    %1406 = vmatmul.f32.gmra.mxu0 %v682
    %v1407 = vpop.f32.mrf.mxu0
    %v1408 = vadd.f32 %v1367, %v1407
    %1409 = vmatmul.f32.gmra.mxu0 %v685
    %v1410 = vpop.f32.mrf.mxu0
    %v1411 = vadd.f32 %v1370, %v1410
    %1412 = vmatmul.f32.gmra.mxu0 %v688
    %v1413 = vpop.f32.mrf.mxu0
    %v1414 = vadd.f32 %v1373, %v1413
    %1415 = vmatmul.f32.gmra.mxu0 %v691
    %v1416 = vpop.f32.mrf.mxu0
    %v1417 = vadd.f32 %v1376, %v1416
    %1418 = vmatmul.f32.gmra.mxu0 %v694
    %v1419 = vpop.f32.mrf.mxu0
    %v1420 = vadd.f32 %v1379, %v1419
    %1421 = vmatmul.f32.gmra.mxu0 %v697
    %v1422 = vpop.f32.mrf.mxu0
    %v1423 = vadd.f32 %v1382, %v1422
    %1424 = vdwg.mxu0
    %1425 = vmatpush.msra.mxu0 %v745
    %1426 = vmatpush.msra.mxu0 %v742
    %1427 = vmatpush.msra.mxu0 %v739
    %1428 = vmatpush.msra.mxu0 %v736
    %1429 = vmatpush.msra.mxu0 %v733
    %1430 = vmatpush.msra.mxu0 %v730
    %1431 = vmatpush.msra.mxu0 %v727
    %1432 = vmatpush.msra.mxu0 %v724
    %1433 = vmatpush.msra.mxu0 %v721
    %1434 = vmatpush.msra.mxu0 %v718
    %1435 = vmatpush.msra.mxu0 %v715
    %1436 = vmatpush.msra.mxu0 %v712
    %1437 = vmatpush.msra.mxu0 %v709
    %1438 = vmatpush.msra.mxu0 %v706
    %1439 = vmatpush.msra.mxu0 %v703
    %1440 = vmatpush.msra.mxu0 %v700
    %1441 = vmatmul.f32.gmra.mxu0 %v594
    %v1442 = vpop.f32.mrf.mxu0
    %v1443 = vadd.f32 %v1238, %v1442
    %1444 = vmatmul.f32.gmra.mxu0 %v597
    %v1445 = vpop.f32.mrf.mxu0
    %v1446 = vadd.f32 %v1241, %v1445
    %1447 = vmatmul.f32.gmra.mxu0 %v600
    %v1448 = vpop.f32.mrf.mxu0
    %v1449 = vadd.f32 %v1244, %v1448
    %1450 = vmatmul.f32.gmra.mxu0 %v603
    %v1451 = vpop.f32.mrf.mxu0
    %v1452 = vadd.f32 %v1247, %v1451
    %1453 = vmatmul.f32.gmra.mxu0 %v606
    %v1454 = vpop.f32.mrf.mxu0
    %v1455 = vadd.f32 %v1250, %v1454
    %1456 = vmatmul.f32.gmra.mxu0 %v609
    %v1457 = vpop.f32.mrf.mxu0
    %v1458 = vadd.f32 %v1253, %v1457
    %1459 = vmatmul.f32.gmra.mxu0 %v612
    %v1460 = vpop.f32.mrf.mxu0
    %v1461 = vadd.f32 %v1256, %v1460
    %1462 = vmatmul.f32.gmra.mxu0 %v615
    %v1463 = vpop.f32.mrf.mxu0
    %v1464 = vadd.f32 %v1259, %v1463
    %1465 = vdwg.mxu0
    %1466 = vmatpush.msra.mxu0 %v793
    %1467 = vmatpush.msra.mxu0 %v790
    %1468 = vmatpush.msra.mxu0 %v787
    %1469 = vmatpush.msra.mxu0 %v784
    %1470 = vmatpush.msra.mxu0 %v781
    %1471 = vmatpush.msra.mxu0 %v778
    %1472 = vmatpush.msra.mxu0 %v775
    %1473 = vmatpush.msra.mxu0 %v772
    %1474 = vmatpush.msra.mxu0 %v769
    %1475 = vmatpush.msra.mxu0 %v766
    %1476 = vmatpush.msra.mxu0 %v763
    %1477 = vmatpush.msra.mxu0 %v760
    %1478 = vmatpush.msra.mxu0 %v757
    %1479 = vmatpush.msra.mxu0 %v754
    %1480 = vmatpush.msra.mxu0 %v751
    %1481 = vmatpush.msra.mxu0 %v748
    %1482 = vmatmul.f32.gmra.mxu0 %v676
    %v1483 = vpop.f32.mrf.mxu0
    %v1484 = vadd.f32 %v1443, %v1483
    %1485 = vmatmul.f32.gmra.mxu0 %v679
    %v1486 = vpop.f32.mrf.mxu0
    %v1487 = vadd.f32 %v1446, %v1486
    %1488 = vmatmul.f32.gmra.mxu0 %v682
    %v1489 = vpop.f32.mrf.mxu0
    %v1490 = vadd.f32 %v1449, %v1489
    %1491 = vmatmul.f32.gmra.mxu0 %v685
    %v1492 = vpop.f32.mrf.mxu0
    %v1493 = vadd.f32 %v1452, %v1492
    %1494 = vmatmul.f32.gmra.mxu0 %v688
    %v1495 = vpop.f32.mrf.mxu0
    %v1496 = vadd.f32 %v1455, %v1495
    %1497 = vmatmul.f32.gmra.mxu0 %v691
    %v1498 = vpop.f32.mrf.mxu0
    %v1499 = vadd.f32 %v1458, %v1498
    %1500 = vmatmul.f32.gmra.mxu0 %v694
    %v1501 = vpop.f32.mrf.mxu0
    %v1502 = vadd.f32 %v1461, %v1501
    %1503 = vmatmul.f32.gmra.mxu0 %v697
    %v1504 = vpop.f32.mrf.mxu0
    %v1505 = vadd.f32 %v1464, %v1504
    %1506 = vdwg.mxu0
    %1507 = vmatpush.msra.mxu0 %v746
    %1508 = vmatpush.msra.mxu0 %v743
    %1509 = vmatpush.msra.mxu0 %v740
    %1510 = vmatpush.msra.mxu0 %v737
    %1511 = vmatpush.msra.mxu0 %v734
    %1512 = vmatpush.msra.mxu0 %v731
    %1513 = vmatpush.msra.mxu0 %v728
    %1514 = vmatpush.msra.mxu0 %v725
    %1515 = vmatpush.msra.mxu0 %v722
    %1516 = vmatpush.msra.mxu0 %v719
    %1517 = vmatpush.msra.mxu0 %v716
    %1518 = vmatpush.msra.mxu0 %v713
    %1519 = vmatpush.msra.mxu0 %v710
    %1520 = vmatpush.msra.mxu0 %v707
    %1521 = vmatpush.msra.mxu0 %v704
    %1522 = vmatpush.msra.mxu0 %v701
    %1523 = vmatmul.f32.gmra.mxu0 %v594
    %v1524 = vpop.f32.mrf.mxu0
    %v1525 = vadd.f32 %v1320, %v1524
    %1526 = vmatmul.f32.gmra.mxu0 %v597
    %v1527 = vpop.f32.mrf.mxu0
    %v1528 = vadd.f32 %v1323, %v1527
    %1529 = vmatmul.f32.gmra.mxu0 %v600
    %v1530 = vpop.f32.mrf.mxu0
    %v1531 = vadd.f32 %v1326, %v1530
    %1532 = vmatmul.f32.gmra.mxu0 %v603
    %v1533 = vpop.f32.mrf.mxu0
    %v1534 = vadd.f32 %v1329, %v1533
    %1535 = vmatmul.f32.gmra.mxu0 %v606
    %v1536 = vpop.f32.mrf.mxu0
    %v1537 = vadd.f32 %v1332, %v1536
    %1538 = vmatmul.f32.gmra.mxu0 %v609
    %v1539 = vpop.f32.mrf.mxu0
    %v1540 = vadd.f32 %v1335, %v1539
    %1541 = vmatmul.f32.gmra.mxu0 %v612
    %v1542 = vpop.f32.mrf.mxu0
    %v1543 = vadd.f32 %v1338, %v1542
    %1544 = vmatmul.f32.gmra.mxu0 %v615
    %v1545 = vpop.f32.mrf.mxu0
    %v1546 = vadd.f32 %v1341, %v1545
    %1547 = vdwg.mxu0
    %1548 = vmatpush.msra.mxu0 %v794
    %1549 = vmatpush.msra.mxu0 %v791
    %1550 = vmatpush.msra.mxu0 %v788
    %1551 = vmatpush.msra.mxu0 %v785
    %1552 = vmatpush.msra.mxu0 %v782
    %1553 = vmatpush.msra.mxu0 %v779
    %1554 = vmatpush.msra.mxu0 %v776
    %1555 = vmatpush.msra.mxu0 %v773
    %1556 = vmatpush.msra.mxu0 %v770
    %1557 = vmatpush.msra.mxu0 %v767
    %1558 = vmatpush.msra.mxu0 %v764
    %1559 = vmatpush.msra.mxu0 %v761
    %1560 = vmatpush.msra.mxu0 %v758
    %1561 = vmatpush.msra.mxu0 %v755
    %1562 = vmatpush.msra.mxu0 %v752
    %1563 = vmatpush.msra.mxu0 %v749
    %1564 = vmatmul.f32.gmra.mxu0 %v676
    %v1565 = vpop.f32.mrf.mxu0
    %v1566 = vadd.f32 %v1525, %v1565
    %1567 = vmatmul.f32.gmra.mxu0 %v679
    %v1568 = vpop.f32.mrf.mxu0
    %v1569 = vadd.f32 %v1528, %v1568
    %1570 = vmatmul.f32.gmra.mxu0 %v682
    %v1571 = vpop.f32.mrf.mxu0
    %v1572 = vadd.f32 %v1531, %v1571
    %1573 = vmatmul.f32.gmra.mxu0 %v685
    %v1574 = vpop.f32.mrf.mxu0
    %v1575 = vadd.f32 %v1534, %v1574
    %1576 = vmatmul.f32.gmra.mxu0 %v688
    %v1577 = vpop.f32.mrf.mxu0
    %v1578 = vadd.f32 %v1537, %v1577
    %1579 = vmatmul.f32.gmra.mxu0 %v691
    %v1580 = vpop.f32.mrf.mxu0
    %v1581 = vadd.f32 %v1540, %v1580
    %1582 = vmatmul.f32.gmra.mxu0 %v694
    %v1583 = vpop.f32.mrf.mxu0
    %v1584 = vadd.f32 %v1543, %v1583
    %1585 = vmatmul.f32.gmra.mxu0 %v697
    %v1586 = vpop.f32.mrf.mxu0
    %v1587 = vadd.f32 %v1546, %v1586
    %1588 = vdwg.mxu0
    %s1589 = scalar_lea.vmem [#allocation9], 256
    %v1590 = vld [vmem:[%s1589] sm:$0xff]
    %v1591 = vld [vmem:[%s1589 + $0x8] sm:$0xff]
    %v1592 = vld [vmem:[%s1589 + $0x10] sm:$0xff]
    %v1593 = vld [vmem:[%s1589 + $0x18] sm:$0xff]
    %v1594 = vld [vmem:[%s1589 + $0x20] sm:$0xff]
    %v1595 = vld [vmem:[%s1589 + $0x28] sm:$0xff]
    %v1596 = vld [vmem:[%s1589 + $0x30] sm:$0xff]
    %v1597 = vld [vmem:[%s1589 + $0x38] sm:$0xff]
    %v1598 = vld [vmem:[%s1589 + $0x40] sm:$0xff]
    %v1599 = vld [vmem:[%s1589 + $0x48] sm:$0xff]
    %v1600 = vld [vmem:[%s1589 + $0x50] sm:$0xff]
    %v1601 = vld [vmem:[%s1589 + $0x58] sm:$0xff]
    %v1602 = vld [vmem:[%s1589 + $0x60] sm:$0xff]
    %v1603 = vld [vmem:[%s1589 + $0x68] sm:$0xff]
    %v1604 = vld [vmem:[%s1589 + $0x70] sm:$0xff]
    %v1605 = vld [vmem:[%s1589 + $0x78] sm:$0xff]
    %v1607 = vsel %vm510, %v1591, 0
    %v1610 = vsel %vm510, %v1593, 0
    %v1613 = vsel %vm510, %v1595, 0
    %v1616 = vsel %vm510, %v1597, 0
    %v1619 = vsel %vm510, %v1599, 0
    %v1622 = vsel %vm510, %v1601, 0
    %v1625 = vsel %vm510, %v1603, 0
    %v1628 = vsel %vm510, %v1605, 0
    %1630 = vmatpush.msra.mxu0 %v490
    %1631 = vmatpush.msra.mxu0 %v488
    %1632 = vmatpush.msra.mxu0 %v486
    %1633 = vmatpush.msra.mxu0 %v484
    %1634 = vmatpush.msra.mxu0 %v482
    %1635 = vmatpush.msra.mxu0 %v480
    %1636 = vmatpush.msra.mxu0 %v478
    %1637 = vmatpush.msra.mxu0 %v476
    %1638 = vmatpush.msra.mxu0 %v474
    %1639 = vmatpush.msra.mxu0 %v472
    %1640 = vmatpush.msra.mxu0 %v470
    %1641 = vmatpush.msra.mxu0 %v468
    %1642 = vmatpush.msra.mxu0 %v466
    %1643 = vmatpush.msra.mxu0 %v464
    %1644 = vmatpush.msra.mxu0 %v462
    %1645 = vmatpush.msra.mxu0 %v460
    %1646 = vmatmul.f32.gmra.mxu0 %v1590
    %v1647 = vpop.f32.mrf.mxu0
    %v1648 = vadd.f32 0.0, %v1647
    %1649 = vmatmul.f32.gmra.mxu0 %v1592
    %v1650 = vpop.f32.mrf.mxu0
    %v1651 = vadd.f32 0.0, %v1650
    %1652 = vmatmul.f32.gmra.mxu0 %v1594
    %v1653 = vpop.f32.mrf.mxu0
    %v1654 = vadd.f32 0.0, %v1653
    %1655 = vmatmul.f32.gmra.mxu0 %v1596
    %v1656 = vpop.f32.mrf.mxu0
    %v1657 = vadd.f32 0.0, %v1656
    %1658 = vmatmul.f32.gmra.mxu0 %v1598
    %v1659 = vpop.f32.mrf.mxu0
    %v1660 = vadd.f32 0.0, %v1659
    %1661 = vmatmul.f32.gmra.mxu0 %v1600
    %v1662 = vpop.f32.mrf.mxu0
    %v1663 = vadd.f32 0.0, %v1662
    %1664 = vmatmul.f32.gmra.mxu0 %v1602
    %v1665 = vpop.f32.mrf.mxu0
    %v1666 = vadd.f32 0.0, %v1665
    %1667 = vmatmul.f32.gmra.mxu0 %v1604
    %v1668 = vpop.f32.mrf.mxu0
    %v1669 = vadd.f32 0.0, %v1668
    %1670 = vdwg.mxu0
    %1671 = vmatpush.msra.mxu0 0.0
    %1672 = vmatpush.msra.mxu0 0.0
    %1673 = vmatpush.msra.mxu0 0.0
    %1674 = vmatpush.msra.mxu0 0.0
    %1675 = vmatpush.msra.mxu0 0.0
    %1676 = vmatpush.msra.mxu0 0.0
    %1677 = vmatpush.msra.mxu0 0.0
    %1678 = vmatpush.msra.mxu0 0.0
    %1679 = vmatpush.msra.mxu0 0.0
    %1680 = vmatpush.msra.mxu0 0.0
    %1681 = vmatpush.msra.mxu0 0.0
    %1682 = vmatpush.msra.mxu0 0.0
    %1683 = vmatpush.msra.mxu0 0.0
    %1684 = vmatpush.msra.mxu0 0.0
    %1685 = vmatpush.msra.mxu0 0.0
    %1686 = vmatpush.msra.mxu0 %v492
    %1687 = vmatmul.f32.gmra.mxu0 %v1607
    %v1688 = vpop.f32.mrf.mxu0
    %v1689 = vadd.f32 %v1648, %v1688
    %1690 = vmatmul.f32.gmra.mxu0 %v1610
    %v1691 = vpop.f32.mrf.mxu0
    %v1692 = vadd.f32 %v1651, %v1691
    %1693 = vmatmul.f32.gmra.mxu0 %v1613
    %v1694 = vpop.f32.mrf.mxu0
    %v1695 = vadd.f32 %v1654, %v1694
    %1696 = vmatmul.f32.gmra.mxu0 %v1616
    %v1697 = vpop.f32.mrf.mxu0
    %v1698 = vadd.f32 %v1657, %v1697
    %1699 = vmatmul.f32.gmra.mxu0 %v1619
    %v1700 = vpop.f32.mrf.mxu0
    %v1701 = vadd.f32 %v1660, %v1700
    %1702 = vmatmul.f32.gmra.mxu0 %v1622
    %v1703 = vpop.f32.mrf.mxu0
    %v1704 = vadd.f32 %v1663, %v1703
    %1705 = vmatmul.f32.gmra.mxu0 %v1625
    %v1706 = vpop.f32.mrf.mxu0
    %v1707 = vadd.f32 %v1666, %v1706
    %1708 = vmatmul.f32.gmra.mxu0 %v1628
    %v1709 = vpop.f32.mrf.mxu0
    %v1710 = vadd.f32 %v1669, %v1709
    %1711 = vdwg.mxu0
    %1712 = vmatpush.msra.mxu0 %v491
    %1713 = vmatpush.msra.mxu0 %v489
    %1714 = vmatpush.msra.mxu0 %v487
    %1715 = vmatpush.msra.mxu0 %v485
    %1716 = vmatpush.msra.mxu0 %v483
    %1717 = vmatpush.msra.mxu0 %v481
    %1718 = vmatpush.msra.mxu0 %v479
    %1719 = vmatpush.msra.mxu0 %v477
    %1720 = vmatpush.msra.mxu0 %v475
    %1721 = vmatpush.msra.mxu0 %v473
    %1722 = vmatpush.msra.mxu0 %v471
    %1723 = vmatpush.msra.mxu0 %v469
    %1724 = vmatpush.msra.mxu0 %v467
    %1725 = vmatpush.msra.mxu0 %v465
    %1726 = vmatpush.msra.mxu0 %v463
    %1727 = vmatpush.msra.mxu0 %v461
    %1728 = vmatmul.f32.gmra.mxu0 %v1590
    %v1729 = vpop.f32.mrf.mxu0
    %v1730 = vadd.f32 0.0, %v1729
    %1731 = vmatmul.f32.gmra.mxu0 %v1592
    %v1732 = vpop.f32.mrf.mxu0
    %v1733 = vadd.f32 0.0, %v1732
    %1734 = vmatmul.f32.gmra.mxu0 %v1594
    %v1735 = vpop.f32.mrf.mxu0
    %v1736 = vadd.f32 0.0, %v1735
    %1737 = vmatmul.f32.gmra.mxu0 %v1596
    %v1738 = vpop.f32.mrf.mxu0
    %v1739 = vadd.f32 0.0, %v1738
    %1740 = vmatmul.f32.gmra.mxu0 %v1598
    %v1741 = vpop.f32.mrf.mxu0
    %v1742 = vadd.f32 0.0, %v1741
    %1743 = vmatmul.f32.gmra.mxu0 %v1600
    %v1744 = vpop.f32.mrf.mxu0
    %v1745 = vadd.f32 0.0, %v1744
    %1746 = vmatmul.f32.gmra.mxu0 %v1602
    %v1747 = vpop.f32.mrf.mxu0
    %v1748 = vadd.f32 0.0, %v1747
    %1749 = vmatmul.f32.gmra.mxu0 %v1604
    %v1750 = vpop.f32.mrf.mxu0
    %v1751 = vadd.f32 0.0, %v1750
    %1752 = vdwg.mxu0
    %1753 = vmatpush.msra.mxu0 0.0
    %1754 = vmatpush.msra.mxu0 0.0
    %1755 = vmatpush.msra.mxu0 0.0
    %1756 = vmatpush.msra.mxu0 0.0
    %1757 = vmatpush.msra.mxu0 0.0
    %1758 = vmatpush.msra.mxu0 0.0
    %1759 = vmatpush.msra.mxu0 0.0
    %1760 = vmatpush.msra.mxu0 0.0
    %1761 = vmatpush.msra.mxu0 0.0
    %1762 = vmatpush.msra.mxu0 0.0
    %1763 = vmatpush.msra.mxu0 0.0
    %1764 = vmatpush.msra.mxu0 0.0
    %1765 = vmatpush.msra.mxu0 0.0
    %1766 = vmatpush.msra.mxu0 0.0
    %1767 = vmatpush.msra.mxu0 0.0
    %1768 = vmatpush.msra.mxu0 %v493
    %1769 = vmatmul.f32.gmra.mxu0 %v1607
    %v1770 = vpop.f32.mrf.mxu0
    %v1771 = vadd.f32 %v1730, %v1770
    %1772 = vmatmul.f32.gmra.mxu0 %v1610
    %v1773 = vpop.f32.mrf.mxu0
    %v1774 = vadd.f32 %v1733, %v1773
    %1775 = vmatmul.f32.gmra.mxu0 %v1613
    %v1776 = vpop.f32.mrf.mxu0
    %v1777 = vadd.f32 %v1736, %v1776
    %1778 = vmatmul.f32.gmra.mxu0 %v1616
    %v1779 = vpop.f32.mrf.mxu0
    %v1780 = vadd.f32 %v1739, %v1779
    %1781 = vmatmul.f32.gmra.mxu0 %v1619
    %v1782 = vpop.f32.mrf.mxu0
    %v1783 = vadd.f32 %v1742, %v1782
    %1784 = vmatmul.f32.gmra.mxu0 %v1622
    %v1785 = vpop.f32.mrf.mxu0
    %v1786 = vadd.f32 %v1745, %v1785
    %1787 = vmatmul.f32.gmra.mxu0 %v1625
    %v1788 = vpop.f32.mrf.mxu0
    %v1789 = vadd.f32 %v1748, %v1788
    %1790 = vmatmul.f32.gmra.mxu0 %v1628
    %v1791 = vpop.f32.mrf.mxu0
    %v1792 = vadd.f32 %v1751, %v1791
    %1793 = vdwg.mxu0
    %s1794 = scalar_lea.vmem [#allocation11], 1536
    %v1795 = vld [vmem:[%s1794] sm:$0xff]
    %v1796 = vld [vmem:[%s1794 + $0x8] sm:$0xff]
    %v1797 = vld [vmem:[%s1794 + $0x10] sm:$0xff]
    %v1798 = vld [vmem:[%s1794 + $0x18] sm:$0xff]
    %v1799 = vld [vmem:[%s1794 + $0x20] sm:$0xff]
    %v1800 = vld [vmem:[%s1794 + $0x28] sm:$0xff]
    %v1801 = vld [vmem:[%s1794 + $0x30] sm:$0xff]
    %v1802 = vld [vmem:[%s1794 + $0x38] sm:$0xff]
    %v1803 = vld [vmem:[%s1794 + $0x40] sm:$0xff]
    %v1804 = vld [vmem:[%s1794 + $0x48] sm:$0xff]
    %v1805 = vld [vmem:[%s1794 + $0x50] sm:$0xff]
    %v1806 = vld [vmem:[%s1794 + $0x58] sm:$0xff]
    %v1807 = vld [vmem:[%s1794 + $0x60] sm:$0xff]
    %v1808 = vld [vmem:[%s1794 + $0x68] sm:$0xff]
    %v1809 = vld [vmem:[%s1794 + $0x70] sm:$0xff]
    %v1810 = vld [vmem:[%s1794 + $0x78] sm:$0xff]
    %v1811 = vld [vmem:[%s1794 + $0x80] sm:$0xff]
    %v1812 = vld [vmem:[%s1794 + $0x88] sm:$0xff]
    %v1813 = vld [vmem:[%s1794 + $0x90] sm:$0xff]
    %v1814 = vld [vmem:[%s1794 + $0x98] sm:$0xff]
    %v1815 = vld [vmem:[%s1794 + $0xa0] sm:$0xff]
    %v1816 = vld [vmem:[%s1794 + $0xa8] sm:$0xff]
    %v1817 = vld [vmem:[%s1794 + $0xb0] sm:$0xff]
    %v1818 = vld [vmem:[%s1794 + $0xb8] sm:$0xff]
    %v1819 = vld [vmem:[%s1794 + $0xc0] sm:$0xff]
    %v1820 = vld [vmem:[%s1794 + $0xc8] sm:$0xff]
    %v1821 = vld [vmem:[%s1794 + $0xd0] sm:$0xff]
    %v1822 = vld [vmem:[%s1794 + $0xd8] sm:$0xff]
    %v1823 = vld [vmem:[%s1794 + $0xe0] sm:$0xff]
    %v1824 = vld [vmem:[%s1794 + $0xe8] sm:$0xff]
    %v1825 = vld [vmem:[%s1794 + $0xf0] sm:$0xff]
    %v1826 = vld [vmem:[%s1794 + $0xf8] sm:$0xff]
    %v1827 = vld [vmem:[%s1794 + $0x100] sm:$0xff]
    %v1828 = vld [vmem:[%s1794 + $0x108] sm:$0xff]
    %v1829 = vld [vmem:[%s1794 + $0x110] sm:$0xff]
    %v1830 = vld [vmem:[%s1794 + $0x118] sm:$0xff]
    %v1831 = vld [vmem:[%s1794 + $0x120] sm:$0xff]
    %v1832 = vld [vmem:[%s1794 + $0x128] sm:$0xff]
    %v1833 = vld [vmem:[%s1794 + $0x130] sm:$0xff]
    %v1834 = vld [vmem:[%s1794 + $0x138] sm:$0xff]
    %v1835 = vld [vmem:[%s1794 + $0x140] sm:$0xff]
    %v1836 = vld [vmem:[%s1794 + $0x148] sm:$0xff]
    %v1837 = vld [vmem:[%s1794 + $0x150] sm:$0xff]
    %v1838 = vld [vmem:[%s1794 + $0x158] sm:$0xff]
    %v1839 = vld [vmem:[%s1794 + $0x160] sm:$0xff]
    %v1840 = vld [vmem:[%s1794 + $0x168] sm:$0xff]
    %v1841 = vld [vmem:[%s1794 + $0x170] sm:$0xff]
    %v1842 = vld [vmem:[%s1794 + $0x178] sm:$0xff]
    %v1843 = vld [vmem:[%s1794 + $0x180] sm:$0xff]
    %v1844 = vld [vmem:[%s1794 + $0x188] sm:$0xff]
    %v1845 = vld [vmem:[%s1794 + $0x190] sm:$0xff]
    %v1846 = vld [vmem:[%s1794 + $0x198] sm:$0xff]
    %v1847 = vld [vmem:[%s1794 + $0x1a0] sm:$0xff]
    %v1848 = vld [vmem:[%s1794 + $0x1a8] sm:$0xff]
    %v1849 = vld [vmem:[%s1794 + $0x1b0] sm:$0xff]
    %v1850 = vld [vmem:[%s1794 + $0x1b8] sm:$0xff]
    %v1851 = vld [vmem:[%s1794 + $0x1c0] sm:$0xff]
    %v1852 = vld [vmem:[%s1794 + $0x1c8] sm:$0xff]
    %v1853 = vld [vmem:[%s1794 + $0x1d0] sm:$0xff]
    %v1854 = vld [vmem:[%s1794 + $0x1d8] sm:$0xff]
    %v1855 = vld [vmem:[%s1794 + $0x1e0] sm:$0xff]
    %v1856 = vld [vmem:[%s1794 + $0x1e8] sm:$0xff]
    %v1857 = vld [vmem:[%s1794 + $0x1f0] sm:$0xff]
    %v1858 = vld [vmem:[%s1794 + $0x1f8] sm:$0xff]
    %v1859 = vld [vmem:[%s1794 + $0x200] sm:$0xff]
    %v1860 = vld [vmem:[%s1794 + $0x208] sm:$0xff]
    %v1861 = vld [vmem:[%s1794 + $0x210] sm:$0xff]
    %v1862 = vld [vmem:[%s1794 + $0x218] sm:$0xff]
    %v1863 = vld [vmem:[%s1794 + $0x220] sm:$0xff]
    %v1864 = vld [vmem:[%s1794 + $0x228] sm:$0xff]
    %v1865 = vld [vmem:[%s1794 + $0x230] sm:$0xff]
    %v1866 = vld [vmem:[%s1794 + $0x238] sm:$0xff]
    %v1867 = vld [vmem:[%s1794 + $0x240] sm:$0xff]
    %v1868 = vld [vmem:[%s1794 + $0x248] sm:$0xff]
    %v1869 = vld [vmem:[%s1794 + $0x250] sm:$0xff]
    %v1870 = vld [vmem:[%s1794 + $0x258] sm:$0xff]
    %v1871 = vld [vmem:[%s1794 + $0x260] sm:$0xff]
    %v1872 = vld [vmem:[%s1794 + $0x268] sm:$0xff]
    %v1873 = vld [vmem:[%s1794 + $0x270] sm:$0xff]
    %v1874 = vld [vmem:[%s1794 + $0x278] sm:$0xff]
    %v1875 = vld [vmem:[%s1794 + $0x280] sm:$0xff]
    %v1876 = vld [vmem:[%s1794 + $0x288] sm:$0xff]
    %v1877 = vld [vmem:[%s1794 + $0x290] sm:$0xff]
    %v1878 = vld [vmem:[%s1794 + $0x298] sm:$0xff]
    %v1879 = vld [vmem:[%s1794 + $0x2a0] sm:$0xff]
    %v1880 = vld [vmem:[%s1794 + $0x2a8] sm:$0xff]
    %v1881 = vld [vmem:[%s1794 + $0x2b0] sm:$0xff]
    %v1882 = vld [vmem:[%s1794 + $0x2b8] sm:$0xff]
    %v1883 = vld [vmem:[%s1794 + $0x2c0] sm:$0xff]
    %v1884 = vld [vmem:[%s1794 + $0x2c8] sm:$0xff]
    %v1885 = vld [vmem:[%s1794 + $0x2d0] sm:$0xff]
    %v1886 = vld [vmem:[%s1794 + $0x2d8] sm:$0xff]
    %v1887 = vld [vmem:[%s1794 + $0x2e0] sm:$0xff]
    %v1888 = vld [vmem:[%s1794 + $0x2e8] sm:$0xff]
    %v1889 = vld [vmem:[%s1794 + $0x2f0] sm:$0xff]
    %v1890 = vld [vmem:[%s1794 + $0x2f8] sm:$0xff]
    %1891 = vmatpush.msra.mxu0 %v1840
    %1892 = vmatpush.msra.mxu0 %v1837
    %1893 = vmatpush.msra.mxu0 %v1834
    %1894 = vmatpush.msra.mxu0 %v1831
    %1895 = vmatpush.msra.mxu0 %v1828
    %1896 = vmatpush.msra.mxu0 %v1825
    %1897 = vmatpush.msra.mxu0 %v1822
    %1898 = vmatpush.msra.mxu0 %v1819
    %1899 = vmatpush.msra.mxu0 %v1816
    %1900 = vmatpush.msra.mxu0 %v1813
    %1901 = vmatpush.msra.mxu0 %v1810
    %1902 = vmatpush.msra.mxu0 %v1807
    %1903 = vmatpush.msra.mxu0 %v1804
    %1904 = vmatpush.msra.mxu0 %v1801
    %1905 = vmatpush.msra.mxu0 %v1798
    %1906 = vmatpush.msra.mxu0 %v1795
    %1907 = vmatmul.f32.gmra.mxu0 %v1689
    %v1908 = vpop.f32.mrf.mxu0
    %v1909 = vadd.f32 0.0, %v1908
    %1910 = vmatmul.f32.gmra.mxu0 %v1692
    %v1911 = vpop.f32.mrf.mxu0
    %v1912 = vadd.f32 0.0, %v1911
    %1913 = vmatmul.f32.gmra.mxu0 %v1695
    %v1914 = vpop.f32.mrf.mxu0
    %v1915 = vadd.f32 0.0, %v1914
    %1916 = vmatmul.f32.gmra.mxu0 %v1698
    %v1917 = vpop.f32.mrf.mxu0
    %v1918 = vadd.f32 0.0, %v1917
    %1919 = vmatmul.f32.gmra.mxu0 %v1701
    %v1920 = vpop.f32.mrf.mxu0
    %v1921 = vadd.f32 0.0, %v1920
    %1922 = vmatmul.f32.gmra.mxu0 %v1704
    %v1923 = vpop.f32.mrf.mxu0
    %v1924 = vadd.f32 0.0, %v1923
    %1925 = vmatmul.f32.gmra.mxu0 %v1707
    %v1926 = vpop.f32.mrf.mxu0
    %v1927 = vadd.f32 0.0, %v1926
    %1928 = vmatmul.f32.gmra.mxu0 %v1710
    %v1929 = vpop.f32.mrf.mxu0
    %v1930 = vadd.f32 0.0, %v1929
    %1931 = vdwg.mxu0
    %1932 = vmatpush.msra.mxu0 %v1888
    %1933 = vmatpush.msra.mxu0 %v1885
    %1934 = vmatpush.msra.mxu0 %v1882
    %1935 = vmatpush.msra.mxu0 %v1879
    %1936 = vmatpush.msra.mxu0 %v1876
    %1937 = vmatpush.msra.mxu0 %v1873
    %1938 = vmatpush.msra.mxu0 %v1870
    %1939 = vmatpush.msra.mxu0 %v1867
    %1940 = vmatpush.msra.mxu0 %v1864
    %1941 = vmatpush.msra.mxu0 %v1861
    %1942 = vmatpush.msra.mxu0 %v1858
    %1943 = vmatpush.msra.mxu0 %v1855
    %1944 = vmatpush.msra.mxu0 %v1852
    %1945 = vmatpush.msra.mxu0 %v1849
    %1946 = vmatpush.msra.mxu0 %v1846
    %1947 = vmatpush.msra.mxu0 %v1843
    %1948 = vmatmul.f32.gmra.mxu0 %v1771
    %v1949 = vpop.f32.mrf.mxu0
    %v1950 = vadd.f32 %v1909, %v1949
    %1951 = vmatmul.f32.gmra.mxu0 %v1774
    %v1952 = vpop.f32.mrf.mxu0
    %v1953 = vadd.f32 %v1912, %v1952
    %1954 = vmatmul.f32.gmra.mxu0 %v1777
    %v1955 = vpop.f32.mrf.mxu0
    %v1956 = vadd.f32 %v1915, %v1955
    %1957 = vmatmul.f32.gmra.mxu0 %v1780
    %v1958 = vpop.f32.mrf.mxu0
    %v1959 = vadd.f32 %v1918, %v1958
    %1960 = vmatmul.f32.gmra.mxu0 %v1783
    %v1961 = vpop.f32.mrf.mxu0
    %v1962 = vadd.f32 %v1921, %v1961
    %1963 = vmatmul.f32.gmra.mxu0 %v1786
    %v1964 = vpop.f32.mrf.mxu0
    %v1965 = vadd.f32 %v1924, %v1964
    %1966 = vmatmul.f32.gmra.mxu0 %v1789
    %v1967 = vpop.f32.mrf.mxu0
    %v1968 = vadd.f32 %v1927, %v1967
    %1969 = vmatmul.f32.gmra.mxu0 %v1792
    %v1970 = vpop.f32.mrf.mxu0
    %v1971 = vadd.f32 %v1930, %v1970
    %1972 = vdwg.mxu0
    %1973 = vmatpush.msra.mxu0 %v1841
    %1974 = vmatpush.msra.mxu0 %v1838
    %1975 = vmatpush.msra.mxu0 %v1835
    %1976 = vmatpush.msra.mxu0 %v1832
    %1977 = vmatpush.msra.mxu0 %v1829
    %1978 = vmatpush.msra.mxu0 %v1826
    %1979 = vmatpush.msra.mxu0 %v1823
    %1980 = vmatpush.msra.mxu0 %v1820
    %1981 = vmatpush.msra.mxu0 %v1817
    %1982 = vmatpush.msra.mxu0 %v1814
    %1983 = vmatpush.msra.mxu0 %v1811
    %1984 = vmatpush.msra.mxu0 %v1808
    %1985 = vmatpush.msra.mxu0 %v1805
    %1986 = vmatpush.msra.mxu0 %v1802
    %1987 = vmatpush.msra.mxu0 %v1799
    %1988 = vmatpush.msra.mxu0 %v1796
    %1989 = vmatmul.f32.gmra.mxu0 %v1689
    %v1990 = vpop.f32.mrf.mxu0
    %v1991 = vadd.f32 0.0, %v1990
    %1992 = vmatmul.f32.gmra.mxu0 %v1692
    %v1993 = vpop.f32.mrf.mxu0
    %v1994 = vadd.f32 0.0, %v1993
    %1995 = vmatmul.f32.gmra.mxu0 %v1695
    %v1996 = vpop.f32.mrf.mxu0
    %v1997 = vadd.f32 0.0, %v1996
    %1998 = vmatmul.f32.gmra.mxu0 %v1698
    %v1999 = vpop.f32.mrf.mxu0
    %v2000 = vadd.f32 0.0, %v1999
    %2001 = vmatmul.f32.gmra.mxu0 %v1701
    %v2002 = vpop.f32.mrf.mxu0
    %v2003 = vadd.f32 0.0, %v2002
    %2004 = vmatmul.f32.gmra.mxu0 %v1704
    %v2005 = vpop.f32.mrf.mxu0
    %v2006 = vadd.f32 0.0, %v2005
    %2007 = vmatmul.f32.gmra.mxu0 %v1707
    %v2008 = vpop.f32.mrf.mxu0
    %v2009 = vadd.f32 0.0, %v2008
    %2010 = vmatmul.f32.gmra.mxu0 %v1710
    %v2011 = vpop.f32.mrf.mxu0
    %v2012 = vadd.f32 0.0, %v2011
    %2013 = vdwg.mxu0
    %2014 = vmatpush.msra.mxu0 %v1889
    %2015 = vmatpush.msra.mxu0 %v1886
    %2016 = vmatpush.msra.mxu0 %v1883
    %2017 = vmatpush.msra.mxu0 %v1880
    %2018 = vmatpush.msra.mxu0 %v1877
    %2019 = vmatpush.msra.mxu0 %v1874
    %2020 = vmatpush.msra.mxu0 %v1871
    %2021 = vmatpush.msra.mxu0 %v1868
    %2022 = vmatpush.msra.mxu0 %v1865
    %2023 = vmatpush.msra.mxu0 %v1862
    %2024 = vmatpush.msra.mxu0 %v1859
    %2025 = vmatpush.msra.mxu0 %v1856
    %2026 = vmatpush.msra.mxu0 %v1853
    %2027 = vmatpush.msra.mxu0 %v1850
    %2028 = vmatpush.msra.mxu0 %v1847
    %2029 = vmatpush.msra.mxu0 %v1844
    %2030 = vmatmul.f32.gmra.mxu0 %v1771
    %v2031 = vpop.f32.mrf.mxu0
    %v2032 = vadd.f32 %v1991, %v2031
    %2033 = vmatmul.f32.gmra.mxu0 %v1774
    %v2034 = vpop.f32.mrf.mxu0
    %v2035 = vadd.f32 %v1994, %v2034
    %2036 = vmatmul.f32.gmra.mxu0 %v1777
    %v2037 = vpop.f32.mrf.mxu0
    %v2038 = vadd.f32 %v1997, %v2037
    %2039 = vmatmul.f32.gmra.mxu0 %v1780
    %v2040 = vpop.f32.mrf.mxu0
    %v2041 = vadd.f32 %v2000, %v2040
    %2042 = vmatmul.f32.gmra.mxu0 %v1783
    %v2043 = vpop.f32.mrf.mxu0
    %v2044 = vadd.f32 %v2003, %v2043
    %2045 = vmatmul.f32.gmra.mxu0 %v1786
    %v2046 = vpop.f32.mrf.mxu0
    %v2047 = vadd.f32 %v2006, %v2046
    %2048 = vmatmul.f32.gmra.mxu0 %v1789
    %v2049 = vpop.f32.mrf.mxu0
    %v2050 = vadd.f32 %v2009, %v2049
    %2051 = vmatmul.f32.gmra.mxu0 %v1792
    %v2052 = vpop.f32.mrf.mxu0
    %v2053 = vadd.f32 %v2012, %v2052
    %2054 = vdwg.mxu0
    %2055 = vmatpush.msra.mxu0 %v1842
    %2056 = vmatpush.msra.mxu0 %v1839
    %2057 = vmatpush.msra.mxu0 %v1836
    %2058 = vmatpush.msra.mxu0 %v1833
    %2059 = vmatpush.msra.mxu0 %v1830
    %2060 = vmatpush.msra.mxu0 %v1827
    %2061 = vmatpush.msra.mxu0 %v1824
    %2062 = vmatpush.msra.mxu0 %v1821
    %2063 = vmatpush.msra.mxu0 %v1818
    %2064 = vmatpush.msra.mxu0 %v1815
    %2065 = vmatpush.msra.mxu0 %v1812
    %2066 = vmatpush.msra.mxu0 %v1809
    %2067 = vmatpush.msra.mxu0 %v1806
    %2068 = vmatpush.msra.mxu0 %v1803
    %2069 = vmatpush.msra.mxu0 %v1800
    %2070 = vmatpush.msra.mxu0 %v1797
    %2071 = vmatmul.f32.gmra.mxu0 %v1689
    %v2072 = vpop.f32.mrf.mxu0
    %v2073 = vadd.f32 0.0, %v2072
    %2074 = vmatmul.f32.gmra.mxu0 %v1692
    %v2075 = vpop.f32.mrf.mxu0
    %v2076 = vadd.f32 0.0, %v2075
    %2077 = vmatmul.f32.gmra.mxu0 %v1695
    %v2078 = vpop.f32.mrf.mxu0
    %v2079 = vadd.f32 0.0, %v2078
    %2080 = vmatmul.f32.gmra.mxu0 %v1698
    %v2081 = vpop.f32.mrf.mxu0
    %v2082 = vadd.f32 0.0, %v2081
    %2083 = vmatmul.f32.gmra.mxu0 %v1701
    %v2084 = vpop.f32.mrf.mxu0
    %v2085 = vadd.f32 0.0, %v2084
    %2086 = vmatmul.f32.gmra.mxu0 %v1704
    %v2087 = vpop.f32.mrf.mxu0
    %v2088 = vadd.f32 0.0, %v2087
    %2089 = vmatmul.f32.gmra.mxu0 %v1707
    %v2090 = vpop.f32.mrf.mxu0
    %v2091 = vadd.f32 0.0, %v2090
    %2092 = vmatmul.f32.gmra.mxu0 %v1710
    %v2093 = vpop.f32.mrf.mxu0
    %v2094 = vadd.f32 0.0, %v2093
    %2095 = vdwg.mxu0
    %2096 = vmatpush.msra.mxu0 %v1890
    %2097 = vmatpush.msra.mxu0 %v1887
    %2098 = vmatpush.msra.mxu0 %v1884
    %2099 = vmatpush.msra.mxu0 %v1881
    %2100 = vmatpush.msra.mxu0 %v1878
    %2101 = vmatpush.msra.mxu0 %v1875
    %2102 = vmatpush.msra.mxu0 %v1872
    %2103 = vmatpush.msra.mxu0 %v1869
    %2104 = vmatpush.msra.mxu0 %v1866
    %2105 = vmatpush.msra.mxu0 %v1863
    %2106 = vmatpush.msra.mxu0 %v1860
    %2107 = vmatpush.msra.mxu0 %v1857
    %2108 = vmatpush.msra.mxu0 %v1854
    %2109 = vmatpush.msra.mxu0 %v1851
    %2110 = vmatpush.msra.mxu0 %v1848
    %2111 = vmatpush.msra.mxu0 %v1845
    %2112 = vmatmul.f32.gmra.mxu0 %v1771
    %v2113 = vpop.f32.mrf.mxu0
    %v2114 = vadd.f32 %v2073, %v2113
    %2115 = vmatmul.f32.gmra.mxu0 %v1774
    %v2116 = vpop.f32.mrf.mxu0
    %v2117 = vadd.f32 %v2076, %v2116
    %2118 = vmatmul.f32.gmra.mxu0 %v1777
    %v2119 = vpop.f32.mrf.mxu0
    %v2120 = vadd.f32 %v2079, %v2119
    %2121 = vmatmul.f32.gmra.mxu0 %v1780
    %v2122 = vpop.f32.mrf.mxu0
    %v2123 = vadd.f32 %v2082, %v2122
    %2124 = vmatmul.f32.gmra.mxu0 %v1783
    %v2125 = vpop.f32.mrf.mxu0
    %v2126 = vadd.f32 %v2085, %v2125
    %2127 = vmatmul.f32.gmra.mxu0 %v1786
    %v2128 = vpop.f32.mrf.mxu0
    %v2129 = vadd.f32 %v2088, %v2128
    %2130 = vmatmul.f32.gmra.mxu0 %v1789
    %v2131 = vpop.f32.mrf.mxu0
    %v2132 = vadd.f32 %v2091, %v2131
    %2133 = vmatmul.f32.gmra.mxu0 %v1792
    %v2134 = vpop.f32.mrf.mxu0
    %v2135 = vadd.f32 %v2094, %v2134
    %2136 = vdwg.mxu0
    %v2137 = vadd.f32 %v1402, %v1950
    %v2138 = vadd.f32 %v1484, %v2032
    %v2139 = vadd.f32 %v1566, %v2114
    %v2140 = vadd.f32 %v1405, %v1953
    %v2141 = vadd.f32 %v1487, %v2035
    %v2142 = vadd.f32 %v1569, %v2117
    %v2143 = vadd.f32 %v1408, %v1956
    %v2144 = vadd.f32 %v1490, %v2038
    %v2145 = vadd.f32 %v1572, %v2120
    %v2146 = vadd.f32 %v1411, %v1959
    %v2147 = vadd.f32 %v1493, %v2041
    %v2148 = vadd.f32 %v1575, %v2123
    %v2149 = vadd.f32 %v1414, %v1962
    %v2150 = vadd.f32 %v1496, %v2044
    %v2151 = vadd.f32 %v1578, %v2126
    %v2152 = vadd.f32 %v1417, %v1965
    %v2153 = vadd.f32 %v1499, %v2047
    %v2154 = vadd.f32 %v1581, %v2129
    %v2155 = vadd.f32 %v1420, %v1968
    %v2156 = vadd.f32 %v1502, %v2050
    %v2157 = vadd.f32 %v1584, %v2132
    %v2158 = vadd.f32 %v1423, %v1971
    %v2159 = vadd.f32 %v1505, %v2053
    %v2160 = vadd.f32 %v1587, %v2135
    %s2161 = scalar_lea.vmem [#allocation9], 384
    %v2162 = vld [vmem:[%s2161] sm:$0xff]
    %v2163 = vld [vmem:[%s2161 + $0x8] sm:$0xff]
    %v2164 = vld [vmem:[%s2161 + $0x10] sm:$0xff]
    %v2165 = vld [vmem:[%s2161 + $0x18] sm:$0xff]
    %v2166 = vld [vmem:[%s2161 + $0x20] sm:$0xff]
    %v2167 = vld [vmem:[%s2161 + $0x28] sm:$0xff]
    %v2168 = vld [vmem:[%s2161 + $0x30] sm:$0xff]
    %v2169 = vld [vmem:[%s2161 + $0x38] sm:$0xff]
    %v2170 = vld [vmem:[%s2161 + $0x40] sm:$0xff]
    %v2171 = vld [vmem:[%s2161 + $0x48] sm:$0xff]
    %v2172 = vld [vmem:[%s2161 + $0x50] sm:$0xff]
    %v2173 = vld [vmem:[%s2161 + $0x58] sm:$0xff]
    %v2174 = vld [vmem:[%s2161 + $0x60] sm:$0xff]
    %v2175 = vld [vmem:[%s2161 + $0x68] sm:$0xff]
    %v2176 = vld [vmem:[%s2161 + $0x70] sm:$0xff]
    %v2177 = vld [vmem:[%s2161 + $0x78] sm:$0xff]
    %v2179 = vsel %vm510, %v2163, 0
    %v2182 = vsel %vm510, %v2165, 0
    %v2185 = vsel %vm510, %v2167, 0
    %v2188 = vsel %vm510, %v2169, 0
    %v2191 = vsel %vm510, %v2171, 0
    %v2194 = vsel %vm510, %v2173, 0
    %v2197 = vsel %vm510, %v2175, 0
    %v2200 = vsel %vm510, %v2177, 0
    %2202 = vmatpush.msra.mxu0 %v490
    %2203 = vmatpush.msra.mxu0 %v488
    %2204 = vmatpush.msra.mxu0 %v486
    %2205 = vmatpush.msra.mxu0 %v484
    %2206 = vmatpush.msra.mxu0 %v482
    %2207 = vmatpush.msra.mxu0 %v480
    %2208 = vmatpush.msra.mxu0 %v478
    %2209 = vmatpush.msra.mxu0 %v476
    %2210 = vmatpush.msra.mxu0 %v474
    %2211 = vmatpush.msra.mxu0 %v472
    %2212 = vmatpush.msra.mxu0 %v470
    %2213 = vmatpush.msra.mxu0 %v468
    %2214 = vmatpush.msra.mxu0 %v466
    %2215 = vmatpush.msra.mxu0 %v464
    %2216 = vmatpush.msra.mxu0 %v462
    %2217 = vmatpush.msra.mxu0 %v460
    %2218 = vmatmul.f32.gmra.mxu0 %v2162
    %v2219 = vpop.f32.mrf.mxu0
    %v2220 = vadd.f32 0.0, %v2219
    %2221 = vmatmul.f32.gmra.mxu0 %v2164
    %v2222 = vpop.f32.mrf.mxu0
    %v2223 = vadd.f32 0.0, %v2222
    %2224 = vmatmul.f32.gmra.mxu0 %v2166
    %v2225 = vpop.f32.mrf.mxu0
    %v2226 = vadd.f32 0.0, %v2225
    %2227 = vmatmul.f32.gmra.mxu0 %v2168
    %v2228 = vpop.f32.mrf.mxu0
    %v2229 = vadd.f32 0.0, %v2228
    %2230 = vmatmul.f32.gmra.mxu0 %v2170
    %v2231 = vpop.f32.mrf.mxu0
    %v2232 = vadd.f32 0.0, %v2231
    %2233 = vmatmul.f32.gmra.mxu0 %v2172
    %v2234 = vpop.f32.mrf.mxu0
    %v2235 = vadd.f32 0.0, %v2234
    %2236 = vmatmul.f32.gmra.mxu0 %v2174
    %v2237 = vpop.f32.mrf.mxu0
    %v2238 = vadd.f32 0.0, %v2237
    %2239 = vmatmul.f32.gmra.mxu0 %v2176
    %v2240 = vpop.f32.mrf.mxu0
    %v2241 = vadd.f32 0.0, %v2240
    %2242 = vdwg.mxu0
    %2243 = vmatpush.msra.mxu0 0.0
    %2244 = vmatpush.msra.mxu0 0.0
    %2245 = vmatpush.msra.mxu0 0.0
    %2246 = vmatpush.msra.mxu0 0.0
    %2247 = vmatpush.msra.mxu0 0.0
    %2248 = vmatpush.msra.mxu0 0.0
    %2249 = vmatpush.msra.mxu0 0.0
    %2250 = vmatpush.msra.mxu0 0.0
    %2251 = vmatpush.msra.mxu0 0.0
    %2252 = vmatpush.msra.mxu0 0.0
    %2253 = vmatpush.msra.mxu0 0.0
    %2254 = vmatpush.msra.mxu0 0.0
    %2255 = vmatpush.msra.mxu0 0.0
    %2256 = vmatpush.msra.mxu0 0.0
    %2257 = vmatpush.msra.mxu0 0.0
    %2258 = vmatpush.msra.mxu0 %v492
    %2259 = vmatmul.f32.gmra.mxu0 %v2179
    %v2260 = vpop.f32.mrf.mxu0
    %v2261 = vadd.f32 %v2220, %v2260
    %2262 = vmatmul.f32.gmra.mxu0 %v2182
    %v2263 = vpop.f32.mrf.mxu0
    %v2264 = vadd.f32 %v2223, %v2263
    %2265 = vmatmul.f32.gmra.mxu0 %v2185
    %v2266 = vpop.f32.mrf.mxu0
    %v2267 = vadd.f32 %v2226, %v2266
    %2268 = vmatmul.f32.gmra.mxu0 %v2188
    %v2269 = vpop.f32.mrf.mxu0
    %v2270 = vadd.f32 %v2229, %v2269
    %2271 = vmatmul.f32.gmra.mxu0 %v2191
    %v2272 = vpop.f32.mrf.mxu0
    %v2273 = vadd.f32 %v2232, %v2272
    %2274 = vmatmul.f32.gmra.mxu0 %v2194
    %v2275 = vpop.f32.mrf.mxu0
    %v2276 = vadd.f32 %v2235, %v2275
    %2277 = vmatmul.f32.gmra.mxu0 %v2197
    %v2278 = vpop.f32.mrf.mxu0
    %v2279 = vadd.f32 %v2238, %v2278
    %2280 = vmatmul.f32.gmra.mxu0 %v2200
    %v2281 = vpop.f32.mrf.mxu0
    %v2282 = vadd.f32 %v2241, %v2281
    %2283 = vdwg.mxu0
    %2284 = vmatpush.msra.mxu0 %v491
    %2285 = vmatpush.msra.mxu0 %v489
    %2286 = vmatpush.msra.mxu0 %v487
    %2287 = vmatpush.msra.mxu0 %v485
    %2288 = vmatpush.msra.mxu0 %v483
    %2289 = vmatpush.msra.mxu0 %v481
    %2290 = vmatpush.msra.mxu0 %v479
    %2291 = vmatpush.msra.mxu0 %v477
    %2292 = vmatpush.msra.mxu0 %v475
    %2293 = vmatpush.msra.mxu0 %v473
    %2294 = vmatpush.msra.mxu0 %v471
    %2295 = vmatpush.msra.mxu0 %v469
    %2296 = vmatpush.msra.mxu0 %v467
    %2297 = vmatpush.msra.mxu0 %v465
    %2298 = vmatpush.msra.mxu0 %v463
    %2299 = vmatpush.msra.mxu0 %v461
    %2300 = vmatmul.f32.gmra.mxu0 %v2162
    %v2301 = vpop.f32.mrf.mxu0
    %v2302 = vadd.f32 0.0, %v2301
    %2303 = vmatmul.f32.gmra.mxu0 %v2164
    %v2304 = vpop.f32.mrf.mxu0
    %v2305 = vadd.f32 0.0, %v2304
    %2306 = vmatmul.f32.gmra.mxu0 %v2166
    %v2307 = vpop.f32.mrf.mxu0
    %v2308 = vadd.f32 0.0, %v2307
    %2309 = vmatmul.f32.gmra.mxu0 %v2168
    %v2310 = vpop.f32.mrf.mxu0
    %v2311 = vadd.f32 0.0, %v2310
    %2312 = vmatmul.f32.gmra.mxu0 %v2170
    %v2313 = vpop.f32.mrf.mxu0
    %v2314 = vadd.f32 0.0, %v2313
    %2315 = vmatmul.f32.gmra.mxu0 %v2172
    %v2316 = vpop.f32.mrf.mxu0
    %v2317 = vadd.f32 0.0, %v2316
    %2318 = vmatmul.f32.gmra.mxu0 %v2174
    %v2319 = vpop.f32.mrf.mxu0
    %v2320 = vadd.f32 0.0, %v2319
    %2321 = vmatmul.f32.gmra.mxu0 %v2176
    %v2322 = vpop.f32.mrf.mxu0
    %v2323 = vadd.f32 0.0, %v2322
    %2324 = vdwg.mxu0
    %2325 = vmatpush.msra.mxu0 0.0
    %2326 = vmatpush.msra.mxu0 0.0
    %2327 = vmatpush.msra.mxu0 0.0
    %2328 = vmatpush.msra.mxu0 0.0
    %2329 = vmatpush.msra.mxu0 0.0
    %2330 = vmatpush.msra.mxu0 0.0
    %2331 = vmatpush.msra.mxu0 0.0
    %2332 = vmatpush.msra.mxu0 0.0
    %2333 = vmatpush.msra.mxu0 0.0
    %2334 = vmatpush.msra.mxu0 0.0
    %2335 = vmatpush.msra.mxu0 0.0
    %2336 = vmatpush.msra.mxu0 0.0
    %2337 = vmatpush.msra.mxu0 0.0
    %2338 = vmatpush.msra.mxu0 0.0
    %2339 = vmatpush.msra.mxu0 0.0
    %2340 = vmatpush.msra.mxu0 %v493
    %2341 = vmatmul.f32.gmra.mxu0 %v2179
    %v2342 = vpop.f32.mrf.mxu0
    %v2343 = vadd.f32 %v2302, %v2342
    %2344 = vmatmul.f32.gmra.mxu0 %v2182
    %v2345 = vpop.f32.mrf.mxu0
    %v2346 = vadd.f32 %v2305, %v2345
    %2347 = vmatmul.f32.gmra.mxu0 %v2185
    %v2348 = vpop.f32.mrf.mxu0
    %v2349 = vadd.f32 %v2308, %v2348
    %2350 = vmatmul.f32.gmra.mxu0 %v2188
    %v2351 = vpop.f32.mrf.mxu0
    %v2352 = vadd.f32 %v2311, %v2351
    %2353 = vmatmul.f32.gmra.mxu0 %v2191
    %v2354 = vpop.f32.mrf.mxu0
    %v2355 = vadd.f32 %v2314, %v2354
    %2356 = vmatmul.f32.gmra.mxu0 %v2194
    %v2357 = vpop.f32.mrf.mxu0
    %v2358 = vadd.f32 %v2317, %v2357
    %2359 = vmatmul.f32.gmra.mxu0 %v2197
    %v2360 = vpop.f32.mrf.mxu0
    %v2361 = vadd.f32 %v2320, %v2360
    %2362 = vmatmul.f32.gmra.mxu0 %v2200
    %v2363 = vpop.f32.mrf.mxu0
    %v2364 = vadd.f32 %v2323, %v2363
    %2365 = vdwg.mxu0
    %s2366 = scalar_lea.vmem [#allocation11], 2304
    %v2367 = vld [vmem:[%s2366] sm:$0xff]
    %v2368 = vld [vmem:[%s2366 + $0x8] sm:$0xff]
    %v2369 = vld [vmem:[%s2366 + $0x10] sm:$0xff]
    %v2370 = vld [vmem:[%s2366 + $0x18] sm:$0xff]
    %v2371 = vld [vmem:[%s2366 + $0x20] sm:$0xff]
    %v2372 = vld [vmem:[%s2366 + $0x28] sm:$0xff]
    %v2373 = vld [vmem:[%s2366 + $0x30] sm:$0xff]
    %v2374 = vld [vmem:[%s2366 + $0x38] sm:$0xff]
    %v2375 = vld [vmem:[%s2366 + $0x40] sm:$0xff]
    %v2376 = vld [vmem:[%s2366 + $0x48] sm:$0xff]
    %v2377 = vld [vmem:[%s2366 + $0x50] sm:$0xff]
    %v2378 = vld [vmem:[%s2366 + $0x58] sm:$0xff]
    %v2379 = vld [vmem:[%s2366 + $0x60] sm:$0xff]
    %v2380 = vld [vmem:[%s2366 + $0x68] sm:$0xff]
    %v2381 = vld [vmem:[%s2366 + $0x70] sm:$0xff]
    %v2382 = vld [vmem:[%s2366 + $0x78] sm:$0xff]
    %v2383 = vld [vmem:[%s2366 + $0x80] sm:$0xff]
    %v2384 = vld [vmem:[%s2366 + $0x88] sm:$0xff]
    %v2385 = vld [vmem:[%s2366 + $0x90] sm:$0xff]
    %v2386 = vld [vmem:[%s2366 + $0x98] sm:$0xff]
    %v2387 = vld [vmem:[%s2366 + $0xa0] sm:$0xff]
    %v2388 = vld [vmem:[%s2366 + $0xa8] sm:$0xff]
    %v2389 = vld [vmem:[%s2366 + $0xb0] sm:$0xff]
    %v2390 = vld [vmem:[%s2366 + $0xb8] sm:$0xff]
    %v2391 = vld [vmem:[%s2366 + $0xc0] sm:$0xff]
    %v2392 = vld [vmem:[%s2366 + $0xc8] sm:$0xff]
    %v2393 = vld [vmem:[%s2366 + $0xd0] sm:$0xff]
    %v2394 = vld [vmem:[%s2366 + $0xd8] sm:$0xff]
    %v2395 = vld [vmem:[%s2366 + $0xe0] sm:$0xff]
    %v2396 = vld [vmem:[%s2366 + $0xe8] sm:$0xff]
    %v2397 = vld [vmem:[%s2366 + $0xf0] sm:$0xff]
    %v2398 = vld [vmem:[%s2366 + $0xf8] sm:$0xff]
    %v2399 = vld [vmem:[%s2366 + $0x100] sm:$0xff]
    %v2400 = vld [vmem:[%s2366 + $0x108] sm:$0xff]
    %v2401 = vld [vmem:[%s2366 + $0x110] sm:$0xff]
    %v2402 = vld [vmem:[%s2366 + $0x118] sm:$0xff]
    %v2403 = vld [vmem:[%s2366 + $0x120] sm:$0xff]
    %v2404 = vld [vmem:[%s2366 + $0x128] sm:$0xff]
    %v2405 = vld [vmem:[%s2366 + $0x130] sm:$0xff]
    %v2406 = vld [vmem:[%s2366 + $0x138] sm:$0xff]
    %v2407 = vld [vmem:[%s2366 + $0x140] sm:$0xff]
    %v2408 = vld [vmem:[%s2366 + $0x148] sm:$0xff]
    %v2409 = vld [vmem:[%s2366 + $0x150] sm:$0xff]
    %v2410 = vld [vmem:[%s2366 + $0x158] sm:$0xff]
    %v2411 = vld [vmem:[%s2366 + $0x160] sm:$0xff]
    %v2412 = vld [vmem:[%s2366 + $0x168] sm:$0xff]
    %v2413 = vld [vmem:[%s2366 + $0x170] sm:$0xff]
    %v2414 = vld [vmem:[%s2366 + $0x178] sm:$0xff]
    %v2415 = vld [vmem:[%s2366 + $0x180] sm:$0xff]
    %v2416 = vld [vmem:[%s2366 + $0x188] sm:$0xff]
    %v2417 = vld [vmem:[%s2366 + $0x190] sm:$0xff]
    %v2418 = vld [vmem:[%s2366 + $0x198] sm:$0xff]
    %v2419 = vld [vmem:[%s2366 + $0x1a0] sm:$0xff]
    %v2420 = vld [vmem:[%s2366 + $0x1a8] sm:$0xff]
    %v2421 = vld [vmem:[%s2366 + $0x1b0] sm:$0xff]
    %v2422 = vld [vmem:[%s2366 + $0x1b8] sm:$0xff]
    %v2423 = vld [vmem:[%s2366 + $0x1c0] sm:$0xff]
    %v2424 = vld [vmem:[%s2366 + $0x1c8] sm:$0xff]
    %v2425 = vld [vmem:[%s2366 + $0x1d0] sm:$0xff]
    %v2426 = vld [vmem:[%s2366 + $0x1d8] sm:$0xff]
    %v2427 = vld [vmem:[%s2366 + $0x1e0] sm:$0xff]
    %v2428 = vld [vmem:[%s2366 + $0x1e8] sm:$0xff]
    %v2429 = vld [vmem:[%s2366 + $0x1f0] sm:$0xff]
    %v2430 = vld [vmem:[%s2366 + $0x1f8] sm:$0xff]
    %v2431 = vld [vmem:[%s2366 + $0x200] sm:$0xff]
    %v2432 = vld [vmem:[%s2366 + $0x208] sm:$0xff]
    %v2433 = vld [vmem:[%s2366 + $0x210] sm:$0xff]
    %v2434 = vld [vmem:[%s2366 + $0x218] sm:$0xff]
    %v2435 = vld [vmem:[%s2366 + $0x220] sm:$0xff]
    %v2436 = vld [vmem:[%s2366 + $0x228] sm:$0xff]
    %v2437 = vld [vmem:[%s2366 + $0x230] sm:$0xff]
    %v2438 = vld [vmem:[%s2366 + $0x238] sm:$0xff]
    %v2439 = vld [vmem:[%s2366 + $0x240] sm:$0xff]
    %v2440 = vld [vmem:[%s2366 + $0x248] sm:$0xff]
    %v2441 = vld [vmem:[%s2366 + $0x250] sm:$0xff]
    %v2442 = vld [vmem:[%s2366 + $0x258] sm:$0xff]
    %v2443 = vld [vmem:[%s2366 + $0x260] sm:$0xff]
    %v2444 = vld [vmem:[%s2366 + $0x268] sm:$0xff]
    %v2445 = vld [vmem:[%s2366 + $0x270] sm:$0xff]
    %v2446 = vld [vmem:[%s2366 + $0x278] sm:$0xff]
    %v2447 = vld [vmem:[%s2366 + $0x280] sm:$0xff]
    %v2448 = vld [vmem:[%s2366 + $0x288] sm:$0xff]
    %v2449 = vld [vmem:[%s2366 + $0x290] sm:$0xff]
    %v2450 = vld [vmem:[%s2366 + $0x298] sm:$0xff]
    %v2451 = vld [vmem:[%s2366 + $0x2a0] sm:$0xff]
    %v2452 = vld [vmem:[%s2366 + $0x2a8] sm:$0xff]
    %v2453 = vld [vmem:[%s2366 + $0x2b0] sm:$0xff]
    %v2454 = vld [vmem:[%s2366 + $0x2b8] sm:$0xff]
    %v2455 = vld [vmem:[%s2366 + $0x2c0] sm:$0xff]
    %v2456 = vld [vmem:[%s2366 + $0x2c8] sm:$0xff]
    %v2457 = vld [vmem:[%s2366 + $0x2d0] sm:$0xff]
    %v2458 = vld [vmem:[%s2366 + $0x2d8] sm:$0xff]
    %v2459 = vld [vmem:[%s2366 + $0x2e0] sm:$0xff]
    %v2460 = vld [vmem:[%s2366 + $0x2e8] sm:$0xff]
    %v2461 = vld [vmem:[%s2366 + $0x2f0] sm:$0xff]
    %v2462 = vld [vmem:[%s2366 + $0x2f8] sm:$0xff]
    %2463 = vmatpush.msra.mxu0 %v2412
    %2464 = vmatpush.msra.mxu0 %v2409
    %2465 = vmatpush.msra.mxu0 %v2406
    %2466 = vmatpush.msra.mxu0 %v2403
    %2467 = vmatpush.msra.mxu0 %v2400
    %2468 = vmatpush.msra.mxu0 %v2397
    %2469 = vmatpush.msra.mxu0 %v2394
    %2470 = vmatpush.msra.mxu0 %v2391
    %2471 = vmatpush.msra.mxu0 %v2388
    %2472 = vmatpush.msra.mxu0 %v2385
    %2473 = vmatpush.msra.mxu0 %v2382
    %2474 = vmatpush.msra.mxu0 %v2379
    %2475 = vmatpush.msra.mxu0 %v2376
    %2476 = vmatpush.msra.mxu0 %v2373
    %2477 = vmatpush.msra.mxu0 %v2370
    %2478 = vmatpush.msra.mxu0 %v2367
    %2479 = vmatmul.f32.gmra.mxu0 %v2261
    %v2480 = vpop.f32.mrf.mxu0
    %v2481 = vadd.f32 0.0, %v2480
    %2482 = vmatmul.f32.gmra.mxu0 %v2264
    %v2483 = vpop.f32.mrf.mxu0
    %v2484 = vadd.f32 0.0, %v2483
    %2485 = vmatmul.f32.gmra.mxu0 %v2267
    %v2486 = vpop.f32.mrf.mxu0
    %v2487 = vadd.f32 0.0, %v2486
    %2488 = vmatmul.f32.gmra.mxu0 %v2270
    %v2489 = vpop.f32.mrf.mxu0
    %v2490 = vadd.f32 0.0, %v2489
    %2491 = vmatmul.f32.gmra.mxu0 %v2273
    %v2492 = vpop.f32.mrf.mxu0
    %v2493 = vadd.f32 0.0, %v2492
    %2494 = vmatmul.f32.gmra.mxu0 %v2276
    %v2495 = vpop.f32.mrf.mxu0
    %v2496 = vadd.f32 0.0, %v2495
    %2497 = vmatmul.f32.gmra.mxu0 %v2279
    %v2498 = vpop.f32.mrf.mxu0
    %v2499 = vadd.f32 0.0, %v2498
    %2500 = vmatmul.f32.gmra.mxu0 %v2282
    %v2501 = vpop.f32.mrf.mxu0
    %v2502 = vadd.f32 0.0, %v2501
    %2503 = vdwg.mxu0
    %2504 = vmatpush.msra.mxu0 %v2460
    %2505 = vmatpush.msra.mxu0 %v2457
    %2506 = vmatpush.msra.mxu0 %v2454
    %2507 = vmatpush.msra.mxu0 %v2451
    %2508 = vmatpush.msra.mxu0 %v2448
    %2509 = vmatpush.msra.mxu0 %v2445
    %2510 = vmatpush.msra.mxu0 %v2442
    %2511 = vmatpush.msra.mxu0 %v2439
    %2512 = vmatpush.msra.mxu0 %v2436
    %2513 = vmatpush.msra.mxu0 %v2433
    %2514 = vmatpush.msra.mxu0 %v2430
    %2515 = vmatpush.msra.mxu0 %v2427
    %2516 = vmatpush.msra.mxu0 %v2424
    %2517 = vmatpush.msra.mxu0 %v2421
    %2518 = vmatpush.msra.mxu0 %v2418
    %2519 = vmatpush.msra.mxu0 %v2415
    %2520 = vmatmul.f32.gmra.mxu0 %v2343
    %v2521 = vpop.f32.mrf.mxu0
    %v2522 = vadd.f32 %v2481, %v2521
    %2523 = vmatmul.f32.gmra.mxu0 %v2346
    %v2524 = vpop.f32.mrf.mxu0
    %v2525 = vadd.f32 %v2484, %v2524
    %2526 = vmatmul.f32.gmra.mxu0 %v2349
    %v2527 = vpop.f32.mrf.mxu0
    %v2528 = vadd.f32 %v2487, %v2527
    %2529 = vmatmul.f32.gmra.mxu0 %v2352
    %v2530 = vpop.f32.mrf.mxu0
    %v2531 = vadd.f32 %v2490, %v2530
    %2532 = vmatmul.f32.gmra.mxu0 %v2355
    %v2533 = vpop.f32.mrf.mxu0
    %v2534 = vadd.f32 %v2493, %v2533
    %2535 = vmatmul.f32.gmra.mxu0 %v2358
    %v2536 = vpop.f32.mrf.mxu0
    %v2537 = vadd.f32 %v2496, %v2536
    %2538 = vmatmul.f32.gmra.mxu0 %v2361
    %v2539 = vpop.f32.mrf.mxu0
    %v2540 = vadd.f32 %v2499, %v2539
    %2541 = vmatmul.f32.gmra.mxu0 %v2364
    %v2542 = vpop.f32.mrf.mxu0
    %v2543 = vadd.f32 %v2502, %v2542
    %2544 = vdwg.mxu0
    %2545 = vmatpush.msra.mxu0 %v2413
    %2546 = vmatpush.msra.mxu0 %v2410
    %2547 = vmatpush.msra.mxu0 %v2407
    %2548 = vmatpush.msra.mxu0 %v2404
    %2549 = vmatpush.msra.mxu0 %v2401
    %2550 = vmatpush.msra.mxu0 %v2398
    %2551 = vmatpush.msra.mxu0 %v2395
    %2552 = vmatpush.msra.mxu0 %v2392
    %2553 = vmatpush.msra.mxu0 %v2389
    %2554 = vmatpush.msra.mxu0 %v2386
    %2555 = vmatpush.msra.mxu0 %v2383
    %2556 = vmatpush.msra.mxu0 %v2380
    %2557 = vmatpush.msra.mxu0 %v2377
    %2558 = vmatpush.msra.mxu0 %v2374
    %2559 = vmatpush.msra.mxu0 %v2371
    %2560 = vmatpush.msra.mxu0 %v2368
    %2561 = vmatmul.f32.gmra.mxu0 %v2261
    %v2562 = vpop.f32.mrf.mxu0
    %v2563 = vadd.f32 0.0, %v2562
    %2564 = vmatmul.f32.gmra.mxu0 %v2264
    %v2565 = vpop.f32.mrf.mxu0
    %v2566 = vadd.f32 0.0, %v2565
    %2567 = vmatmul.f32.gmra.mxu0 %v2267
    %v2568 = vpop.f32.mrf.mxu0
    %v2569 = vadd.f32 0.0, %v2568
    %2570 = vmatmul.f32.gmra.mxu0 %v2270
    %v2571 = vpop.f32.mrf.mxu0
    %v2572 = vadd.f32 0.0, %v2571
    %2573 = vmatmul.f32.gmra.mxu0 %v2273
    %v2574 = vpop.f32.mrf.mxu0
    %v2575 = vadd.f32 0.0, %v2574
    %2576 = vmatmul.f32.gmra.mxu0 %v2276
    %v2577 = vpop.f32.mrf.mxu0
    %v2578 = vadd.f32 0.0, %v2577
    %2579 = vmatmul.f32.gmra.mxu0 %v2279
    %v2580 = vpop.f32.mrf.mxu0
    %v2581 = vadd.f32 0.0, %v2580
    %2582 = vmatmul.f32.gmra.mxu0 %v2282
    %v2583 = vpop.f32.mrf.mxu0
    %v2584 = vadd.f32 0.0, %v2583
    %2585 = vdwg.mxu0
    %2586 = vmatpush.msra.mxu0 %v2461
    %2587 = vmatpush.msra.mxu0 %v2458
    %2588 = vmatpush.msra.mxu0 %v2455
    %2589 = vmatpush.msra.mxu0 %v2452
    %2590 = vmatpush.msra.mxu0 %v2449
    %2591 = vmatpush.msra.mxu0 %v2446
    %2592 = vmatpush.msra.mxu0 %v2443
    %2593 = vmatpush.msra.mxu0 %v2440
    %2594 = vmatpush.msra.mxu0 %v2437
    %2595 = vmatpush.msra.mxu0 %v2434
    %2596 = vmatpush.msra.mxu0 %v2431
    %2597 = vmatpush.msra.mxu0 %v2428
    %2598 = vmatpush.msra.mxu0 %v2425
    %2599 = vmatpush.msra.mxu0 %v2422
    %2600 = vmatpush.msra.mxu0 %v2419
    %2601 = vmatpush.msra.mxu0 %v2416
    %2602 = vmatmul.f32.gmra.mxu0 %v2343
    %v2603 = vpop.f32.mrf.mxu0
    %v2604 = vadd.f32 %v2563, %v2603
    %2605 = vmatmul.f32.gmra.mxu0 %v2346
    %v2606 = vpop.f32.mrf.mxu0
    %v2607 = vadd.f32 %v2566, %v2606
    %2608 = vmatmul.f32.gmra.mxu0 %v2349
    %v2609 = vpop.f32.mrf.mxu0
    %v2610 = vadd.f32 %v2569, %v2609
    %2611 = vmatmul.f32.gmra.mxu0 %v2352
    %v2612 = vpop.f32.mrf.mxu0
    %v2613 = vadd.f32 %v2572, %v2612
    %2614 = vmatmul.f32.gmra.mxu0 %v2355
    %v2615 = vpop.f32.mrf.mxu0
    %v2616 = vadd.f32 %v2575, %v2615
    %2617 = vmatmul.f32.gmra.mxu0 %v2358
    %v2618 = vpop.f32.mrf.mxu0
    %v2619 = vadd.f32 %v2578, %v2618
    %2620 = vmatmul.f32.gmra.mxu0 %v2361
    %v2621 = vpop.f32.mrf.mxu0
    %v2622 = vadd.f32 %v2581, %v2621
    %2623 = vmatmul.f32.gmra.mxu0 %v2364
    %v2624 = vpop.f32.mrf.mxu0
    %v2625 = vadd.f32 %v2584, %v2624
    %2626 = vdwg.mxu0
    %2627 = vmatpush.msra.mxu0 %v2414
    %2628 = vmatpush.msra.mxu0 %v2411
    %2629 = vmatpush.msra.mxu0 %v2408
    %2630 = vmatpush.msra.mxu0 %v2405
    %2631 = vmatpush.msra.mxu0 %v2402
    %2632 = vmatpush.msra.mxu0 %v2399
    %2633 = vmatpush.msra.mxu0 %v2396
    %2634 = vmatpush.msra.mxu0 %v2393
    %2635 = vmatpush.msra.mxu0 %v2390
    %2636 = vmatpush.msra.mxu0 %v2387
    %2637 = vmatpush.msra.mxu0 %v2384
    %2638 = vmatpush.msra.mxu0 %v2381
    %2639 = vmatpush.msra.mxu0 %v2378
    %2640 = vmatpush.msra.mxu0 %v2375
    %2641 = vmatpush.msra.mxu0 %v2372
    %2642 = vmatpush.msra.mxu0 %v2369
    %2643 = vmatmul.f32.gmra.mxu0 %v2261
    %v2644 = vpop.f32.mrf.mxu0
    %v2645 = vadd.f32 0.0, %v2644
    %2646 = vmatmul.f32.gmra.mxu0 %v2264
    %v2647 = vpop.f32.mrf.mxu0
    %v2648 = vadd.f32 0.0, %v2647
    %2649 = vmatmul.f32.gmra.mxu0 %v2267
    %v2650 = vpop.f32.mrf.mxu0
    %v2651 = vadd.f32 0.0, %v2650
    %2652 = vmatmul.f32.gmra.mxu0 %v2270
    %v2653 = vpop.f32.mrf.mxu0
    %v2654 = vadd.f32 0.0, %v2653
    %2655 = vmatmul.f32.gmra.mxu0 %v2273
    %v2656 = vpop.f32.mrf.mxu0
    %v2657 = vadd.f32 0.0, %v2656
    %2658 = vmatmul.f32.gmra.mxu0 %v2276
    %v2659 = vpop.f32.mrf.mxu0
    %v2660 = vadd.f32 0.0, %v2659
    %2661 = vmatmul.f32.gmra.mxu0 %v2279
    %v2662 = vpop.f32.mrf.mxu0
    %v2663 = vadd.f32 0.0, %v2662
    %2664 = vmatmul.f32.gmra.mxu0 %v2282
    %v2665 = vpop.f32.mrf.mxu0
    %v2666 = vadd.f32 0.0, %v2665
    %2667 = vdwg.mxu0
    %2668 = vmatpush.msra.mxu0 %v2462
    %2669 = vmatpush.msra.mxu0 %v2459
    %2670 = vmatpush.msra.mxu0 %v2456
    %2671 = vmatpush.msra.mxu0 %v2453
    %2672 = vmatpush.msra.mxu0 %v2450
    %2673 = vmatpush.msra.mxu0 %v2447
    %2674 = vmatpush.msra.mxu0 %v2444
    %2675 = vmatpush.msra.mxu0 %v2441
    %2676 = vmatpush.msra.mxu0 %v2438
    %2677 = vmatpush.msra.mxu0 %v2435
    %2678 = vmatpush.msra.mxu0 %v2432
    %2679 = vmatpush.msra.mxu0 %v2429
    %2680 = vmatpush.msra.mxu0 %v2426
    %2681 = vmatpush.msra.mxu0 %v2423
    %2682 = vmatpush.msra.mxu0 %v2420
    %2683 = vmatpush.msra.mxu0 %v2417
    %2684 = vmatmul.f32.gmra.mxu0 %v2343
    %v2685 = vpop.f32.mrf.mxu0
    %v2686 = vadd.f32 %v2645, %v2685
    %2687 = vmatmul.f32.gmra.mxu0 %v2346
    %v2688 = vpop.f32.mrf.mxu0
    %v2689 = vadd.f32 %v2648, %v2688
    %2690 = vmatmul.f32.gmra.mxu0 %v2349
    %v2691 = vpop.f32.mrf.mxu0
    %v2692 = vadd.f32 %v2651, %v2691
    %2693 = vmatmul.f32.gmra.mxu0 %v2352
    %v2694 = vpop.f32.mrf.mxu0
    %v2695 = vadd.f32 %v2654, %v2694
    %2696 = vmatmul.f32.gmra.mxu0 %v2355
    %v2697 = vpop.f32.mrf.mxu0
    %v2698 = vadd.f32 %v2657, %v2697
    %2699 = vmatmul.f32.gmra.mxu0 %v2358
    %v2700 = vpop.f32.mrf.mxu0
    %v2701 = vadd.f32 %v2660, %v2700
    %2702 = vmatmul.f32.gmra.mxu0 %v2361
    %v2703 = vpop.f32.mrf.mxu0
    %v2704 = vadd.f32 %v2663, %v2703
    %2705 = vmatmul.f32.gmra.mxu0 %v2364
    %v2706 = vpop.f32.mrf.mxu0
    %v2707 = vadd.f32 %v2666, %v2706
    %2708 = vdwg.mxu0
    %v2709 = vadd.f32 %v2137, %v2522
    %v2710 = vadd.f32 %v2138, %v2604
    %v2711 = vadd.f32 %v2139, %v2686
    %v2712 = vadd.f32 %v2140, %v2525
    %v2713 = vadd.f32 %v2141, %v2607
    %v2714 = vadd.f32 %v2142, %v2689
    %v2715 = vadd.f32 %v2143, %v2528
    %v2716 = vadd.f32 %v2144, %v2610
    %v2717 = vadd.f32 %v2145, %v2692
    %v2718 = vadd.f32 %v2146, %v2531
    %v2719 = vadd.f32 %v2147, %v2613
    %v2720 = vadd.f32 %v2148, %v2695
    %v2721 = vadd.f32 %v2149, %v2534
    %v2722 = vadd.f32 %v2150, %v2616
    %v2723 = vadd.f32 %v2151, %v2698
    %v2724 = vadd.f32 %v2152, %v2537
    %v2725 = vadd.f32 %v2153, %v2619
    %v2726 = vadd.f32 %v2154, %v2701
    %v2727 = vadd.f32 %v2155, %v2540
    %v2728 = vadd.f32 %v2156, %v2622
    %v2729 = vadd.f32 %v2157, %v2704
    %v2730 = vadd.f32 %v2158, %v2543
    %v2731 = vadd.f32 %v2159, %v2625
    %v2732 = vadd.f32 %v2160, %v2707
    %v2733 = vld [vmem:[#allocation12] sm:$0x7]
    %v2735 = vperm.slane %v2733, 0
    %v2736 = vperm.slane %v2733, 1
    %v2737 = vperm.slane %v2733, 2
    %v2741 = vadd.f32 %v2709, %v2735
    %v2742 = vadd.f32 %v2710, %v2736
    %v2743 = vadd.f32 %v2711, %v2737
    %v2744 = vadd.f32 %v2712, %v2735
    %v2745 = vadd.f32 %v2713, %v2736
    %v2746 = vadd.f32 %v2714, %v2737
    %v2747 = vadd.f32 %v2715, %v2735
    %v2748 = vadd.f32 %v2716, %v2736
    %v2749 = vadd.f32 %v2717, %v2737
    %v2750 = vadd.f32 %v2718, %v2735
    %v2751 = vadd.f32 %v2719, %v2736
    %v2752 = vadd.f32 %v2720, %v2737
    %v2753 = vadd.f32 %v2721, %v2735
    %v2754 = vadd.f32 %v2722, %v2736
    %v2755 = vadd.f32 %v2723, %v2737
    %v2756 = vadd.f32 %v2724, %v2735
    %v2757 = vadd.f32 %v2725, %v2736
    %v2758 = vadd.f32 %v2726, %v2737
    %v2759 = vadd.f32 %v2727, %v2735
    %v2760 = vadd.f32 %v2728, %v2736
    %v2761 = vadd.f32 %v2729, %v2737
    %v2762 = vadd.f32 %v2730, %v2735
    %v2763 = vadd.f32 %v2731, %v2736
    %v2764 = vadd.f32 %v2732, %v2737
    %vm2765 = vcmp.gt.f32.partialorder %v2741, 0.0
    %vm2766 = vcmp.gt.f32.partialorder %v2742, 0.0
    %vm2767 = vcmp.gt.f32.partialorder %v2743, 0.0
    %vm2768 = vcmp.gt.f32.partialorder %v2744, 0.0
    %vm2769 = vcmp.gt.f32.partialorder %v2745, 0.0
    %vm2770 = vcmp.gt.f32.partialorder %v2746, 0.0
    %vm2771 = vcmp.gt.f32.partialorder %v2747, 0.0
    %vm2772 = vcmp.gt.f32.partialorder %v2748, 0.0
    %vm2773 = vcmp.gt.f32.partialorder %v2749, 0.0
    %vm2774 = vcmp.gt.f32.partialorder %v2750, 0.0
    %vm2775 = vcmp.gt.f32.partialorder %v2751, 0.0
    %vm2776 = vcmp.gt.f32.partialorder %v2752, 0.0
    %vm2777 = vcmp.gt.f32.partialorder %v2753, 0.0
    %vm2778 = vcmp.gt.f32.partialorder %v2754, 0.0
    %vm2779 = vcmp.gt.f32.partialorder %v2755, 0.0
    %vm2780 = vcmp.gt.f32.partialorder %v2756, 0.0
    %vm2781 = vcmp.gt.f32.partialorder %v2757, 0.0
    %vm2782 = vcmp.gt.f32.partialorder %v2758, 0.0
    %vm2783 = vcmp.gt.f32.partialorder %v2759, 0.0
    %vm2784 = vcmp.gt.f32.partialorder %v2760, 0.0
    %vm2785 = vcmp.gt.f32.partialorder %v2761, 0.0
    %vm2786 = vcmp.gt.f32.partialorder %v2762, 0.0
    %vm2787 = vcmp.gt.f32.partialorder %v2763, 0.0
    %vm2788 = vcmp.gt.f32.partialorder %v2764, 0.0
    %v2789 = vmul.f32 %v2741, 0.01
    %v2790 = vmul.f32 %v2742, 0.01
    %v2791 = vmul.f32 %v2743, 0.01
    %v2792 = vmul.f32 %v2744, 0.01
    %v2793 = vmul.f32 %v2745, 0.01
    %v2794 = vmul.f32 %v2746, 0.01
    %v2795 = vmul.f32 %v2747, 0.01
    %v2796 = vmul.f32 %v2748, 0.01
    %v2797 = vmul.f32 %v2749, 0.01
    %v2798 = vmul.f32 %v2750, 0.01
    %v2799 = vmul.f32 %v2751, 0.01
    %v2800 = vmul.f32 %v2752, 0.01
    %v2801 = vmul.f32 %v2753, 0.01
    %v2802 = vmul.f32 %v2754, 0.01
    %v2803 = vmul.f32 %v2755, 0.01
    %v2804 = vmul.f32 %v2756, 0.01
    %v2805 = vmul.f32 %v2757, 0.01
    %v2806 = vmul.f32 %v2758, 0.01
    %v2807 = vmul.f32 %v2759, 0.01
    %v2808 = vmul.f32 %v2760, 0.01
    %v2809 = vmul.f32 %v2761, 0.01
    %v2810 = vmul.f32 %v2762, 0.01
    %v2811 = vmul.f32 %v2763, 0.01
    %v2812 = vmul.f32 %v2764, 0.01
    %v2813 = vsel %vm2765, %v2741, %v2789
    %v2814 = vsel %vm2766, %v2742, %v2790
    %v2815 = vsel %vm2767, %v2743, %v2791
    %v2816 = vsel %vm2768, %v2744, %v2792
    %v2817 = vsel %vm2769, %v2745, %v2793
    %v2818 = vsel %vm2770, %v2746, %v2794
    %v2819 = vsel %vm2771, %v2747, %v2795
    %v2820 = vsel %vm2772, %v2748, %v2796
    %v2821 = vsel %vm2773, %v2749, %v2797
    %v2822 = vsel %vm2774, %v2750, %v2798
    %v2823 = vsel %vm2775, %v2751, %v2799
    %v2824 = vsel %vm2776, %v2752, %v2800
    %v2825 = vsel %vm2777, %v2753, %v2801
    %v2826 = vsel %vm2778, %v2754, %v2802
    %v2827 = vsel %vm2779, %v2755, %v2803
    %v2828 = vsel %vm2780, %v2756, %v2804
    %v2829 = vsel %vm2781, %v2757, %v2805
    %v2830 = vsel %vm2782, %v2758, %v2806
    %v2831 = vsel %vm2783, %v2759, %v2807
    %v2832 = vsel %vm2784, %v2760, %v2808
    %v2833 = vsel %vm2785, %v2761, %v2809
    %v2834 = vsel %vm2786, %v2762, %v2810
    %v2835 = vsel %vm2787, %v2763, %v2811
    %v2836 = vsel %vm2788, %v2764, %v2812
    %vm2849 = vcmask 1040384
    %v2850 = vrot.slane %v2813, 7
    %v2851 = vrot.slane %v2814, 7
    %v2852 = vrot.slane %v2815, 7
    %v2853 = vrot.slane %v2816, 7
    %v2854 = vsel %vm2849, %v2850, %v2853
    %v2855 = vrot.slane %v2817, 7
    %v2856 = vsel %vm2849, %v2851, %v2855
    %v2857 = vrot.slane %v2818, 7
    %v2858 = vsel %vm2849, %v2852, %v2857
    %v2859 = vrot.slane %v2819, 7
    %v2860 = vsel %vm2849, %v2853, %v2859
    %v2861 = vrot.slane %v2820, 7
    %v2862 = vsel %vm2849, %v2855, %v2861
    %v2863 = vrot.slane %v2821, 7
    %v2864 = vsel %vm2849, %v2857, %v2863
    %v2865 = vrot.slane %v2822, 7
    %v2866 = vsel %vm2849, %v2859, %v2865
    %v2867 = vrot.slane %v2823, 7
    %v2868 = vsel %vm2849, %v2861, %v2867
    %v2869 = vrot.slane %v2824, 7
    %v2870 = vsel %vm2849, %v2863, %v2869
    %2886 = vst [vmem:[#allocation2] sm:$0xfe] %v2850
    %2887 = vst [vmem:[#allocation2 + $0x8] sm:$0xfe] %v2851
    %2888 = vst [vmem:[#allocation2 + $0x10] sm:$0xfe] %v2852
    %2889 = vst [vmem:[#allocation2 + $0x18] sm:$0xff] %v2854
    %2890 = vst [vmem:[#allocation2 + $0x20] sm:$0xff] %v2856
    %2891 = vst [vmem:[#allocation2 + $0x28] sm:$0xff] %v2858
    %2892 = vst [vmem:[#allocation2 + $0x30] sm:$0xff] %v2860
    %2893 = vst [vmem:[#allocation2 + $0x38] sm:$0xff] %v2862
    %2894 = vst [vmem:[#allocation2 + $0x40] sm:$0xff] %v2864
    %2895 = vst [vmem:[#allocation2 + $0x48] sm:$0xff] %v2866
    %2896 = vst [vmem:[#allocation2 + $0x50] sm:$0xff] %v2868
    %2897 = vst [vmem:[#allocation2 + $0x58] sm:$0xff] %v2870
    %2898 = vst [vmem:[#allocation2 + $0x60] sm:$0x1] %v2865
    %2899 = vst [vmem:[#allocation2 + $0x68] sm:$0x1] %v2867
    %2900 = vst [vmem:[#allocation2 + $0x70] sm:$0x1] %v2869
    %vm2913 = vcmask 1042432
    %v2914 = vrot.slane %v2825, 5
    %v2915 = vrot.slane %v2826, 5
    %v2916 = vrot.slane %v2827, 5
    %v2917 = vrot.slane %v2828, 5
    %v2918 = vsel %vm2913, %v2914, %v2917
    %v2919 = vrot.slane %v2829, 5
    %v2920 = vsel %vm2913, %v2915, %v2919
    %v2921 = vrot.slane %v2830, 5
    %v2922 = vsel %vm2913, %v2916, %v2921
    %v2923 = vrot.slane %v2831, 5
    %v2924 = vsel %vm2913, %v2917, %v2923
    %v2925 = vrot.slane %v2832, 5
    %v2926 = vsel %vm2913, %v2919, %v2925
    %v2927 = vrot.slane %v2833, 5
    %v2928 = vsel %vm2913, %v2921, %v2927
    %v2929 = vrot.slane %v2834, 5
    %v2930 = vsel %vm2913, %v2923, %v2929
    %v2931 = vrot.slane %v2835, 5
    %v2932 = vsel %vm2913, %v2925, %v2931
    %v2933 = vrot.slane %v2836, 5
    %v2934 = vsel %vm2913, %v2927, %v2933
    %2950 = vst [vmem:[#allocation2 + $0x60] sm:$0xf8] %v2914
    %2951 = vst [vmem:[#allocation2 + $0x68] sm:$0xf8] %v2915
    %2952 = vst [vmem:[#allocation2 + $0x70] sm:$0xf8] %v2916
    %2953 = vst [vmem:[#allocation2 + $0x78] sm:$0xff] %v2918
    %2954 = vst [vmem:[#allocation2 + $0x80] sm:$0xff] %v2920
    %2955 = vst [vmem:[#allocation2 + $0x88] sm:$0xff] %v2922
    %2956 = vst [vmem:[#allocation2 + $0x90] sm:$0xff] %v2924
    %2957 = vst [vmem:[#allocation2 + $0x98] sm:$0xff] %v2926
    %2958 = vst [vmem:[#allocation2 + $0xa0] sm:$0xff] %v2928
    %2959 = vst [vmem:[#allocation2 + $0xa8] sm:$0xff] %v2930
    %2960 = vst [vmem:[#allocation2 + $0xb0] sm:$0xff] %v2932
    %2961 = vst [vmem:[#allocation2 + $0xb8] sm:$0xff] %v2934
    %2962 = vst [vmem:[#allocation2 + $0xc0] sm:$0x7] %v2929
    %2963 = vst [vmem:[#allocation2 + $0xc8] sm:$0x7] %v2931
    %2964 = vst [vmem:[#allocation2 + $0xd0] sm:$0x7] %v2933
    %v2965 = vld [vmem:[#allocation2] sm:$0xff]
    %v2966 = vld [vmem:[#allocation2 + $0x8] sm:$0xff]
    %v2967 = vld [vmem:[#allocation2 + $0x10] sm:$0xff]
    %v2968 = vld [vmem:[#allocation2 + $0x18] sm:$0xff]
    %v2969 = vld [vmem:[#allocation2 + $0x20] sm:$0xff]
    %v2970 = vld [vmem:[#allocation2 + $0x28] sm:$0xff]
    %v2971 = vld [vmem:[#allocation2 + $0x30] sm:$0xff]
    %v2972 = vld [vmem:[#allocation2 + $0x38] sm:$0xff]
    %v2973 = vld [vmem:[#allocation2 + $0x40] sm:$0xff]
    %v2974 = vld [vmem:[#allocation2 + $0x48] sm:$0xff]
    %v2975 = vld [vmem:[#allocation2 + $0x50] sm:$0xff]
    %v2976 = vld [vmem:[#allocation2 + $0x58] sm:$0xff]
    %v2977 = vld [vmem:[#allocation2 + $0x60] sm:$0xff]
    %v2978 = vld [vmem:[#allocation2 + $0x68] sm:$0xff]
    %v2979 = vld [vmem:[#allocation2 + $0x70] sm:$0xff]
    %v2980 = vld [vmem:[#allocation2 + $0x78] sm:$0xff]
    %v2981 = vld [vmem:[#allocation2 + $0x80] sm:$0xff]
    %v2982 = vld [vmem:[#allocation2 + $0x88] sm:$0xff]
    %v2983 = vld [vmem:[#allocation2 + $0x90] sm:$0xff]
    %v2984 = vld [vmem:[#allocation2 + $0x98] sm:$0xff]
    %v2985 = vld [vmem:[#allocation2 + $0xa0] sm:$0xff]
    %v2986 = vld [vmem:[#allocation2 + $0xa8] sm:$0xff]
    %v2987 = vld [vmem:[#allocation2 + $0xb0] sm:$0xff]
    %v2988 = vld [vmem:[#allocation2 + $0xb8] sm:$0xff]
    %v2989 = vld [vmem:[#allocation2 + $0xc0] sm:$0xff]
    %v2990 = vld [vmem:[#allocation2 + $0xc8] sm:$0xff]
    %v2991 = vld [vmem:[#allocation2 + $0xd0] sm:$0xff]
    %v2992 = vld [vmem:[#allocation14] sm:$0xff]
    %v2993 = vld [vmem:[#allocation14 + $0x8] sm:$0xff]
    %v2994 = vld [vmem:[#allocation14 + $0x10] sm:$0xff]
    %v2995 = vld [vmem:[#allocation14 + $0x18] sm:$0xff]
    %vm2996 = vcmask 588800
    %v2998 = vsel %vm2996, %v2992, 0
    %v3001 = vsel %vm2996, %v2993, 0
    %v3004 = vsel %vm2996, %v2994, 0
    %v3007 = vsel %vm2996, %v2995, 0
    %3009 = vmatpush.msra.mxu0 0.0
    %3010 = vmatpush.msra.mxu0 0.0
    %3011 = vmatpush.msra.mxu0 0.0
    %3012 = vmatpush.msra.mxu0 0.0
    %3013 = vmatpush.msra.mxu0 0.0
    %3014 = vmatpush.msra.mxu0 0.0
    %3015 = vmatpush.msra.mxu0 0.0
    %3016 = vmatpush.msra.mxu0 %v2989
    %3017 = vmatpush.msra.mxu0 %v2986
    %3018 = vmatpush.msra.mxu0 %v2983
    %3019 = vmatpush.msra.mxu0 %v2980
    %3020 = vmatpush.msra.mxu0 %v2977
    %3021 = vmatpush.msra.mxu0 %v2974
    %3022 = vmatpush.msra.mxu0 %v2971
    %3023 = vmatpush.msra.mxu0 %v2968
    %3024 = vmatpush.msra.mxu0 %v2965
    %3025 = vmatmul.f32.gmra.mxu0 %v2998
    %v3026 = vpop.f32.mrf.mxu0
    %v3027 = vadd.f32 0.0, %v3026
    %3028 = vmatmul.f32.gmra.mxu0 %v3001
    %v3029 = vpop.f32.mrf.mxu0
    %v3030 = vadd.f32 0.0, %v3029
    %3031 = vmatmul.f32.gmra.mxu0 %v3004
    %v3032 = vpop.f32.mrf.mxu0
    %v3033 = vadd.f32 0.0, %v3032
    %3034 = vmatmul.f32.gmra.mxu0 %v3007
    %v3035 = vpop.f32.mrf.mxu0
    %v3036 = vadd.f32 0.0, %v3035
    %3037 = vdwg.mxu0
    %3038 = vmatpush.msra.mxu0 0.0
    %3039 = vmatpush.msra.mxu0 0.0
    %3040 = vmatpush.msra.mxu0 0.0
    %3041 = vmatpush.msra.mxu0 0.0
    %3042 = vmatpush.msra.mxu0 0.0
    %3043 = vmatpush.msra.mxu0 0.0
    %3044 = vmatpush.msra.mxu0 0.0
    %3045 = vmatpush.msra.mxu0 %v2990
    %3046 = vmatpush.msra.mxu0 %v2987
    %3047 = vmatpush.msra.mxu0 %v2984
    %3048 = vmatpush.msra.mxu0 %v2981
    %3049 = vmatpush.msra.mxu0 %v2978
    %3050 = vmatpush.msra.mxu0 %v2975
    %3051 = vmatpush.msra.mxu0 %v2972
    %3052 = vmatpush.msra.mxu0 %v2969
    %3053 = vmatpush.msra.mxu0 %v2966
    %3054 = vmatmul.f32.gmra.mxu0 %v2998
    %v3055 = vpop.f32.mrf.mxu0
    %v3056 = vadd.f32 0.0, %v3055
    %3057 = vmatmul.f32.gmra.mxu0 %v3001
    %v3058 = vpop.f32.mrf.mxu0
    %v3059 = vadd.f32 0.0, %v3058
    %3060 = vmatmul.f32.gmra.mxu0 %v3004
    %v3061 = vpop.f32.mrf.mxu0
    %v3062 = vadd.f32 0.0, %v3061
    %3063 = vmatmul.f32.gmra.mxu0 %v3007
    %v3064 = vpop.f32.mrf.mxu0
    %v3065 = vadd.f32 0.0, %v3064
    %3066 = vdwg.mxu0
    %3067 = vmatpush.msra.mxu0 0.0
    %3068 = vmatpush.msra.mxu0 0.0
    %3069 = vmatpush.msra.mxu0 0.0
    %3070 = vmatpush.msra.mxu0 0.0
    %3071 = vmatpush.msra.mxu0 0.0
    %3072 = vmatpush.msra.mxu0 0.0
    %3073 = vmatpush.msra.mxu0 0.0
    %3074 = vmatpush.msra.mxu0 %v2991
    %3075 = vmatpush.msra.mxu0 %v2988
    %3076 = vmatpush.msra.mxu0 %v2985
    %3077 = vmatpush.msra.mxu0 %v2982
    %3078 = vmatpush.msra.mxu0 %v2979
    %3079 = vmatpush.msra.mxu0 %v2976
    %3080 = vmatpush.msra.mxu0 %v2973
    %3081 = vmatpush.msra.mxu0 %v2970
    %3082 = vmatpush.msra.mxu0 %v2967
    %3083 = vmatmul.f32.gmra.mxu0 %v2998
    %v3084 = vpop.f32.mrf.mxu0
    %v3085 = vadd.f32 0.0, %v3084
    %3086 = vmatmul.f32.gmra.mxu0 %v3001
    %v3087 = vpop.f32.mrf.mxu0
    %v3088 = vadd.f32 0.0, %v3087
    %3089 = vmatmul.f32.gmra.mxu0 %v3004
    %v3090 = vpop.f32.mrf.mxu0
    %v3091 = vadd.f32 0.0, %v3090
    %3092 = vmatmul.f32.gmra.mxu0 %v3007
    %v3093 = vpop.f32.mrf.mxu0
    %v3094 = vadd.f32 0.0, %v3093
    %3095 = vdwg.mxu0
    %v3096 = vld [vmem:[#allocation15] sm:$0xff]
    %v3097 = vld [vmem:[#allocation15 + $0x8] sm:$0xff]
    %v3098 = vld [vmem:[#allocation15 + $0x10] sm:$0xff]
    %v3099 = vld [vmem:[#allocation15 + $0x18] sm:$0xff]
    %v3100 = vld [vmem:[#allocation15 + $0x20] sm:$0xff]
    %v3101 = vld [vmem:[#allocation15 + $0x28] sm:$0xff]
    %v3102 = vld [vmem:[#allocation15 + $0x30] sm:$0xff]
    %v3103 = vld [vmem:[#allocation15 + $0x38] sm:$0xff]
    %v3104 = vld [vmem:[#allocation15 + $0x40] sm:$0xff]
    %v3105 = vld [vmem:[#allocation15 + $0x48] sm:$0xff]
    %v3106 = vld [vmem:[#allocation15 + $0x50] sm:$0xff]
    %v3107 = vld [vmem:[#allocation15 + $0x58] sm:$0xff]
    %v3108 = vld [vmem:[#allocation15 + $0x60] sm:$0xff]
    %v3109 = vld [vmem:[#allocation15 + $0x68] sm:$0xff]
    %v3110 = vld [vmem:[#allocation15 + $0x70] sm:$0xff]
    %v3111 = vld [vmem:[#allocation15 + $0x78] sm:$0xff]
    %v3112 = vld [vmem:[#allocation15 + $0x80] sm:$0xff]
    %v3113 = vld [vmem:[#allocation15 + $0x88] sm:$0xff]
    %v3114 = vld [vmem:[#allocation15 + $0x90] sm:$0xff]
    %v3115 = vld [vmem:[#allocation15 + $0x98] sm:$0xff]
    %v3116 = vld [vmem:[#allocation15 + $0xa0] sm:$0xff]
    %v3117 = vld [vmem:[#allocation15 + $0xa8] sm:$0xff]
    %v3118 = vld [vmem:[#allocation15 + $0xb0] sm:$0xff]
    %v3119 = vld [vmem:[#allocation15 + $0xb8] sm:$0xff]
    %v3120 = vld [vmem:[#allocation15 + $0xc0] sm:$0xff]
    %v3121 = vld [vmem:[#allocation15 + $0xc8] sm:$0xff]
    %v3122 = vld [vmem:[#allocation15 + $0xd0] sm:$0xff]
    %v3123 = vld [vmem:[#allocation15 + $0xd8] sm:$0xff]
    %v3124 = vld [vmem:[#allocation15 + $0xe0] sm:$0xff]
    %v3125 = vld [vmem:[#allocation15 + $0xe8] sm:$0xff]
    %v3126 = vld [vmem:[#allocation15 + $0xf0] sm:$0xff]
    %v3127 = vld [vmem:[#allocation15 + $0xf8] sm:$0xff]
    %v3128 = vld [vmem:[#allocation15 + $0x100] sm:$0xff]
    %v3129 = vld [vmem:[#allocation15 + $0x108] sm:$0xff]
    %v3130 = vld [vmem:[#allocation15 + $0x110] sm:$0xff]
    %v3131 = vld [vmem:[#allocation15 + $0x118] sm:$0xff]
    %v3132 = vld [vmem:[#allocation15 + $0x120] sm:$0xff]
    %v3133 = vld [vmem:[#allocation15 + $0x128] sm:$0xff]
    %v3134 = vld [vmem:[#allocation15 + $0x130] sm:$0xff]
    %v3135 = vld [vmem:[#allocation15 + $0x138] sm:$0xff]
    %v3136 = vld [vmem:[#allocation15 + $0x140] sm:$0xff]
    %v3137 = vld [vmem:[#allocation15 + $0x148] sm:$0xff]
    %v3138 = vld [vmem:[#allocation15 + $0x150] sm:$0xff]
    %v3139 = vld [vmem:[#allocation15 + $0x158] sm:$0xff]
    %v3140 = vld [vmem:[#allocation15 + $0x160] sm:$0xff]
    %v3141 = vld [vmem:[#allocation15 + $0x168] sm:$0xff]
    %v3142 = vld [vmem:[#allocation15 + $0x170] sm:$0xff]
    %v3143 = vld [vmem:[#allocation15 + $0x178] sm:$0xff]
    %v3144 = vld [vmem:[#allocation15 + $0x180] sm:$0xff]
    %v3145 = vld [vmem:[#allocation15 + $0x188] sm:$0xff]
    %v3146 = vld [vmem:[#allocation15 + $0x190] sm:$0xff]
    %v3147 = vld [vmem:[#allocation15 + $0x198] sm:$0xff]
    %v3148 = vld [vmem:[#allocation15 + $0x1a0] sm:$0xff]
    %v3149 = vld [vmem:[#allocation15 + $0x1a8] sm:$0xff]
    %v3150 = vld [vmem:[#allocation15 + $0x1b0] sm:$0xff]
    %v3151 = vld [vmem:[#allocation15 + $0x1b8] sm:$0xff]
    %v3152 = vld [vmem:[#allocation15 + $0x1c0] sm:$0xff]
    %v3153 = vld [vmem:[#allocation15 + $0x1c8] sm:$0xff]
    %v3154 = vld [vmem:[#allocation15 + $0x1d0] sm:$0xff]
    %v3155 = vld [vmem:[#allocation15 + $0x1d8] sm:$0xff]
    %v3156 = vld [vmem:[#allocation15 + $0x1e0] sm:$0xff]
    %v3157 = vld [vmem:[#allocation15 + $0x1e8] sm:$0xff]
    %v3158 = vld [vmem:[#allocation15 + $0x1f0] sm:$0xff]
    %v3159 = vld [vmem:[#allocation15 + $0x1f8] sm:$0xff]
    %v3160 = vld [vmem:[#allocation15 + $0x200] sm:$0xff]
    %v3161 = vld [vmem:[#allocation15 + $0x208] sm:$0xff]
    %v3162 = vld [vmem:[#allocation15 + $0x210] sm:$0xff]
    %v3163 = vld [vmem:[#allocation15 + $0x218] sm:$0xff]
    %v3164 = vld [vmem:[#allocation15 + $0x220] sm:$0xff]
    %v3165 = vld [vmem:[#allocation15 + $0x228] sm:$0xff]
    %v3166 = vld [vmem:[#allocation15 + $0x230] sm:$0xff]
    %v3167 = vld [vmem:[#allocation15 + $0x238] sm:$0xff]
    %v3168 = vld [vmem:[#allocation15 + $0x240] sm:$0xff]
    %v3169 = vld [vmem:[#allocation15 + $0x248] sm:$0xff]
    %v3170 = vld [vmem:[#allocation15 + $0x250] sm:$0xff]
    %v3171 = vld [vmem:[#allocation15 + $0x258] sm:$0xff]
    %v3172 = vld [vmem:[#allocation15 + $0x260] sm:$0xff]
    %v3173 = vld [vmem:[#allocation15 + $0x268] sm:$0xff]
    %v3174 = vld [vmem:[#allocation15 + $0x270] sm:$0xff]
    %v3175 = vld [vmem:[#allocation15 + $0x278] sm:$0xff]
    %v3176 = vld [vmem:[#allocation15 + $0x280] sm:$0xff]
    %v3177 = vld [vmem:[#allocation15 + $0x288] sm:$0xff]
    %v3178 = vld [vmem:[#allocation15 + $0x290] sm:$0xff]
    %v3179 = vld [vmem:[#allocation15 + $0x298] sm:$0xff]
    %v3180 = vld [vmem:[#allocation15 + $0x2a0] sm:$0xff]
    %v3181 = vld [vmem:[#allocation15 + $0x2a8] sm:$0xff]
    %v3182 = vld [vmem:[#allocation15 + $0x2b0] sm:$0xff]
    %v3183 = vld [vmem:[#allocation15 + $0x2b8] sm:$0xff]
    %v3184 = vld [vmem:[#allocation15 + $0x2c0] sm:$0xff]
    %v3185 = vld [vmem:[#allocation15 + $0x2c8] sm:$0xff]
    %v3186 = vld [vmem:[#allocation15 + $0x2d0] sm:$0xff]
    %v3187 = vld [vmem:[#allocation15 + $0x2d8] sm:$0xff]
    %v3188 = vld [vmem:[#allocation15 + $0x2e0] sm:$0xff]
    %v3189 = vld [vmem:[#allocation15 + $0x2e8] sm:$0xff]
    %v3190 = vld [vmem:[#allocation15 + $0x2f0] sm:$0xff]
    %v3191 = vld [vmem:[#allocation15 + $0x2f8] sm:$0xff]
    %v3192 = vld [vmem:[#allocation15 + $0x300] sm:$0xff]
    %v3193 = vld [vmem:[#allocation15 + $0x308] sm:$0xff]
    %v3194 = vld [vmem:[#allocation15 + $0x310] sm:$0xff]
    %v3195 = vld [vmem:[#allocation15 + $0x318] sm:$0xff]
    %v3196 = vld [vmem:[#allocation15 + $0x320] sm:$0xff]
    %v3197 = vld [vmem:[#allocation15 + $0x328] sm:$0xff]
    %v3198 = vld [vmem:[#allocation15 + $0x330] sm:$0xff]
    %v3199 = vld [vmem:[#allocation15 + $0x338] sm:$0xff]
    %v3200 = vld [vmem:[#allocation15 + $0x340] sm:$0xff]
    %v3201 = vld [vmem:[#allocation15 + $0x348] sm:$0xff]
    %v3202 = vld [vmem:[#allocation15 + $0x350] sm:$0xff]
    %v3203 = vld [vmem:[#allocation15 + $0x358] sm:$0xff]
    %v3204 = vld [vmem:[#allocation15 + $0x360] sm:$0xff]
    %v3205 = vld [vmem:[#allocation15 + $0x368] sm:$0xff]
    %v3206 = vld [vmem:[#allocation15 + $0x370] sm:$0xff]
    %v3207 = vld [vmem:[#allocation15 + $0x378] sm:$0xff]
    %v3208 = vld [vmem:[#allocation15 + $0x380] sm:$0xff]
    %v3209 = vld [vmem:[#allocation15 + $0x388] sm:$0xff]
    %v3210 = vld [vmem:[#allocation15 + $0x390] sm:$0xff]
    %v3211 = vld [vmem:[#allocation15 + $0x398] sm:$0xff]
    %v3212 = vld [vmem:[#allocation15 + $0x3a0] sm:$0xff]
    %v3213 = vld [vmem:[#allocation15 + $0x3a8] sm:$0xff]
    %v3214 = vld [vmem:[#allocation15 + $0x3b0] sm:$0xff]
    %v3215 = vld [vmem:[#allocation15 + $0x3b8] sm:$0xff]
    %v3216 = vld [vmem:[#allocation15 + $0x3c0] sm:$0xff]
    %v3217 = vld [vmem:[#allocation15 + $0x3c8] sm:$0xff]
    %v3218 = vld [vmem:[#allocation15 + $0x3d0] sm:$0xff]
    %v3219 = vld [vmem:[#allocation15 + $0x3d8] sm:$0xff]
    %v3220 = vld [vmem:[#allocation15 + $0x3e0] sm:$0xff]
    %v3221 = vld [vmem:[#allocation15 + $0x3e8] sm:$0xff]
    %v3222 = vld [vmem:[#allocation15 + $0x3f0] sm:$0xff]
    %v3223 = vld [vmem:[#allocation15 + $0x3f8] sm:$0xff]
    %v3224 = vld [vmem:[#allocation15 + $0x400] sm:$0xff]
    %v3225 = vld [vmem:[#allocation15 + $0x408] sm:$0xff]
    %v3226 = vld [vmem:[#allocation15 + $0x410] sm:$0xff]
    %v3227 = vld [vmem:[#allocation15 + $0x418] sm:$0xff]
    %v3228 = vld [vmem:[#allocation15 + $0x420] sm:$0xff]
    %v3229 = vld [vmem:[#allocation15 + $0x428] sm:$0xff]
    %v3230 = vld [vmem:[#allocation15 + $0x430] sm:$0xff]
    %v3231 = vld [vmem:[#allocation15 + $0x438] sm:$0xff]
    %v3232 = vld [vmem:[#allocation15 + $0x440] sm:$0xff]
    %v3233 = vld [vmem:[#allocation15 + $0x448] sm:$0xff]
    %v3234 = vld [vmem:[#allocation15 + $0x450] sm:$0xff]
    %v3235 = vld [vmem:[#allocation15 + $0x458] sm:$0xff]
    %v3236 = vld [vmem:[#allocation15 + $0x460] sm:$0xff]
    %v3237 = vld [vmem:[#allocation15 + $0x468] sm:$0xff]
    %v3238 = vld [vmem:[#allocation15 + $0x470] sm:$0xff]
    %v3239 = vld [vmem:[#allocation15 + $0x478] sm:$0xff]
    %s3240 = scalar_lea.vmem [#allocation14], 32
    %v3241 = vld [vmem:[%s3240] sm:$0xff]
    %v3242 = vld [vmem:[%s3240 + $0x8] sm:$0xff]
    %v3243 = vld [vmem:[%s3240 + $0x10] sm:$0xff]
    %v3244 = vld [vmem:[%s3240 + $0x18] sm:$0xff]
    %v3246 = vsel %vm2996, %v3241, 0
    %v3249 = vsel %vm2996, %v3242, 0
    %v3252 = vsel %vm2996, %v3243, 0
    %v3255 = vsel %vm2996, %v3244, 0
    %3257 = vmatpush.msra.mxu0 0.0
    %3258 = vmatpush.msra.mxu0 0.0
    %3259 = vmatpush.msra.mxu0 0.0
    %3260 = vmatpush.msra.mxu0 0.0
    %3261 = vmatpush.msra.mxu0 0.0
    %3262 = vmatpush.msra.mxu0 0.0
    %3263 = vmatpush.msra.mxu0 0.0
    %3264 = vmatpush.msra.mxu0 %v2989
    %3265 = vmatpush.msra.mxu0 %v2986
    %3266 = vmatpush.msra.mxu0 %v2983
    %3267 = vmatpush.msra.mxu0 %v2980
    %3268 = vmatpush.msra.mxu0 %v2977
    %3269 = vmatpush.msra.mxu0 %v2974
    %3270 = vmatpush.msra.mxu0 %v2971
    %3271 = vmatpush.msra.mxu0 %v2968
    %3272 = vmatpush.msra.mxu0 %v2965
    %3273 = vmatmul.f32.gmra.mxu0 %v3246
    %v3274 = vpop.f32.mrf.mxu0
    %v3275 = vadd.f32 0.0, %v3274
    %3276 = vmatmul.f32.gmra.mxu0 %v3249
    %v3277 = vpop.f32.mrf.mxu0
    %v3278 = vadd.f32 0.0, %v3277
    %3279 = vmatmul.f32.gmra.mxu0 %v3252
    %v3280 = vpop.f32.mrf.mxu0
    %v3281 = vadd.f32 0.0, %v3280
    %3282 = vmatmul.f32.gmra.mxu0 %v3255
    %v3283 = vpop.f32.mrf.mxu0
    %v3284 = vadd.f32 0.0, %v3283
    %3285 = vdwg.mxu0
    %3286 = vmatpush.msra.mxu0 0.0
    %3287 = vmatpush.msra.mxu0 0.0
    %3288 = vmatpush.msra.mxu0 0.0
    %3289 = vmatpush.msra.mxu0 0.0
    %3290 = vmatpush.msra.mxu0 0.0
    %3291 = vmatpush.msra.mxu0 0.0
    %3292 = vmatpush.msra.mxu0 0.0
    %3293 = vmatpush.msra.mxu0 %v2990
    %3294 = vmatpush.msra.mxu0 %v2987
    %3295 = vmatpush.msra.mxu0 %v2984
    %3296 = vmatpush.msra.mxu0 %v2981
    %3297 = vmatpush.msra.mxu0 %v2978
    %3298 = vmatpush.msra.mxu0 %v2975
    %3299 = vmatpush.msra.mxu0 %v2972
    %3300 = vmatpush.msra.mxu0 %v2969
    %3301 = vmatpush.msra.mxu0 %v2966
    %3302 = vmatmul.f32.gmra.mxu0 %v3246
    %v3303 = vpop.f32.mrf.mxu0
    %v3304 = vadd.f32 0.0, %v3303
    %3305 = vmatmul.f32.gmra.mxu0 %v3249
    %v3306 = vpop.f32.mrf.mxu0
    %v3307 = vadd.f32 0.0, %v3306
    %3308 = vmatmul.f32.gmra.mxu0 %v3252
    %v3309 = vpop.f32.mrf.mxu0
    %v3310 = vadd.f32 0.0, %v3309
    %3311 = vmatmul.f32.gmra.mxu0 %v3255
    %v3312 = vpop.f32.mrf.mxu0
    %v3313 = vadd.f32 0.0, %v3312
    %3314 = vdwg.mxu0
    %3315 = vmatpush.msra.mxu0 0.0
    %3316 = vmatpush.msra.mxu0 0.0
    %3317 = vmatpush.msra.mxu0 0.0
    %3318 = vmatpush.msra.mxu0 0.0
    %3319 = vmatpush.msra.mxu0 0.0
    %3320 = vmatpush.msra.mxu0 0.0
    %3321 = vmatpush.msra.mxu0 0.0
    %3322 = vmatpush.msra.mxu0 %v2991
    %3323 = vmatpush.msra.mxu0 %v2988
    %3324 = vmatpush.msra.mxu0 %v2985
    %3325 = vmatpush.msra.mxu0 %v2982
    %3326 = vmatpush.msra.mxu0 %v2979
    %3327 = vmatpush.msra.mxu0 %v2976
    %3328 = vmatpush.msra.mxu0 %v2973
    %3329 = vmatpush.msra.mxu0 %v2970
    %3330 = vmatpush.msra.mxu0 %v2967
    %3331 = vmatmul.f32.gmra.mxu0 %v3246
    %v3332 = vpop.f32.mrf.mxu0
    %v3333 = vadd.f32 0.0, %v3332
    %3334 = vmatmul.f32.gmra.mxu0 %v3249
    %v3335 = vpop.f32.mrf.mxu0
    %v3336 = vadd.f32 0.0, %v3335
    %3337 = vmatmul.f32.gmra.mxu0 %v3252
    %v3338 = vpop.f32.mrf.mxu0
    %v3339 = vadd.f32 0.0, %v3338
    %3340 = vmatmul.f32.gmra.mxu0 %v3255
    %v3341 = vpop.f32.mrf.mxu0
    %v3342 = vadd.f32 0.0, %v3341
    %3343 = vdwg.mxu0
    %s3344 = scalar_lea.vmem [#allocation15], 1152
    %v3345 = vld [vmem:[%s3344] sm:$0xff]
    %v3346 = vld [vmem:[%s3344 + $0x8] sm:$0xff]
    %v3347 = vld [vmem:[%s3344 + $0x10] sm:$0xff]
    %v3348 = vld [vmem:[%s3344 + $0x18] sm:$0xff]
    %v3349 = vld [vmem:[%s3344 + $0x20] sm:$0xff]
    %v3350 = vld [vmem:[%s3344 + $0x28] sm:$0xff]
    %v3351 = vld [vmem:[%s3344 + $0x30] sm:$0xff]
    %v3352 = vld [vmem:[%s3344 + $0x38] sm:$0xff]
    %v3353 = vld [vmem:[%s3344 + $0x40] sm:$0xff]
    %v3354 = vld [vmem:[%s3344 + $0x48] sm:$0xff]
    %v3355 = vld [vmem:[%s3344 + $0x50] sm:$0xff]
    %v3356 = vld [vmem:[%s3344 + $0x58] sm:$0xff]
    %v3357 = vld [vmem:[%s3344 + $0x60] sm:$0xff]
    %v3358 = vld [vmem:[%s3344 + $0x68] sm:$0xff]
    %v3359 = vld [vmem:[%s3344 + $0x70] sm:$0xff]
    %v3360 = vld [vmem:[%s3344 + $0x78] sm:$0xff]
    %v3361 = vld [vmem:[%s3344 + $0x80] sm:$0xff]
    %v3362 = vld [vmem:[%s3344 + $0x88] sm:$0xff]
    %v3363 = vld [vmem:[%s3344 + $0x90] sm:$0xff]
    %v3364 = vld [vmem:[%s3344 + $0x98] sm:$0xff]
    %v3365 = vld [vmem:[%s3344 + $0xa0] sm:$0xff]
    %v3366 = vld [vmem:[%s3344 + $0xa8] sm:$0xff]
    %v3367 = vld [vmem:[%s3344 + $0xb0] sm:$0xff]
    %v3368 = vld [vmem:[%s3344 + $0xb8] sm:$0xff]
    %v3369 = vld [vmem:[%s3344 + $0xc0] sm:$0xff]
    %v3370 = vld [vmem:[%s3344 + $0xc8] sm:$0xff]
    %v3371 = vld [vmem:[%s3344 + $0xd0] sm:$0xff]
    %v3372 = vld [vmem:[%s3344 + $0xd8] sm:$0xff]
    %v3373 = vld [vmem:[%s3344 + $0xe0] sm:$0xff]
    %v3374 = vld [vmem:[%s3344 + $0xe8] sm:$0xff]
    %v3375 = vld [vmem:[%s3344 + $0xf0] sm:$0xff]
    %v3376 = vld [vmem:[%s3344 + $0xf8] sm:$0xff]
    %v3377 = vld [vmem:[%s3344 + $0x100] sm:$0xff]
    %v3378 = vld [vmem:[%s3344 + $0x108] sm:$0xff]
    %v3379 = vld [vmem:[%s3344 + $0x110] sm:$0xff]
    %v3380 = vld [vmem:[%s3344 + $0x118] sm:$0xff]
    %v3381 = vld [vmem:[%s3344 + $0x120] sm:$0xff]
    %v3382 = vld [vmem:[%s3344 + $0x128] sm:$0xff]
    %v3383 = vld [vmem:[%s3344 + $0x130] sm:$0xff]
    %v3384 = vld [vmem:[%s3344 + $0x138] sm:$0xff]
    %v3385 = vld [vmem:[%s3344 + $0x140] sm:$0xff]
    %v3386 = vld [vmem:[%s3344 + $0x148] sm:$0xff]
    %v3387 = vld [vmem:[%s3344 + $0x150] sm:$0xff]
    %v3388 = vld [vmem:[%s3344 + $0x158] sm:$0xff]
    %v3389 = vld [vmem:[%s3344 + $0x160] sm:$0xff]
    %v3390 = vld [vmem:[%s3344 + $0x168] sm:$0xff]
    %v3391 = vld [vmem:[%s3344 + $0x170] sm:$0xff]
    %v3392 = vld [vmem:[%s3344 + $0x178] sm:$0xff]
    %v3393 = vld [vmem:[%s3344 + $0x180] sm:$0xff]
    %v3394 = vld [vmem:[%s3344 + $0x188] sm:$0xff]
    %v3395 = vld [vmem:[%s3344 + $0x190] sm:$0xff]
    %v3396 = vld [vmem:[%s3344 + $0x198] sm:$0xff]
    %v3397 = vld [vmem:[%s3344 + $0x1a0] sm:$0xff]
    %v3398 = vld [vmem:[%s3344 + $0x1a8] sm:$0xff]
    %v3399 = vld [vmem:[%s3344 + $0x1b0] sm:$0xff]
    %v3400 = vld [vmem:[%s3344 + $0x1b8] sm:$0xff]
    %v3401 = vld [vmem:[%s3344 + $0x1c0] sm:$0xff]
    %v3402 = vld [vmem:[%s3344 + $0x1c8] sm:$0xff]
    %v3403 = vld [vmem:[%s3344 + $0x1d0] sm:$0xff]
    %v3404 = vld [vmem:[%s3344 + $0x1d8] sm:$0xff]
    %v3405 = vld [vmem:[%s3344 + $0x1e0] sm:$0xff]
    %v3406 = vld [vmem:[%s3344 + $0x1e8] sm:$0xff]
    %v3407 = vld [vmem:[%s3344 + $0x1f0] sm:$0xff]
    %v3408 = vld [vmem:[%s3344 + $0x1f8] sm:$0xff]
    %v3409 = vld [vmem:[%s3344 + $0x200] sm:$0xff]
    %v3410 = vld [vmem:[%s3344 + $0x208] sm:$0xff]
    %v3411 = vld [vmem:[%s3344 + $0x210] sm:$0xff]
    %v3412 = vld [vmem:[%s3344 + $0x218] sm:$0xff]
    %v3413 = vld [vmem:[%s3344 + $0x220] sm:$0xff]
    %v3414 = vld [vmem:[%s3344 + $0x228] sm:$0xff]
    %v3415 = vld [vmem:[%s3344 + $0x230] sm:$0xff]
    %v3416 = vld [vmem:[%s3344 + $0x238] sm:$0xff]
    %v3417 = vld [vmem:[%s3344 + $0x240] sm:$0xff]
    %v3418 = vld [vmem:[%s3344 + $0x248] sm:$0xff]
    %v3419 = vld [vmem:[%s3344 + $0x250] sm:$0xff]
    %v3420 = vld [vmem:[%s3344 + $0x258] sm:$0xff]
    %v3421 = vld [vmem:[%s3344 + $0x260] sm:$0xff]
    %v3422 = vld [vmem:[%s3344 + $0x268] sm:$0xff]
    %v3423 = vld [vmem:[%s3344 + $0x270] sm:$0xff]
    %v3424 = vld [vmem:[%s3344 + $0x278] sm:$0xff]
    %v3425 = vld [vmem:[%s3344 + $0x280] sm:$0xff]
    %v3426 = vld [vmem:[%s3344 + $0x288] sm:$0xff]
    %v3427 = vld [vmem:[%s3344 + $0x290] sm:$0xff]
    %v3428 = vld [vmem:[%s3344 + $0x298] sm:$0xff]
    %v3429 = vld [vmem:[%s3344 + $0x2a0] sm:$0xff]
    %v3430 = vld [vmem:[%s3344 + $0x2a8] sm:$0xff]
    %v3431 = vld [vmem:[%s3344 + $0x2b0] sm:$0xff]
    %v3432 = vld [vmem:[%s3344 + $0x2b8] sm:$0xff]
    %v3433 = vld [vmem:[%s3344 + $0x2c0] sm:$0xff]
    %v3434 = vld [vmem:[%s3344 + $0x2c8] sm:$0xff]
    %v3435 = vld [vmem:[%s3344 + $0x2d0] sm:$0xff]
    %v3436 = vld [vmem:[%s3344 + $0x2d8] sm:$0xff]
    %v3437 = vld [vmem:[%s3344 + $0x2e0] sm:$0xff]
    %v3438 = vld [vmem:[%s3344 + $0x2e8] sm:$0xff]
    %v3439 = vld [vmem:[%s3344 + $0x2f0] sm:$0xff]
    %v3440 = vld [vmem:[%s3344 + $0x2f8] sm:$0xff]
    %v3441 = vld [vmem:[%s3344 + $0x300] sm:$0xff]
    %v3442 = vld [vmem:[%s3344 + $0x308] sm:$0xff]
    %v3443 = vld [vmem:[%s3344 + $0x310] sm:$0xff]
    %v3444 = vld [vmem:[%s3344 + $0x318] sm:$0xff]
    %v3445 = vld [vmem:[%s3344 + $0x320] sm:$0xff]
    %v3446 = vld [vmem:[%s3344 + $0x328] sm:$0xff]
    %v3447 = vld [vmem:[%s3344 + $0x330] sm:$0xff]
    %v3448 = vld [vmem:[%s3344 + $0x338] sm:$0xff]
    %v3449 = vld [vmem:[%s3344 + $0x340] sm:$0xff]
    %v3450 = vld [vmem:[%s3344 + $0x348] sm:$0xff]
    %v3451 = vld [vmem:[%s3344 + $0x350] sm:$0xff]
    %v3452 = vld [vmem:[%s3344 + $0x358] sm:$0xff]
    %v3453 = vld [vmem:[%s3344 + $0x360] sm:$0xff]
    %v3454 = vld [vmem:[%s3344 + $0x368] sm:$0xff]
    %v3455 = vld [vmem:[%s3344 + $0x370] sm:$0xff]
    %v3456 = vld [vmem:[%s3344 + $0x378] sm:$0xff]
    %v3457 = vld [vmem:[%s3344 + $0x380] sm:$0xff]
    %v3458 = vld [vmem:[%s3344 + $0x388] sm:$0xff]
    %v3459 = vld [vmem:[%s3344 + $0x390] sm:$0xff]
    %v3460 = vld [vmem:[%s3344 + $0x398] sm:$0xff]
    %v3461 = vld [vmem:[%s3344 + $0x3a0] sm:$0xff]
    %v3462 = vld [vmem:[%s3344 + $0x3a8] sm:$0xff]
    %v3463 = vld [vmem:[%s3344 + $0x3b0] sm:$0xff]
    %v3464 = vld [vmem:[%s3344 + $0x3b8] sm:$0xff]
    %v3465 = vld [vmem:[%s3344 + $0x3c0] sm:$0xff]
    %v3466 = vld [vmem:[%s3344 + $0x3c8] sm:$0xff]
    %v3467 = vld [vmem:[%s3344 + $0x3d0] sm:$0xff]
    %v3468 = vld [vmem:[%s3344 + $0x3d8] sm:$0xff]
    %v3469 = vld [vmem:[%s3344 + $0x3e0] sm:$0xff]
    %v3470 = vld [vmem:[%s3344 + $0x3e8] sm:$0xff]
    %v3471 = vld [vmem:[%s3344 + $0x3f0] sm:$0xff]
    %v3472 = vld [vmem:[%s3344 + $0x3f8] sm:$0xff]
    %v3473 = vld [vmem:[%s3344 + $0x400] sm:$0xff]
    %v3474 = vld [vmem:[%s3344 + $0x408] sm:$0xff]
    %v3475 = vld [vmem:[%s3344 + $0x410] sm:$0xff]
    %v3476 = vld [vmem:[%s3344 + $0x418] sm:$0xff]
    %v3477 = vld [vmem:[%s3344 + $0x420] sm:$0xff]
    %v3478 = vld [vmem:[%s3344 + $0x428] sm:$0xff]
    %v3479 = vld [vmem:[%s3344 + $0x430] sm:$0xff]
    %v3480 = vld [vmem:[%s3344 + $0x438] sm:$0xff]
    %v3481 = vld [vmem:[%s3344 + $0x440] sm:$0xff]
    %v3482 = vld [vmem:[%s3344 + $0x448] sm:$0xff]
    %v3483 = vld [vmem:[%s3344 + $0x450] sm:$0xff]
    %v3484 = vld [vmem:[%s3344 + $0x458] sm:$0xff]
    %v3485 = vld [vmem:[%s3344 + $0x460] sm:$0xff]
    %v3486 = vld [vmem:[%s3344 + $0x468] sm:$0xff]
    %v3487 = vld [vmem:[%s3344 + $0x470] sm:$0xff]
    %v3488 = vld [vmem:[%s3344 + $0x478] sm:$0xff]
    %3489 = vmatpush.msra.mxu0 %v3390
    %3490 = vmatpush.msra.mxu0 %v3387
    %3491 = vmatpush.msra.mxu0 %v3384
    %3492 = vmatpush.msra.mxu0 %v3381
    %3493 = vmatpush.msra.mxu0 %v3378
    %3494 = vmatpush.msra.mxu0 %v3375
    %3495 = vmatpush.msra.mxu0 %v3372
    %3496 = vmatpush.msra.mxu0 %v3369
    %3497 = vmatpush.msra.mxu0 %v3366
    %3498 = vmatpush.msra.mxu0 %v3363
    %3499 = vmatpush.msra.mxu0 %v3360
    %3500 = vmatpush.msra.mxu0 %v3357
    %3501 = vmatpush.msra.mxu0 %v3354
    %3502 = vmatpush.msra.mxu0 %v3351
    %3503 = vmatpush.msra.mxu0 %v3348
    %3504 = vmatpush.msra.mxu0 %v3345
    %3505 = vmatmul.f32.gmra.mxu0 %v3275
    %v3506 = vpop.f32.mrf.mxu0
    %v3507 = vadd.f32 0.0, %v3506
    %3508 = vmatmul.f32.gmra.mxu0 %v3278
    %v3509 = vpop.f32.mrf.mxu0
    %v3510 = vadd.f32 0.0, %v3509
    %3511 = vmatmul.f32.gmra.mxu0 %v3281
    %v3512 = vpop.f32.mrf.mxu0
    %v3513 = vadd.f32 0.0, %v3512
    %3514 = vmatmul.f32.gmra.mxu0 %v3284
    %v3515 = vpop.f32.mrf.mxu0
    %v3516 = vadd.f32 0.0, %v3515
    %3517 = vdwg.mxu0
    %3518 = vmatpush.msra.mxu0 %v3438
    %3519 = vmatpush.msra.mxu0 %v3435
    %3520 = vmatpush.msra.mxu0 %v3432
    %3521 = vmatpush.msra.mxu0 %v3429
    %3522 = vmatpush.msra.mxu0 %v3426
    %3523 = vmatpush.msra.mxu0 %v3423
    %3524 = vmatpush.msra.mxu0 %v3420
    %3525 = vmatpush.msra.mxu0 %v3417
    %3526 = vmatpush.msra.mxu0 %v3414
    %3527 = vmatpush.msra.mxu0 %v3411
    %3528 = vmatpush.msra.mxu0 %v3408
    %3529 = vmatpush.msra.mxu0 %v3405
    %3530 = vmatpush.msra.mxu0 %v3402
    %3531 = vmatpush.msra.mxu0 %v3399
    %3532 = vmatpush.msra.mxu0 %v3396
    %3533 = vmatpush.msra.mxu0 %v3393
    %3534 = vmatmul.f32.gmra.mxu0 %v3304
    %v3535 = vpop.f32.mrf.mxu0
    %v3536 = vadd.f32 %v3507, %v3535
    %3537 = vmatmul.f32.gmra.mxu0 %v3307
    %v3538 = vpop.f32.mrf.mxu0
    %v3539 = vadd.f32 %v3510, %v3538
    %3540 = vmatmul.f32.gmra.mxu0 %v3310
    %v3541 = vpop.f32.mrf.mxu0
    %v3542 = vadd.f32 %v3513, %v3541
    %3543 = vmatmul.f32.gmra.mxu0 %v3313
    %v3544 = vpop.f32.mrf.mxu0
    %v3545 = vadd.f32 %v3516, %v3544
    %3546 = vdwg.mxu0
    %3547 = vmatpush.msra.mxu0 %v3486
    %3548 = vmatpush.msra.mxu0 %v3483
    %3549 = vmatpush.msra.mxu0 %v3480
    %3550 = vmatpush.msra.mxu0 %v3477
    %3551 = vmatpush.msra.mxu0 %v3474
    %3552 = vmatpush.msra.mxu0 %v3471
    %3553 = vmatpush.msra.mxu0 %v3468
    %3554 = vmatpush.msra.mxu0 %v3465
    %3555 = vmatpush.msra.mxu0 %v3462
    %3556 = vmatpush.msra.mxu0 %v3459
    %3557 = vmatpush.msra.mxu0 %v3456
    %3558 = vmatpush.msra.mxu0 %v3453
    %3559 = vmatpush.msra.mxu0 %v3450
    %3560 = vmatpush.msra.mxu0 %v3447
    %3561 = vmatpush.msra.mxu0 %v3444
    %3562 = vmatpush.msra.mxu0 %v3441
    %3563 = vmatmul.f32.gmra.mxu0 %v3333
    %v3564 = vpop.f32.mrf.mxu0
    %v3565 = vadd.f32 %v3536, %v3564
    %3566 = vmatmul.f32.gmra.mxu0 %v3336
    %v3567 = vpop.f32.mrf.mxu0
    %v3568 = vadd.f32 %v3539, %v3567
    %3569 = vmatmul.f32.gmra.mxu0 %v3339
    %v3570 = vpop.f32.mrf.mxu0
    %v3571 = vadd.f32 %v3542, %v3570
    %3572 = vmatmul.f32.gmra.mxu0 %v3342
    %v3573 = vpop.f32.mrf.mxu0
    %v3574 = vadd.f32 %v3545, %v3573
    %3575 = vdwg.mxu0
    %3576 = vmatpush.msra.mxu0 %v3391
    %3577 = vmatpush.msra.mxu0 %v3388
    %3578 = vmatpush.msra.mxu0 %v3385
    %3579 = vmatpush.msra.mxu0 %v3382
    %3580 = vmatpush.msra.mxu0 %v3379
    %3581 = vmatpush.msra.mxu0 %v3376
    %3582 = vmatpush.msra.mxu0 %v3373
    %3583 = vmatpush.msra.mxu0 %v3370
    %3584 = vmatpush.msra.mxu0 %v3367
    %3585 = vmatpush.msra.mxu0 %v3364
    %3586 = vmatpush.msra.mxu0 %v3361
    %3587 = vmatpush.msra.mxu0 %v3358
    %3588 = vmatpush.msra.mxu0 %v3355
    %3589 = vmatpush.msra.mxu0 %v3352
    %3590 = vmatpush.msra.mxu0 %v3349
    %3591 = vmatpush.msra.mxu0 %v3346
    %3592 = vmatmul.f32.gmra.mxu0 %v3275
    %v3593 = vpop.f32.mrf.mxu0
    %v3594 = vadd.f32 0.0, %v3593
    %3595 = vmatmul.f32.gmra.mxu0 %v3278
    %v3596 = vpop.f32.mrf.mxu0
    %v3597 = vadd.f32 0.0, %v3596
    %3598 = vmatmul.f32.gmra.mxu0 %v3281
    %v3599 = vpop.f32.mrf.mxu0
    %v3600 = vadd.f32 0.0, %v3599
    %3601 = vmatmul.f32.gmra.mxu0 %v3284
    %v3602 = vpop.f32.mrf.mxu0
    %v3603 = vadd.f32 0.0, %v3602
    %3604 = vdwg.mxu0
    %3605 = vmatpush.msra.mxu0 %v3439
    %3606 = vmatpush.msra.mxu0 %v3436
    %3607 = vmatpush.msra.mxu0 %v3433
    %3608 = vmatpush.msra.mxu0 %v3430
    %3609 = vmatpush.msra.mxu0 %v3427
    %3610 = vmatpush.msra.mxu0 %v3424
    %3611 = vmatpush.msra.mxu0 %v3421
    %3612 = vmatpush.msra.mxu0 %v3418
    %3613 = vmatpush.msra.mxu0 %v3415
    %3614 = vmatpush.msra.mxu0 %v3412
    %3615 = vmatpush.msra.mxu0 %v3409
    %3616 = vmatpush.msra.mxu0 %v3406
    %3617 = vmatpush.msra.mxu0 %v3403
    %3618 = vmatpush.msra.mxu0 %v3400
    %3619 = vmatpush.msra.mxu0 %v3397
    %3620 = vmatpush.msra.mxu0 %v3394
    %3621 = vmatmul.f32.gmra.mxu0 %v3304
    %v3622 = vpop.f32.mrf.mxu0
    %v3623 = vadd.f32 %v3594, %v3622
    %3624 = vmatmul.f32.gmra.mxu0 %v3307
    %v3625 = vpop.f32.mrf.mxu0
    %v3626 = vadd.f32 %v3597, %v3625
    %3627 = vmatmul.f32.gmra.mxu0 %v3310
    %v3628 = vpop.f32.mrf.mxu0
    %v3629 = vadd.f32 %v3600, %v3628
    %3630 = vmatmul.f32.gmra.mxu0 %v3313
    %v3631 = vpop.f32.mrf.mxu0
    %v3632 = vadd.f32 %v3603, %v3631
    %3633 = vdwg.mxu0
    %3634 = vmatpush.msra.mxu0 %v3487
    %3635 = vmatpush.msra.mxu0 %v3484
    %3636 = vmatpush.msra.mxu0 %v3481
    %3637 = vmatpush.msra.mxu0 %v3478
    %3638 = vmatpush.msra.mxu0 %v3475
    %3639 = vmatpush.msra.mxu0 %v3472
    %3640 = vmatpush.msra.mxu0 %v3469
    %3641 = vmatpush.msra.mxu0 %v3466
    %3642 = vmatpush.msra.mxu0 %v3463
    %3643 = vmatpush.msra.mxu0 %v3460
    %3644 = vmatpush.msra.mxu0 %v3457
    %3645 = vmatpush.msra.mxu0 %v3454
    %3646 = vmatpush.msra.mxu0 %v3451
    %3647 = vmatpush.msra.mxu0 %v3448
    %3648 = vmatpush.msra.mxu0 %v3445
    %3649 = vmatpush.msra.mxu0 %v3442
    %3650 = vmatmul.f32.gmra.mxu0 %v3333
    %v3651 = vpop.f32.mrf.mxu0
    %v3652 = vadd.f32 %v3623, %v3651
    %3653 = vmatmul.f32.gmra.mxu0 %v3336
    %v3654 = vpop.f32.mrf.mxu0
    %v3655 = vadd.f32 %v3626, %v3654
    %3656 = vmatmul.f32.gmra.mxu0 %v3339
    %v3657 = vpop.f32.mrf.mxu0
    %v3658 = vadd.f32 %v3629, %v3657
    %3659 = vmatmul.f32.gmra.mxu0 %v3342
    %v3660 = vpop.f32.mrf.mxu0
    %v3661 = vadd.f32 %v3632, %v3660
    %3662 = vdwg.mxu0
    %3663 = vmatpush.msra.mxu0 %v3392
    %3664 = vmatpush.msra.mxu0 %v3389
    %3665 = vmatpush.msra.mxu0 %v3386
    %3666 = vmatpush.msra.mxu0 %v3383
    %3667 = vmatpush.msra.mxu0 %v3380
    %3668 = vmatpush.msra.mxu0 %v3377
    %3669 = vmatpush.msra.mxu0 %v3374
    %3670 = vmatpush.msra.mxu0 %v3371
    %3671 = vmatpush.msra.mxu0 %v3368
    %3672 = vmatpush.msra.mxu0 %v3365
    %3673 = vmatpush.msra.mxu0 %v3362
    %3674 = vmatpush.msra.mxu0 %v3359
    %3675 = vmatpush.msra.mxu0 %v3356
    %3676 = vmatpush.msra.mxu0 %v3353
    %3677 = vmatpush.msra.mxu0 %v3350
    %3678 = vmatpush.msra.mxu0 %v3347
    %3679 = vmatmul.f32.gmra.mxu0 %v3275
    %v3680 = vpop.f32.mrf.mxu0
    %v3681 = vadd.f32 0.0, %v3680
    %3682 = vmatmul.f32.gmra.mxu0 %v3278
    %v3683 = vpop.f32.mrf.mxu0
    %v3684 = vadd.f32 0.0, %v3683
    %3685 = vmatmul.f32.gmra.mxu0 %v3281
    %v3686 = vpop.f32.mrf.mxu0
    %v3687 = vadd.f32 0.0, %v3686
    %3688 = vmatmul.f32.gmra.mxu0 %v3284
    %v3689 = vpop.f32.mrf.mxu0
    %v3690 = vadd.f32 0.0, %v3689
    %3691 = vdwg.mxu0
    %3692 = vmatpush.msra.mxu0 %v3440
    %3693 = vmatpush.msra.mxu0 %v3437
    %3694 = vmatpush.msra.mxu0 %v3434
    %3695 = vmatpush.msra.mxu0 %v3431
    %3696 = vmatpush.msra.mxu0 %v3428
    %3697 = vmatpush.msra.mxu0 %v3425
    %3698 = vmatpush.msra.mxu0 %v3422
    %3699 = vmatpush.msra.mxu0 %v3419
    %3700 = vmatpush.msra.mxu0 %v3416
    %3701 = vmatpush.msra.mxu0 %v3413
    %3702 = vmatpush.msra.mxu0 %v3410
    %3703 = vmatpush.msra.mxu0 %v3407
    %3704 = vmatpush.msra.mxu0 %v3404
    %3705 = vmatpush.msra.mxu0 %v3401
    %3706 = vmatpush.msra.mxu0 %v3398
    %3707 = vmatpush.msra.mxu0 %v3395
    %3708 = vmatmul.f32.gmra.mxu0 %v3304
    %v3709 = vpop.f32.mrf.mxu0
    %v3710 = vadd.f32 %v3681, %v3709
    %3711 = vmatmul.f32.gmra.mxu0 %v3307
    %v3712 = vpop.f32.mrf.mxu0
    %v3713 = vadd.f32 %v3684, %v3712
    %3714 = vmatmul.f32.gmra.mxu0 %v3310
    %v3715 = vpop.f32.mrf.mxu0
    %v3716 = vadd.f32 %v3687, %v3715
    %3717 = vmatmul.f32.gmra.mxu0 %v3313
    %v3718 = vpop.f32.mrf.mxu0
    %v3719 = vadd.f32 %v3690, %v3718
    %3720 = vdwg.mxu0
    %3721 = vmatpush.msra.mxu0 %v3488
    %3722 = vmatpush.msra.mxu0 %v3485
    %3723 = vmatpush.msra.mxu0 %v3482
    %3724 = vmatpush.msra.mxu0 %v3479
    %3725 = vmatpush.msra.mxu0 %v3476
    %3726 = vmatpush.msra.mxu0 %v3473
    %3727 = vmatpush.msra.mxu0 %v3470
    %3728 = vmatpush.msra.mxu0 %v3467
    %3729 = vmatpush.msra.mxu0 %v3464
    %3730 = vmatpush.msra.mxu0 %v3461
    %3731 = vmatpush.msra.mxu0 %v3458
    %3732 = vmatpush.msra.mxu0 %v3455
    %3733 = vmatpush.msra.mxu0 %v3452
    %3734 = vmatpush.msra.mxu0 %v3449
    %3735 = vmatpush.msra.mxu0 %v3446
    %3736 = vmatpush.msra.mxu0 %v3443
    %3737 = vmatmul.f32.gmra.mxu0 %v3333
    %v3738 = vpop.f32.mrf.mxu0
    %v3739 = vadd.f32 %v3710, %v3738
    %3740 = vmatmul.f32.gmra.mxu0 %v3336
    %v3741 = vpop.f32.mrf.mxu0
    %v3742 = vadd.f32 %v3713, %v3741
    %3743 = vmatmul.f32.gmra.mxu0 %v3339
    %v3744 = vpop.f32.mrf.mxu0
    %v3745 = vadd.f32 %v3716, %v3744
    %3746 = vmatmul.f32.gmra.mxu0 %v3342
    %v3747 = vpop.f32.mrf.mxu0
    %v3748 = vadd.f32 %v3719, %v3747
    %3749 = vdwg.mxu0
    %3750 = vmatpush.msra.mxu0 %v3141
    %3751 = vmatpush.msra.mxu0 %v3138
    %3752 = vmatpush.msra.mxu0 %v3135
    %3753 = vmatpush.msra.mxu0 %v3132
    %3754 = vmatpush.msra.mxu0 %v3129
    %3755 = vmatpush.msra.mxu0 %v3126
    %3756 = vmatpush.msra.mxu0 %v3123
    %3757 = vmatpush.msra.mxu0 %v3120
    %3758 = vmatpush.msra.mxu0 %v3117
    %3759 = vmatpush.msra.mxu0 %v3114
    %3760 = vmatpush.msra.mxu0 %v3111
    %3761 = vmatpush.msra.mxu0 %v3108
    %3762 = vmatpush.msra.mxu0 %v3105
    %3763 = vmatpush.msra.mxu0 %v3102
    %3764 = vmatpush.msra.mxu0 %v3099
    %3765 = vmatpush.msra.mxu0 %v3096
    %3766 = vmatmul.f32.gmra.mxu0 %v3027
    %v3767 = vpop.f32.mrf.mxu0
    %v3768 = vadd.f32 %v3565, %v3767
    %3769 = vmatmul.f32.gmra.mxu0 %v3030
    %v3770 = vpop.f32.mrf.mxu0
    %v3771 = vadd.f32 %v3568, %v3770
    %3772 = vmatmul.f32.gmra.mxu0 %v3033
    %v3773 = vpop.f32.mrf.mxu0
    %v3774 = vadd.f32 %v3571, %v3773
    %3775 = vmatmul.f32.gmra.mxu0 %v3036
    %v3776 = vpop.f32.mrf.mxu0
    %v3777 = vadd.f32 %v3574, %v3776
    %3778 = vdwg.mxu0
    %3779 = vmatpush.msra.mxu0 %v3189
    %3780 = vmatpush.msra.mxu0 %v3186
    %3781 = vmatpush.msra.mxu0 %v3183
    %3782 = vmatpush.msra.mxu0 %v3180
    %3783 = vmatpush.msra.mxu0 %v3177
    %3784 = vmatpush.msra.mxu0 %v3174
    %3785 = vmatpush.msra.mxu0 %v3171
    %3786 = vmatpush.msra.mxu0 %v3168
    %3787 = vmatpush.msra.mxu0 %v3165
    %3788 = vmatpush.msra.mxu0 %v3162
    %3789 = vmatpush.msra.mxu0 %v3159
    %3790 = vmatpush.msra.mxu0 %v3156
    %3791 = vmatpush.msra.mxu0 %v3153
    %3792 = vmatpush.msra.mxu0 %v3150
    %3793 = vmatpush.msra.mxu0 %v3147
    %3794 = vmatpush.msra.mxu0 %v3144
    %3795 = vmatmul.f32.gmra.mxu0 %v3056
    %v3796 = vpop.f32.mrf.mxu0
    %v3797 = vadd.f32 %v3768, %v3796
    %3798 = vmatmul.f32.gmra.mxu0 %v3059
    %v3799 = vpop.f32.mrf.mxu0
    %v3800 = vadd.f32 %v3771, %v3799
    %3801 = vmatmul.f32.gmra.mxu0 %v3062
    %v3802 = vpop.f32.mrf.mxu0
    %v3803 = vadd.f32 %v3774, %v3802
    %3804 = vmatmul.f32.gmra.mxu0 %v3065
    %v3805 = vpop.f32.mrf.mxu0
    %v3806 = vadd.f32 %v3777, %v3805
    %3807 = vdwg.mxu0
    %3808 = vmatpush.msra.mxu0 %v3237
    %3809 = vmatpush.msra.mxu0 %v3234
    %3810 = vmatpush.msra.mxu0 %v3231
    %3811 = vmatpush.msra.mxu0 %v3228
    %3812 = vmatpush.msra.mxu0 %v3225
    %3813 = vmatpush.msra.mxu0 %v3222
    %3814 = vmatpush.msra.mxu0 %v3219
    %3815 = vmatpush.msra.mxu0 %v3216
    %3816 = vmatpush.msra.mxu0 %v3213
    %3817 = vmatpush.msra.mxu0 %v3210
    %3818 = vmatpush.msra.mxu0 %v3207
    %3819 = vmatpush.msra.mxu0 %v3204
    %3820 = vmatpush.msra.mxu0 %v3201
    %3821 = vmatpush.msra.mxu0 %v3198
    %3822 = vmatpush.msra.mxu0 %v3195
    %3823 = vmatpush.msra.mxu0 %v3192
    %3824 = vmatmul.f32.gmra.mxu0 %v3085
    %v3825 = vpop.f32.mrf.mxu0
    %v3826 = vadd.f32 %v3797, %v3825
    %3827 = vmatmul.f32.gmra.mxu0 %v3088
    %v3828 = vpop.f32.mrf.mxu0
    %v3829 = vadd.f32 %v3800, %v3828
    %3830 = vmatmul.f32.gmra.mxu0 %v3091
    %v3831 = vpop.f32.mrf.mxu0
    %v3832 = vadd.f32 %v3803, %v3831
    %3833 = vmatmul.f32.gmra.mxu0 %v3094
    %v3834 = vpop.f32.mrf.mxu0
    %v3835 = vadd.f32 %v3806, %v3834
    %3836 = vdwg.mxu0
    %3837 = vmatpush.msra.mxu0 %v3142
    %3838 = vmatpush.msra.mxu0 %v3139
    %3839 = vmatpush.msra.mxu0 %v3136
    %3840 = vmatpush.msra.mxu0 %v3133
    %3841 = vmatpush.msra.mxu0 %v3130
    %3842 = vmatpush.msra.mxu0 %v3127
    %3843 = vmatpush.msra.mxu0 %v3124
    %3844 = vmatpush.msra.mxu0 %v3121
    %3845 = vmatpush.msra.mxu0 %v3118
    %3846 = vmatpush.msra.mxu0 %v3115
    %3847 = vmatpush.msra.mxu0 %v3112
    %3848 = vmatpush.msra.mxu0 %v3109
    %3849 = vmatpush.msra.mxu0 %v3106
    %3850 = vmatpush.msra.mxu0 %v3103
    %3851 = vmatpush.msra.mxu0 %v3100
    %3852 = vmatpush.msra.mxu0 %v3097
    %3853 = vmatmul.f32.gmra.mxu0 %v3027
    %v3854 = vpop.f32.mrf.mxu0
    %v3855 = vadd.f32 %v3652, %v3854
    %3856 = vmatmul.f32.gmra.mxu0 %v3030
    %v3857 = vpop.f32.mrf.mxu0
    %v3858 = vadd.f32 %v3655, %v3857
    %3859 = vmatmul.f32.gmra.mxu0 %v3033
    %v3860 = vpop.f32.mrf.mxu0
    %v3861 = vadd.f32 %v3658, %v3860
    %3862 = vmatmul.f32.gmra.mxu0 %v3036
    %v3863 = vpop.f32.mrf.mxu0
    %v3864 = vadd.f32 %v3661, %v3863
    %3865 = vdwg.mxu0
    %3866 = vmatpush.msra.mxu0 %v3190
    %3867 = vmatpush.msra.mxu0 %v3187
    %3868 = vmatpush.msra.mxu0 %v3184
    %3869 = vmatpush.msra.mxu0 %v3181
    %3870 = vmatpush.msra.mxu0 %v3178
    %3871 = vmatpush.msra.mxu0 %v3175
    %3872 = vmatpush.msra.mxu0 %v3172
    %3873 = vmatpush.msra.mxu0 %v3169
    %3874 = vmatpush.msra.mxu0 %v3166
    %3875 = vmatpush.msra.mxu0 %v3163
    %3876 = vmatpush.msra.mxu0 %v3160
    %3877 = vmatpush.msra.mxu0 %v3157
    %3878 = vmatpush.msra.mxu0 %v3154
    %3879 = vmatpush.msra.mxu0 %v3151
    %3880 = vmatpush.msra.mxu0 %v3148
    %3881 = vmatpush.msra.mxu0 %v3145
    %3882 = vmatmul.f32.gmra.mxu0 %v3056
    %v3883 = vpop.f32.mrf.mxu0
    %v3884 = vadd.f32 %v3855, %v3883
    %3885 = vmatmul.f32.gmra.mxu0 %v3059
    %v3886 = vpop.f32.mrf.mxu0
    %v3887 = vadd.f32 %v3858, %v3886
    %3888 = vmatmul.f32.gmra.mxu0 %v3062
    %v3889 = vpop.f32.mrf.mxu0
    %v3890 = vadd.f32 %v3861, %v3889
    %3891 = vmatmul.f32.gmra.mxu0 %v3065
    %v3892 = vpop.f32.mrf.mxu0
    %v3893 = vadd.f32 %v3864, %v3892
    %3894 = vdwg.mxu0
    %3895 = vmatpush.msra.mxu0 %v3238
    %3896 = vmatpush.msra.mxu0 %v3235
    %3897 = vmatpush.msra.mxu0 %v3232
    %3898 = vmatpush.msra.mxu0 %v3229
    %3899 = vmatpush.msra.mxu0 %v3226
    %3900 = vmatpush.msra.mxu0 %v3223
    %3901 = vmatpush.msra.mxu0 %v3220
    %3902 = vmatpush.msra.mxu0 %v3217
    %3903 = vmatpush.msra.mxu0 %v3214
    %3904 = vmatpush.msra.mxu0 %v3211
    %3905 = vmatpush.msra.mxu0 %v3208
    %3906 = vmatpush.msra.mxu0 %v3205
    %3907 = vmatpush.msra.mxu0 %v3202
    %3908 = vmatpush.msra.mxu0 %v3199
    %3909 = vmatpush.msra.mxu0 %v3196
    %3910 = vmatpush.msra.mxu0 %v3193
    %3911 = vmatmul.f32.gmra.mxu0 %v3085
    %v3912 = vpop.f32.mrf.mxu0
    %v3913 = vadd.f32 %v3884, %v3912
    %3914 = vmatmul.f32.gmra.mxu0 %v3088
    %v3915 = vpop.f32.mrf.mxu0
    %v3916 = vadd.f32 %v3887, %v3915
    %3917 = vmatmul.f32.gmra.mxu0 %v3091
    %v3918 = vpop.f32.mrf.mxu0
    %v3919 = vadd.f32 %v3890, %v3918
    %3920 = vmatmul.f32.gmra.mxu0 %v3094
    %v3921 = vpop.f32.mrf.mxu0
    %v3922 = vadd.f32 %v3893, %v3921
    %3923 = vdwg.mxu0
    %3924 = vmatpush.msra.mxu0 %v3143
    %3925 = vmatpush.msra.mxu0 %v3140
    %3926 = vmatpush.msra.mxu0 %v3137
    %3927 = vmatpush.msra.mxu0 %v3134
    %3928 = vmatpush.msra.mxu0 %v3131
    %3929 = vmatpush.msra.mxu0 %v3128
    %3930 = vmatpush.msra.mxu0 %v3125
    %3931 = vmatpush.msra.mxu0 %v3122
    %3932 = vmatpush.msra.mxu0 %v3119
    %3933 = vmatpush.msra.mxu0 %v3116
    %3934 = vmatpush.msra.mxu0 %v3113
    %3935 = vmatpush.msra.mxu0 %v3110
    %3936 = vmatpush.msra.mxu0 %v3107
    %3937 = vmatpush.msra.mxu0 %v3104
    %3938 = vmatpush.msra.mxu0 %v3101
    %3939 = vmatpush.msra.mxu0 %v3098
    %3940 = vmatmul.f32.gmra.mxu0 %v3027
    %v3941 = vpop.f32.mrf.mxu0
    %v3942 = vadd.f32 %v3739, %v3941
    %3943 = vmatmul.f32.gmra.mxu0 %v3030
    %v3944 = vpop.f32.mrf.mxu0
    %v3945 = vadd.f32 %v3742, %v3944
    %3946 = vmatmul.f32.gmra.mxu0 %v3033
    %v3947 = vpop.f32.mrf.mxu0
    %v3948 = vadd.f32 %v3745, %v3947
    %3949 = vmatmul.f32.gmra.mxu0 %v3036
    %v3950 = vpop.f32.mrf.mxu0
    %v3951 = vadd.f32 %v3748, %v3950
    %3952 = vdwg.mxu0
    %3953 = vmatpush.msra.mxu0 %v3191
    %3954 = vmatpush.msra.mxu0 %v3188
    %3955 = vmatpush.msra.mxu0 %v3185
    %3956 = vmatpush.msra.mxu0 %v3182
    %3957 = vmatpush.msra.mxu0 %v3179
    %3958 = vmatpush.msra.mxu0 %v3176
    %3959 = vmatpush.msra.mxu0 %v3173
    %3960 = vmatpush.msra.mxu0 %v3170
    %3961 = vmatpush.msra.mxu0 %v3167
    %3962 = vmatpush.msra.mxu0 %v3164
    %3963 = vmatpush.msra.mxu0 %v3161
    %3964 = vmatpush.msra.mxu0 %v3158
    %3965 = vmatpush.msra.mxu0 %v3155
    %3966 = vmatpush.msra.mxu0 %v3152
    %3967 = vmatpush.msra.mxu0 %v3149
    %3968 = vmatpush.msra.mxu0 %v3146
    %3969 = vmatmul.f32.gmra.mxu0 %v3056
    %v3970 = vpop.f32.mrf.mxu0
    %v3971 = vadd.f32 %v3942, %v3970
    %3972 = vmatmul.f32.gmra.mxu0 %v3059
    %v3973 = vpop.f32.mrf.mxu0
    %v3974 = vadd.f32 %v3945, %v3973
    %3975 = vmatmul.f32.gmra.mxu0 %v3062
    %v3976 = vpop.f32.mrf.mxu0
    %v3977 = vadd.f32 %v3948, %v3976
    %3978 = vmatmul.f32.gmra.mxu0 %v3065
    %v3979 = vpop.f32.mrf.mxu0
    %v3980 = vadd.f32 %v3951, %v3979
    %3981 = vdwg.mxu0
    %3982 = vmatpush.msra.mxu0 %v3239
    %3983 = vmatpush.msra.mxu0 %v3236
    %3984 = vmatpush.msra.mxu0 %v3233
    %3985 = vmatpush.msra.mxu0 %v3230
    %3986 = vmatpush.msra.mxu0 %v3227
    %3987 = vmatpush.msra.mxu0 %v3224
    %3988 = vmatpush.msra.mxu0 %v3221
    %3989 = vmatpush.msra.mxu0 %v3218
    %3990 = vmatpush.msra.mxu0 %v3215
    %3991 = vmatpush.msra.mxu0 %v3212
    %3992 = vmatpush.msra.mxu0 %v3209
    %3993 = vmatpush.msra.mxu0 %v3206
    %3994 = vmatpush.msra.mxu0 %v3203
    %3995 = vmatpush.msra.mxu0 %v3200
    %3996 = vmatpush.msra.mxu0 %v3197
    %3997 = vmatpush.msra.mxu0 %v3194
    %3998 = vmatmul.f32.gmra.mxu0 %v3085
    %v3999 = vpop.f32.mrf.mxu0
    %v4000 = vadd.f32 %v3971, %v3999
    %4001 = vmatmul.f32.gmra.mxu0 %v3088
    %v4002 = vpop.f32.mrf.mxu0
    %v4003 = vadd.f32 %v3974, %v4002
    %4004 = vmatmul.f32.gmra.mxu0 %v3091
    %v4005 = vpop.f32.mrf.mxu0
    %v4006 = vadd.f32 %v3977, %v4005
    %4007 = vmatmul.f32.gmra.mxu0 %v3094
    %v4008 = vpop.f32.mrf.mxu0
    %v4009 = vadd.f32 %v3980, %v4008
    %4010 = vdwg.mxu0
    %s4011 = scalar_lea.vmem [#allocation14], 64
    %v4012 = vld [vmem:[%s4011] sm:$0xff]
    %v4013 = vld [vmem:[%s4011 + $0x8] sm:$0xff]
    %v4014 = vld [vmem:[%s4011 + $0x10] sm:$0xff]
    %v4015 = vld [vmem:[%s4011 + $0x18] sm:$0xff]
    %v4017 = vsel %vm2996, %v4012, 0
    %v4020 = vsel %vm2996, %v4013, 0
    %v4023 = vsel %vm2996, %v4014, 0
    %v4026 = vsel %vm2996, %v4015, 0
    %4028 = vmatpush.msra.mxu0 0.0
    %4029 = vmatpush.msra.mxu0 0.0
    %4030 = vmatpush.msra.mxu0 0.0
    %4031 = vmatpush.msra.mxu0 0.0
    %4032 = vmatpush.msra.mxu0 0.0
    %4033 = vmatpush.msra.mxu0 0.0
    %4034 = vmatpush.msra.mxu0 0.0
    %4035 = vmatpush.msra.mxu0 %v2989
    %4036 = vmatpush.msra.mxu0 %v2986
    %4037 = vmatpush.msra.mxu0 %v2983
    %4038 = vmatpush.msra.mxu0 %v2980
    %4039 = vmatpush.msra.mxu0 %v2977
    %4040 = vmatpush.msra.mxu0 %v2974
    %4041 = vmatpush.msra.mxu0 %v2971
    %4042 = vmatpush.msra.mxu0 %v2968
    %4043 = vmatpush.msra.mxu0 %v2965
    %4044 = vmatmul.f32.gmra.mxu0 %v4017
    %v4045 = vpop.f32.mrf.mxu0
    %v4046 = vadd.f32 0.0, %v4045
    %4047 = vmatmul.f32.gmra.mxu0 %v4020
    %v4048 = vpop.f32.mrf.mxu0
    %v4049 = vadd.f32 0.0, %v4048
    %4050 = vmatmul.f32.gmra.mxu0 %v4023
    %v4051 = vpop.f32.mrf.mxu0
    %v4052 = vadd.f32 0.0, %v4051
    %4053 = vmatmul.f32.gmra.mxu0 %v4026
    %v4054 = vpop.f32.mrf.mxu0
    %v4055 = vadd.f32 0.0, %v4054
    %4056 = vdwg.mxu0
    %4057 = vmatpush.msra.mxu0 0.0
    %4058 = vmatpush.msra.mxu0 0.0
    %4059 = vmatpush.msra.mxu0 0.0
    %4060 = vmatpush.msra.mxu0 0.0
    %4061 = vmatpush.msra.mxu0 0.0
    %4062 = vmatpush.msra.mxu0 0.0
    %4063 = vmatpush.msra.mxu0 0.0
    %4064 = vmatpush.msra.mxu0 %v2990
    %4065 = vmatpush.msra.mxu0 %v2987
    %4066 = vmatpush.msra.mxu0 %v2984
    %4067 = vmatpush.msra.mxu0 %v2981
    %4068 = vmatpush.msra.mxu0 %v2978
    %4069 = vmatpush.msra.mxu0 %v2975
    %4070 = vmatpush.msra.mxu0 %v2972
    %4071 = vmatpush.msra.mxu0 %v2969
    %4072 = vmatpush.msra.mxu0 %v2966
    %4073 = vmatmul.f32.gmra.mxu0 %v4017
    %v4074 = vpop.f32.mrf.mxu0
    %v4075 = vadd.f32 0.0, %v4074
    %4076 = vmatmul.f32.gmra.mxu0 %v4020
    %v4077 = vpop.f32.mrf.mxu0
    %v4078 = vadd.f32 0.0, %v4077
    %4079 = vmatmul.f32.gmra.mxu0 %v4023
    %v4080 = vpop.f32.mrf.mxu0
    %v4081 = vadd.f32 0.0, %v4080
    %4082 = vmatmul.f32.gmra.mxu0 %v4026
    %v4083 = vpop.f32.mrf.mxu0
    %v4084 = vadd.f32 0.0, %v4083
    %4085 = vdwg.mxu0
    %4086 = vmatpush.msra.mxu0 0.0
    %4087 = vmatpush.msra.mxu0 0.0
    %4088 = vmatpush.msra.mxu0 0.0
    %4089 = vmatpush.msra.mxu0 0.0
    %4090 = vmatpush.msra.mxu0 0.0
    %4091 = vmatpush.msra.mxu0 0.0
    %4092 = vmatpush.msra.mxu0 0.0
    %4093 = vmatpush.msra.mxu0 %v2991
    %4094 = vmatpush.msra.mxu0 %v2988
    %4095 = vmatpush.msra.mxu0 %v2985
    %4096 = vmatpush.msra.mxu0 %v2982
    %4097 = vmatpush.msra.mxu0 %v2979
    %4098 = vmatpush.msra.mxu0 %v2976
    %4099 = vmatpush.msra.mxu0 %v2973
    %4100 = vmatpush.msra.mxu0 %v2970
    %4101 = vmatpush.msra.mxu0 %v2967
    %4102 = vmatmul.f32.gmra.mxu0 %v4017
    %v4103 = vpop.f32.mrf.mxu0
    %v4104 = vadd.f32 0.0, %v4103
    %4105 = vmatmul.f32.gmra.mxu0 %v4020
    %v4106 = vpop.f32.mrf.mxu0
    %v4107 = vadd.f32 0.0, %v4106
    %4108 = vmatmul.f32.gmra.mxu0 %v4023
    %v4109 = vpop.f32.mrf.mxu0
    %v4110 = vadd.f32 0.0, %v4109
    %4111 = vmatmul.f32.gmra.mxu0 %v4026
    %v4112 = vpop.f32.mrf.mxu0
    %v4113 = vadd.f32 0.0, %v4112
    %4114 = vdwg.mxu0
    %s4115 = scalar_lea.vmem [#allocation15], 2304
    %v4116 = vld [vmem:[%s4115] sm:$0xff]
    %v4117 = vld [vmem:[%s4115 + $0x8] sm:$0xff]
    %v4118 = vld [vmem:[%s4115 + $0x10] sm:$0xff]
    %v4119 = vld [vmem:[%s4115 + $0x18] sm:$0xff]
    %v4120 = vld [vmem:[%s4115 + $0x20] sm:$0xff]
    %v4121 = vld [vmem:[%s4115 + $0x28] sm:$0xff]
    %v4122 = vld [vmem:[%s4115 + $0x30] sm:$0xff]
    %v4123 = vld [vmem:[%s4115 + $0x38] sm:$0xff]
    %v4124 = vld [vmem:[%s4115 + $0x40] sm:$0xff]
    %v4125 = vld [vmem:[%s4115 + $0x48] sm:$0xff]
    %v4126 = vld [vmem:[%s4115 + $0x50] sm:$0xff]
    %v4127 = vld [vmem:[%s4115 + $0x58] sm:$0xff]
    %v4128 = vld [vmem:[%s4115 + $0x60] sm:$0xff]
    %v4129 = vld [vmem:[%s4115 + $0x68] sm:$0xff]
    %v4130 = vld [vmem:[%s4115 + $0x70] sm:$0xff]
    %v4131 = vld [vmem:[%s4115 + $0x78] sm:$0xff]
    %v4132 = vld [vmem:[%s4115 + $0x80] sm:$0xff]
    %v4133 = vld [vmem:[%s4115 + $0x88] sm:$0xff]
    %v4134 = vld [vmem:[%s4115 + $0x90] sm:$0xff]
    %v4135 = vld [vmem:[%s4115 + $0x98] sm:$0xff]
    %v4136 = vld [vmem:[%s4115 + $0xa0] sm:$0xff]
    %v4137 = vld [vmem:[%s4115 + $0xa8] sm:$0xff]
    %v4138 = vld [vmem:[%s4115 + $0xb0] sm:$0xff]
    %v4139 = vld [vmem:[%s4115 + $0xb8] sm:$0xff]
    %v4140 = vld [vmem:[%s4115 + $0xc0] sm:$0xff]
    %v4141 = vld [vmem:[%s4115 + $0xc8] sm:$0xff]
    %v4142 = vld [vmem:[%s4115 + $0xd0] sm:$0xff]
    %v4143 = vld [vmem:[%s4115 + $0xd8] sm:$0xff]
    %v4144 = vld [vmem:[%s4115 + $0xe0] sm:$0xff]
    %v4145 = vld [vmem:[%s4115 + $0xe8] sm:$0xff]
    %v4146 = vld [vmem:[%s4115 + $0xf0] sm:$0xff]
    %v4147 = vld [vmem:[%s4115 + $0xf8] sm:$0xff]
    %v4148 = vld [vmem:[%s4115 + $0x100] sm:$0xff]
    %v4149 = vld [vmem:[%s4115 + $0x108] sm:$0xff]
    %v4150 = vld [vmem:[%s4115 + $0x110] sm:$0xff]
    %v4151 = vld [vmem:[%s4115 + $0x118] sm:$0xff]
    %v4152 = vld [vmem:[%s4115 + $0x120] sm:$0xff]
    %v4153 = vld [vmem:[%s4115 + $0x128] sm:$0xff]
    %v4154 = vld [vmem:[%s4115 + $0x130] sm:$0xff]
    %v4155 = vld [vmem:[%s4115 + $0x138] sm:$0xff]
    %v4156 = vld [vmem:[%s4115 + $0x140] sm:$0xff]
    %v4157 = vld [vmem:[%s4115 + $0x148] sm:$0xff]
    %v4158 = vld [vmem:[%s4115 + $0x150] sm:$0xff]
    %v4159 = vld [vmem:[%s4115 + $0x158] sm:$0xff]
    %v4160 = vld [vmem:[%s4115 + $0x160] sm:$0xff]
    %v4161 = vld [vmem:[%s4115 + $0x168] sm:$0xff]
    %v4162 = vld [vmem:[%s4115 + $0x170] sm:$0xff]
    %v4163 = vld [vmem:[%s4115 + $0x178] sm:$0xff]
    %v4164 = vld [vmem:[%s4115 + $0x180] sm:$0xff]
    %v4165 = vld [vmem:[%s4115 + $0x188] sm:$0xff]
    %v4166 = vld [vmem:[%s4115 + $0x190] sm:$0xff]
    %v4167 = vld [vmem:[%s4115 + $0x198] sm:$0xff]
    %v4168 = vld [vmem:[%s4115 + $0x1a0] sm:$0xff]
    %v4169 = vld [vmem:[%s4115 + $0x1a8] sm:$0xff]
    %v4170 = vld [vmem:[%s4115 + $0x1b0] sm:$0xff]
    %v4171 = vld [vmem:[%s4115 + $0x1b8] sm:$0xff]
    %v4172 = vld [vmem:[%s4115 + $0x1c0] sm:$0xff]
    %v4173 = vld [vmem:[%s4115 + $0x1c8] sm:$0xff]
    %v4174 = vld [vmem:[%s4115 + $0x1d0] sm:$0xff]
    %v4175 = vld [vmem:[%s4115 + $0x1d8] sm:$0xff]
    %v4176 = vld [vmem:[%s4115 + $0x1e0] sm:$0xff]
    %v4177 = vld [vmem:[%s4115 + $0x1e8] sm:$0xff]
    %v4178 = vld [vmem:[%s4115 + $0x1f0] sm:$0xff]
    %v4179 = vld [vmem:[%s4115 + $0x1f8] sm:$0xff]
    %v4180 = vld [vmem:[%s4115 + $0x200] sm:$0xff]
    %v4181 = vld [vmem:[%s4115 + $0x208] sm:$0xff]
    %v4182 = vld [vmem:[%s4115 + $0x210] sm:$0xff]
    %v4183 = vld [vmem:[%s4115 + $0x218] sm:$0xff]
    %v4184 = vld [vmem:[%s4115 + $0x220] sm:$0xff]
    %v4185 = vld [vmem:[%s4115 + $0x228] sm:$0xff]
    %v4186 = vld [vmem:[%s4115 + $0x230] sm:$0xff]
    %v4187 = vld [vmem:[%s4115 + $0x238] sm:$0xff]
    %v4188 = vld [vmem:[%s4115 + $0x240] sm:$0xff]
    %v4189 = vld [vmem:[%s4115 + $0x248] sm:$0xff]
    %v4190 = vld [vmem:[%s4115 + $0x250] sm:$0xff]
    %v4191 = vld [vmem:[%s4115 + $0x258] sm:$0xff]
    %v4192 = vld [vmem:[%s4115 + $0x260] sm:$0xff]
    %v4193 = vld [vmem:[%s4115 + $0x268] sm:$0xff]
    %v4194 = vld [vmem:[%s4115 + $0x270] sm:$0xff]
    %v4195 = vld [vmem:[%s4115 + $0x278] sm:$0xff]
    %v4196 = vld [vmem:[%s4115 + $0x280] sm:$0xff]
    %v4197 = vld [vmem:[%s4115 + $0x288] sm:$0xff]
    %v4198 = vld [vmem:[%s4115 + $0x290] sm:$0xff]
    %v4199 = vld [vmem:[%s4115 + $0x298] sm:$0xff]
    %v4200 = vld [vmem:[%s4115 + $0x2a0] sm:$0xff]
    %v4201 = vld [vmem:[%s4115 + $0x2a8] sm:$0xff]
    %v4202 = vld [vmem:[%s4115 + $0x2b0] sm:$0xff]
    %v4203 = vld [vmem:[%s4115 + $0x2b8] sm:$0xff]
    %v4204 = vld [vmem:[%s4115 + $0x2c0] sm:$0xff]
    %v4205 = vld [vmem:[%s4115 + $0x2c8] sm:$0xff]
    %v4206 = vld [vmem:[%s4115 + $0x2d0] sm:$0xff]
    %v4207 = vld [vmem:[%s4115 + $0x2d8] sm:$0xff]
    %v4208 = vld [vmem:[%s4115 + $0x2e0] sm:$0xff]
    %v4209 = vld [vmem:[%s4115 + $0x2e8] sm:$0xff]
    %v4210 = vld [vmem:[%s4115 + $0x2f0] sm:$0xff]
    %v4211 = vld [vmem:[%s4115 + $0x2f8] sm:$0xff]
    %v4212 = vld [vmem:[%s4115 + $0x300] sm:$0xff]
    %v4213 = vld [vmem:[%s4115 + $0x308] sm:$0xff]
    %v4214 = vld [vmem:[%s4115 + $0x310] sm:$0xff]
    %v4215 = vld [vmem:[%s4115 + $0x318] sm:$0xff]
    %v4216 = vld [vmem:[%s4115 + $0x320] sm:$0xff]
    %v4217 = vld [vmem:[%s4115 + $0x328] sm:$0xff]
    %v4218 = vld [vmem:[%s4115 + $0x330] sm:$0xff]
    %v4219 = vld [vmem:[%s4115 + $0x338] sm:$0xff]
    %v4220 = vld [vmem:[%s4115 + $0x340] sm:$0xff]
    %v4221 = vld [vmem:[%s4115 + $0x348] sm:$0xff]
    %v4222 = vld [vmem:[%s4115 + $0x350] sm:$0xff]
    %v4223 = vld [vmem:[%s4115 + $0x358] sm:$0xff]
    %v4224 = vld [vmem:[%s4115 + $0x360] sm:$0xff]
    %v4225 = vld [vmem:[%s4115 + $0x368] sm:$0xff]
    %v4226 = vld [vmem:[%s4115 + $0x370] sm:$0xff]
    %v4227 = vld [vmem:[%s4115 + $0x378] sm:$0xff]
    %v4228 = vld [vmem:[%s4115 + $0x380] sm:$0xff]
    %v4229 = vld [vmem:[%s4115 + $0x388] sm:$0xff]
    %v4230 = vld [vmem:[%s4115 + $0x390] sm:$0xff]
    %v4231 = vld [vmem:[%s4115 + $0x398] sm:$0xff]
    %v4232 = vld [vmem:[%s4115 + $0x3a0] sm:$0xff]
    %v4233 = vld [vmem:[%s4115 + $0x3a8] sm:$0xff]
    %v4234 = vld [vmem:[%s4115 + $0x3b0] sm:$0xff]
    %v4235 = vld [vmem:[%s4115 + $0x3b8] sm:$0xff]
    %v4236 = vld [vmem:[%s4115 + $0x3c0] sm:$0xff]
    %v4237 = vld [vmem:[%s4115 + $0x3c8] sm:$0xff]
    %v4238 = vld [vmem:[%s4115 + $0x3d0] sm:$0xff]
    %v4239 = vld [vmem:[%s4115 + $0x3d8] sm:$0xff]
    %v4240 = vld [vmem:[%s4115 + $0x3e0] sm:$0xff]
    %v4241 = vld [vmem:[%s4115 + $0x3e8] sm:$0xff]
    %v4242 = vld [vmem:[%s4115 + $0x3f0] sm:$0xff]
    %v4243 = vld [vmem:[%s4115 + $0x3f8] sm:$0xff]
    %v4244 = vld [vmem:[%s4115 + $0x400] sm:$0xff]
    %v4245 = vld [vmem:[%s4115 + $0x408] sm:$0xff]
    %v4246 = vld [vmem:[%s4115 + $0x410] sm:$0xff]
    %v4247 = vld [vmem:[%s4115 + $0x418] sm:$0xff]
    %v4248 = vld [vmem:[%s4115 + $0x420] sm:$0xff]
    %v4249 = vld [vmem:[%s4115 + $0x428] sm:$0xff]
    %v4250 = vld [vmem:[%s4115 + $0x430] sm:$0xff]
    %v4251 = vld [vmem:[%s4115 + $0x438] sm:$0xff]
    %v4252 = vld [vmem:[%s4115 + $0x440] sm:$0xff]
    %v4253 = vld [vmem:[%s4115 + $0x448] sm:$0xff]
    %v4254 = vld [vmem:[%s4115 + $0x450] sm:$0xff]
    %v4255 = vld [vmem:[%s4115 + $0x458] sm:$0xff]
    %v4256 = vld [vmem:[%s4115 + $0x460] sm:$0xff]
    %v4257 = vld [vmem:[%s4115 + $0x468] sm:$0xff]
    %v4258 = vld [vmem:[%s4115 + $0x470] sm:$0xff]
    %v4259 = vld [vmem:[%s4115 + $0x478] sm:$0xff]
    %4260 = vmatpush.msra.mxu0 %v4161
    %4261 = vmatpush.msra.mxu0 %v4158
    %4262 = vmatpush.msra.mxu0 %v4155
    %4263 = vmatpush.msra.mxu0 %v4152
    %4264 = vmatpush.msra.mxu0 %v4149
    %4265 = vmatpush.msra.mxu0 %v4146
    %4266 = vmatpush.msra.mxu0 %v4143
    %4267 = vmatpush.msra.mxu0 %v4140
    %4268 = vmatpush.msra.mxu0 %v4137
    %4269 = vmatpush.msra.mxu0 %v4134
    %4270 = vmatpush.msra.mxu0 %v4131
    %4271 = vmatpush.msra.mxu0 %v4128
    %4272 = vmatpush.msra.mxu0 %v4125
    %4273 = vmatpush.msra.mxu0 %v4122
    %4274 = vmatpush.msra.mxu0 %v4119
    %4275 = vmatpush.msra.mxu0 %v4116
    %4276 = vmatmul.f32.gmra.mxu0 %v4046
    %v4277 = vpop.f32.mrf.mxu0
    %v4278 = vadd.f32 0.0, %v4277
    %4279 = vmatmul.f32.gmra.mxu0 %v4049
    %v4280 = vpop.f32.mrf.mxu0
    %v4281 = vadd.f32 0.0, %v4280
    %4282 = vmatmul.f32.gmra.mxu0 %v4052
    %v4283 = vpop.f32.mrf.mxu0
    %v4284 = vadd.f32 0.0, %v4283
    %4285 = vmatmul.f32.gmra.mxu0 %v4055
    %v4286 = vpop.f32.mrf.mxu0
    %v4287 = vadd.f32 0.0, %v4286
    %4288 = vdwg.mxu0
    %4289 = vmatpush.msra.mxu0 %v4209
    %4290 = vmatpush.msra.mxu0 %v4206
    %4291 = vmatpush.msra.mxu0 %v4203
    %4292 = vmatpush.msra.mxu0 %v4200
    %4293 = vmatpush.msra.mxu0 %v4197
    %4294 = vmatpush.msra.mxu0 %v4194
    %4295 = vmatpush.msra.mxu0 %v4191
    %4296 = vmatpush.msra.mxu0 %v4188
    %4297 = vmatpush.msra.mxu0 %v4185
    %4298 = vmatpush.msra.mxu0 %v4182
    %4299 = vmatpush.msra.mxu0 %v4179
    %4300 = vmatpush.msra.mxu0 %v4176
    %4301 = vmatpush.msra.mxu0 %v4173
    %4302 = vmatpush.msra.mxu0 %v4170
    %4303 = vmatpush.msra.mxu0 %v4167
    %4304 = vmatpush.msra.mxu0 %v4164
    %4305 = vmatmul.f32.gmra.mxu0 %v4075
    %v4306 = vpop.f32.mrf.mxu0
    %v4307 = vadd.f32 %v4278, %v4306
    %4308 = vmatmul.f32.gmra.mxu0 %v4078
    %v4309 = vpop.f32.mrf.mxu0
    %v4310 = vadd.f32 %v4281, %v4309
    %4311 = vmatmul.f32.gmra.mxu0 %v4081
    %v4312 = vpop.f32.mrf.mxu0
    %v4313 = vadd.f32 %v4284, %v4312
    %4314 = vmatmul.f32.gmra.mxu0 %v4084
    %v4315 = vpop.f32.mrf.mxu0
    %v4316 = vadd.f32 %v4287, %v4315
    %4317 = vdwg.mxu0
    %4318 = vmatpush.msra.mxu0 %v4257
    %4319 = vmatpush.msra.mxu0 %v4254
    %4320 = vmatpush.msra.mxu0 %v4251
    %4321 = vmatpush.msra.mxu0 %v4248
    %4322 = vmatpush.msra.mxu0 %v4245
    %4323 = vmatpush.msra.mxu0 %v4242
    %4324 = vmatpush.msra.mxu0 %v4239
    %4325 = vmatpush.msra.mxu0 %v4236
    %4326 = vmatpush.msra.mxu0 %v4233
    %4327 = vmatpush.msra.mxu0 %v4230
    %4328 = vmatpush.msra.mxu0 %v4227
    %4329 = vmatpush.msra.mxu0 %v4224
    %4330 = vmatpush.msra.mxu0 %v4221
    %4331 = vmatpush.msra.mxu0 %v4218
    %4332 = vmatpush.msra.mxu0 %v4215
    %4333 = vmatpush.msra.mxu0 %v4212
    %4334 = vmatmul.f32.gmra.mxu0 %v4104
    %v4335 = vpop.f32.mrf.mxu0
    %v4336 = vadd.f32 %v4307, %v4335
    %4337 = vmatmul.f32.gmra.mxu0 %v4107
    %v4338 = vpop.f32.mrf.mxu0
    %v4339 = vadd.f32 %v4310, %v4338
    %4340 = vmatmul.f32.gmra.mxu0 %v4110
    %v4341 = vpop.f32.mrf.mxu0
    %v4342 = vadd.f32 %v4313, %v4341
    %4343 = vmatmul.f32.gmra.mxu0 %v4113
    %v4344 = vpop.f32.mrf.mxu0
    %v4345 = vadd.f32 %v4316, %v4344
    %4346 = vdwg.mxu0
    %4347 = vmatpush.msra.mxu0 %v4162
    %4348 = vmatpush.msra.mxu0 %v4159
    %4349 = vmatpush.msra.mxu0 %v4156
    %4350 = vmatpush.msra.mxu0 %v4153
    %4351 = vmatpush.msra.mxu0 %v4150
    %4352 = vmatpush.msra.mxu0 %v4147
    %4353 = vmatpush.msra.mxu0 %v4144
    %4354 = vmatpush.msra.mxu0 %v4141
    %4355 = vmatpush.msra.mxu0 %v4138
    %4356 = vmatpush.msra.mxu0 %v4135
    %4357 = vmatpush.msra.mxu0 %v4132
    %4358 = vmatpush.msra.mxu0 %v4129
    %4359 = vmatpush.msra.mxu0 %v4126
    %4360 = vmatpush.msra.mxu0 %v4123
    %4361 = vmatpush.msra.mxu0 %v4120
    %4362 = vmatpush.msra.mxu0 %v4117
    %4363 = vmatmul.f32.gmra.mxu0 %v4046
    %v4364 = vpop.f32.mrf.mxu0
    %v4365 = vadd.f32 0.0, %v4364
    %4366 = vmatmul.f32.gmra.mxu0 %v4049
    %v4367 = vpop.f32.mrf.mxu0
    %v4368 = vadd.f32 0.0, %v4367
    %4369 = vmatmul.f32.gmra.mxu0 %v4052
    %v4370 = vpop.f32.mrf.mxu0
    %v4371 = vadd.f32 0.0, %v4370
    %4372 = vmatmul.f32.gmra.mxu0 %v4055
    %v4373 = vpop.f32.mrf.mxu0
    %v4374 = vadd.f32 0.0, %v4373
    %4375 = vdwg.mxu0
    %4376 = vmatpush.msra.mxu0 %v4210
    %4377 = vmatpush.msra.mxu0 %v4207
    %4378 = vmatpush.msra.mxu0 %v4204
    %4379 = vmatpush.msra.mxu0 %v4201
    %4380 = vmatpush.msra.mxu0 %v4198
    %4381 = vmatpush.msra.mxu0 %v4195
    %4382 = vmatpush.msra.mxu0 %v4192
    %4383 = vmatpush.msra.mxu0 %v4189
    %4384 = vmatpush.msra.mxu0 %v4186
    %4385 = vmatpush.msra.mxu0 %v4183
    %4386 = vmatpush.msra.mxu0 %v4180
    %4387 = vmatpush.msra.mxu0 %v4177
    %4388 = vmatpush.msra.mxu0 %v4174
    %4389 = vmatpush.msra.mxu0 %v4171
    %4390 = vmatpush.msra.mxu0 %v4168
    %4391 = vmatpush.msra.mxu0 %v4165
    %4392 = vmatmul.f32.gmra.mxu0 %v4075
    %v4393 = vpop.f32.mrf.mxu0
    %v4394 = vadd.f32 %v4365, %v4393
    %4395 = vmatmul.f32.gmra.mxu0 %v4078
    %v4396 = vpop.f32.mrf.mxu0
    %v4397 = vadd.f32 %v4368, %v4396
    %4398 = vmatmul.f32.gmra.mxu0 %v4081
    %v4399 = vpop.f32.mrf.mxu0
    %v4400 = vadd.f32 %v4371, %v4399
    %4401 = vmatmul.f32.gmra.mxu0 %v4084
    %v4402 = vpop.f32.mrf.mxu0
    %v4403 = vadd.f32 %v4374, %v4402
    %4404 = vdwg.mxu0
    %4405 = vmatpush.msra.mxu0 %v4258
    %4406 = vmatpush.msra.mxu0 %v4255
    %4407 = vmatpush.msra.mxu0 %v4252
    %4408 = vmatpush.msra.mxu0 %v4249
    %4409 = vmatpush.msra.mxu0 %v4246
    %4410 = vmatpush.msra.mxu0 %v4243
    %4411 = vmatpush.msra.mxu0 %v4240
    %4412 = vmatpush.msra.mxu0 %v4237
    %4413 = vmatpush.msra.mxu0 %v4234
    %4414 = vmatpush.msra.mxu0 %v4231
    %4415 = vmatpush.msra.mxu0 %v4228
    %4416 = vmatpush.msra.mxu0 %v4225
    %4417 = vmatpush.msra.mxu0 %v4222
    %4418 = vmatpush.msra.mxu0 %v4219
    %4419 = vmatpush.msra.mxu0 %v4216
    %4420 = vmatpush.msra.mxu0 %v4213
    %4421 = vmatmul.f32.gmra.mxu0 %v4104
    %v4422 = vpop.f32.mrf.mxu0
    %v4423 = vadd.f32 %v4394, %v4422
    %4424 = vmatmul.f32.gmra.mxu0 %v4107
    %v4425 = vpop.f32.mrf.mxu0
    %v4426 = vadd.f32 %v4397, %v4425
    %4427 = vmatmul.f32.gmra.mxu0 %v4110
    %v4428 = vpop.f32.mrf.mxu0
    %v4429 = vadd.f32 %v4400, %v4428
    %4430 = vmatmul.f32.gmra.mxu0 %v4113
    %v4431 = vpop.f32.mrf.mxu0
    %v4432 = vadd.f32 %v4403, %v4431
    %4433 = vdwg.mxu0
    %4434 = vmatpush.msra.mxu0 %v4163
    %4435 = vmatpush.msra.mxu0 %v4160
    %4436 = vmatpush.msra.mxu0 %v4157
    %4437 = vmatpush.msra.mxu0 %v4154
    %4438 = vmatpush.msra.mxu0 %v4151
    %4439 = vmatpush.msra.mxu0 %v4148
    %4440 = vmatpush.msra.mxu0 %v4145
    %4441 = vmatpush.msra.mxu0 %v4142
    %4442 = vmatpush.msra.mxu0 %v4139
    %4443 = vmatpush.msra.mxu0 %v4136
    %4444 = vmatpush.msra.mxu0 %v4133
    %4445 = vmatpush.msra.mxu0 %v4130
    %4446 = vmatpush.msra.mxu0 %v4127
    %4447 = vmatpush.msra.mxu0 %v4124
    %4448 = vmatpush.msra.mxu0 %v4121
    %4449 = vmatpush.msra.mxu0 %v4118
    %4450 = vmatmul.f32.gmra.mxu0 %v4046
    %v4451 = vpop.f32.mrf.mxu0
    %v4452 = vadd.f32 0.0, %v4451
    %4453 = vmatmul.f32.gmra.mxu0 %v4049
    %v4454 = vpop.f32.mrf.mxu0
    %v4455 = vadd.f32 0.0, %v4454
    %4456 = vmatmul.f32.gmra.mxu0 %v4052
    %v4457 = vpop.f32.mrf.mxu0
    %v4458 = vadd.f32 0.0, %v4457
    %4459 = vmatmul.f32.gmra.mxu0 %v4055
    %v4460 = vpop.f32.mrf.mxu0
    %v4461 = vadd.f32 0.0, %v4460
    %4462 = vdwg.mxu0
    %4463 = vmatpush.msra.mxu0 %v4211
    %4464 = vmatpush.msra.mxu0 %v4208
    %4465 = vmatpush.msra.mxu0 %v4205
    %4466 = vmatpush.msra.mxu0 %v4202
    %4467 = vmatpush.msra.mxu0 %v4199
    %4468 = vmatpush.msra.mxu0 %v4196
    %4469 = vmatpush.msra.mxu0 %v4193
    %4470 = vmatpush.msra.mxu0 %v4190
    %4471 = vmatpush.msra.mxu0 %v4187
    %4472 = vmatpush.msra.mxu0 %v4184
    %4473 = vmatpush.msra.mxu0 %v4181
    %4474 = vmatpush.msra.mxu0 %v4178
    %4475 = vmatpush.msra.mxu0 %v4175
    %4476 = vmatpush.msra.mxu0 %v4172
    %4477 = vmatpush.msra.mxu0 %v4169
    %4478 = vmatpush.msra.mxu0 %v4166
    %4479 = vmatmul.f32.gmra.mxu0 %v4075
    %v4480 = vpop.f32.mrf.mxu0
    %v4481 = vadd.f32 %v4452, %v4480
    %4482 = vmatmul.f32.gmra.mxu0 %v4078
    %v4483 = vpop.f32.mrf.mxu0
    %v4484 = vadd.f32 %v4455, %v4483
    %4485 = vmatmul.f32.gmra.mxu0 %v4081
    %v4486 = vpop.f32.mrf.mxu0
    %v4487 = vadd.f32 %v4458, %v4486
    %4488 = vmatmul.f32.gmra.mxu0 %v4084
    %v4489 = vpop.f32.mrf.mxu0
    %v4490 = vadd.f32 %v4461, %v4489
    %4491 = vdwg.mxu0
    %4492 = vmatpush.msra.mxu0 %v4259
    %4493 = vmatpush.msra.mxu0 %v4256
    %4494 = vmatpush.msra.mxu0 %v4253
    %4495 = vmatpush.msra.mxu0 %v4250
    %4496 = vmatpush.msra.mxu0 %v4247
    %4497 = vmatpush.msra.mxu0 %v4244
    %4498 = vmatpush.msra.mxu0 %v4241
    %4499 = vmatpush.msra.mxu0 %v4238
    %4500 = vmatpush.msra.mxu0 %v4235
    %4501 = vmatpush.msra.mxu0 %v4232
    %4502 = vmatpush.msra.mxu0 %v4229
    %4503 = vmatpush.msra.mxu0 %v4226
    %4504 = vmatpush.msra.mxu0 %v4223
    %4505 = vmatpush.msra.mxu0 %v4220
    %4506 = vmatpush.msra.mxu0 %v4217
    %4507 = vmatpush.msra.mxu0 %v4214
    %4508 = vmatmul.f32.gmra.mxu0 %v4104
    %v4509 = vpop.f32.mrf.mxu0
    %v4510 = vadd.f32 %v4481, %v4509
    %4511 = vmatmul.f32.gmra.mxu0 %v4107
    %v4512 = vpop.f32.mrf.mxu0
    %v4513 = vadd.f32 %v4484, %v4512
    %4514 = vmatmul.f32.gmra.mxu0 %v4110
    %v4515 = vpop.f32.mrf.mxu0
    %v4516 = vadd.f32 %v4487, %v4515
    %4517 = vmatmul.f32.gmra.mxu0 %v4113
    %v4518 = vpop.f32.mrf.mxu0
    %v4519 = vadd.f32 %v4490, %v4518
    %4520 = vdwg.mxu0
    %v4521 = vadd.f32 %v3826, %v4336
    %v4522 = vadd.f32 %v3913, %v4423
    %v4523 = vadd.f32 %v4000, %v4510
    %v4524 = vadd.f32 %v3829, %v4339
    %v4525 = vadd.f32 %v3916, %v4426
    %v4526 = vadd.f32 %v4003, %v4513
    %v4527 = vadd.f32 %v3832, %v4342
    %v4528 = vadd.f32 %v3919, %v4429
    %v4529 = vadd.f32 %v4006, %v4516
    %v4530 = vadd.f32 %v3835, %v4345
    %v4531 = vadd.f32 %v3922, %v4432
    %v4532 = vadd.f32 %v4009, %v4519
    %s4533 = scalar_lea.vmem [#allocation14], 96
    %v4534 = vld [vmem:[%s4533] sm:$0xff]
    %v4535 = vld [vmem:[%s4533 + $0x8] sm:$0xff]
    %v4536 = vld [vmem:[%s4533 + $0x10] sm:$0xff]
    %v4537 = vld [vmem:[%s4533 + $0x18] sm:$0xff]
    %v4539 = vsel %vm2996, %v4534, 0
    %v4542 = vsel %vm2996, %v4535, 0
    %v4545 = vsel %vm2996, %v4536, 0
    %v4548 = vsel %vm2996, %v4537, 0
    %4550 = vmatpush.msra.mxu0 0.0
    %4551 = vmatpush.msra.mxu0 0.0
    %4552 = vmatpush.msra.mxu0 0.0
    %4553 = vmatpush.msra.mxu0 0.0
    %4554 = vmatpush.msra.mxu0 0.0
    %4555 = vmatpush.msra.mxu0 0.0
    %4556 = vmatpush.msra.mxu0 0.0
    %4557 = vmatpush.msra.mxu0 %v2989
    %4558 = vmatpush.msra.mxu0 %v2986
    %4559 = vmatpush.msra.mxu0 %v2983
    %4560 = vmatpush.msra.mxu0 %v2980
    %4561 = vmatpush.msra.mxu0 %v2977
    %4562 = vmatpush.msra.mxu0 %v2974
    %4563 = vmatpush.msra.mxu0 %v2971
    %4564 = vmatpush.msra.mxu0 %v2968
    %4565 = vmatpush.msra.mxu0 %v2965
    %4566 = vmatmul.f32.gmra.mxu0 %v4539
    %v4567 = vpop.f32.mrf.mxu0
    %v4568 = vadd.f32 0.0, %v4567
    %4569 = vmatmul.f32.gmra.mxu0 %v4542
    %v4570 = vpop.f32.mrf.mxu0
    %v4571 = vadd.f32 0.0, %v4570
    %4572 = vmatmul.f32.gmra.mxu0 %v4545
    %v4573 = vpop.f32.mrf.mxu0
    %v4574 = vadd.f32 0.0, %v4573
    %4575 = vmatmul.f32.gmra.mxu0 %v4548
    %v4576 = vpop.f32.mrf.mxu0
    %v4577 = vadd.f32 0.0, %v4576
    %4578 = vdwg.mxu0
    %4579 = vmatpush.msra.mxu0 0.0
    %4580 = vmatpush.msra.mxu0 0.0
    %4581 = vmatpush.msra.mxu0 0.0
    %4582 = vmatpush.msra.mxu0 0.0
    %4583 = vmatpush.msra.mxu0 0.0
    %4584 = vmatpush.msra.mxu0 0.0
    %4585 = vmatpush.msra.mxu0 0.0
    %4586 = vmatpush.msra.mxu0 %v2990
    %4587 = vmatpush.msra.mxu0 %v2987
    %4588 = vmatpush.msra.mxu0 %v2984
    %4589 = vmatpush.msra.mxu0 %v2981
    %4590 = vmatpush.msra.mxu0 %v2978
    %4591 = vmatpush.msra.mxu0 %v2975
    %4592 = vmatpush.msra.mxu0 %v2972
    %4593 = vmatpush.msra.mxu0 %v2969
    %4594 = vmatpush.msra.mxu0 %v2966
    %4595 = vmatmul.f32.gmra.mxu0 %v4539
    %v4596 = vpop.f32.mrf.mxu0
    %v4597 = vadd.f32 0.0, %v4596
    %4598 = vmatmul.f32.gmra.mxu0 %v4542
    %v4599 = vpop.f32.mrf.mxu0
    %v4600 = vadd.f32 0.0, %v4599
    %4601 = vmatmul.f32.gmra.mxu0 %v4545
    %v4602 = vpop.f32.mrf.mxu0
    %v4603 = vadd.f32 0.0, %v4602
    %4604 = vmatmul.f32.gmra.mxu0 %v4548
    %v4605 = vpop.f32.mrf.mxu0
    %v4606 = vadd.f32 0.0, %v4605
    %4607 = vdwg.mxu0
    %4608 = vmatpush.msra.mxu0 0.0
    %4609 = vmatpush.msra.mxu0 0.0
    %4610 = vmatpush.msra.mxu0 0.0
    %4611 = vmatpush.msra.mxu0 0.0
    %4612 = vmatpush.msra.mxu0 0.0
    %4613 = vmatpush.msra.mxu0 0.0
    %4614 = vmatpush.msra.mxu0 0.0
    %4615 = vmatpush.msra.mxu0 %v2991
    %4616 = vmatpush.msra.mxu0 %v2988
    %4617 = vmatpush.msra.mxu0 %v2985
    %4618 = vmatpush.msra.mxu0 %v2982
    %4619 = vmatpush.msra.mxu0 %v2979
    %4620 = vmatpush.msra.mxu0 %v2976
    %4621 = vmatpush.msra.mxu0 %v2973
    %4622 = vmatpush.msra.mxu0 %v2970
    %4623 = vmatpush.msra.mxu0 %v2967
    %4624 = vmatmul.f32.gmra.mxu0 %v4539
    %v4625 = vpop.f32.mrf.mxu0
    %v4626 = vadd.f32 0.0, %v4625
    %4627 = vmatmul.f32.gmra.mxu0 %v4542
    %v4628 = vpop.f32.mrf.mxu0
    %v4629 = vadd.f32 0.0, %v4628
    %4630 = vmatmul.f32.gmra.mxu0 %v4545
    %v4631 = vpop.f32.mrf.mxu0
    %v4632 = vadd.f32 0.0, %v4631
    %4633 = vmatmul.f32.gmra.mxu0 %v4548
    %v4634 = vpop.f32.mrf.mxu0
    %v4635 = vadd.f32 0.0, %v4634
    %4636 = vdwg.mxu0
    %s4637 = scalar_lea.vmem [#allocation15], 3456
    %v4638 = vld [vmem:[%s4637] sm:$0xff]
    %v4639 = vld [vmem:[%s4637 + $0x8] sm:$0xff]
    %v4640 = vld [vmem:[%s4637 + $0x10] sm:$0xff]
    %v4641 = vld [vmem:[%s4637 + $0x18] sm:$0xff]
    %v4642 = vld [vmem:[%s4637 + $0x20] sm:$0xff]
    %v4643 = vld [vmem:[%s4637 + $0x28] sm:$0xff]
    %v4644 = vld [vmem:[%s4637 + $0x30] sm:$0xff]
    %v4645 = vld [vmem:[%s4637 + $0x38] sm:$0xff]
    %v4646 = vld [vmem:[%s4637 + $0x40] sm:$0xff]
    %v4647 = vld [vmem:[%s4637 + $0x48] sm:$0xff]
    %v4648 = vld [vmem:[%s4637 + $0x50] sm:$0xff]
    %v4649 = vld [vmem:[%s4637 + $0x58] sm:$0xff]
    %v4650 = vld [vmem:[%s4637 + $0x60] sm:$0xff]
    %v4651 = vld [vmem:[%s4637 + $0x68] sm:$0xff]
    %v4652 = vld [vmem:[%s4637 + $0x70] sm:$0xff]
    %v4653 = vld [vmem:[%s4637 + $0x78] sm:$0xff]
    %v4654 = vld [vmem:[%s4637 + $0x80] sm:$0xff]
    %v4655 = vld [vmem:[%s4637 + $0x88] sm:$0xff]
    %v4656 = vld [vmem:[%s4637 + $0x90] sm:$0xff]
    %v4657 = vld [vmem:[%s4637 + $0x98] sm:$0xff]
    %v4658 = vld [vmem:[%s4637 + $0xa0] sm:$0xff]
    %v4659 = vld [vmem:[%s4637 + $0xa8] sm:$0xff]
    %v4660 = vld [vmem:[%s4637 + $0xb0] sm:$0xff]
    %v4661 = vld [vmem:[%s4637 + $0xb8] sm:$0xff]
    %v4662 = vld [vmem:[%s4637 + $0xc0] sm:$0xff]
    %v4663 = vld [vmem:[%s4637 + $0xc8] sm:$0xff]
    %v4664 = vld [vmem:[%s4637 + $0xd0] sm:$0xff]
    %v4665 = vld [vmem:[%s4637 + $0xd8] sm:$0xff]
    %v4666 = vld [vmem:[%s4637 + $0xe0] sm:$0xff]
    %v4667 = vld [vmem:[%s4637 + $0xe8] sm:$0xff]
    %v4668 = vld [vmem:[%s4637 + $0xf0] sm:$0xff]
    %v4669 = vld [vmem:[%s4637 + $0xf8] sm:$0xff]
    %v4670 = vld [vmem:[%s4637 + $0x100] sm:$0xff]
    %v4671 = vld [vmem:[%s4637 + $0x108] sm:$0xff]
    %v4672 = vld [vmem:[%s4637 + $0x110] sm:$0xff]
    %v4673 = vld [vmem:[%s4637 + $0x118] sm:$0xff]
    %v4674 = vld [vmem:[%s4637 + $0x120] sm:$0xff]
    %v4675 = vld [vmem:[%s4637 + $0x128] sm:$0xff]
    %v4676 = vld [vmem:[%s4637 + $0x130] sm:$0xff]
    %v4677 = vld [vmem:[%s4637 + $0x138] sm:$0xff]
    %v4678 = vld [vmem:[%s4637 + $0x140] sm:$0xff]
    %v4679 = vld [vmem:[%s4637 + $0x148] sm:$0xff]
    %v4680 = vld [vmem:[%s4637 + $0x150] sm:$0xff]
    %v4681 = vld [vmem:[%s4637 + $0x158] sm:$0xff]
    %v4682 = vld [vmem:[%s4637 + $0x160] sm:$0xff]
    %v4683 = vld [vmem:[%s4637 + $0x168] sm:$0xff]
    %v4684 = vld [vmem:[%s4637 + $0x170] sm:$0xff]
    %v4685 = vld [vmem:[%s4637 + $0x178] sm:$0xff]
    %v4686 = vld [vmem:[%s4637 + $0x180] sm:$0xff]
    %v4687 = vld [vmem:[%s4637 + $0x188] sm:$0xff]
    %v4688 = vld [vmem:[%s4637 + $0x190] sm:$0xff]
    %v4689 = vld [vmem:[%s4637 + $0x198] sm:$0xff]
    %v4690 = vld [vmem:[%s4637 + $0x1a0] sm:$0xff]
    %v4691 = vld [vmem:[%s4637 + $0x1a8] sm:$0xff]
    %v4692 = vld [vmem:[%s4637 + $0x1b0] sm:$0xff]
    %v4693 = vld [vmem:[%s4637 + $0x1b8] sm:$0xff]
    %v4694 = vld [vmem:[%s4637 + $0x1c0] sm:$0xff]
    %v4695 = vld [vmem:[%s4637 + $0x1c8] sm:$0xff]
    %v4696 = vld [vmem:[%s4637 + $0x1d0] sm:$0xff]
    %v4697 = vld [vmem:[%s4637 + $0x1d8] sm:$0xff]
    %v4698 = vld [vmem:[%s4637 + $0x1e0] sm:$0xff]
    %v4699 = vld [vmem:[%s4637 + $0x1e8] sm:$0xff]
    %v4700 = vld [vmem:[%s4637 + $0x1f0] sm:$0xff]
    %v4701 = vld [vmem:[%s4637 + $0x1f8] sm:$0xff]
    %v4702 = vld [vmem:[%s4637 + $0x200] sm:$0xff]
    %v4703 = vld [vmem:[%s4637 + $0x208] sm:$0xff]
    %v4704 = vld [vmem:[%s4637 + $0x210] sm:$0xff]
    %v4705 = vld [vmem:[%s4637 + $0x218] sm:$0xff]
    %v4706 = vld [vmem:[%s4637 + $0x220] sm:$0xff]
    %v4707 = vld [vmem:[%s4637 + $0x228] sm:$0xff]
    %v4708 = vld [vmem:[%s4637 + $0x230] sm:$0xff]
    %v4709 = vld [vmem:[%s4637 + $0x238] sm:$0xff]
    %v4710 = vld [vmem:[%s4637 + $0x240] sm:$0xff]
    %v4711 = vld [vmem:[%s4637 + $0x248] sm:$0xff]
    %v4712 = vld [vmem:[%s4637 + $0x250] sm:$0xff]
    %v4713 = vld [vmem:[%s4637 + $0x258] sm:$0xff]
    %v4714 = vld [vmem:[%s4637 + $0x260] sm:$0xff]
    %v4715 = vld [vmem:[%s4637 + $0x268] sm:$0xff]
    %v4716 = vld [vmem:[%s4637 + $0x270] sm:$0xff]
    %v4717 = vld [vmem:[%s4637 + $0x278] sm:$0xff]
    %v4718 = vld [vmem:[%s4637 + $0x280] sm:$0xff]
    %v4719 = vld [vmem:[%s4637 + $0x288] sm:$0xff]
    %v4720 = vld [vmem:[%s4637 + $0x290] sm:$0xff]
    %v4721 = vld [vmem:[%s4637 + $0x298] sm:$0xff]
    %v4722 = vld [vmem:[%s4637 + $0x2a0] sm:$0xff]
    %v4723 = vld [vmem:[%s4637 + $0x2a8] sm:$0xff]
    %v4724 = vld [vmem:[%s4637 + $0x2b0] sm:$0xff]
    %v4725 = vld [vmem:[%s4637 + $0x2b8] sm:$0xff]
    %v4726 = vld [vmem:[%s4637 + $0x2c0] sm:$0xff]
    %v4727 = vld [vmem:[%s4637 + $0x2c8] sm:$0xff]
    %v4728 = vld [vmem:[%s4637 + $0x2d0] sm:$0xff]
    %v4729 = vld [vmem:[%s4637 + $0x2d8] sm:$0xff]
    %v4730 = vld [vmem:[%s4637 + $0x2e0] sm:$0xff]
    %v4731 = vld [vmem:[%s4637 + $0x2e8] sm:$0xff]
    %v4732 = vld [vmem:[%s4637 + $0x2f0] sm:$0xff]
    %v4733 = vld [vmem:[%s4637 + $0x2f8] sm:$0xff]
    %v4734 = vld [vmem:[%s4637 + $0x300] sm:$0xff]
    %v4735 = vld [vmem:[%s4637 + $0x308] sm:$0xff]
    %v4736 = vld [vmem:[%s4637 + $0x310] sm:$0xff]
    %v4737 = vld [vmem:[%s4637 + $0x318] sm:$0xff]
    %v4738 = vld [vmem:[%s4637 + $0x320] sm:$0xff]
    %v4739 = vld [vmem:[%s4637 + $0x328] sm:$0xff]
    %v4740 = vld [vmem:[%s4637 + $0x330] sm:$0xff]
    %v4741 = vld [vmem:[%s4637 + $0x338] sm:$0xff]
    %v4742 = vld [vmem:[%s4637 + $0x340] sm:$0xff]
    %v4743 = vld [vmem:[%s4637 + $0x348] sm:$0xff]
    %v4744 = vld [vmem:[%s4637 + $0x350] sm:$0xff]
    %v4745 = vld [vmem:[%s4637 + $0x358] sm:$0xff]
    %v4746 = vld [vmem:[%s4637 + $0x360] sm:$0xff]
    %v4747 = vld [vmem:[%s4637 + $0x368] sm:$0xff]
    %v4748 = vld [vmem:[%s4637 + $0x370] sm:$0xff]
    %v4749 = vld [vmem:[%s4637 + $0x378] sm:$0xff]
    %v4750 = vld [vmem:[%s4637 + $0x380] sm:$0xff]
    %v4751 = vld [vmem:[%s4637 + $0x388] sm:$0xff]
    %v4752 = vld [vmem:[%s4637 + $0x390] sm:$0xff]
    %v4753 = vld [vmem:[%s4637 + $0x398] sm:$0xff]
    %v4754 = vld [vmem:[%s4637 + $0x3a0] sm:$0xff]
    %v4755 = vld [vmem:[%s4637 + $0x3a8] sm:$0xff]
    %v4756 = vld [vmem:[%s4637 + $0x3b0] sm:$0xff]
    %v4757 = vld [vmem:[%s4637 + $0x3b8] sm:$0xff]
    %v4758 = vld [vmem:[%s4637 + $0x3c0] sm:$0xff]
    %v4759 = vld [vmem:[%s4637 + $0x3c8] sm:$0xff]
    %v4760 = vld [vmem:[%s4637 + $0x3d0] sm:$0xff]
    %v4761 = vld [vmem:[%s4637 + $0x3d8] sm:$0xff]
    %v4762 = vld [vmem:[%s4637 + $0x3e0] sm:$0xff]
    %v4763 = vld [vmem:[%s4637 + $0x3e8] sm:$0xff]
    %v4764 = vld [vmem:[%s4637 + $0x3f0] sm:$0xff]
    %v4765 = vld [vmem:[%s4637 + $0x3f8] sm:$0xff]
    %v4766 = vld [vmem:[%s4637 + $0x400] sm:$0xff]
    %v4767 = vld [vmem:[%s4637 + $0x408] sm:$0xff]
    %v4768 = vld [vmem:[%s4637 + $0x410] sm:$0xff]
    %v4769 = vld [vmem:[%s4637 + $0x418] sm:$0xff]
    %v4770 = vld [vmem:[%s4637 + $0x420] sm:$0xff]
    %v4771 = vld [vmem:[%s4637 + $0x428] sm:$0xff]
    %v4772 = vld [vmem:[%s4637 + $0x430] sm:$0xff]
    %v4773 = vld [vmem:[%s4637 + $0x438] sm:$0xff]
    %v4774 = vld [vmem:[%s4637 + $0x440] sm:$0xff]
    %v4775 = vld [vmem:[%s4637 + $0x448] sm:$0xff]
    %v4776 = vld [vmem:[%s4637 + $0x450] sm:$0xff]
    %v4777 = vld [vmem:[%s4637 + $0x458] sm:$0xff]
    %v4778 = vld [vmem:[%s4637 + $0x460] sm:$0xff]
    %v4779 = vld [vmem:[%s4637 + $0x468] sm:$0xff]
    %v4780 = vld [vmem:[%s4637 + $0x470] sm:$0xff]
    %v4781 = vld [vmem:[%s4637 + $0x478] sm:$0xff]
    %4782 = vmatpush.msra.mxu0 %v4683
    %4783 = vmatpush.msra.mxu0 %v4680
    %4784 = vmatpush.msra.mxu0 %v4677
    %4785 = vmatpush.msra.mxu0 %v4674
    %4786 = vmatpush.msra.mxu0 %v4671
    %4787 = vmatpush.msra.mxu0 %v4668
    %4788 = vmatpush.msra.mxu0 %v4665
    %4789 = vmatpush.msra.mxu0 %v4662
    %4790 = vmatpush.msra.mxu0 %v4659
    %4791 = vmatpush.msra.mxu0 %v4656
    %4792 = vmatpush.msra.mxu0 %v4653
    %4793 = vmatpush.msra.mxu0 %v4650
    %4794 = vmatpush.msra.mxu0 %v4647
    %4795 = vmatpush.msra.mxu0 %v4644
    %4796 = vmatpush.msra.mxu0 %v4641
    %4797 = vmatpush.msra.mxu0 %v4638
    %4798 = vmatmul.f32.gmra.mxu0 %v4568
    %v4799 = vpop.f32.mrf.mxu0
    %v4800 = vadd.f32 0.0, %v4799
    %4801 = vmatmul.f32.gmra.mxu0 %v4571
    %v4802 = vpop.f32.mrf.mxu0
    %v4803 = vadd.f32 0.0, %v4802
    %4804 = vmatmul.f32.gmra.mxu0 %v4574
    %v4805 = vpop.f32.mrf.mxu0
    %v4806 = vadd.f32 0.0, %v4805
    %4807 = vmatmul.f32.gmra.mxu0 %v4577
    %v4808 = vpop.f32.mrf.mxu0
    %v4809 = vadd.f32 0.0, %v4808
    %4810 = vdwg.mxu0
    %4811 = vmatpush.msra.mxu0 %v4731
    %4812 = vmatpush.msra.mxu0 %v4728
    %4813 = vmatpush.msra.mxu0 %v4725
    %4814 = vmatpush.msra.mxu0 %v4722
    %4815 = vmatpush.msra.mxu0 %v4719
    %4816 = vmatpush.msra.mxu0 %v4716
    %4817 = vmatpush.msra.mxu0 %v4713
    %4818 = vmatpush.msra.mxu0 %v4710
    %4819 = vmatpush.msra.mxu0 %v4707
    %4820 = vmatpush.msra.mxu0 %v4704
    %4821 = vmatpush.msra.mxu0 %v4701
    %4822 = vmatpush.msra.mxu0 %v4698
    %4823 = vmatpush.msra.mxu0 %v4695
    %4824 = vmatpush.msra.mxu0 %v4692
    %4825 = vmatpush.msra.mxu0 %v4689
    %4826 = vmatpush.msra.mxu0 %v4686
    %4827 = vmatmul.f32.gmra.mxu0 %v4597
    %v4828 = vpop.f32.mrf.mxu0
    %v4829 = vadd.f32 %v4800, %v4828
    %4830 = vmatmul.f32.gmra.mxu0 %v4600
    %v4831 = vpop.f32.mrf.mxu0
    %v4832 = vadd.f32 %v4803, %v4831
    %4833 = vmatmul.f32.gmra.mxu0 %v4603
    %v4834 = vpop.f32.mrf.mxu0
    %v4835 = vadd.f32 %v4806, %v4834
    %4836 = vmatmul.f32.gmra.mxu0 %v4606
    %v4837 = vpop.f32.mrf.mxu0
    %v4838 = vadd.f32 %v4809, %v4837
    %4839 = vdwg.mxu0
    %4840 = vmatpush.msra.mxu0 %v4779
    %4841 = vmatpush.msra.mxu0 %v4776
    %4842 = vmatpush.msra.mxu0 %v4773
    %4843 = vmatpush.msra.mxu0 %v4770
    %4844 = vmatpush.msra.mxu0 %v4767
    %4845 = vmatpush.msra.mxu0 %v4764
    %4846 = vmatpush.msra.mxu0 %v4761
    %4847 = vmatpush.msra.mxu0 %v4758
    %4848 = vmatpush.msra.mxu0 %v4755
    %4849 = vmatpush.msra.mxu0 %v4752
    %4850 = vmatpush.msra.mxu0 %v4749
    %4851 = vmatpush.msra.mxu0 %v4746
    %4852 = vmatpush.msra.mxu0 %v4743
    %4853 = vmatpush.msra.mxu0 %v4740
    %4854 = vmatpush.msra.mxu0 %v4737
    %4855 = vmatpush.msra.mxu0 %v4734
    %4856 = vmatmul.f32.gmra.mxu0 %v4626
    %v4857 = vpop.f32.mrf.mxu0
    %v4858 = vadd.f32 %v4829, %v4857
    %4859 = vmatmul.f32.gmra.mxu0 %v4629
    %v4860 = vpop.f32.mrf.mxu0
    %v4861 = vadd.f32 %v4832, %v4860
    %4862 = vmatmul.f32.gmra.mxu0 %v4632
    %v4863 = vpop.f32.mrf.mxu0
    %v4864 = vadd.f32 %v4835, %v4863
    %4865 = vmatmul.f32.gmra.mxu0 %v4635
    %v4866 = vpop.f32.mrf.mxu0
    %v4867 = vadd.f32 %v4838, %v4866
    %4868 = vdwg.mxu0
    %4869 = vmatpush.msra.mxu0 %v4684
    %4870 = vmatpush.msra.mxu0 %v4681
    %4871 = vmatpush.msra.mxu0 %v4678
    %4872 = vmatpush.msra.mxu0 %v4675
    %4873 = vmatpush.msra.mxu0 %v4672
    %4874 = vmatpush.msra.mxu0 %v4669
    %4875 = vmatpush.msra.mxu0 %v4666
    %4876 = vmatpush.msra.mxu0 %v4663
    %4877 = vmatpush.msra.mxu0 %v4660
    %4878 = vmatpush.msra.mxu0 %v4657
    %4879 = vmatpush.msra.mxu0 %v4654
    %4880 = vmatpush.msra.mxu0 %v4651
    %4881 = vmatpush.msra.mxu0 %v4648
    %4882 = vmatpush.msra.mxu0 %v4645
    %4883 = vmatpush.msra.mxu0 %v4642
    %4884 = vmatpush.msra.mxu0 %v4639
    %4885 = vmatmul.f32.gmra.mxu0 %v4568
    %v4886 = vpop.f32.mrf.mxu0
    %v4887 = vadd.f32 0.0, %v4886
    %4888 = vmatmul.f32.gmra.mxu0 %v4571
    %v4889 = vpop.f32.mrf.mxu0
    %v4890 = vadd.f32 0.0, %v4889
    %4891 = vmatmul.f32.gmra.mxu0 %v4574
    %v4892 = vpop.f32.mrf.mxu0
    %v4893 = vadd.f32 0.0, %v4892
    %4894 = vmatmul.f32.gmra.mxu0 %v4577
    %v4895 = vpop.f32.mrf.mxu0
    %v4896 = vadd.f32 0.0, %v4895
    %4897 = vdwg.mxu0
    %4898 = vmatpush.msra.mxu0 %v4732
    %4899 = vmatpush.msra.mxu0 %v4729
    %4900 = vmatpush.msra.mxu0 %v4726
    %4901 = vmatpush.msra.mxu0 %v4723
    %4902 = vmatpush.msra.mxu0 %v4720
    %4903 = vmatpush.msra.mxu0 %v4717
    %4904 = vmatpush.msra.mxu0 %v4714
    %4905 = vmatpush.msra.mxu0 %v4711
    %4906 = vmatpush.msra.mxu0 %v4708
    %4907 = vmatpush.msra.mxu0 %v4705
    %4908 = vmatpush.msra.mxu0 %v4702
    %4909 = vmatpush.msra.mxu0 %v4699
    %4910 = vmatpush.msra.mxu0 %v4696
    %4911 = vmatpush.msra.mxu0 %v4693
    %4912 = vmatpush.msra.mxu0 %v4690
    %4913 = vmatpush.msra.mxu0 %v4687
    %4914 = vmatmul.f32.gmra.mxu0 %v4597
    %v4915 = vpop.f32.mrf.mxu0
    %v4916 = vadd.f32 %v4887, %v4915
    %4917 = vmatmul.f32.gmra.mxu0 %v4600
    %v4918 = vpop.f32.mrf.mxu0
    %v4919 = vadd.f32 %v4890, %v4918
    %4920 = vmatmul.f32.gmra.mxu0 %v4603
    %v4921 = vpop.f32.mrf.mxu0
    %v4922 = vadd.f32 %v4893, %v4921
    %4923 = vmatmul.f32.gmra.mxu0 %v4606
    %v4924 = vpop.f32.mrf.mxu0
    %v4925 = vadd.f32 %v4896, %v4924
    %4926 = vdwg.mxu0
    %4927 = vmatpush.msra.mxu0 %v4780
    %4928 = vmatpush.msra.mxu0 %v4777
    %4929 = vmatpush.msra.mxu0 %v4774
    %4930 = vmatpush.msra.mxu0 %v4771
    %4931 = vmatpush.msra.mxu0 %v4768
    %4932 = vmatpush.msra.mxu0 %v4765
    %4933 = vmatpush.msra.mxu0 %v4762
    %4934 = vmatpush.msra.mxu0 %v4759
    %4935 = vmatpush.msra.mxu0 %v4756
    %4936 = vmatpush.msra.mxu0 %v4753
    %4937 = vmatpush.msra.mxu0 %v4750
    %4938 = vmatpush.msra.mxu0 %v4747
    %4939 = vmatpush.msra.mxu0 %v4744
    %4940 = vmatpush.msra.mxu0 %v4741
    %4941 = vmatpush.msra.mxu0 %v4738
    %4942 = vmatpush.msra.mxu0 %v4735
    %4943 = vmatmul.f32.gmra.mxu0 %v4626
    %v4944 = vpop.f32.mrf.mxu0
    %v4945 = vadd.f32 %v4916, %v4944
    %4946 = vmatmul.f32.gmra.mxu0 %v4629
    %v4947 = vpop.f32.mrf.mxu0
    %v4948 = vadd.f32 %v4919, %v4947
    %4949 = vmatmul.f32.gmra.mxu0 %v4632
    %v4950 = vpop.f32.mrf.mxu0
    %v4951 = vadd.f32 %v4922, %v4950
    %4952 = vmatmul.f32.gmra.mxu0 %v4635
    %v4953 = vpop.f32.mrf.mxu0
    %v4954 = vadd.f32 %v4925, %v4953
    %4955 = vdwg.mxu0
    %4956 = vmatpush.msra.mxu0 %v4685
    %4957 = vmatpush.msra.mxu0 %v4682
    %4958 = vmatpush.msra.mxu0 %v4679
    %4959 = vmatpush.msra.mxu0 %v4676
    %4960 = vmatpush.msra.mxu0 %v4673
    %4961 = vmatpush.msra.mxu0 %v4670
    %4962 = vmatpush.msra.mxu0 %v4667
    %4963 = vmatpush.msra.mxu0 %v4664
    %4964 = vmatpush.msra.mxu0 %v4661
    %4965 = vmatpush.msra.mxu0 %v4658
    %4966 = vmatpush.msra.mxu0 %v4655
    %4967 = vmatpush.msra.mxu0 %v4652
    %4968 = vmatpush.msra.mxu0 %v4649
    %4969 = vmatpush.msra.mxu0 %v4646
    %4970 = vmatpush.msra.mxu0 %v4643
    %4971 = vmatpush.msra.mxu0 %v4640
    %4972 = vmatmul.f32.gmra.mxu0 %v4568
    %v4973 = vpop.f32.mrf.mxu0
    %v4974 = vadd.f32 0.0, %v4973
    %4975 = vmatmul.f32.gmra.mxu0 %v4571
    %v4976 = vpop.f32.mrf.mxu0
    %v4977 = vadd.f32 0.0, %v4976
    %4978 = vmatmul.f32.gmra.mxu0 %v4574
    %v4979 = vpop.f32.mrf.mxu0
    %v4980 = vadd.f32 0.0, %v4979
    %4981 = vmatmul.f32.gmra.mxu0 %v4577
    %v4982 = vpop.f32.mrf.mxu0
    %v4983 = vadd.f32 0.0, %v4982
    %4984 = vdwg.mxu0
    %4985 = vmatpush.msra.mxu0 %v4733
    %4986 = vmatpush.msra.mxu0 %v4730
    %4987 = vmatpush.msra.mxu0 %v4727
    %4988 = vmatpush.msra.mxu0 %v4724
    %4989 = vmatpush.msra.mxu0 %v4721
    %4990 = vmatpush.msra.mxu0 %v4718
    %4991 = vmatpush.msra.mxu0 %v4715
    %4992 = vmatpush.msra.mxu0 %v4712
    %4993 = vmatpush.msra.mxu0 %v4709
    %4994 = vmatpush.msra.mxu0 %v4706
    %4995 = vmatpush.msra.mxu0 %v4703
    %4996 = vmatpush.msra.mxu0 %v4700
    %4997 = vmatpush.msra.mxu0 %v4697
    %4998 = vmatpush.msra.mxu0 %v4694
    %4999 = vmatpush.msra.mxu0 %v4691
    %5000 = vmatpush.msra.mxu0 %v4688
    %5001 = vmatmul.f32.gmra.mxu0 %v4597
    %v5002 = vpop.f32.mrf.mxu0
    %v5003 = vadd.f32 %v4974, %v5002
    %5004 = vmatmul.f32.gmra.mxu0 %v4600
    %v5005 = vpop.f32.mrf.mxu0
    %v5006 = vadd.f32 %v4977, %v5005
    %5007 = vmatmul.f32.gmra.mxu0 %v4603
    %v5008 = vpop.f32.mrf.mxu0
    %v5009 = vadd.f32 %v4980, %v5008
    %5010 = vmatmul.f32.gmra.mxu0 %v4606
    %v5011 = vpop.f32.mrf.mxu0
    %v5012 = vadd.f32 %v4983, %v5011
    %5013 = vdwg.mxu0
    %5014 = vmatpush.msra.mxu0 %v4781
    %5015 = vmatpush.msra.mxu0 %v4778
    %5016 = vmatpush.msra.mxu0 %v4775
    %5017 = vmatpush.msra.mxu0 %v4772
    %5018 = vmatpush.msra.mxu0 %v4769
    %5019 = vmatpush.msra.mxu0 %v4766
    %5020 = vmatpush.msra.mxu0 %v4763
    %5021 = vmatpush.msra.mxu0 %v4760
    %5022 = vmatpush.msra.mxu0 %v4757
    %5023 = vmatpush.msra.mxu0 %v4754
    %5024 = vmatpush.msra.mxu0 %v4751
    %5025 = vmatpush.msra.mxu0 %v4748
    %5026 = vmatpush.msra.mxu0 %v4745
    %5027 = vmatpush.msra.mxu0 %v4742
    %5028 = vmatpush.msra.mxu0 %v4739
    %5029 = vmatpush.msra.mxu0 %v4736
    %5030 = vmatmul.f32.gmra.mxu0 %v4626
    %v5031 = vpop.f32.mrf.mxu0
    %v5032 = vadd.f32 %v5003, %v5031
    %5033 = vmatmul.f32.gmra.mxu0 %v4629
    %v5034 = vpop.f32.mrf.mxu0
    %v5035 = vadd.f32 %v5006, %v5034
    %5036 = vmatmul.f32.gmra.mxu0 %v4632
    %v5037 = vpop.f32.mrf.mxu0
    %v5038 = vadd.f32 %v5009, %v5037
    %5039 = vmatmul.f32.gmra.mxu0 %v4635
    %v5040 = vpop.f32.mrf.mxu0
    %v5041 = vadd.f32 %v5012, %v5040
    %5042 = vdwg.mxu0
    %v5043 = vadd.f32 %v4521, %v4858
    %v5044 = vadd.f32 %v4522, %v4945
    %v5045 = vadd.f32 %v4523, %v5032
    %v5046 = vadd.f32 %v4524, %v4861
    %v5047 = vadd.f32 %v4525, %v4948
    %v5048 = vadd.f32 %v4526, %v5035
    %v5049 = vadd.f32 %v4527, %v4864
    %v5050 = vadd.f32 %v4528, %v4951
    %v5051 = vadd.f32 %v4529, %v5038
    %v5052 = vadd.f32 %v4530, %v4867
    %v5053 = vadd.f32 %v4531, %v4954
    %v5054 = vadd.f32 %v4532, %v5041
    %v5055 = vadd.f32 %v5043, %v5046
    %v5056 = vadd.f32 %v5055, %v5049
    %v5057 = vadd.f32 %v5056, %v5052
    %v5058 = vrot.slane %v5057, 4
    %v5059 = vadd.f32 %v5057, %v5058
    %v5060 = vrot.slane %v5059, 2
    %v5061 = vadd.f32 %v5059, %v5060
    %v5062 = vrot.slane %v5061, 1
    %v5063 = vadd.f32 %v5061, %v5062
    %v5064 = vadd.f32 %v5044, %v5047
    %v5065 = vadd.f32 %v5064, %v5050
    %v5066 = vadd.f32 %v5065, %v5053
    %v5067 = vrot.slane %v5066, 4
    %v5068 = vadd.f32 %v5066, %v5067
    %v5069 = vrot.slane %v5068, 2
    %v5070 = vadd.f32 %v5068, %v5069
    %v5071 = vrot.slane %v5070, 1
    %v5072 = vadd.f32 %v5070, %v5071
    %v5073 = vadd.f32 %v5045, %v5048
    %v5074 = vadd.f32 %v5073, %v5051
    %v5075 = vadd.f32 %v5074, %v5054
    %v5076 = vrot.slane %v5075, 4
    %v5077 = vadd.f32 %v5075, %v5076
    %v5078 = vrot.slane %v5077, 2
    %v5079 = vadd.f32 %v5077, %v5078
    %v5080 = vrot.slane %v5079, 1
    %v5081 = vadd.f32 %v5079, %v5080
    %v5082 = vmul.f32 %v5043, %v5043
    %v5083 = vmul.f32 %v5044, %v5044
    %v5084 = vmul.f32 %v5045, %v5045
    %v5085 = vmul.f32 %v5046, %v5046
    %v5086 = vmul.f32 %v5047, %v5047
    %v5087 = vmul.f32 %v5048, %v5048
    %v5088 = vmul.f32 %v5049, %v5049
    %v5089 = vmul.f32 %v5050, %v5050
    %v5090 = vmul.f32 %v5051, %v5051
    %v5091 = vmul.f32 %v5052, %v5052
    %v5092 = vmul.f32 %v5053, %v5053
    %v5093 = vmul.f32 %v5054, %v5054
    %v5094 = vadd.f32 %v5082, %v5085
    %v5095 = vadd.f32 %v5094, %v5088
    %v5096 = vadd.f32 %v5095, %v5091
    %v5097 = vrot.slane %v5096, 4
    %v5098 = vadd.f32 %v5096, %v5097
    %v5099 = vrot.slane %v5098, 2
    %v5100 = vadd.f32 %v5098, %v5099
    %v5101 = vrot.slane %v5100, 1
    %v5102 = vadd.f32 %v5100, %v5101
    %v5103 = vadd.f32 %v5083, %v5086
    %v5104 = vadd.f32 %v5103, %v5089
    %v5105 = vadd.f32 %v5104, %v5092
    %v5106 = vrot.slane %v5105, 4
    %v5107 = vadd.f32 %v5105, %v5106
    %v5108 = vrot.slane %v5107, 2
    %v5109 = vadd.f32 %v5107, %v5108
    %v5110 = vrot.slane %v5109, 1
    %v5111 = vadd.f32 %v5109, %v5110
    %v5112 = vadd.f32 %v5084, %v5087
    %v5113 = vadd.f32 %v5112, %v5090
    %v5114 = vadd.f32 %v5113, %v5093
    %v5115 = vrot.slane %v5114, 4
    %v5116 = vadd.f32 %v5114, %v5115
    %v5117 = vrot.slane %v5116, 2
    %v5118 = vadd.f32 %v5116, %v5117
    %v5119 = vrot.slane %v5118, 1
    %v5120 = vadd.f32 %v5118, %v5119
    %v5121 = vld [vmem:[%s6] sm:$0xff]
    %v5122 = vld [vmem:[%s6 + $0x8] sm:$0xff]
    %v5123 = vld [vmem:[%s6 + $0x10] sm:$0xff]
    %v5124 = vld [vmem:[%s6 + $0x18] sm:$0xff]
    %v5125 = vld [vmem:[%s6 + $0x20] sm:$0xff]
    %v5126 = vld [vmem:[%s6 + $0x28] sm:$0xff]
    %v5127 = vld [vmem:[%s6 + $0x30] sm:$0xff]
    %v5128 = vld [vmem:[%s6 + $0x38] sm:$0xff]
    %v5129 = vld [vmem:[%s6 + $0x40] sm:$0xff]
    %v5130 = vld [vmem:[%s6 + $0x48] sm:$0xff]
    %v5131 = vld [vmem:[%s6 + $0x50] sm:$0xff]
    %v5132 = vld [vmem:[%s6 + $0x58] sm:$0xff]
    %v5133 = vld [vmem:[%s6 + $0x60] sm:$0xff]
    %v5134 = vld [vmem:[%s6 + $0x68] sm:$0xff]
    %v5135 = vld [vmem:[%s6 + $0x70] sm:$0xff]
    %v5136 = vld [vmem:[%s6 + $0x78] sm:$0xff]
    %v5137 = vld [vmem:[%s6 + $0x80] sm:$0xff]
    %v5138 = vld [vmem:[%s6 + $0x88] sm:$0xff]
    %v5139 = vld [vmem:[%s6 + $0x90] sm:$0xff]
    %v5140 = vld [vmem:[%s6 + $0x98] sm:$0xff]
    %v5141 = vld [vmem:[%s6 + $0xa0] sm:$0xff]
    %v5142 = vld [vmem:[%s6 + $0xa8] sm:$0xff]
    %v5143 = vld [vmem:[%s6 + $0xb0] sm:$0xff]
    %v5144 = vld [vmem:[%s6 + $0xb8] sm:$0xff]
    %v5145 = vld [vmem:[%s6 + $0xc0] sm:$0xff]
    %v5146 = vld [vmem:[%s6 + $0xc8] sm:$0xff]
    %v5147 = vld [vmem:[%s6 + $0xd0] sm:$0xff]
    %v5148 = vld [vmem:[%s6 + $0xd8] sm:$0xff]
    %v5149 = vld [vmem:[%s6 + $0xe0] sm:$0xff]
    %v5150 = vld [vmem:[%s6 + $0xe8] sm:$0xff]
    %v5151 = vld [vmem:[%s6 + $0xf0] sm:$0xff]
    %v5152 = vld [vmem:[%s6 + $0xf8] sm:$0xff]
    %v5153 = vld [vmem:[%s6 + $0x100] sm:$0xff]
    %v5154 = vld [vmem:[%s6 + $0x108] sm:$0xff]
    %v5155 = vld [vmem:[%s6 + $0x110] sm:$0xff]
    %v5156 = vld [vmem:[%s6 + $0x118] sm:$0xff]
    %v5157 = vld [vmem:[%s6 + $0x120] sm:$0xff]
    %v5158 = vld [vmem:[%s6 + $0x128] sm:$0xff]
    %v5159 = vld [vmem:[%s6 + $0x130] sm:$0xff]
    %v5160 = vld [vmem:[%s6 + $0x138] sm:$0xff]
    %v5161 = vld [vmem:[%s6 + $0x140] sm:$0xff]
    %v5162 = vld [vmem:[%s6 + $0x148] sm:$0xff]
    %v5163 = vld [vmem:[%s6 + $0x150] sm:$0xff]
    %v5164 = vld [vmem:[%s6 + $0x158] sm:$0xff]
    %v5165 = vld [vmem:[%s6 + $0x160] sm:$0xff]
    %v5166 = vld [vmem:[%s6 + $0x168] sm:$0xff]
    %v5167 = vld [vmem:[%s6 + $0x170] sm:$0xff]
    %v5168 = vld [vmem:[%s6 + $0x178] sm:$0xff]
    %5169 = vmatpush.msra.mxu0 %v5136
    %5170 = vmatpush.msra.mxu0 %v5135
    %5171 = vmatpush.msra.mxu0 %v5134
    %5172 = vmatpush.msra.mxu0 %v5133
    %5173 = vmatpush.msra.mxu0 %v5132
    %5174 = vmatpush.msra.mxu0 %v5131
    %5175 = vmatpush.msra.mxu0 %v5130
    %5176 = vmatpush.msra.mxu0 %v5129
    %5177 = vmatpush.msra.mxu0 %v5128
    %5178 = vmatpush.msra.mxu0 %v5127
    %5179 = vmatpush.msra.mxu0 %v5126
    %5180 = vmatpush.msra.mxu0 %v5125
    %5181 = vmatpush.msra.mxu0 %v5124
    %5182 = vmatpush.msra.mxu0 %v5123
    %5183 = vmatpush.msra.mxu0 %v5122
    %5184 = vmatpush.msra.mxu0 %v5121
    %5185 = vmatmul.f32.gmra.mxu0 %v5063
    %v5186 = vpop.f32.mrf.mxu0
    %v5187 = vadd.f32 0.0, %v5186
    %5188 = vdwg.mxu0
    %5189 = vmatpush.msra.mxu0 %v5152
    %5190 = vmatpush.msra.mxu0 %v5151
    %5191 = vmatpush.msra.mxu0 %v5150
    %5192 = vmatpush.msra.mxu0 %v5149
    %5193 = vmatpush.msra.mxu0 %v5148
    %5194 = vmatpush.msra.mxu0 %v5147
    %5195 = vmatpush.msra.mxu0 %v5146
    %5196 = vmatpush.msra.mxu0 %v5145
    %5197 = vmatpush.msra.mxu0 %v5144
    %5198 = vmatpush.msra.mxu0 %v5143
    %5199 = vmatpush.msra.mxu0 %v5142
    %5200 = vmatpush.msra.mxu0 %v5141
    %5201 = vmatpush.msra.mxu0 %v5140
    %5202 = vmatpush.msra.mxu0 %v5139
    %5203 = vmatpush.msra.mxu0 %v5138
    %5204 = vmatpush.msra.mxu0 %v5137
    %5205 = vmatmul.f32.gmra.mxu0 %v5072
    %v5206 = vpop.f32.mrf.mxu0
    %v5207 = vadd.f32 %v5187, %v5206
    %5208 = vdwg.mxu0
    %5209 = vmatpush.msra.mxu0 %v5168
    %5210 = vmatpush.msra.mxu0 %v5167
    %5211 = vmatpush.msra.mxu0 %v5166
    %5212 = vmatpush.msra.mxu0 %v5165
    %5213 = vmatpush.msra.mxu0 %v5164
    %5214 = vmatpush.msra.mxu0 %v5163
    %5215 = vmatpush.msra.mxu0 %v5162
    %5216 = vmatpush.msra.mxu0 %v5161
    %5217 = vmatpush.msra.mxu0 %v5160
    %5218 = vmatpush.msra.mxu0 %v5159
    %5219 = vmatpush.msra.mxu0 %v5158
    %5220 = vmatpush.msra.mxu0 %v5157
    %5221 = vmatpush.msra.mxu0 %v5156
    %5222 = vmatpush.msra.mxu0 %v5155
    %5223 = vmatpush.msra.mxu0 %v5154
    %5224 = vmatpush.msra.mxu0 %v5153
    %5225 = vmatmul.f32.gmra.mxu0 %v5081
    %v5226 = vpop.f32.mrf.mxu0
    %v5227 = vadd.f32 %v5207, %v5226
    %5228 = vdwg.mxu0
    %5229 = vmatpush.msra.mxu0 %v5136
    %5230 = vmatpush.msra.mxu0 %v5135
    %5231 = vmatpush.msra.mxu0 %v5134
    %5232 = vmatpush.msra.mxu0 %v5133
    %5233 = vmatpush.msra.mxu0 %v5132
    %5234 = vmatpush.msra.mxu0 %v5131
    %5235 = vmatpush.msra.mxu0 %v5130
    %5236 = vmatpush.msra.mxu0 %v5129
    %5237 = vmatpush.msra.mxu0 %v5128
    %5238 = vmatpush.msra.mxu0 %v5127
    %5239 = vmatpush.msra.mxu0 %v5126
    %5240 = vmatpush.msra.mxu0 %v5125
    %5241 = vmatpush.msra.mxu0 %v5124
    %5242 = vmatpush.msra.mxu0 %v5123
    %5243 = vmatpush.msra.mxu0 %v5122
    %5244 = vmatpush.msra.mxu0 %v5121
    %5245 = vmatmul.f32.gmra.mxu0 %v5102
    %v5246 = vpop.f32.mrf.mxu0
    %v5247 = vadd.f32 0.0, %v5246
    %5248 = vdwg.mxu0
    %5249 = vmatpush.msra.mxu0 %v5152
    %5250 = vmatpush.msra.mxu0 %v5151
    %5251 = vmatpush.msra.mxu0 %v5150
    %5252 = vmatpush.msra.mxu0 %v5149
    %5253 = vmatpush.msra.mxu0 %v5148
    %5254 = vmatpush.msra.mxu0 %v5147
    %5255 = vmatpush.msra.mxu0 %v5146
    %5256 = vmatpush.msra.mxu0 %v5145
    %5257 = vmatpush.msra.mxu0 %v5144
    %5258 = vmatpush.msra.mxu0 %v5143
    %5259 = vmatpush.msra.mxu0 %v5142
    %5260 = vmatpush.msra.mxu0 %v5141
    %5261 = vmatpush.msra.mxu0 %v5140
    %5262 = vmatpush.msra.mxu0 %v5139
    %5263 = vmatpush.msra.mxu0 %v5138
    %5264 = vmatpush.msra.mxu0 %v5137
    %5265 = vmatmul.f32.gmra.mxu0 %v5111
    %v5266 = vpop.f32.mrf.mxu0
    %v5267 = vadd.f32 %v5247, %v5266
    %5268 = vdwg.mxu0
    %5269 = vmatpush.msra.mxu0 %v5168
    %5270 = vmatpush.msra.mxu0 %v5167
    %5271 = vmatpush.msra.mxu0 %v5166
    %5272 = vmatpush.msra.mxu0 %v5165
    %5273 = vmatpush.msra.mxu0 %v5164
    %5274 = vmatpush.msra.mxu0 %v5163
    %5275 = vmatpush.msra.mxu0 %v5162
    %5276 = vmatpush.msra.mxu0 %v5161
    %5277 = vmatpush.msra.mxu0 %v5160
    %5278 = vmatpush.msra.mxu0 %v5159
    %5279 = vmatpush.msra.mxu0 %v5158
    %5280 = vmatpush.msra.mxu0 %v5157
    %5281 = vmatpush.msra.mxu0 %v5156
    %5282 = vmatpush.msra.mxu0 %v5155
    %5283 = vmatpush.msra.mxu0 %v5154
    %5284 = vmatpush.msra.mxu0 %v5153
    %5285 = vmatmul.f32.gmra.mxu0 %v5120
    %v5286 = vpop.f32.mrf.mxu0
    %v5287 = vadd.f32 %v5267, %v5286
    %5288 = vdwg.mxu0
    %v5289 = vrcp.pop 512.0
    %v5290 = vmul.f32 512.0, %v5289
    %v5291 = vsub.f32 1.0, %v5290
    %v5292 = vmul.f32 %v5289, %v5291
    %v5293 = vadd.f32 %v5289, %v5292
    %vm5294 = vweird.f32 %v5289
    %v5295 = vsel %vm5294, %v5289, %v5293
    %v5296 = vmul.f32 %v5227, %v5295
    %v5297 = vmul.f32 %v5287, %v5295
    %v5298 = vmul.f32 %v5296, %v5296
    %v5299 = vsub.f32 %v5297, %v5298
    %v5300 = vmax.f32 %v5299, 0.0
    %v5301 = vld [vmem:[#allocation18] sm:$0x1]
    %v5302 = vadd.f32 %v5300, 1e-05
    %v5303 = vrsqrt.pop %v5302
    %v5304 = vmul.f32 %v5303, %v5302
    %v5305 = vmul.f32 %v5304, %v5303
    %v5306 = vmul.f32 0.5, %v5305
    %v5307 = vsub.f32 1.5, %v5306
    %v5308 = vmul.f32 %v5303, %v5307
    %vm5309 = vweird.f32 %v5302
    %vm5310 = vweird.f32 %v5303
    %vm5311 = vmor %vm5309, %vm5310
    %v5312 = vsel %vm5311, %v5303, %v5308
    %v5313 = vmul.f32 %v5301, %v5312
    %v5314 = vld [vmem:[#allocation20] sm:$0x1]
    %v5315 = vmul.f32 %v5296, %v5313
    %v5316 = vsub.f32 %v5314, %v5315
    %v5317 = vld [vmem:[#allocation17] sm:$0xff]
    %v5318 = vld [vmem:[#allocation17 + $0x8] sm:$0xff]
    %v5319 = vld [vmem:[#allocation17 + $0x10] sm:$0xff]
    %v5320 = vld [vmem:[#allocation17 + $0x18] sm:$0xff]
    %v5321 = vld [vmem:[#allocation17 + $0x20] sm:$0xff]
    %v5322 = vld [vmem:[#allocation17 + $0x28] sm:$0xff]
    %vm5323 = vcmask 130048
    %v5325 = vsel %vm5323, %v5313, 0
    %5327 = vmatpush.msra.mxu0 0.0
    %5328 = vmatpush.msra.mxu0 0.0
    %5329 = vmatpush.msra.mxu0 0.0
    %5330 = vmatpush.msra.mxu0 0.0
    %5331 = vmatpush.msra.mxu0 0.0
    %5332 = vmatpush.msra.mxu0 0.0
    %5333 = vmatpush.msra.mxu0 0.0
    %5334 = vmatpush.msra.mxu0 0.0
    %5335 = vmatpush.msra.mxu0 0.0
    %5336 = vmatpush.msra.mxu0 0.0
    %5337 = vmatpush.msra.mxu0 0.0
    %5338 = vmatpush.msra.mxu0 0.0
    %5339 = vmatpush.msra.mxu0 0.0
    %5340 = vmatpush.msra.mxu0 0.0
    %5341 = vmatpush.msra.mxu0 %v5320
    %5342 = vmatpush.msra.mxu0 %v5317
    %5343 = vmatmul.f32.gmra.mxu0 %v5325
    %v5344 = vpop.f32.mrf.mxu0
    %v5345 = vadd.f32 0.0, %v5344
    %5346 = vdwg.mxu0
    %5347 = vmatpush.msra.mxu0 0.0
    %5348 = vmatpush.msra.mxu0 0.0
    %5349 = vmatpush.msra.mxu0 0.0
    %5350 = vmatpush.msra.mxu0 0.0
    %5351 = vmatpush.msra.mxu0 0.0
    %5352 = vmatpush.msra.mxu0 0.0
    %5353 = vmatpush.msra.mxu0 0.0
    %5354 = vmatpush.msra.mxu0 0.0
    %5355 = vmatpush.msra.mxu0 0.0
    %5356 = vmatpush.msra.mxu0 0.0
    %5357 = vmatpush.msra.mxu0 0.0
    %5358 = vmatpush.msra.mxu0 0.0
    %5359 = vmatpush.msra.mxu0 0.0
    %5360 = vmatpush.msra.mxu0 0.0
    %5361 = vmatpush.msra.mxu0 %v5321
    %5362 = vmatpush.msra.mxu0 %v5318
    %5363 = vmatmul.f32.gmra.mxu0 %v5325
    %v5364 = vpop.f32.mrf.mxu0
    %v5365 = vadd.f32 0.0, %v5364
    %5366 = vdwg.mxu0
    %5367 = vmatpush.msra.mxu0 0.0
    %5368 = vmatpush.msra.mxu0 0.0
    %5369 = vmatpush.msra.mxu0 0.0
    %5370 = vmatpush.msra.mxu0 0.0
    %5371 = vmatpush.msra.mxu0 0.0
    %5372 = vmatpush.msra.mxu0 0.0
    %5373 = vmatpush.msra.mxu0 0.0
    %5374 = vmatpush.msra.mxu0 0.0
    %5375 = vmatpush.msra.mxu0 0.0
    %5376 = vmatpush.msra.mxu0 0.0
    %5377 = vmatpush.msra.mxu0 0.0
    %5378 = vmatpush.msra.mxu0 0.0
    %5379 = vmatpush.msra.mxu0 0.0
    %5380 = vmatpush.msra.mxu0 0.0
    %5381 = vmatpush.msra.mxu0 %v5322
    %5382 = vmatpush.msra.mxu0 %v5319
    %5383 = vmatmul.f32.gmra.mxu0 %v5325
    %v5384 = vpop.f32.mrf.mxu0
    %v5385 = vadd.f32 0.0, %v5384
    %5386 = vdwg.mxu0
    %v5388 = vsel %vm5323, %v5316, 0
    %5390 = vmatpush.msra.mxu0 0.0
    %5391 = vmatpush.msra.mxu0 0.0
    %5392 = vmatpush.msra.mxu0 0.0
    %5393 = vmatpush.msra.mxu0 0.0
    %5394 = vmatpush.msra.mxu0 0.0
    %5395 = vmatpush.msra.mxu0 0.0
    %5396 = vmatpush.msra.mxu0 0.0
    %5397 = vmatpush.msra.mxu0 0.0
    %5398 = vmatpush.msra.mxu0 0.0
    %5399 = vmatpush.msra.mxu0 0.0
    %5400 = vmatpush.msra.mxu0 0.0
    %5401 = vmatpush.msra.mxu0 0.0
    %5402 = vmatpush.msra.mxu0 0.0
    %5403 = vmatpush.msra.mxu0 0.0
    %5404 = vmatpush.msra.mxu0 %v5320
    %5405 = vmatpush.msra.mxu0 %v5317
    %5406 = vmatmul.f32.gmra.mxu0 %v5388
    %v5407 = vpop.f32.mrf.mxu0
    %v5408 = vadd.f32 0.0, %v5407
    %5409 = vdwg.mxu0
    %5410 = vmatpush.msra.mxu0 0.0
    %5411 = vmatpush.msra.mxu0 0.0
    %5412 = vmatpush.msra.mxu0 0.0
    %5413 = vmatpush.msra.mxu0 0.0
    %5414 = vmatpush.msra.mxu0 0.0
    %5415 = vmatpush.msra.mxu0 0.0
    %5416 = vmatpush.msra.mxu0 0.0
    %5417 = vmatpush.msra.mxu0 0.0
    %5418 = vmatpush.msra.mxu0 0.0
    %5419 = vmatpush.msra.mxu0 0.0
    %5420 = vmatpush.msra.mxu0 0.0
    %5421 = vmatpush.msra.mxu0 0.0
    %5422 = vmatpush.msra.mxu0 0.0
    %5423 = vmatpush.msra.mxu0 0.0
    %5424 = vmatpush.msra.mxu0 %v5321
    %5425 = vmatpush.msra.mxu0 %v5318
    %5426 = vmatmul.f32.gmra.mxu0 %v5388
    %v5427 = vpop.f32.mrf.mxu0
    %v5428 = vadd.f32 0.0, %v5427
    %5429 = vdwg.mxu0
    %5430 = vmatpush.msra.mxu0 0.0
    %5431 = vmatpush.msra.mxu0 0.0
    %5432 = vmatpush.msra.mxu0 0.0
    %5433 = vmatpush.msra.mxu0 0.0
    %5434 = vmatpush.msra.mxu0 0.0
    %5435 = vmatpush.msra.mxu0 0.0
    %5436 = vmatpush.msra.mxu0 0.0
    %5437 = vmatpush.msra.mxu0 0.0
    %5438 = vmatpush.msra.mxu0 0.0
    %5439 = vmatpush.msra.mxu0 0.0
    %5440 = vmatpush.msra.mxu0 0.0
    %5441 = vmatpush.msra.mxu0 0.0
    %5442 = vmatpush.msra.mxu0 0.0
    %5443 = vmatpush.msra.mxu0 0.0
    %5444 = vmatpush.msra.mxu0 %v5322
    %5445 = vmatpush.msra.mxu0 %v5319
    %5446 = vmatmul.f32.gmra.mxu0 %v5388
    %v5447 = vpop.f32.mrf.mxu0
    %v5448 = vadd.f32 0.0, %v5447
    %5449 = vdwg.mxu0
    %v5450 = vperm.slane %v5345, 0
    %v5451 = vperm.slane %v5365, 0
    %v5452 = vperm.slane %v5385, 0
    %v5453 = vmul.f32 %v5043, %v5450
    %v5454 = vmul.f32 %v5044, %v5451
    %v5455 = vmul.f32 %v5045, %v5452
    %v5456 = vmul.f32 %v5046, %v5450
    %v5457 = vmul.f32 %v5047, %v5451
    %v5458 = vmul.f32 %v5048, %v5452
    %v5459 = vmul.f32 %v5049, %v5450
    %v5460 = vmul.f32 %v5050, %v5451
    %v5461 = vmul.f32 %v5051, %v5452
    %v5462 = vmul.f32 %v5052, %v5450
    %v5463 = vmul.f32 %v5053, %v5451
    %v5464 = vmul.f32 %v5054, %v5452
    %v5465 = vperm.slane %v5408, 0
    %v5466 = vperm.slane %v5428, 0
    %v5467 = vperm.slane %v5448, 0
    %v5468 = vadd.f32 %v5453, %v5465
    %v5469 = vadd.f32 %v5454, %v5466
    %v5470 = vadd.f32 %v5455, %v5467
    %v5471 = vadd.f32 %v5456, %v5465
    %v5472 = vadd.f32 %v5457, %v5466
    %v5473 = vadd.f32 %v5458, %v5467
    %v5474 = vadd.f32 %v5459, %v5465
    %v5475 = vadd.f32 %v5460, %v5466
    %v5476 = vadd.f32 %v5461, %v5467
    %v5477 = vadd.f32 %v5462, %v5465
    %v5478 = vadd.f32 %v5463, %v5466
    %v5479 = vadd.f32 %v5464, %v5467
    %vm5480 = vcmp.gt.f32.partialorder %v5468, 0.0
    %vm5481 = vcmp.gt.f32.partialorder %v5469, 0.0
    %vm5482 = vcmp.gt.f32.partialorder %v5470, 0.0
    %vm5483 = vcmp.gt.f32.partialorder %v5471, 0.0
    %vm5484 = vcmp.gt.f32.partialorder %v5472, 0.0
    %vm5485 = vcmp.gt.f32.partialorder %v5473, 0.0
    %vm5486 = vcmp.gt.f32.partialorder %v5474, 0.0
    %vm5487 = vcmp.gt.f32.partialorder %v5475, 0.0
    %vm5488 = vcmp.gt.f32.partialorder %v5476, 0.0
    %vm5489 = vcmp.gt.f32.partialorder %v5477, 0.0
    %vm5490 = vcmp.gt.f32.partialorder %v5478, 0.0
    %vm5491 = vcmp.gt.f32.partialorder %v5479, 0.0
    %v5492 = vmul.f32 %v5468, 0.01
    %v5493 = vmul.f32 %v5469, 0.01
    %v5494 = vmul.f32 %v5470, 0.01
    %v5495 = vmul.f32 %v5471, 0.01
    %v5496 = vmul.f32 %v5472, 0.01
    %v5497 = vmul.f32 %v5473, 0.01
    %v5498 = vmul.f32 %v5474, 0.01
    %v5499 = vmul.f32 %v5475, 0.01
    %v5500 = vmul.f32 %v5476, 0.01
    %v5501 = vmul.f32 %v5477, 0.01
    %v5502 = vmul.f32 %v5478, 0.01
    %v5503 = vmul.f32 %v5479, 0.01
    %v5504 = vsel %vm5480, %v5468, %v5492
    %v5505 = vsel %vm5481, %v5469, %v5493
    %v5506 = vsel %vm5482, %v5470, %v5494
    %v5507 = vsel %vm5483, %v5471, %v5495
    %v5508 = vsel %vm5484, %v5472, %v5496
    %v5509 = vsel %vm5485, %v5473, %v5497
    %v5510 = vsel %vm5486, %v5474, %v5498
    %v5511 = vsel %vm5487, %v5475, %v5499
    %v5512 = vsel %vm5488, %v5476, %v5500
    %v5513 = vsel %vm5489, %v5477, %v5501
    %v5514 = vsel %vm5490, %v5478, %v5502
    %v5515 = vsel %vm5491, %v5479, %v5503
    %v5522 = vrot.slane %v5504, 7
    %v5523 = vrot.slane %v5505, 7
    %v5524 = vrot.slane %v5506, 7
    %v5525 = vrot.slane %v5507, 7
    %v5526 = vsel %vm2849, %v5522, %v5525
    %v5527 = vrot.slane %v5508, 7
    %v5528 = vsel %vm2849, %v5523, %v5527
    %v5529 = vrot.slane %v5509, 7
    %v5530 = vsel %vm2849, %v5524, %v5529
    %5540 = vst [vmem:[#allocation3] sm:$0xfe] %v5522
    %5541 = vst [vmem:[#allocation3 + $0x8] sm:$0xfe] %v5523
    %5542 = vst [vmem:[#allocation3 + $0x10] sm:$0xfe] %v5524
    %5543 = vst [vmem:[#allocation3 + $0x18] sm:$0xff] %v5526
    %5544 = vst [vmem:[#allocation3 + $0x20] sm:$0xff] %v5528
    %5545 = vst [vmem:[#allocation3 + $0x28] sm:$0xff] %v5530
    %5546 = vst [vmem:[#allocation3 + $0x30] sm:$0x1] %v5525
    %5547 = vst [vmem:[#allocation3 + $0x38] sm:$0x1] %v5527
    %5548 = vst [vmem:[#allocation3 + $0x40] sm:$0x1] %v5529
    %v5555 = vrot.slane %v5510, 5
    %v5556 = vrot.slane %v5511, 5
    %v5557 = vrot.slane %v5512, 5
    %v5558 = vrot.slane %v5513, 5
    %v5559 = vsel %vm2913, %v5555, %v5558
    %v5560 = vrot.slane %v5514, 5
    %v5561 = vsel %vm2913, %v5556, %v5560
    %v5562 = vrot.slane %v5515, 5
    %v5563 = vsel %vm2913, %v5557, %v5562
    %5573 = vst [vmem:[#allocation3 + $0x30] sm:$0xf8] %v5555
    %5574 = vst [vmem:[#allocation3 + $0x38] sm:$0xf8] %v5556
    %5575 = vst [vmem:[#allocation3 + $0x40] sm:$0xf8] %v5557
    %5576 = vst [vmem:[#allocation3 + $0x48] sm:$0xff] %v5559
    %5577 = vst [vmem:[#allocation3 + $0x50] sm:$0xff] %v5561
    %5578 = vst [vmem:[#allocation3 + $0x58] sm:$0xff] %v5563
    %5579 = vst [vmem:[#allocation3 + $0x60] sm:$0x7] %v5558
    %5580 = vst [vmem:[#allocation3 + $0x68] sm:$0x7] %v5560
    %5581 = vst [vmem:[#allocation3 + $0x70] sm:$0x7] %v5562
    %v5582 = vld [vmem:[#allocation3] sm:$0xff]
    %v5583 = vld [vmem:[#allocation3 + $0x8] sm:$0xff]
    %v5584 = vld [vmem:[#allocation3 + $0x10] sm:$0xff]
    %v5585 = vld [vmem:[#allocation3 + $0x18] sm:$0xff]
    %v5586 = vld [vmem:[#allocation3 + $0x20] sm:$0xff]
    %v5587 = vld [vmem:[#allocation3 + $0x28] sm:$0xff]
    %v5588 = vld [vmem:[#allocation3 + $0x30] sm:$0xff]
    %v5589 = vld [vmem:[#allocation3 + $0x38] sm:$0xff]
    %v5590 = vld [vmem:[#allocation3 + $0x40] sm:$0xff]
    %v5591 = vld [vmem:[#allocation3 + $0x48] sm:$0xff]
    %v5592 = vld [vmem:[#allocation3 + $0x50] sm:$0xff]
    %v5593 = vld [vmem:[#allocation3 + $0x58] sm:$0xff]
    %v5594 = vld [vmem:[#allocation3 + $0x60] sm:$0xff]
    %v5595 = vld [vmem:[#allocation3 + $0x68] sm:$0xff]
    %v5596 = vld [vmem:[#allocation3 + $0x70] sm:$0xff]
    %v5597 = vld [vmem:[#allocation21] sm:$0xff]
    %v5598 = vld [vmem:[#allocation21 + $0x8] sm:$0xff]
    %vm5599 = vcmask 326656
    %v5601 = vsel %vm5599, %v5597, 0
    %v5604 = vsel %vm5599, %v5598, 0
    %5606 = vmatpush.msra.mxu0 0.0
    %5607 = vmatpush.msra.mxu0 0.0
    %5608 = vmatpush.msra.mxu0 0.0
    %5609 = vmatpush.msra.mxu0 0.0
    %5610 = vmatpush.msra.mxu0 0.0
    %5611 = vmatpush.msra.mxu0 0.0
    %5612 = vmatpush.msra.mxu0 0.0
    %5613 = vmatpush.msra.mxu0 0.0
    %5614 = vmatpush.msra.mxu0 0.0
    %5615 = vmatpush.msra.mxu0 0.0
    %5616 = vmatpush.msra.mxu0 0.0
    %5617 = vmatpush.msra.mxu0 %v5594
    %5618 = vmatpush.msra.mxu0 %v5591
    %5619 = vmatpush.msra.mxu0 %v5588
    %5620 = vmatpush.msra.mxu0 %v5585
    %5621 = vmatpush.msra.mxu0 %v5582
    %5622 = vmatmul.f32.gmra.mxu0 %v5601
    %v5623 = vpop.f32.mrf.mxu0
    %v5624 = vadd.f32 0.0, %v5623
    %5625 = vmatmul.f32.gmra.mxu0 %v5604
    %v5626 = vpop.f32.mrf.mxu0
    %v5627 = vadd.f32 0.0, %v5626
    %5628 = vdwg.mxu0
    %5629 = vmatpush.msra.mxu0 0.0
    %5630 = vmatpush.msra.mxu0 0.0
    %5631 = vmatpush.msra.mxu0 0.0
    %5632 = vmatpush.msra.mxu0 0.0
    %5633 = vmatpush.msra.mxu0 0.0
    %5634 = vmatpush.msra.mxu0 0.0
    %5635 = vmatpush.msra.mxu0 0.0
    %5636 = vmatpush.msra.mxu0 0.0
    %5637 = vmatpush.msra.mxu0 0.0
    %5638 = vmatpush.msra.mxu0 0.0
    %5639 = vmatpush.msra.mxu0 0.0
    %5640 = vmatpush.msra.mxu0 %v5595
    %5641 = vmatpush.msra.mxu0 %v5592
    %5642 = vmatpush.msra.mxu0 %v5589
    %5643 = vmatpush.msra.mxu0 %v5586
    %5644 = vmatpush.msra.mxu0 %v5583
    %5645 = vmatmul.f32.gmra.mxu0 %v5601
    %v5646 = vpop.f32.mrf.mxu0
    %v5647 = vadd.f32 0.0, %v5646
    %5648 = vmatmul.f32.gmra.mxu0 %v5604
    %v5649 = vpop.f32.mrf.mxu0
    %v5650 = vadd.f32 0.0, %v5649
    %5651 = vdwg.mxu0
    %5652 = vmatpush.msra.mxu0 0.0
    %5653 = vmatpush.msra.mxu0 0.0
    %5654 = vmatpush.msra.mxu0 0.0
    %5655 = vmatpush.msra.mxu0 0.0
    %5656 = vmatpush.msra.mxu0 0.0
    %5657 = vmatpush.msra.mxu0 0.0
    %5658 = vmatpush.msra.mxu0 0.0
    %5659 = vmatpush.msra.mxu0 0.0
    %5660 = vmatpush.msra.mxu0 0.0
    %5661 = vmatpush.msra.mxu0 0.0
    %5662 = vmatpush.msra.mxu0 0.0
    %5663 = vmatpush.msra.mxu0 %v5596
    %5664 = vmatpush.msra.mxu0 %v5593
    %5665 = vmatpush.msra.mxu0 %v5590
    %5666 = vmatpush.msra.mxu0 %v5587
    %5667 = vmatpush.msra.mxu0 %v5584
    %5668 = vmatmul.f32.gmra.mxu0 %v5601
    %v5669 = vpop.f32.mrf.mxu0
    %v5670 = vadd.f32 0.0, %v5669
    %5671 = vmatmul.f32.gmra.mxu0 %v5604
    %v5672 = vpop.f32.mrf.mxu0
    %v5673 = vadd.f32 0.0, %v5672
    %5674 = vdwg.mxu0
    %v5675 = vld [vmem:[#allocation23] sm:$0xff]
    %v5676 = vld [vmem:[#allocation23 + $0x8] sm:$0xff]
    %v5677 = vld [vmem:[#allocation23 + $0x10] sm:$0xff]
    %v5678 = vld [vmem:[#allocation23 + $0x18] sm:$0xff]
    %v5679 = vld [vmem:[#allocation23 + $0x20] sm:$0xff]
    %v5680 = vld [vmem:[#allocation23 + $0x28] sm:$0xff]
    %v5681 = vld [vmem:[#allocation23 + $0x30] sm:$0xff]
    %v5682 = vld [vmem:[#allocation23 + $0x38] sm:$0xff]
    %v5683 = vld [vmem:[#allocation23 + $0x40] sm:$0xff]
    %v5684 = vld [vmem:[#allocation23 + $0x48] sm:$0xff]
    %v5685 = vld [vmem:[#allocation23 + $0x50] sm:$0xff]
    %v5686 = vld [vmem:[#allocation23 + $0x58] sm:$0xff]
    %v5687 = vld [vmem:[#allocation23 + $0x60] sm:$0xff]
    %v5688 = vld [vmem:[#allocation23 + $0x68] sm:$0xff]
    %v5689 = vld [vmem:[#allocation23 + $0x70] sm:$0xff]
    %v5690 = vld [vmem:[#allocation23 + $0x78] sm:$0xff]
    %v5691 = vld [vmem:[#allocation23 + $0x80] sm:$0xff]
    %v5692 = vld [vmem:[#allocation23 + $0x88] sm:$0xff]
    %v5693 = vld [vmem:[#allocation23 + $0x90] sm:$0xff]
    %v5694 = vld [vmem:[#allocation23 + $0x98] sm:$0xff]
    %v5695 = vld [vmem:[#allocation23 + $0xa0] sm:$0xff]
    %v5696 = vld [vmem:[#allocation23 + $0xa8] sm:$0xff]
    %v5697 = vld [vmem:[#allocation23 + $0xb0] sm:$0xff]
    %v5698 = vld [vmem:[#allocation23 + $0xb8] sm:$0xff]
    %v5699 = vld [vmem:[#allocation23 + $0xc0] sm:$0xff]
    %v5700 = vld [vmem:[#allocation23 + $0xc8] sm:$0xff]
    %v5701 = vld [vmem:[#allocation23 + $0xd0] sm:$0xff]
    %v5702 = vld [vmem:[#allocation23 + $0xd8] sm:$0xff]
    %v5703 = vld [vmem:[#allocation23 + $0xe0] sm:$0xff]
    %v5704 = vld [vmem:[#allocation23 + $0xe8] sm:$0xff]
    %v5705 = vld [vmem:[#allocation23 + $0xf0] sm:$0xff]
    %v5706 = vld [vmem:[#allocation23 + $0xf8] sm:$0xff]
    %v5707 = vld [vmem:[#allocation23 + $0x100] sm:$0xff]
    %v5708 = vld [vmem:[#allocation23 + $0x108] sm:$0xff]
    %v5709 = vld [vmem:[#allocation23 + $0x110] sm:$0xff]
    %v5710 = vld [vmem:[#allocation23 + $0x118] sm:$0xff]
    %v5711 = vld [vmem:[#allocation23 + $0x120] sm:$0xff]
    %v5712 = vld [vmem:[#allocation23 + $0x128] sm:$0xff]
    %v5713 = vld [vmem:[#allocation23 + $0x130] sm:$0xff]
    %v5714 = vld [vmem:[#allocation23 + $0x138] sm:$0xff]
    %v5715 = vld [vmem:[#allocation23 + $0x140] sm:$0xff]
    %v5716 = vld [vmem:[#allocation23 + $0x148] sm:$0xff]
    %v5717 = vld [vmem:[#allocation23 + $0x150] sm:$0xff]
    %v5718 = vld [vmem:[#allocation23 + $0x158] sm:$0xff]
    %v5719 = vld [vmem:[#allocation23 + $0x160] sm:$0xff]
    %v5720 = vld [vmem:[#allocation23 + $0x168] sm:$0xff]
    %v5721 = vld [vmem:[#allocation23 + $0x170] sm:$0xff]
    %v5722 = vld [vmem:[#allocation23 + $0x178] sm:$0xff]
    %v5723 = vld [vmem:[#allocation23 + $0x180] sm:$0xff]
    %v5724 = vld [vmem:[#allocation23 + $0x188] sm:$0xff]
    %v5725 = vld [vmem:[#allocation23 + $0x190] sm:$0xff]
    %v5726 = vld [vmem:[#allocation23 + $0x198] sm:$0xff]
    %v5727 = vld [vmem:[#allocation23 + $0x1a0] sm:$0xff]
    %v5728 = vld [vmem:[#allocation23 + $0x1a8] sm:$0xff]
    %v5729 = vld [vmem:[#allocation23 + $0x1b0] sm:$0xff]
    %v5730 = vld [vmem:[#allocation23 + $0x1b8] sm:$0xff]
    %v5731 = vld [vmem:[#allocation23 + $0x1c0] sm:$0xff]
    %v5732 = vld [vmem:[#allocation23 + $0x1c8] sm:$0xff]
    %v5733 = vld [vmem:[#allocation23 + $0x1d0] sm:$0xff]
    %v5734 = vld [vmem:[#allocation23 + $0x1d8] sm:$0xff]
    %v5735 = vld [vmem:[#allocation23 + $0x1e0] sm:$0xff]
    %v5736 = vld [vmem:[#allocation23 + $0x1e8] sm:$0xff]
    %v5737 = vld [vmem:[#allocation23 + $0x1f0] sm:$0xff]
    %v5738 = vld [vmem:[#allocation23 + $0x1f8] sm:$0xff]
    %v5739 = vld [vmem:[#allocation23 + $0x200] sm:$0xff]
    %v5740 = vld [vmem:[#allocation23 + $0x208] sm:$0xff]
    %v5741 = vld [vmem:[#allocation23 + $0x210] sm:$0xff]
    %v5742 = vld [vmem:[#allocation23 + $0x218] sm:$0xff]
    %v5743 = vld [vmem:[#allocation23 + $0x220] sm:$0xff]
    %v5744 = vld [vmem:[#allocation23 + $0x228] sm:$0xff]
    %v5745 = vld [vmem:[#allocation23 + $0x230] sm:$0xff]
    %v5746 = vld [vmem:[#allocation23 + $0x238] sm:$0xff]
    %v5747 = vld [vmem:[#allocation23 + $0x240] sm:$0xff]
    %v5748 = vld [vmem:[#allocation23 + $0x248] sm:$0xff]
    %v5749 = vld [vmem:[#allocation23 + $0x250] sm:$0xff]
    %v5750 = vld [vmem:[#allocation23 + $0x258] sm:$0xff]
    %v5751 = vld [vmem:[#allocation23 + $0x260] sm:$0xff]
    %v5752 = vld [vmem:[#allocation23 + $0x268] sm:$0xff]
    %v5753 = vld [vmem:[#allocation23 + $0x270] sm:$0xff]
    %v5754 = vld [vmem:[#allocation23 + $0x278] sm:$0xff]
    %v5755 = vld [vmem:[#allocation23 + $0x280] sm:$0xff]
    %v5756 = vld [vmem:[#allocation23 + $0x288] sm:$0xff]
    %v5757 = vld [vmem:[#allocation23 + $0x290] sm:$0xff]
    %v5758 = vld [vmem:[#allocation23 + $0x298] sm:$0xff]
    %v5759 = vld [vmem:[#allocation23 + $0x2a0] sm:$0xff]
    %v5760 = vld [vmem:[#allocation23 + $0x2a8] sm:$0xff]
    %v5761 = vld [vmem:[#allocation23 + $0x2b0] sm:$0xff]
    %v5762 = vld [vmem:[#allocation23 + $0x2b8] sm:$0xff]
    %v5763 = vld [vmem:[#allocation23 + $0x2c0] sm:$0xff]
    %v5764 = vld [vmem:[#allocation23 + $0x2c8] sm:$0xff]
    %v5765 = vld [vmem:[#allocation23 + $0x2d0] sm:$0xff]
    %v5766 = vld [vmem:[#allocation23 + $0x2d8] sm:$0xff]
    %v5767 = vld [vmem:[#allocation23 + $0x2e0] sm:$0xff]
    %v5768 = vld [vmem:[#allocation23 + $0x2e8] sm:$0xff]
    %v5769 = vld [vmem:[#allocation23 + $0x2f0] sm:$0xff]
    %v5770 = vld [vmem:[#allocation23 + $0x2f8] sm:$0xff]
    %v5771 = vld [vmem:[#allocation23 + $0x300] sm:$0xff]
    %v5772 = vld [vmem:[#allocation23 + $0x308] sm:$0xff]
    %v5773 = vld [vmem:[#allocation23 + $0x310] sm:$0xff]
    %v5774 = vld [vmem:[#allocation23 + $0x318] sm:$0xff]
    %v5775 = vld [vmem:[#allocation23 + $0x320] sm:$0xff]
    %v5776 = vld [vmem:[#allocation23 + $0x328] sm:$0xff]
    %v5777 = vld [vmem:[#allocation23 + $0x330] sm:$0xff]
    %v5778 = vld [vmem:[#allocation23 + $0x338] sm:$0xff]
    %v5779 = vld [vmem:[#allocation23 + $0x340] sm:$0xff]
    %v5780 = vld [vmem:[#allocation23 + $0x348] sm:$0xff]
    %v5781 = vld [vmem:[#allocation23 + $0x350] sm:$0xff]
    %v5782 = vld [vmem:[#allocation23 + $0x358] sm:$0xff]
    %v5783 = vld [vmem:[#allocation23 + $0x360] sm:$0xff]
    %v5784 = vld [vmem:[#allocation23 + $0x368] sm:$0xff]
    %v5785 = vld [vmem:[#allocation23 + $0x370] sm:$0xff]
    %v5786 = vld [vmem:[#allocation23 + $0x378] sm:$0xff]
    %v5787 = vld [vmem:[#allocation23 + $0x380] sm:$0xff]
    %v5788 = vld [vmem:[#allocation23 + $0x388] sm:$0xff]
    %v5789 = vld [vmem:[#allocation23 + $0x390] sm:$0xff]
    %v5790 = vld [vmem:[#allocation23 + $0x398] sm:$0xff]
    %v5791 = vld [vmem:[#allocation23 + $0x3a0] sm:$0xff]
    %v5792 = vld [vmem:[#allocation23 + $0x3a8] sm:$0xff]
    %v5793 = vld [vmem:[#allocation23 + $0x3b0] sm:$0xff]
    %v5794 = vld [vmem:[#allocation23 + $0x3b8] sm:$0xff]
    %v5795 = vld [vmem:[#allocation23 + $0x3c0] sm:$0xff]
    %v5796 = vld [vmem:[#allocation23 + $0x3c8] sm:$0xff]
    %v5797 = vld [vmem:[#allocation23 + $0x3d0] sm:$0xff]
    %v5798 = vld [vmem:[#allocation23 + $0x3d8] sm:$0xff]
    %v5799 = vld [vmem:[#allocation23 + $0x3e0] sm:$0xff]
    %v5800 = vld [vmem:[#allocation23 + $0x3e8] sm:$0xff]
    %v5801 = vld [vmem:[#allocation23 + $0x3f0] sm:$0xff]
    %v5802 = vld [vmem:[#allocation23 + $0x3f8] sm:$0xff]
    %v5803 = vld [vmem:[#allocation23 + $0x400] sm:$0xff]
    %v5804 = vld [vmem:[#allocation23 + $0x408] sm:$0xff]
    %v5805 = vld [vmem:[#allocation23 + $0x410] sm:$0xff]
    %v5806 = vld [vmem:[#allocation23 + $0x418] sm:$0xff]
    %v5807 = vld [vmem:[#allocation23 + $0x420] sm:$0xff]
    %v5808 = vld [vmem:[#allocation23 + $0x428] sm:$0xff]
    %v5809 = vld [vmem:[#allocation23 + $0x430] sm:$0xff]
    %v5810 = vld [vmem:[#allocation23 + $0x438] sm:$0xff]
    %v5811 = vld [vmem:[#allocation23 + $0x440] sm:$0xff]
    %v5812 = vld [vmem:[#allocation23 + $0x448] sm:$0xff]
    %v5813 = vld [vmem:[#allocation23 + $0x450] sm:$0xff]
    %v5814 = vld [vmem:[#allocation23 + $0x458] sm:$0xff]
    %v5815 = vld [vmem:[#allocation23 + $0x460] sm:$0xff]
    %v5816 = vld [vmem:[#allocation23 + $0x468] sm:$0xff]
    %v5817 = vld [vmem:[#allocation23 + $0x470] sm:$0xff]
    %v5818 = vld [vmem:[#allocation23 + $0x478] sm:$0xff]
    %s5819 = scalar_lea.vmem [#allocation21], 16
    %v5820 = vld [vmem:[%s5819] sm:$0xff]
    %v5821 = vld [vmem:[%s5819 + $0x8] sm:$0xff]
    %v5823 = vsel %vm5599, %v5820, 0
    %v5826 = vsel %vm5599, %v5821, 0
    %5828 = vmatpush.msra.mxu0 0.0
    %5829 = vmatpush.msra.mxu0 0.0
    %5830 = vmatpush.msra.mxu0 0.0
    %5831 = vmatpush.msra.mxu0 0.0
    %5832 = vmatpush.msra.mxu0 0.0
    %5833 = vmatpush.msra.mxu0 0.0
    %5834 = vmatpush.msra.mxu0 0.0
    %5835 = vmatpush.msra.mxu0 0.0
    %5836 = vmatpush.msra.mxu0 0.0
    %5837 = vmatpush.msra.mxu0 0.0
    %5838 = vmatpush.msra.mxu0 0.0
    %5839 = vmatpush.msra.mxu0 %v5594
    %5840 = vmatpush.msra.mxu0 %v5591
    %5841 = vmatpush.msra.mxu0 %v5588
    %5842 = vmatpush.msra.mxu0 %v5585
    %5843 = vmatpush.msra.mxu0 %v5582
    %5844 = vmatmul.f32.gmra.mxu0 %v5823
    %v5845 = vpop.f32.mrf.mxu0
    %v5846 = vadd.f32 0.0, %v5845
    %5847 = vmatmul.f32.gmra.mxu0 %v5826
    %v5848 = vpop.f32.mrf.mxu0
    %v5849 = vadd.f32 0.0, %v5848
    %5850 = vdwg.mxu0
    %5851 = vmatpush.msra.mxu0 0.0
    %5852 = vmatpush.msra.mxu0 0.0
    %5853 = vmatpush.msra.mxu0 0.0
    %5854 = vmatpush.msra.mxu0 0.0
    %5855 = vmatpush.msra.mxu0 0.0
    %5856 = vmatpush.msra.mxu0 0.0
    %5857 = vmatpush.msra.mxu0 0.0
    %5858 = vmatpush.msra.mxu0 0.0
    %5859 = vmatpush.msra.mxu0 0.0
    %5860 = vmatpush.msra.mxu0 0.0
    %5861 = vmatpush.msra.mxu0 0.0
    %5862 = vmatpush.msra.mxu0 %v5595
    %5863 = vmatpush.msra.mxu0 %v5592
    %5864 = vmatpush.msra.mxu0 %v5589
    %5865 = vmatpush.msra.mxu0 %v5586
    %5866 = vmatpush.msra.mxu0 %v5583
    %5867 = vmatmul.f32.gmra.mxu0 %v5823
    %v5868 = vpop.f32.mrf.mxu0
    %v5869 = vadd.f32 0.0, %v5868
    %5870 = vmatmul.f32.gmra.mxu0 %v5826
    %v5871 = vpop.f32.mrf.mxu0
    %v5872 = vadd.f32 0.0, %v5871
    %5873 = vdwg.mxu0
    %5874 = vmatpush.msra.mxu0 0.0
    %5875 = vmatpush.msra.mxu0 0.0
    %5876 = vmatpush.msra.mxu0 0.0
    %5877 = vmatpush.msra.mxu0 0.0
    %5878 = vmatpush.msra.mxu0 0.0
    %5879 = vmatpush.msra.mxu0 0.0
    %5880 = vmatpush.msra.mxu0 0.0
    %5881 = vmatpush.msra.mxu0 0.0
    %5882 = vmatpush.msra.mxu0 0.0
    %5883 = vmatpush.msra.mxu0 0.0
    %5884 = vmatpush.msra.mxu0 0.0
    %5885 = vmatpush.msra.mxu0 %v5596
    %5886 = vmatpush.msra.mxu0 %v5593
    %5887 = vmatpush.msra.mxu0 %v5590
    %5888 = vmatpush.msra.mxu0 %v5587
    %5889 = vmatpush.msra.mxu0 %v5584
    %5890 = vmatmul.f32.gmra.mxu0 %v5823
    %v5891 = vpop.f32.mrf.mxu0
    %v5892 = vadd.f32 0.0, %v5891
    %5893 = vmatmul.f32.gmra.mxu0 %v5826
    %v5894 = vpop.f32.mrf.mxu0
    %v5895 = vadd.f32 0.0, %v5894
    %5896 = vdwg.mxu0
    %s5897 = scalar_lea.vmem [#allocation23], 1152
    %v5898 = vld [vmem:[%s5897] sm:$0xff]
    %v5899 = vld [vmem:[%s5897 + $0x8] sm:$0xff]
    %v5900 = vld [vmem:[%s5897 + $0x10] sm:$0xff]
    %v5901 = vld [vmem:[%s5897 + $0x18] sm:$0xff]
    %v5902 = vld [vmem:[%s5897 + $0x20] sm:$0xff]
    %v5903 = vld [vmem:[%s5897 + $0x28] sm:$0xff]
    %v5904 = vld [vmem:[%s5897 + $0x30] sm:$0xff]
    %v5905 = vld [vmem:[%s5897 + $0x38] sm:$0xff]
    %v5906 = vld [vmem:[%s5897 + $0x40] sm:$0xff]
    %v5907 = vld [vmem:[%s5897 + $0x48] sm:$0xff]
    %v5908 = vld [vmem:[%s5897 + $0x50] sm:$0xff]
    %v5909 = vld [vmem:[%s5897 + $0x58] sm:$0xff]
    %v5910 = vld [vmem:[%s5897 + $0x60] sm:$0xff]
    %v5911 = vld [vmem:[%s5897 + $0x68] sm:$0xff]
    %v5912 = vld [vmem:[%s5897 + $0x70] sm:$0xff]
    %v5913 = vld [vmem:[%s5897 + $0x78] sm:$0xff]
    %v5914 = vld [vmem:[%s5897 + $0x80] sm:$0xff]
    %v5915 = vld [vmem:[%s5897 + $0x88] sm:$0xff]
    %v5916 = vld [vmem:[%s5897 + $0x90] sm:$0xff]
    %v5917 = vld [vmem:[%s5897 + $0x98] sm:$0xff]
    %v5918 = vld [vmem:[%s5897 + $0xa0] sm:$0xff]
    %v5919 = vld [vmem:[%s5897 + $0xa8] sm:$0xff]
    %v5920 = vld [vmem:[%s5897 + $0xb0] sm:$0xff]
    %v5921 = vld [vmem:[%s5897 + $0xb8] sm:$0xff]
    %v5922 = vld [vmem:[%s5897 + $0xc0] sm:$0xff]
    %v5923 = vld [vmem:[%s5897 + $0xc8] sm:$0xff]
    %v5924 = vld [vmem:[%s5897 + $0xd0] sm:$0xff]
    %v5925 = vld [vmem:[%s5897 + $0xd8] sm:$0xff]
    %v5926 = vld [vmem:[%s5897 + $0xe0] sm:$0xff]
    %v5927 = vld [vmem:[%s5897 + $0xe8] sm:$0xff]
    %v5928 = vld [vmem:[%s5897 + $0xf0] sm:$0xff]
    %v5929 = vld [vmem:[%s5897 + $0xf8] sm:$0xff]
    %v5930 = vld [vmem:[%s5897 + $0x100] sm:$0xff]
    %v5931 = vld [vmem:[%s5897 + $0x108] sm:$0xff]
    %v5932 = vld [vmem:[%s5897 + $0x110] sm:$0xff]
    %v5933 = vld [vmem:[%s5897 + $0x118] sm:$0xff]
    %v5934 = vld [vmem:[%s5897 + $0x120] sm:$0xff]
    %v5935 = vld [vmem:[%s5897 + $0x128] sm:$0xff]
    %v5936 = vld [vmem:[%s5897 + $0x130] sm:$0xff]
    %v5937 = vld [vmem:[%s5897 + $0x138] sm:$0xff]
    %v5938 = vld [vmem:[%s5897 + $0x140] sm:$0xff]
    %v5939 = vld [vmem:[%s5897 + $0x148] sm:$0xff]
    %v5940 = vld [vmem:[%s5897 + $0x150] sm:$0xff]
    %v5941 = vld [vmem:[%s5897 + $0x158] sm:$0xff]
    %v5942 = vld [vmem:[%s5897 + $0x160] sm:$0xff]
    %v5943 = vld [vmem:[%s5897 + $0x168] sm:$0xff]
    %v5944 = vld [vmem:[%s5897 + $0x170] sm:$0xff]
    %v5945 = vld [vmem:[%s5897 + $0x178] sm:$0xff]
    %v5946 = vld [vmem:[%s5897 + $0x180] sm:$0xff]
    %v5947 = vld [vmem:[%s5897 + $0x188] sm:$0xff]
    %v5948 = vld [vmem:[%s5897 + $0x190] sm:$0xff]
    %v5949 = vld [vmem:[%s5897 + $0x198] sm:$0xff]
    %v5950 = vld [vmem:[%s5897 + $0x1a0] sm:$0xff]
    %v5951 = vld [vmem:[%s5897 + $0x1a8] sm:$0xff]
    %v5952 = vld [vmem:[%s5897 + $0x1b0] sm:$0xff]
    %v5953 = vld [vmem:[%s5897 + $0x1b8] sm:$0xff]
    %v5954 = vld [vmem:[%s5897 + $0x1c0] sm:$0xff]
    %v5955 = vld [vmem:[%s5897 + $0x1c8] sm:$0xff]
    %v5956 = vld [vmem:[%s5897 + $0x1d0] sm:$0xff]
    %v5957 = vld [vmem:[%s5897 + $0x1d8] sm:$0xff]
    %v5958 = vld [vmem:[%s5897 + $0x1e0] sm:$0xff]
    %v5959 = vld [vmem:[%s5897 + $0x1e8] sm:$0xff]
    %v5960 = vld [vmem:[%s5897 + $0x1f0] sm:$0xff]
    %v5961 = vld [vmem:[%s5897 + $0x1f8] sm:$0xff]
    %v5962 = vld [vmem:[%s5897 + $0x200] sm:$0xff]
    %v5963 = vld [vmem:[%s5897 + $0x208] sm:$0xff]
    %v5964 = vld [vmem:[%s5897 + $0x210] sm:$0xff]
    %v5965 = vld [vmem:[%s5897 + $0x218] sm:$0xff]
    %v5966 = vld [vmem:[%s5897 + $0x220] sm:$0xff]
    %v5967 = vld [vmem:[%s5897 + $0x228] sm:$0xff]
    %v5968 = vld [vmem:[%s5897 + $0x230] sm:$0xff]
    %v5969 = vld [vmem:[%s5897 + $0x238] sm:$0xff]
    %v5970 = vld [vmem:[%s5897 + $0x240] sm:$0xff]
    %v5971 = vld [vmem:[%s5897 + $0x248] sm:$0xff]
    %v5972 = vld [vmem:[%s5897 + $0x250] sm:$0xff]
    %v5973 = vld [vmem:[%s5897 + $0x258] sm:$0xff]
    %v5974 = vld [vmem:[%s5897 + $0x260] sm:$0xff]
    %v5975 = vld [vmem:[%s5897 + $0x268] sm:$0xff]
    %v5976 = vld [vmem:[%s5897 + $0x270] sm:$0xff]
    %v5977 = vld [vmem:[%s5897 + $0x278] sm:$0xff]
    %v5978 = vld [vmem:[%s5897 + $0x280] sm:$0xff]
    %v5979 = vld [vmem:[%s5897 + $0x288] sm:$0xff]
    %v5980 = vld [vmem:[%s5897 + $0x290] sm:$0xff]
    %v5981 = vld [vmem:[%s5897 + $0x298] sm:$0xff]
    %v5982 = vld [vmem:[%s5897 + $0x2a0] sm:$0xff]
    %v5983 = vld [vmem:[%s5897 + $0x2a8] sm:$0xff]
    %v5984 = vld [vmem:[%s5897 + $0x2b0] sm:$0xff]
    %v5985 = vld [vmem:[%s5897 + $0x2b8] sm:$0xff]
    %v5986 = vld [vmem:[%s5897 + $0x2c0] sm:$0xff]
    %v5987 = vld [vmem:[%s5897 + $0x2c8] sm:$0xff]
    %v5988 = vld [vmem:[%s5897 + $0x2d0] sm:$0xff]
    %v5989 = vld [vmem:[%s5897 + $0x2d8] sm:$0xff]
    %v5990 = vld [vmem:[%s5897 + $0x2e0] sm:$0xff]
    %v5991 = vld [vmem:[%s5897 + $0x2e8] sm:$0xff]
    %v5992 = vld [vmem:[%s5897 + $0x2f0] sm:$0xff]
    %v5993 = vld [vmem:[%s5897 + $0x2f8] sm:$0xff]
    %v5994 = vld [vmem:[%s5897 + $0x300] sm:$0xff]
    %v5995 = vld [vmem:[%s5897 + $0x308] sm:$0xff]
    %v5996 = vld [vmem:[%s5897 + $0x310] sm:$0xff]
    %v5997 = vld [vmem:[%s5897 + $0x318] sm:$0xff]
    %v5998 = vld [vmem:[%s5897 + $0x320] sm:$0xff]
    %v5999 = vld [vmem:[%s5897 + $0x328] sm:$0xff]
    %v6000 = vld [vmem:[%s5897 + $0x330] sm:$0xff]
    %v6001 = vld [vmem:[%s5897 + $0x338] sm:$0xff]
    %v6002 = vld [vmem:[%s5897 + $0x340] sm:$0xff]
    %v6003 = vld [vmem:[%s5897 + $0x348] sm:$0xff]
    %v6004 = vld [vmem:[%s5897 + $0x350] sm:$0xff]
    %v6005 = vld [vmem:[%s5897 + $0x358] sm:$0xff]
    %v6006 = vld [vmem:[%s5897 + $0x360] sm:$0xff]
    %v6007 = vld [vmem:[%s5897 + $0x368] sm:$0xff]
    %v6008 = vld [vmem:[%s5897 + $0x370] sm:$0xff]
    %v6009 = vld [vmem:[%s5897 + $0x378] sm:$0xff]
    %v6010 = vld [vmem:[%s5897 + $0x380] sm:$0xff]
    %v6011 = vld [vmem:[%s5897 + $0x388] sm:$0xff]
    %v6012 = vld [vmem:[%s5897 + $0x390] sm:$0xff]
    %v6013 = vld [vmem:[%s5897 + $0x398] sm:$0xff]
    %v6014 = vld [vmem:[%s5897 + $0x3a0] sm:$0xff]
    %v6015 = vld [vmem:[%s5897 + $0x3a8] sm:$0xff]
    %v6016 = vld [vmem:[%s5897 + $0x3b0] sm:$0xff]
    %v6017 = vld [vmem:[%s5897 + $0x3b8] sm:$0xff]
    %v6018 = vld [vmem:[%s5897 + $0x3c0] sm:$0xff]
    %v6019 = vld [vmem:[%s5897 + $0x3c8] sm:$0xff]
    %v6020 = vld [vmem:[%s5897 + $0x3d0] sm:$0xff]
    %v6021 = vld [vmem:[%s5897 + $0x3d8] sm:$0xff]
    %v6022 = vld [vmem:[%s5897 + $0x3e0] sm:$0xff]
    %v6023 = vld [vmem:[%s5897 + $0x3e8] sm:$0xff]
    %v6024 = vld [vmem:[%s5897 + $0x3f0] sm:$0xff]
    %v6025 = vld [vmem:[%s5897 + $0x3f8] sm:$0xff]
    %v6026 = vld [vmem:[%s5897 + $0x400] sm:$0xff]
    %v6027 = vld [vmem:[%s5897 + $0x408] sm:$0xff]
    %v6028 = vld [vmem:[%s5897 + $0x410] sm:$0xff]
    %v6029 = vld [vmem:[%s5897 + $0x418] sm:$0xff]
    %v6030 = vld [vmem:[%s5897 + $0x420] sm:$0xff]
    %v6031 = vld [vmem:[%s5897 + $0x428] sm:$0xff]
    %v6032 = vld [vmem:[%s5897 + $0x430] sm:$0xff]
    %v6033 = vld [vmem:[%s5897 + $0x438] sm:$0xff]
    %v6034 = vld [vmem:[%s5897 + $0x440] sm:$0xff]
    %v6035 = vld [vmem:[%s5897 + $0x448] sm:$0xff]
    %v6036 = vld [vmem:[%s5897 + $0x450] sm:$0xff]
    %v6037 = vld [vmem:[%s5897 + $0x458] sm:$0xff]
    %v6038 = vld [vmem:[%s5897 + $0x460] sm:$0xff]
    %v6039 = vld [vmem:[%s5897 + $0x468] sm:$0xff]
    %v6040 = vld [vmem:[%s5897 + $0x470] sm:$0xff]
    %v6041 = vld [vmem:[%s5897 + $0x478] sm:$0xff]
    %6042 = vmatpush.msra.mxu0 %v5943
    %6043 = vmatpush.msra.mxu0 %v5940
    %6044 = vmatpush.msra.mxu0 %v5937
    %6045 = vmatpush.msra.mxu0 %v5934
    %6046 = vmatpush.msra.mxu0 %v5931
    %6047 = vmatpush.msra.mxu0 %v5928
    %6048 = vmatpush.msra.mxu0 %v5925
    %6049 = vmatpush.msra.mxu0 %v5922
    %6050 = vmatpush.msra.mxu0 %v5919
    %6051 = vmatpush.msra.mxu0 %v5916
    %6052 = vmatpush.msra.mxu0 %v5913
    %6053 = vmatpush.msra.mxu0 %v5910
    %6054 = vmatpush.msra.mxu0 %v5907
    %6055 = vmatpush.msra.mxu0 %v5904
    %6056 = vmatpush.msra.mxu0 %v5901
    %6057 = vmatpush.msra.mxu0 %v5898
    %6058 = vmatmul.f32.gmra.mxu0 %v5846
    %v6059 = vpop.f32.mrf.mxu0
    %v6060 = vadd.f32 0.0, %v6059
    %6061 = vmatmul.f32.gmra.mxu0 %v5849
    %v6062 = vpop.f32.mrf.mxu0
    %v6063 = vadd.f32 0.0, %v6062
    %6064 = vdwg.mxu0
    %6065 = vmatpush.msra.mxu0 %v5991
    %6066 = vmatpush.msra.mxu0 %v5988
    %6067 = vmatpush.msra.mxu0 %v5985
    %6068 = vmatpush.msra.mxu0 %v5982
    %6069 = vmatpush.msra.mxu0 %v5979
    %6070 = vmatpush.msra.mxu0 %v5976
    %6071 = vmatpush.msra.mxu0 %v5973
    %6072 = vmatpush.msra.mxu0 %v5970
    %6073 = vmatpush.msra.mxu0 %v5967
    %6074 = vmatpush.msra.mxu0 %v5964
    %6075 = vmatpush.msra.mxu0 %v5961
    %6076 = vmatpush.msra.mxu0 %v5958
    %6077 = vmatpush.msra.mxu0 %v5955
    %6078 = vmatpush.msra.mxu0 %v5952
    %6079 = vmatpush.msra.mxu0 %v5949
    %6080 = vmatpush.msra.mxu0 %v5946
    %6081 = vmatmul.f32.gmra.mxu0 %v5869
    %v6082 = vpop.f32.mrf.mxu0
    %v6083 = vadd.f32 %v6060, %v6082
    %6084 = vmatmul.f32.gmra.mxu0 %v5872
    %v6085 = vpop.f32.mrf.mxu0
    %v6086 = vadd.f32 %v6063, %v6085
    %6087 = vdwg.mxu0
    %6088 = vmatpush.msra.mxu0 %v6039
    %6089 = vmatpush.msra.mxu0 %v6036
    %6090 = vmatpush.msra.mxu0 %v6033
    %6091 = vmatpush.msra.mxu0 %v6030
    %6092 = vmatpush.msra.mxu0 %v6027
    %6093 = vmatpush.msra.mxu0 %v6024
    %6094 = vmatpush.msra.mxu0 %v6021
    %6095 = vmatpush.msra.mxu0 %v6018
    %6096 = vmatpush.msra.mxu0 %v6015
    %6097 = vmatpush.msra.mxu0 %v6012
    %6098 = vmatpush.msra.mxu0 %v6009
    %6099 = vmatpush.msra.mxu0 %v6006
    %6100 = vmatpush.msra.mxu0 %v6003
    %6101 = vmatpush.msra.mxu0 %v6000
    %6102 = vmatpush.msra.mxu0 %v5997
    %6103 = vmatpush.msra.mxu0 %v5994
    %6104 = vmatmul.f32.gmra.mxu0 %v5892
    %v6105 = vpop.f32.mrf.mxu0
    %v6106 = vadd.f32 %v6083, %v6105
    %6107 = vmatmul.f32.gmra.mxu0 %v5895
    %v6108 = vpop.f32.mrf.mxu0
    %v6109 = vadd.f32 %v6086, %v6108
    %6110 = vdwg.mxu0
    %6111 = vmatpush.msra.mxu0 %v5944
    %6112 = vmatpush.msra.mxu0 %v5941
    %6113 = vmatpush.msra.mxu0 %v5938
    %6114 = vmatpush.msra.mxu0 %v5935
    %6115 = vmatpush.msra.mxu0 %v5932
    %6116 = vmatpush.msra.mxu0 %v5929
    %6117 = vmatpush.msra.mxu0 %v5926
    %6118 = vmatpush.msra.mxu0 %v5923
    %6119 = vmatpush.msra.mxu0 %v5920
    %6120 = vmatpush.msra.mxu0 %v5917
    %6121 = vmatpush.msra.mxu0 %v5914
    %6122 = vmatpush.msra.mxu0 %v5911
    %6123 = vmatpush.msra.mxu0 %v5908
    %6124 = vmatpush.msra.mxu0 %v5905
    %6125 = vmatpush.msra.mxu0 %v5902
    %6126 = vmatpush.msra.mxu0 %v5899
    %6127 = vmatmul.f32.gmra.mxu0 %v5846
    %v6128 = vpop.f32.mrf.mxu0
    %v6129 = vadd.f32 0.0, %v6128
    %6130 = vmatmul.f32.gmra.mxu0 %v5849
    %v6131 = vpop.f32.mrf.mxu0
    %v6132 = vadd.f32 0.0, %v6131
    %6133 = vdwg.mxu0
    %6134 = vmatpush.msra.mxu0 %v5992
    %6135 = vmatpush.msra.mxu0 %v5989
    %6136 = vmatpush.msra.mxu0 %v5986
    %6137 = vmatpush.msra.mxu0 %v5983
    %6138 = vmatpush.msra.mxu0 %v5980
    %6139 = vmatpush.msra.mxu0 %v5977
    %6140 = vmatpush.msra.mxu0 %v5974
    %6141 = vmatpush.msra.mxu0 %v5971
    %6142 = vmatpush.msra.mxu0 %v5968
    %6143 = vmatpush.msra.mxu0 %v5965
    %6144 = vmatpush.msra.mxu0 %v5962
    %6145 = vmatpush.msra.mxu0 %v5959
    %6146 = vmatpush.msra.mxu0 %v5956
    %6147 = vmatpush.msra.mxu0 %v5953
    %6148 = vmatpush.msra.mxu0 %v5950
    %6149 = vmatpush.msra.mxu0 %v5947
    %6150 = vmatmul.f32.gmra.mxu0 %v5869
    %v6151 = vpop.f32.mrf.mxu0
    %v6152 = vadd.f32 %v6129, %v6151
    %6153 = vmatmul.f32.gmra.mxu0 %v5872
    %v6154 = vpop.f32.mrf.mxu0
    %v6155 = vadd.f32 %v6132, %v6154
    %6156 = vdwg.mxu0
    %6157 = vmatpush.msra.mxu0 %v6040
    %6158 = vmatpush.msra.mxu0 %v6037
    %6159 = vmatpush.msra.mxu0 %v6034
    %6160 = vmatpush.msra.mxu0 %v6031
    %6161 = vmatpush.msra.mxu0 %v6028
    %6162 = vmatpush.msra.mxu0 %v6025
    %6163 = vmatpush.msra.mxu0 %v6022
    %6164 = vmatpush.msra.mxu0 %v6019
    %6165 = vmatpush.msra.mxu0 %v6016
    %6166 = vmatpush.msra.mxu0 %v6013
    %6167 = vmatpush.msra.mxu0 %v6010
    %6168 = vmatpush.msra.mxu0 %v6007
    %6169 = vmatpush.msra.mxu0 %v6004
    %6170 = vmatpush.msra.mxu0 %v6001
    %6171 = vmatpush.msra.mxu0 %v5998
    %6172 = vmatpush.msra.mxu0 %v5995
    %6173 = vmatmul.f32.gmra.mxu0 %v5892
    %v6174 = vpop.f32.mrf.mxu0
    %v6175 = vadd.f32 %v6152, %v6174
    %6176 = vmatmul.f32.gmra.mxu0 %v5895
    %v6177 = vpop.f32.mrf.mxu0
    %v6178 = vadd.f32 %v6155, %v6177
    %6179 = vdwg.mxu0
    %6180 = vmatpush.msra.mxu0 %v5945
    %6181 = vmatpush.msra.mxu0 %v5942
    %6182 = vmatpush.msra.mxu0 %v5939
    %6183 = vmatpush.msra.mxu0 %v5936
    %6184 = vmatpush.msra.mxu0 %v5933
    %6185 = vmatpush.msra.mxu0 %v5930
    %6186 = vmatpush.msra.mxu0 %v5927
    %6187 = vmatpush.msra.mxu0 %v5924
    %6188 = vmatpush.msra.mxu0 %v5921
    %6189 = vmatpush.msra.mxu0 %v5918
    %6190 = vmatpush.msra.mxu0 %v5915
    %6191 = vmatpush.msra.mxu0 %v5912
    %6192 = vmatpush.msra.mxu0 %v5909
    %6193 = vmatpush.msra.mxu0 %v5906
    %6194 = vmatpush.msra.mxu0 %v5903
    %6195 = vmatpush.msra.mxu0 %v5900
    %6196 = vmatmul.f32.gmra.mxu0 %v5846
    %v6197 = vpop.f32.mrf.mxu0
    %v6198 = vadd.f32 0.0, %v6197
    %6199 = vmatmul.f32.gmra.mxu0 %v5849
    %v6200 = vpop.f32.mrf.mxu0
    %v6201 = vadd.f32 0.0, %v6200
    %6202 = vdwg.mxu0
    %6203 = vmatpush.msra.mxu0 %v5993
    %6204 = vmatpush.msra.mxu0 %v5990
    %6205 = vmatpush.msra.mxu0 %v5987
    %6206 = vmatpush.msra.mxu0 %v5984
    %6207 = vmatpush.msra.mxu0 %v5981
    %6208 = vmatpush.msra.mxu0 %v5978
    %6209 = vmatpush.msra.mxu0 %v5975
    %6210 = vmatpush.msra.mxu0 %v5972
    %6211 = vmatpush.msra.mxu0 %v5969
    %6212 = vmatpush.msra.mxu0 %v5966
    %6213 = vmatpush.msra.mxu0 %v5963
    %6214 = vmatpush.msra.mxu0 %v5960
    %6215 = vmatpush.msra.mxu0 %v5957
    %6216 = vmatpush.msra.mxu0 %v5954
    %6217 = vmatpush.msra.mxu0 %v5951
    %6218 = vmatpush.msra.mxu0 %v5948
    %6219 = vmatmul.f32.gmra.mxu0 %v5869
    %v6220 = vpop.f32.mrf.mxu0
    %v6221 = vadd.f32 %v6198, %v6220
    %6222 = vmatmul.f32.gmra.mxu0 %v5872
    %v6223 = vpop.f32.mrf.mxu0
    %v6224 = vadd.f32 %v6201, %v6223
    %6225 = vdwg.mxu0
    %6226 = vmatpush.msra.mxu0 %v6041
    %6227 = vmatpush.msra.mxu0 %v6038
    %6228 = vmatpush.msra.mxu0 %v6035
    %6229 = vmatpush.msra.mxu0 %v6032
    %6230 = vmatpush.msra.mxu0 %v6029
    %6231 = vmatpush.msra.mxu0 %v6026
    %6232 = vmatpush.msra.mxu0 %v6023
    %6233 = vmatpush.msra.mxu0 %v6020
    %6234 = vmatpush.msra.mxu0 %v6017
    %6235 = vmatpush.msra.mxu0 %v6014
    %6236 = vmatpush.msra.mxu0 %v6011
    %6237 = vmatpush.msra.mxu0 %v6008
    %6238 = vmatpush.msra.mxu0 %v6005
    %6239 = vmatpush.msra.mxu0 %v6002
    %6240 = vmatpush.msra.mxu0 %v5999
    %6241 = vmatpush.msra.mxu0 %v5996
    %6242 = vmatmul.f32.gmra.mxu0 %v5892
    %v6243 = vpop.f32.mrf.mxu0
    %v6244 = vadd.f32 %v6221, %v6243
    %6245 = vmatmul.f32.gmra.mxu0 %v5895
    %v6246 = vpop.f32.mrf.mxu0
    %v6247 = vadd.f32 %v6224, %v6246
    %6248 = vdwg.mxu0
    %6249 = vmatpush.msra.mxu0 %v5720
    %6250 = vmatpush.msra.mxu0 %v5717
    %6251 = vmatpush.msra.mxu0 %v5714
    %6252 = vmatpush.msra.mxu0 %v5711
    %6253 = vmatpush.msra.mxu0 %v5708
    %6254 = vmatpush.msra.mxu0 %v5705
    %6255 = vmatpush.msra.mxu0 %v5702
    %6256 = vmatpush.msra.mxu0 %v5699
    %6257 = vmatpush.msra.mxu0 %v5696
    %6258 = vmatpush.msra.mxu0 %v5693
    %6259 = vmatpush.msra.mxu0 %v5690
    %6260 = vmatpush.msra.mxu0 %v5687
    %6261 = vmatpush.msra.mxu0 %v5684
    %6262 = vmatpush.msra.mxu0 %v5681
    %6263 = vmatpush.msra.mxu0 %v5678
    %6264 = vmatpush.msra.mxu0 %v5675
    %6265 = vmatmul.f32.gmra.mxu0 %v5624
    %v6266 = vpop.f32.mrf.mxu0
    %v6267 = vadd.f32 %v6106, %v6266
    %6268 = vmatmul.f32.gmra.mxu0 %v5627
    %v6269 = vpop.f32.mrf.mxu0
    %v6270 = vadd.f32 %v6109, %v6269
    %6271 = vdwg.mxu0
    %6272 = vmatpush.msra.mxu0 %v5768
    %6273 = vmatpush.msra.mxu0 %v5765
    %6274 = vmatpush.msra.mxu0 %v5762
    %6275 = vmatpush.msra.mxu0 %v5759
    %6276 = vmatpush.msra.mxu0 %v5756
    %6277 = vmatpush.msra.mxu0 %v5753
    %6278 = vmatpush.msra.mxu0 %v5750
    %6279 = vmatpush.msra.mxu0 %v5747
    %6280 = vmatpush.msra.mxu0 %v5744
    %6281 = vmatpush.msra.mxu0 %v5741
    %6282 = vmatpush.msra.mxu0 %v5738
    %6283 = vmatpush.msra.mxu0 %v5735
    %6284 = vmatpush.msra.mxu0 %v5732
    %6285 = vmatpush.msra.mxu0 %v5729
    %6286 = vmatpush.msra.mxu0 %v5726
    %6287 = vmatpush.msra.mxu0 %v5723
    %6288 = vmatmul.f32.gmra.mxu0 %v5647
    %v6289 = vpop.f32.mrf.mxu0
    %v6290 = vadd.f32 %v6267, %v6289
    %6291 = vmatmul.f32.gmra.mxu0 %v5650
    %v6292 = vpop.f32.mrf.mxu0
    %v6293 = vadd.f32 %v6270, %v6292
    %6294 = vdwg.mxu0
    %6295 = vmatpush.msra.mxu0 %v5816
    %6296 = vmatpush.msra.mxu0 %v5813
    %6297 = vmatpush.msra.mxu0 %v5810
    %6298 = vmatpush.msra.mxu0 %v5807
    %6299 = vmatpush.msra.mxu0 %v5804
    %6300 = vmatpush.msra.mxu0 %v5801
    %6301 = vmatpush.msra.mxu0 %v5798
    %6302 = vmatpush.msra.mxu0 %v5795
    %6303 = vmatpush.msra.mxu0 %v5792
    %6304 = vmatpush.msra.mxu0 %v5789
    %6305 = vmatpush.msra.mxu0 %v5786
    %6306 = vmatpush.msra.mxu0 %v5783
    %6307 = vmatpush.msra.mxu0 %v5780
    %6308 = vmatpush.msra.mxu0 %v5777
    %6309 = vmatpush.msra.mxu0 %v5774
    %6310 = vmatpush.msra.mxu0 %v5771
    %6311 = vmatmul.f32.gmra.mxu0 %v5670
    %v6312 = vpop.f32.mrf.mxu0
    %v6313 = vadd.f32 %v6290, %v6312
    %6314 = vmatmul.f32.gmra.mxu0 %v5673
    %v6315 = vpop.f32.mrf.mxu0
    %v6316 = vadd.f32 %v6293, %v6315
    %6317 = vdwg.mxu0
    %6318 = vmatpush.msra.mxu0 %v5721
    %6319 = vmatpush.msra.mxu0 %v5718
    %6320 = vmatpush.msra.mxu0 %v5715
    %6321 = vmatpush.msra.mxu0 %v5712
    %6322 = vmatpush.msra.mxu0 %v5709
    %6323 = vmatpush.msra.mxu0 %v5706
    %6324 = vmatpush.msra.mxu0 %v5703
    %6325 = vmatpush.msra.mxu0 %v5700
    %6326 = vmatpush.msra.mxu0 %v5697
    %6327 = vmatpush.msra.mxu0 %v5694
    %6328 = vmatpush.msra.mxu0 %v5691
    %6329 = vmatpush.msra.mxu0 %v5688
    %6330 = vmatpush.msra.mxu0 %v5685
    %6331 = vmatpush.msra.mxu0 %v5682
    %6332 = vmatpush.msra.mxu0 %v5679
    %6333 = vmatpush.msra.mxu0 %v5676
    %6334 = vmatmul.f32.gmra.mxu0 %v5624
    %v6335 = vpop.f32.mrf.mxu0
    %v6336 = vadd.f32 %v6175, %v6335
    %6337 = vmatmul.f32.gmra.mxu0 %v5627
    %v6338 = vpop.f32.mrf.mxu0
    %v6339 = vadd.f32 %v6178, %v6338
    %6340 = vdwg.mxu0
    %6341 = vmatpush.msra.mxu0 %v5769
    %6342 = vmatpush.msra.mxu0 %v5766
    %6343 = vmatpush.msra.mxu0 %v5763
    %6344 = vmatpush.msra.mxu0 %v5760
    %6345 = vmatpush.msra.mxu0 %v5757
    %6346 = vmatpush.msra.mxu0 %v5754
    %6347 = vmatpush.msra.mxu0 %v5751
    %6348 = vmatpush.msra.mxu0 %v5748
    %6349 = vmatpush.msra.mxu0 %v5745
    %6350 = vmatpush.msra.mxu0 %v5742
    %6351 = vmatpush.msra.mxu0 %v5739
    %6352 = vmatpush.msra.mxu0 %v5736
    %6353 = vmatpush.msra.mxu0 %v5733
    %6354 = vmatpush.msra.mxu0 %v5730
    %6355 = vmatpush.msra.mxu0 %v5727
    %6356 = vmatpush.msra.mxu0 %v5724
    %6357 = vmatmul.f32.gmra.mxu0 %v5647
    %v6358 = vpop.f32.mrf.mxu0
    %v6359 = vadd.f32 %v6336, %v6358
    %6360 = vmatmul.f32.gmra.mxu0 %v5650
    %v6361 = vpop.f32.mrf.mxu0
    %v6362 = vadd.f32 %v6339, %v6361
    %6363 = vdwg.mxu0
    %6364 = vmatpush.msra.mxu0 %v5817
    %6365 = vmatpush.msra.mxu0 %v5814
    %6366 = vmatpush.msra.mxu0 %v5811
    %6367 = vmatpush.msra.mxu0 %v5808
    %6368 = vmatpush.msra.mxu0 %v5805
    %6369 = vmatpush.msra.mxu0 %v5802
    %6370 = vmatpush.msra.mxu0 %v5799
    %6371 = vmatpush.msra.mxu0 %v5796
    %6372 = vmatpush.msra.mxu0 %v5793
    %6373 = vmatpush.msra.mxu0 %v5790
    %6374 = vmatpush.msra.mxu0 %v5787
    %6375 = vmatpush.msra.mxu0 %v5784
    %6376 = vmatpush.msra.mxu0 %v5781
    %6377 = vmatpush.msra.mxu0 %v5778
    %6378 = vmatpush.msra.mxu0 %v5775
    %6379 = vmatpush.msra.mxu0 %v5772
    %6380 = vmatmul.f32.gmra.mxu0 %v5670
    %v6381 = vpop.f32.mrf.mxu0
    %v6382 = vadd.f32 %v6359, %v6381
    %6383 = vmatmul.f32.gmra.mxu0 %v5673
    %v6384 = vpop.f32.mrf.mxu0
    %v6385 = vadd.f32 %v6362, %v6384
    %6386 = vdwg.mxu0
    %6387 = vmatpush.msra.mxu0 %v5722
    %6388 = vmatpush.msra.mxu0 %v5719
    %6389 = vmatpush.msra.mxu0 %v5716
    %6390 = vmatpush.msra.mxu0 %v5713
    %6391 = vmatpush.msra.mxu0 %v5710
    %6392 = vmatpush.msra.mxu0 %v5707
    %6393 = vmatpush.msra.mxu0 %v5704
    %6394 = vmatpush.msra.mxu0 %v5701
    %6395 = vmatpush.msra.mxu0 %v5698
    %6396 = vmatpush.msra.mxu0 %v5695
    %6397 = vmatpush.msra.mxu0 %v5692
    %6398 = vmatpush.msra.mxu0 %v5689
    %6399 = vmatpush.msra.mxu0 %v5686
    %6400 = vmatpush.msra.mxu0 %v5683
    %6401 = vmatpush.msra.mxu0 %v5680
    %6402 = vmatpush.msra.mxu0 %v5677
    %6403 = vmatmul.f32.gmra.mxu0 %v5624
    %v6404 = vpop.f32.mrf.mxu0
    %v6405 = vadd.f32 %v6244, %v6404
    %6406 = vmatmul.f32.gmra.mxu0 %v5627
    %v6407 = vpop.f32.mrf.mxu0
    %v6408 = vadd.f32 %v6247, %v6407
    %6409 = vdwg.mxu0
    %6410 = vmatpush.msra.mxu0 %v5770
    %6411 = vmatpush.msra.mxu0 %v5767
    %6412 = vmatpush.msra.mxu0 %v5764
    %6413 = vmatpush.msra.mxu0 %v5761
    %6414 = vmatpush.msra.mxu0 %v5758
    %6415 = vmatpush.msra.mxu0 %v5755
    %6416 = vmatpush.msra.mxu0 %v5752
    %6417 = vmatpush.msra.mxu0 %v5749
    %6418 = vmatpush.msra.mxu0 %v5746
    %6419 = vmatpush.msra.mxu0 %v5743
    %6420 = vmatpush.msra.mxu0 %v5740
    %6421 = vmatpush.msra.mxu0 %v5737
    %6422 = vmatpush.msra.mxu0 %v5734
    %6423 = vmatpush.msra.mxu0 %v5731
    %6424 = vmatpush.msra.mxu0 %v5728
    %6425 = vmatpush.msra.mxu0 %v5725
    %6426 = vmatmul.f32.gmra.mxu0 %v5647
    %v6427 = vpop.f32.mrf.mxu0
    %v6428 = vadd.f32 %v6405, %v6427
    %6429 = vmatmul.f32.gmra.mxu0 %v5650
    %v6430 = vpop.f32.mrf.mxu0
    %v6431 = vadd.f32 %v6408, %v6430
    %6432 = vdwg.mxu0
    %6433 = vmatpush.msra.mxu0 %v5818
    %6434 = vmatpush.msra.mxu0 %v5815
    %6435 = vmatpush.msra.mxu0 %v5812
    %6436 = vmatpush.msra.mxu0 %v5809
    %6437 = vmatpush.msra.mxu0 %v5806
    %6438 = vmatpush.msra.mxu0 %v5803
    %6439 = vmatpush.msra.mxu0 %v5800
    %6440 = vmatpush.msra.mxu0 %v5797
    %6441 = vmatpush.msra.mxu0 %v5794
    %6442 = vmatpush.msra.mxu0 %v5791
    %6443 = vmatpush.msra.mxu0 %v5788
    %6444 = vmatpush.msra.mxu0 %v5785
    %6445 = vmatpush.msra.mxu0 %v5782
    %6446 = vmatpush.msra.mxu0 %v5779
    %6447 = vmatpush.msra.mxu0 %v5776
    %6448 = vmatpush.msra.mxu0 %v5773
    %6449 = vmatmul.f32.gmra.mxu0 %v5670
    %v6450 = vpop.f32.mrf.mxu0
    %v6451 = vadd.f32 %v6428, %v6450
    %6452 = vmatmul.f32.gmra.mxu0 %v5673
    %v6453 = vpop.f32.mrf.mxu0
    %v6454 = vadd.f32 %v6431, %v6453
    %6455 = vdwg.mxu0
    %s6456 = scalar_lea.vmem [#allocation21], 32
    %v6457 = vld [vmem:[%s6456] sm:$0xff]
    %v6458 = vld [vmem:[%s6456 + $0x8] sm:$0xff]
    %v6460 = vsel %vm5599, %v6457, 0
    %v6463 = vsel %vm5599, %v6458, 0
    %6465 = vmatpush.msra.mxu0 0.0
    %6466 = vmatpush.msra.mxu0 0.0
    %6467 = vmatpush.msra.mxu0 0.0
    %6468 = vmatpush.msra.mxu0 0.0
    %6469 = vmatpush.msra.mxu0 0.0
    %6470 = vmatpush.msra.mxu0 0.0
    %6471 = vmatpush.msra.mxu0 0.0
    %6472 = vmatpush.msra.mxu0 0.0
    %6473 = vmatpush.msra.mxu0 0.0
    %6474 = vmatpush.msra.mxu0 0.0
    %6475 = vmatpush.msra.mxu0 0.0
    %6476 = vmatpush.msra.mxu0 %v5594
    %6477 = vmatpush.msra.mxu0 %v5591
    %6478 = vmatpush.msra.mxu0 %v5588
    %6479 = vmatpush.msra.mxu0 %v5585
    %6480 = vmatpush.msra.mxu0 %v5582
    %6481 = vmatmul.f32.gmra.mxu0 %v6460
    %v6482 = vpop.f32.mrf.mxu0
    %v6483 = vadd.f32 0.0, %v6482
    %6484 = vmatmul.f32.gmra.mxu0 %v6463
    %v6485 = vpop.f32.mrf.mxu0
    %v6486 = vadd.f32 0.0, %v6485
    %6487 = vdwg.mxu0
    %6488 = vmatpush.msra.mxu0 0.0
    %6489 = vmatpush.msra.mxu0 0.0
    %6490 = vmatpush.msra.mxu0 0.0
    %6491 = vmatpush.msra.mxu0 0.0
    %6492 = vmatpush.msra.mxu0 0.0
    %6493 = vmatpush.msra.mxu0 0.0
    %6494 = vmatpush.msra.mxu0 0.0
    %6495 = vmatpush.msra.mxu0 0.0
    %6496 = vmatpush.msra.mxu0 0.0
    %6497 = vmatpush.msra.mxu0 0.0
    %6498 = vmatpush.msra.mxu0 0.0
    %6499 = vmatpush.msra.mxu0 %v5595
    %6500 = vmatpush.msra.mxu0 %v5592
    %6501 = vmatpush.msra.mxu0 %v5589
    %6502 = vmatpush.msra.mxu0 %v5586
    %6503 = vmatpush.msra.mxu0 %v5583
    %6504 = vmatmul.f32.gmra.mxu0 %v6460
    %v6505 = vpop.f32.mrf.mxu0
    %v6506 = vadd.f32 0.0, %v6505
    %6507 = vmatmul.f32.gmra.mxu0 %v6463
    %v6508 = vpop.f32.mrf.mxu0
    %v6509 = vadd.f32 0.0, %v6508
    %6510 = vdwg.mxu0
    %6511 = vmatpush.msra.mxu0 0.0
    %6512 = vmatpush.msra.mxu0 0.0
    %6513 = vmatpush.msra.mxu0 0.0
    %6514 = vmatpush.msra.mxu0 0.0
    %6515 = vmatpush.msra.mxu0 0.0
    %6516 = vmatpush.msra.mxu0 0.0
    %6517 = vmatpush.msra.mxu0 0.0
    %6518 = vmatpush.msra.mxu0 0.0
    %6519 = vmatpush.msra.mxu0 0.0
    %6520 = vmatpush.msra.mxu0 0.0
    %6521 = vmatpush.msra.mxu0 0.0
    %6522 = vmatpush.msra.mxu0 %v5596
    %6523 = vmatpush.msra.mxu0 %v5593
    %6524 = vmatpush.msra.mxu0 %v5590
    %6525 = vmatpush.msra.mxu0 %v5587
    %6526 = vmatpush.msra.mxu0 %v5584
    %6527 = vmatmul.f32.gmra.mxu0 %v6460
    %v6528 = vpop.f32.mrf.mxu0
    %v6529 = vadd.f32 0.0, %v6528
    %6530 = vmatmul.f32.gmra.mxu0 %v6463
    %v6531 = vpop.f32.mrf.mxu0
    %v6532 = vadd.f32 0.0, %v6531
    %6533 = vdwg.mxu0
    %s6534 = scalar_lea.vmem [#allocation23], 2304
    %v6535 = vld [vmem:[%s6534] sm:$0xff]
    %v6536 = vld [vmem:[%s6534 + $0x8] sm:$0xff]
    %v6537 = vld [vmem:[%s6534 + $0x10] sm:$0xff]
    %v6538 = vld [vmem:[%s6534 + $0x18] sm:$0xff]
    %v6539 = vld [vmem:[%s6534 + $0x20] sm:$0xff]
    %v6540 = vld [vmem:[%s6534 + $0x28] sm:$0xff]
    %v6541 = vld [vmem:[%s6534 + $0x30] sm:$0xff]
    %v6542 = vld [vmem:[%s6534 + $0x38] sm:$0xff]
    %v6543 = vld [vmem:[%s6534 + $0x40] sm:$0xff]
    %v6544 = vld [vmem:[%s6534 + $0x48] sm:$0xff]
    %v6545 = vld [vmem:[%s6534 + $0x50] sm:$0xff]
    %v6546 = vld [vmem:[%s6534 + $0x58] sm:$0xff]
    %v6547 = vld [vmem:[%s6534 + $0x60] sm:$0xff]
    %v6548 = vld [vmem:[%s6534 + $0x68] sm:$0xff]
    %v6549 = vld [vmem:[%s6534 + $0x70] sm:$0xff]
    %v6550 = vld [vmem:[%s6534 + $0x78] sm:$0xff]
    %v6551 = vld [vmem:[%s6534 + $0x80] sm:$0xff]
    %v6552 = vld [vmem:[%s6534 + $0x88] sm:$0xff]
    %v6553 = vld [vmem:[%s6534 + $0x90] sm:$0xff]
    %v6554 = vld [vmem:[%s6534 + $0x98] sm:$0xff]
    %v6555 = vld [vmem:[%s6534 + $0xa0] sm:$0xff]
    %v6556 = vld [vmem:[%s6534 + $0xa8] sm:$0xff]
    %v6557 = vld [vmem:[%s6534 + $0xb0] sm:$0xff]
    %v6558 = vld [vmem:[%s6534 + $0xb8] sm:$0xff]
    %v6559 = vld [vmem:[%s6534 + $0xc0] sm:$0xff]
    %v6560 = vld [vmem:[%s6534 + $0xc8] sm:$0xff]
    %v6561 = vld [vmem:[%s6534 + $0xd0] sm:$0xff]
    %v6562 = vld [vmem:[%s6534 + $0xd8] sm:$0xff]
    %v6563 = vld [vmem:[%s6534 + $0xe0] sm:$0xff]
    %v6564 = vld [vmem:[%s6534 + $0xe8] sm:$0xff]
    %v6565 = vld [vmem:[%s6534 + $0xf0] sm:$0xff]
    %v6566 = vld [vmem:[%s6534 + $0xf8] sm:$0xff]
    %v6567 = vld [vmem:[%s6534 + $0x100] sm:$0xff]
    %v6568 = vld [vmem:[%s6534 + $0x108] sm:$0xff]
    %v6569 = vld [vmem:[%s6534 + $0x110] sm:$0xff]
    %v6570 = vld [vmem:[%s6534 + $0x118] sm:$0xff]
    %v6571 = vld [vmem:[%s6534 + $0x120] sm:$0xff]
    %v6572 = vld [vmem:[%s6534 + $0x128] sm:$0xff]
    %v6573 = vld [vmem:[%s6534 + $0x130] sm:$0xff]
    %v6574 = vld [vmem:[%s6534 + $0x138] sm:$0xff]
    %v6575 = vld [vmem:[%s6534 + $0x140] sm:$0xff]
    %v6576 = vld [vmem:[%s6534 + $0x148] sm:$0xff]
    %v6577 = vld [vmem:[%s6534 + $0x150] sm:$0xff]
    %v6578 = vld [vmem:[%s6534 + $0x158] sm:$0xff]
    %v6579 = vld [vmem:[%s6534 + $0x160] sm:$0xff]
    %v6580 = vld [vmem:[%s6534 + $0x168] sm:$0xff]
    %v6581 = vld [vmem:[%s6534 + $0x170] sm:$0xff]
    %v6582 = vld [vmem:[%s6534 + $0x178] sm:$0xff]
    %v6583 = vld [vmem:[%s6534 + $0x180] sm:$0xff]
    %v6584 = vld [vmem:[%s6534 + $0x188] sm:$0xff]
    %v6585 = vld [vmem:[%s6534 + $0x190] sm:$0xff]
    %v6586 = vld [vmem:[%s6534 + $0x198] sm:$0xff]
    %v6587 = vld [vmem:[%s6534 + $0x1a0] sm:$0xff]
    %v6588 = vld [vmem:[%s6534 + $0x1a8] sm:$0xff]
    %v6589 = vld [vmem:[%s6534 + $0x1b0] sm:$0xff]
    %v6590 = vld [vmem:[%s6534 + $0x1b8] sm:$0xff]
    %v6591 = vld [vmem:[%s6534 + $0x1c0] sm:$0xff]
    %v6592 = vld [vmem:[%s6534 + $0x1c8] sm:$0xff]
    %v6593 = vld [vmem:[%s6534 + $0x1d0] sm:$0xff]
    %v6594 = vld [vmem:[%s6534 + $0x1d8] sm:$0xff]
    %v6595 = vld [vmem:[%s6534 + $0x1e0] sm:$0xff]
    %v6596 = vld [vmem:[%s6534 + $0x1e8] sm:$0xff]
    %v6597 = vld [vmem:[%s6534 + $0x1f0] sm:$0xff]
    %v6598 = vld [vmem:[%s6534 + $0x1f8] sm:$0xff]
    %v6599 = vld [vmem:[%s6534 + $0x200] sm:$0xff]
    %v6600 = vld [vmem:[%s6534 + $0x208] sm:$0xff]
    %v6601 = vld [vmem:[%s6534 + $0x210] sm:$0xff]
    %v6602 = vld [vmem:[%s6534 + $0x218] sm:$0xff]
    %v6603 = vld [vmem:[%s6534 + $0x220] sm:$0xff]
    %v6604 = vld [vmem:[%s6534 + $0x228] sm:$0xff]
    %v6605 = vld [vmem:[%s6534 + $0x230] sm:$0xff]
    %v6606 = vld [vmem:[%s6534 + $0x238] sm:$0xff]
    %v6607 = vld [vmem:[%s6534 + $0x240] sm:$0xff]
    %v6608 = vld [vmem:[%s6534 + $0x248] sm:$0xff]
    %v6609 = vld [vmem:[%s6534 + $0x250] sm:$0xff]
    %v6610 = vld [vmem:[%s6534 + $0x258] sm:$0xff]
    %v6611 = vld [vmem:[%s6534 + $0x260] sm:$0xff]
    %v6612 = vld [vmem:[%s6534 + $0x268] sm:$0xff]
    %v6613 = vld [vmem:[%s6534 + $0x270] sm:$0xff]
    %v6614 = vld [vmem:[%s6534 + $0x278] sm:$0xff]
    %v6615 = vld [vmem:[%s6534 + $0x280] sm:$0xff]
    %v6616 = vld [vmem:[%s6534 + $0x288] sm:$0xff]
    %v6617 = vld [vmem:[%s6534 + $0x290] sm:$0xff]
    %v6618 = vld [vmem:[%s6534 + $0x298] sm:$0xff]
    %v6619 = vld [vmem:[%s6534 + $0x2a0] sm:$0xff]
    %v6620 = vld [vmem:[%s6534 + $0x2a8] sm:$0xff]
    %v6621 = vld [vmem:[%s6534 + $0x2b0] sm:$0xff]
    %v6622 = vld [vmem:[%s6534 + $0x2b8] sm:$0xff]
    %v6623 = vld [vmem:[%s6534 + $0x2c0] sm:$0xff]
    %v6624 = vld [vmem:[%s6534 + $0x2c8] sm:$0xff]
    %v6625 = vld [vmem:[%s6534 + $0x2d0] sm:$0xff]
    %v6626 = vld [vmem:[%s6534 + $0x2d8] sm:$0xff]
    %v6627 = vld [vmem:[%s6534 + $0x2e0] sm:$0xff]
    %v6628 = vld [vmem:[%s6534 + $0x2e8] sm:$0xff]
    %v6629 = vld [vmem:[%s6534 + $0x2f0] sm:$0xff]
    %v6630 = vld [vmem:[%s6534 + $0x2f8] sm:$0xff]
    %v6631 = vld [vmem:[%s6534 + $0x300] sm:$0xff]
    %v6632 = vld [vmem:[%s6534 + $0x308] sm:$0xff]
    %v6633 = vld [vmem:[%s6534 + $0x310] sm:$0xff]
    %v6634 = vld [vmem:[%s6534 + $0x318] sm:$0xff]
    %v6635 = vld [vmem:[%s6534 + $0x320] sm:$0xff]
    %v6636 = vld [vmem:[%s6534 + $0x328] sm:$0xff]
    %v6637 = vld [vmem:[%s6534 + $0x330] sm:$0xff]
    %v6638 = vld [vmem:[%s6534 + $0x338] sm:$0xff]
    %v6639 = vld [vmem:[%s6534 + $0x340] sm:$0xff]
    %v6640 = vld [vmem:[%s6534 + $0x348] sm:$0xff]
    %v6641 = vld [vmem:[%s6534 + $0x350] sm:$0xff]
    %v6642 = vld [vmem:[%s6534 + $0x358] sm:$0xff]
    %v6643 = vld [vmem:[%s6534 + $0x360] sm:$0xff]
    %v6644 = vld [vmem:[%s6534 + $0x368] sm:$0xff]
    %v6645 = vld [vmem:[%s6534 + $0x370] sm:$0xff]
    %v6646 = vld [vmem:[%s6534 + $0x378] sm:$0xff]
    %v6647 = vld [vmem:[%s6534 + $0x380] sm:$0xff]
    %v6648 = vld [vmem:[%s6534 + $0x388] sm:$0xff]
    %v6649 = vld [vmem:[%s6534 + $0x390] sm:$0xff]
    %v6650 = vld [vmem:[%s6534 + $0x398] sm:$0xff]
    %v6651 = vld [vmem:[%s6534 + $0x3a0] sm:$0xff]
    %v6652 = vld [vmem:[%s6534 + $0x3a8] sm:$0xff]
    %v6653 = vld [vmem:[%s6534 + $0x3b0] sm:$0xff]
    %v6654 = vld [vmem:[%s6534 + $0x3b8] sm:$0xff]
    %v6655 = vld [vmem:[%s6534 + $0x3c0] sm:$0xff]
    %v6656 = vld [vmem:[%s6534 + $0x3c8] sm:$0xff]
    %v6657 = vld [vmem:[%s6534 + $0x3d0] sm:$0xff]
    %v6658 = vld [vmem:[%s6534 + $0x3d8] sm:$0xff]
    %v6659 = vld [vmem:[%s6534 + $0x3e0] sm:$0xff]
    %v6660 = vld [vmem:[%s6534 + $0x3e8] sm:$0xff]
    %v6661 = vld [vmem:[%s6534 + $0x3f0] sm:$0xff]
    %v6662 = vld [vmem:[%s6534 + $0x3f8] sm:$0xff]
    %v6663 = vld [vmem:[%s6534 + $0x400] sm:$0xff]
    %v6664 = vld [vmem:[%s6534 + $0x408] sm:$0xff]
    %v6665 = vld [vmem:[%s6534 + $0x410] sm:$0xff]
    %v6666 = vld [vmem:[%s6534 + $0x418] sm:$0xff]
    %v6667 = vld [vmem:[%s6534 + $0x420] sm:$0xff]
    %v6668 = vld [vmem:[%s6534 + $0x428] sm:$0xff]
    %v6669 = vld [vmem:[%s6534 + $0x430] sm:$0xff]
    %v6670 = vld [vmem:[%s6534 + $0x438] sm:$0xff]
    %v6671 = vld [vmem:[%s6534 + $0x440] sm:$0xff]
    %v6672 = vld [vmem:[%s6534 + $0x448] sm:$0xff]
    %v6673 = vld [vmem:[%s6534 + $0x450] sm:$0xff]
    %v6674 = vld [vmem:[%s6534 + $0x458] sm:$0xff]
    %v6675 = vld [vmem:[%s6534 + $0x460] sm:$0xff]
    %v6676 = vld [vmem:[%s6534 + $0x468] sm:$0xff]
    %v6677 = vld [vmem:[%s6534 + $0x470] sm:$0xff]
    %v6678 = vld [vmem:[%s6534 + $0x478] sm:$0xff]
    %6679 = vmatpush.msra.mxu0 %v6580
    %6680 = vmatpush.msra.mxu0 %v6577
    %6681 = vmatpush.msra.mxu0 %v6574
    %6682 = vmatpush.msra.mxu0 %v6571
    %6683 = vmatpush.msra.mxu0 %v6568
    %6684 = vmatpush.msra.mxu0 %v6565
    %6685 = vmatpush.msra.mxu0 %v6562
    %6686 = vmatpush.msra.mxu0 %v6559
    %6687 = vmatpush.msra.mxu0 %v6556
    %6688 = vmatpush.msra.mxu0 %v6553
    %6689 = vmatpush.msra.mxu0 %v6550
    %6690 = vmatpush.msra.mxu0 %v6547
    %6691 = vmatpush.msra.mxu0 %v6544
    %6692 = vmatpush.msra.mxu0 %v6541
    %6693 = vmatpush.msra.mxu0 %v6538
    %6694 = vmatpush.msra.mxu0 %v6535
    %6695 = vmatmul.f32.gmra.mxu0 %v6483
    %v6696 = vpop.f32.mrf.mxu0
    %v6697 = vadd.f32 0.0, %v6696
    %6698 = vmatmul.f32.gmra.mxu0 %v6486
    %v6699 = vpop.f32.mrf.mxu0
    %v6700 = vadd.f32 0.0, %v6699
    %6701 = vdwg.mxu0
    %6702 = vmatpush.msra.mxu0 %v6628
    %6703 = vmatpush.msra.mxu0 %v6625
    %6704 = vmatpush.msra.mxu0 %v6622
    %6705 = vmatpush.msra.mxu0 %v6619
    %6706 = vmatpush.msra.mxu0 %v6616
    %6707 = vmatpush.msra.mxu0 %v6613
    %6708 = vmatpush.msra.mxu0 %v6610
    %6709 = vmatpush.msra.mxu0 %v6607
    %6710 = vmatpush.msra.mxu0 %v6604
    %6711 = vmatpush.msra.mxu0 %v6601
    %6712 = vmatpush.msra.mxu0 %v6598
    %6713 = vmatpush.msra.mxu0 %v6595
    %6714 = vmatpush.msra.mxu0 %v6592
    %6715 = vmatpush.msra.mxu0 %v6589
    %6716 = vmatpush.msra.mxu0 %v6586
    %6717 = vmatpush.msra.mxu0 %v6583
    %6718 = vmatmul.f32.gmra.mxu0 %v6506
    %v6719 = vpop.f32.mrf.mxu0
    %v6720 = vadd.f32 %v6697, %v6719
    %6721 = vmatmul.f32.gmra.mxu0 %v6509
    %v6722 = vpop.f32.mrf.mxu0
    %v6723 = vadd.f32 %v6700, %v6722
    %6724 = vdwg.mxu0
    %6725 = vmatpush.msra.mxu0 %v6676
    %6726 = vmatpush.msra.mxu0 %v6673
    %6727 = vmatpush.msra.mxu0 %v6670
    %6728 = vmatpush.msra.mxu0 %v6667
    %6729 = vmatpush.msra.mxu0 %v6664
    %6730 = vmatpush.msra.mxu0 %v6661
    %6731 = vmatpush.msra.mxu0 %v6658
    %6732 = vmatpush.msra.mxu0 %v6655
    %6733 = vmatpush.msra.mxu0 %v6652
    %6734 = vmatpush.msra.mxu0 %v6649
    %6735 = vmatpush.msra.mxu0 %v6646
    %6736 = vmatpush.msra.mxu0 %v6643
    %6737 = vmatpush.msra.mxu0 %v6640
    %6738 = vmatpush.msra.mxu0 %v6637
    %6739 = vmatpush.msra.mxu0 %v6634
    %6740 = vmatpush.msra.mxu0 %v6631
    %6741 = vmatmul.f32.gmra.mxu0 %v6529
    %v6742 = vpop.f32.mrf.mxu0
    %v6743 = vadd.f32 %v6720, %v6742
    %6744 = vmatmul.f32.gmra.mxu0 %v6532
    %v6745 = vpop.f32.mrf.mxu0
    %v6746 = vadd.f32 %v6723, %v6745
    %6747 = vdwg.mxu0
    %6748 = vmatpush.msra.mxu0 %v6581
    %6749 = vmatpush.msra.mxu0 %v6578
    %6750 = vmatpush.msra.mxu0 %v6575
    %6751 = vmatpush.msra.mxu0 %v6572
    %6752 = vmatpush.msra.mxu0 %v6569
    %6753 = vmatpush.msra.mxu0 %v6566
    %6754 = vmatpush.msra.mxu0 %v6563
    %6755 = vmatpush.msra.mxu0 %v6560
    %6756 = vmatpush.msra.mxu0 %v6557
    %6757 = vmatpush.msra.mxu0 %v6554
    %6758 = vmatpush.msra.mxu0 %v6551
    %6759 = vmatpush.msra.mxu0 %v6548
    %6760 = vmatpush.msra.mxu0 %v6545
    %6761 = vmatpush.msra.mxu0 %v6542
    %6762 = vmatpush.msra.mxu0 %v6539
    %6763 = vmatpush.msra.mxu0 %v6536
    %6764 = vmatmul.f32.gmra.mxu0 %v6483
    %v6765 = vpop.f32.mrf.mxu0
    %v6766 = vadd.f32 0.0, %v6765
    %6767 = vmatmul.f32.gmra.mxu0 %v6486
    %v6768 = vpop.f32.mrf.mxu0
    %v6769 = vadd.f32 0.0, %v6768
    %6770 = vdwg.mxu0
    %6771 = vmatpush.msra.mxu0 %v6629
    %6772 = vmatpush.msra.mxu0 %v6626
    %6773 = vmatpush.msra.mxu0 %v6623
    %6774 = vmatpush.msra.mxu0 %v6620
    %6775 = vmatpush.msra.mxu0 %v6617
    %6776 = vmatpush.msra.mxu0 %v6614
    %6777 = vmatpush.msra.mxu0 %v6611
    %6778 = vmatpush.msra.mxu0 %v6608
    %6779 = vmatpush.msra.mxu0 %v6605
    %6780 = vmatpush.msra.mxu0 %v6602
    %6781 = vmatpush.msra.mxu0 %v6599
    %6782 = vmatpush.msra.mxu0 %v6596
    %6783 = vmatpush.msra.mxu0 %v6593
    %6784 = vmatpush.msra.mxu0 %v6590
    %6785 = vmatpush.msra.mxu0 %v6587
    %6786 = vmatpush.msra.mxu0 %v6584
    %6787 = vmatmul.f32.gmra.mxu0 %v6506
    %v6788 = vpop.f32.mrf.mxu0
    %v6789 = vadd.f32 %v6766, %v6788
    %6790 = vmatmul.f32.gmra.mxu0 %v6509
    %v6791 = vpop.f32.mrf.mxu0
    %v6792 = vadd.f32 %v6769, %v6791
    %6793 = vdwg.mxu0
    %6794 = vmatpush.msra.mxu0 %v6677
    %6795 = vmatpush.msra.mxu0 %v6674
    %6796 = vmatpush.msra.mxu0 %v6671
    %6797 = vmatpush.msra.mxu0 %v6668
    %6798 = vmatpush.msra.mxu0 %v6665
    %6799 = vmatpush.msra.mxu0 %v6662
    %6800 = vmatpush.msra.mxu0 %v6659
    %6801 = vmatpush.msra.mxu0 %v6656
    %6802 = vmatpush.msra.mxu0 %v6653
    %6803 = vmatpush.msra.mxu0 %v6650
    %6804 = vmatpush.msra.mxu0 %v6647
    %6805 = vmatpush.msra.mxu0 %v6644
    %6806 = vmatpush.msra.mxu0 %v6641
    %6807 = vmatpush.msra.mxu0 %v6638
    %6808 = vmatpush.msra.mxu0 %v6635
    %6809 = vmatpush.msra.mxu0 %v6632
    %6810 = vmatmul.f32.gmra.mxu0 %v6529
    %v6811 = vpop.f32.mrf.mxu0
    %v6812 = vadd.f32 %v6789, %v6811
    %6813 = vmatmul.f32.gmra.mxu0 %v6532
    %v6814 = vpop.f32.mrf.mxu0
    %v6815 = vadd.f32 %v6792, %v6814
    %6816 = vdwg.mxu0
    %6817 = vmatpush.msra.mxu0 %v6582
    %6818 = vmatpush.msra.mxu0 %v6579
    %6819 = vmatpush.msra.mxu0 %v6576
    %6820 = vmatpush.msra.mxu0 %v6573
    %6821 = vmatpush.msra.mxu0 %v6570
    %6822 = vmatpush.msra.mxu0 %v6567
    %6823 = vmatpush.msra.mxu0 %v6564
    %6824 = vmatpush.msra.mxu0 %v6561
    %6825 = vmatpush.msra.mxu0 %v6558
    %6826 = vmatpush.msra.mxu0 %v6555
    %6827 = vmatpush.msra.mxu0 %v6552
    %6828 = vmatpush.msra.mxu0 %v6549
    %6829 = vmatpush.msra.mxu0 %v6546
    %6830 = vmatpush.msra.mxu0 %v6543
    %6831 = vmatpush.msra.mxu0 %v6540
    %6832 = vmatpush.msra.mxu0 %v6537
    %6833 = vmatmul.f32.gmra.mxu0 %v6483
    %v6834 = vpop.f32.mrf.mxu0
    %v6835 = vadd.f32 0.0, %v6834
    %6836 = vmatmul.f32.gmra.mxu0 %v6486
    %v6837 = vpop.f32.mrf.mxu0
    %v6838 = vadd.f32 0.0, %v6837
    %6839 = vdwg.mxu0
    %6840 = vmatpush.msra.mxu0 %v6630
    %6841 = vmatpush.msra.mxu0 %v6627
    %6842 = vmatpush.msra.mxu0 %v6624
    %6843 = vmatpush.msra.mxu0 %v6621
    %6844 = vmatpush.msra.mxu0 %v6618
    %6845 = vmatpush.msra.mxu0 %v6615
    %6846 = vmatpush.msra.mxu0 %v6612
    %6847 = vmatpush.msra.mxu0 %v6609
    %6848 = vmatpush.msra.mxu0 %v6606
    %6849 = vmatpush.msra.mxu0 %v6603
    %6850 = vmatpush.msra.mxu0 %v6600
    %6851 = vmatpush.msra.mxu0 %v6597
    %6852 = vmatpush.msra.mxu0 %v6594
    %6853 = vmatpush.msra.mxu0 %v6591
    %6854 = vmatpush.msra.mxu0 %v6588
    %6855 = vmatpush.msra.mxu0 %v6585
    %6856 = vmatmul.f32.gmra.mxu0 %v6506
    %v6857 = vpop.f32.mrf.mxu0
    %v6858 = vadd.f32 %v6835, %v6857
    %6859 = vmatmul.f32.gmra.mxu0 %v6509
    %v6860 = vpop.f32.mrf.mxu0
    %v6861 = vadd.f32 %v6838, %v6860
    %6862 = vdwg.mxu0
    %6863 = vmatpush.msra.mxu0 %v6678
    %6864 = vmatpush.msra.mxu0 %v6675
    %6865 = vmatpush.msra.mxu0 %v6672
    %6866 = vmatpush.msra.mxu0 %v6669
    %6867 = vmatpush.msra.mxu0 %v6666
    %6868 = vmatpush.msra.mxu0 %v6663
    %6869 = vmatpush.msra.mxu0 %v6660
    %6870 = vmatpush.msra.mxu0 %v6657
    %6871 = vmatpush.msra.mxu0 %v6654
    %6872 = vmatpush.msra.mxu0 %v6651
    %6873 = vmatpush.msra.mxu0 %v6648
    %6874 = vmatpush.msra.mxu0 %v6645
    %6875 = vmatpush.msra.mxu0 %v6642
    %6876 = vmatpush.msra.mxu0 %v6639
    %6877 = vmatpush.msra.mxu0 %v6636
    %6878 = vmatpush.msra.mxu0 %v6633
    %6879 = vmatmul.f32.gmra.mxu0 %v6529
    %v6880 = vpop.f32.mrf.mxu0
    %v6881 = vadd.f32 %v6858, %v6880
    %6882 = vmatmul.f32.gmra.mxu0 %v6532
    %v6883 = vpop.f32.mrf.mxu0
    %v6884 = vadd.f32 %v6861, %v6883
    %6885 = vdwg.mxu0
    %v6886 = vadd.f32 %v6313, %v6743
    %v6887 = vadd.f32 %v6382, %v6812
    %v6888 = vadd.f32 %v6451, %v6881
    %v6889 = vadd.f32 %v6316, %v6746
    %v6890 = vadd.f32 %v6385, %v6815
    %v6891 = vadd.f32 %v6454, %v6884
    %s6892 = scalar_lea.vmem [#allocation21], 48
    %v6893 = vld [vmem:[%s6892] sm:$0xff]
    %v6894 = vld [vmem:[%s6892 + $0x8] sm:$0xff]
    %v6896 = vsel %vm5599, %v6893, 0
    %v6899 = vsel %vm5599, %v6894, 0
    %6901 = vmatpush.msra.mxu0 0.0
    %6902 = vmatpush.msra.mxu0 0.0
    %6903 = vmatpush.msra.mxu0 0.0
    %6904 = vmatpush.msra.mxu0 0.0
    %6905 = vmatpush.msra.mxu0 0.0
    %6906 = vmatpush.msra.mxu0 0.0
    %6907 = vmatpush.msra.mxu0 0.0
    %6908 = vmatpush.msra.mxu0 0.0
    %6909 = vmatpush.msra.mxu0 0.0
    %6910 = vmatpush.msra.mxu0 0.0
    %6911 = vmatpush.msra.mxu0 0.0
    %6912 = vmatpush.msra.mxu0 %v5594
    %6913 = vmatpush.msra.mxu0 %v5591
    %6914 = vmatpush.msra.mxu0 %v5588
    %6915 = vmatpush.msra.mxu0 %v5585
    %6916 = vmatpush.msra.mxu0 %v5582
    %6917 = vmatmul.f32.gmra.mxu0 %v6896
    %v6918 = vpop.f32.mrf.mxu0
    %v6919 = vadd.f32 0.0, %v6918
    %6920 = vmatmul.f32.gmra.mxu0 %v6899
    %v6921 = vpop.f32.mrf.mxu0
    %v6922 = vadd.f32 0.0, %v6921
    %6923 = vdwg.mxu0
    %6924 = vmatpush.msra.mxu0 0.0
    %6925 = vmatpush.msra.mxu0 0.0
    %6926 = vmatpush.msra.mxu0 0.0
    %6927 = vmatpush.msra.mxu0 0.0
    %6928 = vmatpush.msra.mxu0 0.0
    %6929 = vmatpush.msra.mxu0 0.0
    %6930 = vmatpush.msra.mxu0 0.0
    %6931 = vmatpush.msra.mxu0 0.0
    %6932 = vmatpush.msra.mxu0 0.0
    %6933 = vmatpush.msra.mxu0 0.0
    %6934 = vmatpush.msra.mxu0 0.0
    %6935 = vmatpush.msra.mxu0 %v5595
    %6936 = vmatpush.msra.mxu0 %v5592
    %6937 = vmatpush.msra.mxu0 %v5589
    %6938 = vmatpush.msra.mxu0 %v5586
    %6939 = vmatpush.msra.mxu0 %v5583
    %6940 = vmatmul.f32.gmra.mxu0 %v6896
    %v6941 = vpop.f32.mrf.mxu0
    %v6942 = vadd.f32 0.0, %v6941
    %6943 = vmatmul.f32.gmra.mxu0 %v6899
    %v6944 = vpop.f32.mrf.mxu0
    %v6945 = vadd.f32 0.0, %v6944
    %6946 = vdwg.mxu0
    %6947 = vmatpush.msra.mxu0 0.0
    %6948 = vmatpush.msra.mxu0 0.0
    %6949 = vmatpush.msra.mxu0 0.0
    %6950 = vmatpush.msra.mxu0 0.0
    %6951 = vmatpush.msra.mxu0 0.0
    %6952 = vmatpush.msra.mxu0 0.0
    %6953 = vmatpush.msra.mxu0 0.0
    %6954 = vmatpush.msra.mxu0 0.0
    %6955 = vmatpush.msra.mxu0 0.0
    %6956 = vmatpush.msra.mxu0 0.0
    %6957 = vmatpush.msra.mxu0 0.0
    %6958 = vmatpush.msra.mxu0 %v5596
    %6959 = vmatpush.msra.mxu0 %v5593
    %6960 = vmatpush.msra.mxu0 %v5590
    %6961 = vmatpush.msra.mxu0 %v5587
    %6962 = vmatpush.msra.mxu0 %v5584
    %6963 = vmatmul.f32.gmra.mxu0 %v6896
    %v6964 = vpop.f32.mrf.mxu0
    %v6965 = vadd.f32 0.0, %v6964
    %6966 = vmatmul.f32.gmra.mxu0 %v6899
    %v6967 = vpop.f32.mrf.mxu0
    %v6968 = vadd.f32 0.0, %v6967
    %6969 = vdwg.mxu0
    %s6970 = scalar_lea.vmem [#allocation23], 3456
    %v6971 = vld [vmem:[%s6970] sm:$0xff]
    %v6972 = vld [vmem:[%s6970 + $0x8] sm:$0xff]
    %v6973 = vld [vmem:[%s6970 + $0x10] sm:$0xff]
    %v6974 = vld [vmem:[%s6970 + $0x18] sm:$0xff]
    %v6975 = vld [vmem:[%s6970 + $0x20] sm:$0xff]
    %v6976 = vld [vmem:[%s6970 + $0x28] sm:$0xff]
    %v6977 = vld [vmem:[%s6970 + $0x30] sm:$0xff]
    %v6978 = vld [vmem:[%s6970 + $0x38] sm:$0xff]
    %v6979 = vld [vmem:[%s6970 + $0x40] sm:$0xff]
    %v6980 = vld [vmem:[%s6970 + $0x48] sm:$0xff]
    %v6981 = vld [vmem:[%s6970 + $0x50] sm:$0xff]
    %v6982 = vld [vmem:[%s6970 + $0x58] sm:$0xff]
    %v6983 = vld [vmem:[%s6970 + $0x60] sm:$0xff]
    %v6984 = vld [vmem:[%s6970 + $0x68] sm:$0xff]
    %v6985 = vld [vmem:[%s6970 + $0x70] sm:$0xff]
    %v6986 = vld [vmem:[%s6970 + $0x78] sm:$0xff]
    %v6987 = vld [vmem:[%s6970 + $0x80] sm:$0xff]
    %v6988 = vld [vmem:[%s6970 + $0x88] sm:$0xff]
    %v6989 = vld [vmem:[%s6970 + $0x90] sm:$0xff]
    %v6990 = vld [vmem:[%s6970 + $0x98] sm:$0xff]
    %v6991 = vld [vmem:[%s6970 + $0xa0] sm:$0xff]
    %v6992 = vld [vmem:[%s6970 + $0xa8] sm:$0xff]
    %v6993 = vld [vmem:[%s6970 + $0xb0] sm:$0xff]
    %v6994 = vld [vmem:[%s6970 + $0xb8] sm:$0xff]
    %v6995 = vld [vmem:[%s6970 + $0xc0] sm:$0xff]
    %v6996 = vld [vmem:[%s6970 + $0xc8] sm:$0xff]
    %v6997 = vld [vmem:[%s6970 + $0xd0] sm:$0xff]
    %v6998 = vld [vmem:[%s6970 + $0xd8] sm:$0xff]
    %v6999 = vld [vmem:[%s6970 + $0xe0] sm:$0xff]
    %v7000 = vld [vmem:[%s6970 + $0xe8] sm:$0xff]
    %v7001 = vld [vmem:[%s6970 + $0xf0] sm:$0xff]
    %v7002 = vld [vmem:[%s6970 + $0xf8] sm:$0xff]
    %v7003 = vld [vmem:[%s6970 + $0x100] sm:$0xff]
    %v7004 = vld [vmem:[%s6970 + $0x108] sm:$0xff]
    %v7005 = vld [vmem:[%s6970 + $0x110] sm:$0xff]
    %v7006 = vld [vmem:[%s6970 + $0x118] sm:$0xff]
    %v7007 = vld [vmem:[%s6970 + $0x120] sm:$0xff]
    %v7008 = vld [vmem:[%s6970 + $0x128] sm:$0xff]
    %v7009 = vld [vmem:[%s6970 + $0x130] sm:$0xff]
    %v7010 = vld [vmem:[%s6970 + $0x138] sm:$0xff]
    %v7011 = vld [vmem:[%s6970 + $0x140] sm:$0xff]
    %v7012 = vld [vmem:[%s6970 + $0x148] sm:$0xff]
    %v7013 = vld [vmem:[%s6970 + $0x150] sm:$0xff]
    %v7014 = vld [vmem:[%s6970 + $0x158] sm:$0xff]
    %v7015 = vld [vmem:[%s6970 + $0x160] sm:$0xff]
    %v7016 = vld [vmem:[%s6970 + $0x168] sm:$0xff]
    %v7017 = vld [vmem:[%s6970 + $0x170] sm:$0xff]
    %v7018 = vld [vmem:[%s6970 + $0x178] sm:$0xff]
    %v7019 = vld [vmem:[%s6970 + $0x180] sm:$0xff]
    %v7020 = vld [vmem:[%s6970 + $0x188] sm:$0xff]
    %v7021 = vld [vmem:[%s6970 + $0x190] sm:$0xff]
    %v7022 = vld [vmem:[%s6970 + $0x198] sm:$0xff]
    %v7023 = vld [vmem:[%s6970 + $0x1a0] sm:$0xff]
    %v7024 = vld [vmem:[%s6970 + $0x1a8] sm:$0xff]
    %v7025 = vld [vmem:[%s6970 + $0x1b0] sm:$0xff]
    %v7026 = vld [vmem:[%s6970 + $0x1b8] sm:$0xff]
    %v7027 = vld [vmem:[%s6970 + $0x1c0] sm:$0xff]
    %v7028 = vld [vmem:[%s6970 + $0x1c8] sm:$0xff]
    %v7029 = vld [vmem:[%s6970 + $0x1d0] sm:$0xff]
    %v7030 = vld [vmem:[%s6970 + $0x1d8] sm:$0xff]
    %v7031 = vld [vmem:[%s6970 + $0x1e0] sm:$0xff]
    %v7032 = vld [vmem:[%s6970 + $0x1e8] sm:$0xff]
    %v7033 = vld [vmem:[%s6970 + $0x1f0] sm:$0xff]
    %v7034 = vld [vmem:[%s6970 + $0x1f8] sm:$0xff]
    %v7035 = vld [vmem:[%s6970 + $0x200] sm:$0xff]
    %v7036 = vld [vmem:[%s6970 + $0x208] sm:$0xff]
    %v7037 = vld [vmem:[%s6970 + $0x210] sm:$0xff]
    %v7038 = vld [vmem:[%s6970 + $0x218] sm:$0xff]
    %v7039 = vld [vmem:[%s6970 + $0x220] sm:$0xff]
    %v7040 = vld [vmem:[%s6970 + $0x228] sm:$0xff]
    %v7041 = vld [vmem:[%s6970 + $0x230] sm:$0xff]
    %v7042 = vld [vmem:[%s6970 + $0x238] sm:$0xff]
    %v7043 = vld [vmem:[%s6970 + $0x240] sm:$0xff]
    %v7044 = vld [vmem:[%s6970 + $0x248] sm:$0xff]
    %v7045 = vld [vmem:[%s6970 + $0x250] sm:$0xff]
    %v7046 = vld [vmem:[%s6970 + $0x258] sm:$0xff]
    %v7047 = vld [vmem:[%s6970 + $0x260] sm:$0xff]
    %v7048 = vld [vmem:[%s6970 + $0x268] sm:$0xff]
    %v7049 = vld [vmem:[%s6970 + $0x270] sm:$0xff]
    %v7050 = vld [vmem:[%s6970 + $0x278] sm:$0xff]
    %v7051 = vld [vmem:[%s6970 + $0x280] sm:$0xff]
    %v7052 = vld [vmem:[%s6970 + $0x288] sm:$0xff]
    %v7053 = vld [vmem:[%s6970 + $0x290] sm:$0xff]
    %v7054 = vld [vmem:[%s6970 + $0x298] sm:$0xff]
    %v7055 = vld [vmem:[%s6970 + $0x2a0] sm:$0xff]
    %v7056 = vld [vmem:[%s6970 + $0x2a8] sm:$0xff]
    %v7057 = vld [vmem:[%s6970 + $0x2b0] sm:$0xff]
    %v7058 = vld [vmem:[%s6970 + $0x2b8] sm:$0xff]
    %v7059 = vld [vmem:[%s6970 + $0x2c0] sm:$0xff]
    %v7060 = vld [vmem:[%s6970 + $0x2c8] sm:$0xff]
    %v7061 = vld [vmem:[%s6970 + $0x2d0] sm:$0xff]
    %v7062 = vld [vmem:[%s6970 + $0x2d8] sm:$0xff]
    %v7063 = vld [vmem:[%s6970 + $0x2e0] sm:$0xff]
    %v7064 = vld [vmem:[%s6970 + $0x2e8] sm:$0xff]
    %v7065 = vld [vmem:[%s6970 + $0x2f0] sm:$0xff]
    %v7066 = vld [vmem:[%s6970 + $0x2f8] sm:$0xff]
    %v7067 = vld [vmem:[%s6970 + $0x300] sm:$0xff]
    %v7068 = vld [vmem:[%s6970 + $0x308] sm:$0xff]
    %v7069 = vld [vmem:[%s6970 + $0x310] sm:$0xff]
    %v7070 = vld [vmem:[%s6970 + $0x318] sm:$0xff]
    %v7071 = vld [vmem:[%s6970 + $0x320] sm:$0xff]
    %v7072 = vld [vmem:[%s6970 + $0x328] sm:$0xff]
    %v7073 = vld [vmem:[%s6970 + $0x330] sm:$0xff]
    %v7074 = vld [vmem:[%s6970 + $0x338] sm:$0xff]
    %v7075 = vld [vmem:[%s6970 + $0x340] sm:$0xff]
    %v7076 = vld [vmem:[%s6970 + $0x348] sm:$0xff]
    %v7077 = vld [vmem:[%s6970 + $0x350] sm:$0xff]
    %v7078 = vld [vmem:[%s6970 + $0x358] sm:$0xff]
    %v7079 = vld [vmem:[%s6970 + $0x360] sm:$0xff]
    %v7080 = vld [vmem:[%s6970 + $0x368] sm:$0xff]
    %v7081 = vld [vmem:[%s6970 + $0x370] sm:$0xff]
    %v7082 = vld [vmem:[%s6970 + $0x378] sm:$0xff]
    %v7083 = vld [vmem:[%s6970 + $0x380] sm:$0xff]
    %v7084 = vld [vmem:[%s6970 + $0x388] sm:$0xff]
    %v7085 = vld [vmem:[%s6970 + $0x390] sm:$0xff]
    %v7086 = vld [vmem:[%s6970 + $0x398] sm:$0xff]
    %v7087 = vld [vmem:[%s6970 + $0x3a0] sm:$0xff]
    %v7088 = vld [vmem:[%s6970 + $0x3a8] sm:$0xff]
    %v7089 = vld [vmem:[%s6970 + $0x3b0] sm:$0xff]
    %v7090 = vld [vmem:[%s6970 + $0x3b8] sm:$0xff]
    %v7091 = vld [vmem:[%s6970 + $0x3c0] sm:$0xff]
    %v7092 = vld [vmem:[%s6970 + $0x3c8] sm:$0xff]
    %v7093 = vld [vmem:[%s6970 + $0x3d0] sm:$0xff]
    %v7094 = vld [vmem:[%s6970 + $0x3d8] sm:$0xff]
    %v7095 = vld [vmem:[%s6970 + $0x3e0] sm:$0xff]
    %v7096 = vld [vmem:[%s6970 + $0x3e8] sm:$0xff]
    %v7097 = vld [vmem:[%s6970 + $0x3f0] sm:$0xff]
    %v7098 = vld [vmem:[%s6970 + $0x3f8] sm:$0xff]
    %v7099 = vld [vmem:[%s6970 + $0x400] sm:$0xff]
    %v7100 = vld [vmem:[%s6970 + $0x408] sm:$0xff]
    %v7101 = vld [vmem:[%s6970 + $0x410] sm:$0xff]
    %v7102 = vld [vmem:[%s6970 + $0x418] sm:$0xff]
    %v7103 = vld [vmem:[%s6970 + $0x420] sm:$0xff]
    %v7104 = vld [vmem:[%s6970 + $0x428] sm:$0xff]
    %v7105 = vld [vmem:[%s6970 + $0x430] sm:$0xff]
    %v7106 = vld [vmem:[%s6970 + $0x438] sm:$0xff]
    %v7107 = vld [vmem:[%s6970 + $0x440] sm:$0xff]
    %v7108 = vld [vmem:[%s6970 + $0x448] sm:$0xff]
    %v7109 = vld [vmem:[%s6970 + $0x450] sm:$0xff]
    %v7110 = vld [vmem:[%s6970 + $0x458] sm:$0xff]
    %v7111 = vld [vmem:[%s6970 + $0x460] sm:$0xff]
    %v7112 = vld [vmem:[%s6970 + $0x468] sm:$0xff]
    %v7113 = vld [vmem:[%s6970 + $0x470] sm:$0xff]
    %v7114 = vld [vmem:[%s6970 + $0x478] sm:$0xff]
    %7115 = vmatpush.msra.mxu0 %v7016
    %7116 = vmatpush.msra.mxu0 %v7013
    %7117 = vmatpush.msra.mxu0 %v7010
    %7118 = vmatpush.msra.mxu0 %v7007
    %7119 = vmatpush.msra.mxu0 %v7004
    %7120 = vmatpush.msra.mxu0 %v7001
    %7121 = vmatpush.msra.mxu0 %v6998
    %7122 = vmatpush.msra.mxu0 %v6995
    %7123 = vmatpush.msra.mxu0 %v6992
    %7124 = vmatpush.msra.mxu0 %v6989
    %7125 = vmatpush.msra.mxu0 %v6986
    %7126 = vmatpush.msra.mxu0 %v6983
    %7127 = vmatpush.msra.mxu0 %v6980
    %7128 = vmatpush.msra.mxu0 %v6977
    %7129 = vmatpush.msra.mxu0 %v6974
    %7130 = vmatpush.msra.mxu0 %v6971
    %7131 = vmatmul.f32.gmra.mxu0 %v6919
    %v7132 = vpop.f32.mrf.mxu0
    %v7133 = vadd.f32 0.0, %v7132
    %7134 = vmatmul.f32.gmra.mxu0 %v6922
    %v7135 = vpop.f32.mrf.mxu0
    %v7136 = vadd.f32 0.0, %v7135
    %7137 = vdwg.mxu0
    %7138 = vmatpush.msra.mxu0 %v7064
    %7139 = vmatpush.msra.mxu0 %v7061
    %7140 = vmatpush.msra.mxu0 %v7058
    %7141 = vmatpush.msra.mxu0 %v7055
    %7142 = vmatpush.msra.mxu0 %v7052
    %7143 = vmatpush.msra.mxu0 %v7049
    %7144 = vmatpush.msra.mxu0 %v7046
    %7145 = vmatpush.msra.mxu0 %v7043
    %7146 = vmatpush.msra.mxu0 %v7040
    %7147 = vmatpush.msra.mxu0 %v7037
    %7148 = vmatpush.msra.mxu0 %v7034
    %7149 = vmatpush.msra.mxu0 %v7031
    %7150 = vmatpush.msra.mxu0 %v7028
    %7151 = vmatpush.msra.mxu0 %v7025
    %7152 = vmatpush.msra.mxu0 %v7022
    %7153 = vmatpush.msra.mxu0 %v7019
    %7154 = vmatmul.f32.gmra.mxu0 %v6942
    %v7155 = vpop.f32.mrf.mxu0
    %v7156 = vadd.f32 %v7133, %v7155
    %7157 = vmatmul.f32.gmra.mxu0 %v6945
    %v7158 = vpop.f32.mrf.mxu0
    %v7159 = vadd.f32 %v7136, %v7158
    %7160 = vdwg.mxu0
    %7161 = vmatpush.msra.mxu0 %v7112
    %7162 = vmatpush.msra.mxu0 %v7109
    %7163 = vmatpush.msra.mxu0 %v7106
    %7164 = vmatpush.msra.mxu0 %v7103
    %7165 = vmatpush.msra.mxu0 %v7100
    %7166 = vmatpush.msra.mxu0 %v7097
    %7167 = vmatpush.msra.mxu0 %v7094
    %7168 = vmatpush.msra.mxu0 %v7091
    %7169 = vmatpush.msra.mxu0 %v7088
    %7170 = vmatpush.msra.mxu0 %v7085
    %7171 = vmatpush.msra.mxu0 %v7082
    %7172 = vmatpush.msra.mxu0 %v7079
    %7173 = vmatpush.msra.mxu0 %v7076
    %7174 = vmatpush.msra.mxu0 %v7073
    %7175 = vmatpush.msra.mxu0 %v7070
    %7176 = vmatpush.msra.mxu0 %v7067
    %7177 = vmatmul.f32.gmra.mxu0 %v6965
    %v7178 = vpop.f32.mrf.mxu0
    %v7179 = vadd.f32 %v7156, %v7178
    %7180 = vmatmul.f32.gmra.mxu0 %v6968
    %v7181 = vpop.f32.mrf.mxu0
    %v7182 = vadd.f32 %v7159, %v7181
    %7183 = vdwg.mxu0
    %7184 = vmatpush.msra.mxu0 %v7017
    %7185 = vmatpush.msra.mxu0 %v7014
    %7186 = vmatpush.msra.mxu0 %v7011
    %7187 = vmatpush.msra.mxu0 %v7008
    %7188 = vmatpush.msra.mxu0 %v7005
    %7189 = vmatpush.msra.mxu0 %v7002
    %7190 = vmatpush.msra.mxu0 %v6999
    %7191 = vmatpush.msra.mxu0 %v6996
    %7192 = vmatpush.msra.mxu0 %v6993
    %7193 = vmatpush.msra.mxu0 %v6990
    %7194 = vmatpush.msra.mxu0 %v6987
    %7195 = vmatpush.msra.mxu0 %v6984
    %7196 = vmatpush.msra.mxu0 %v6981
    %7197 = vmatpush.msra.mxu0 %v6978
    %7198 = vmatpush.msra.mxu0 %v6975
    %7199 = vmatpush.msra.mxu0 %v6972
    %7200 = vmatmul.f32.gmra.mxu0 %v6919
    %v7201 = vpop.f32.mrf.mxu0
    %v7202 = vadd.f32 0.0, %v7201
    %7203 = vmatmul.f32.gmra.mxu0 %v6922
    %v7204 = vpop.f32.mrf.mxu0
    %v7205 = vadd.f32 0.0, %v7204
    %7206 = vdwg.mxu0
    %7207 = vmatpush.msra.mxu0 %v7065
    %7208 = vmatpush.msra.mxu0 %v7062
    %7209 = vmatpush.msra.mxu0 %v7059
    %7210 = vmatpush.msra.mxu0 %v7056
    %7211 = vmatpush.msra.mxu0 %v7053
    %7212 = vmatpush.msra.mxu0 %v7050
    %7213 = vmatpush.msra.mxu0 %v7047
    %7214 = vmatpush.msra.mxu0 %v7044
    %7215 = vmatpush.msra.mxu0 %v7041
    %7216 = vmatpush.msra.mxu0 %v7038
    %7217 = vmatpush.msra.mxu0 %v7035
    %7218 = vmatpush.msra.mxu0 %v7032
    %7219 = vmatpush.msra.mxu0 %v7029
    %7220 = vmatpush.msra.mxu0 %v7026
    %7221 = vmatpush.msra.mxu0 %v7023
    %7222 = vmatpush.msra.mxu0 %v7020
    %7223 = vmatmul.f32.gmra.mxu0 %v6942
    %v7224 = vpop.f32.mrf.mxu0
    %v7225 = vadd.f32 %v7202, %v7224
    %7226 = vmatmul.f32.gmra.mxu0 %v6945
    %v7227 = vpop.f32.mrf.mxu0
    %v7228 = vadd.f32 %v7205, %v7227
    %7229 = vdwg.mxu0
    %7230 = vmatpush.msra.mxu0 %v7113
    %7231 = vmatpush.msra.mxu0 %v7110
    %7232 = vmatpush.msra.mxu0 %v7107
    %7233 = vmatpush.msra.mxu0 %v7104
    %7234 = vmatpush.msra.mxu0 %v7101
    %7235 = vmatpush.msra.mxu0 %v7098
    %7236 = vmatpush.msra.mxu0 %v7095
    %7237 = vmatpush.msra.mxu0 %v7092
    %7238 = vmatpush.msra.mxu0 %v7089
    %7239 = vmatpush.msra.mxu0 %v7086
    %7240 = vmatpush.msra.mxu0 %v7083
    %7241 = vmatpush.msra.mxu0 %v7080
    %7242 = vmatpush.msra.mxu0 %v7077
    %7243 = vmatpush.msra.mxu0 %v7074
    %7244 = vmatpush.msra.mxu0 %v7071
    %7245 = vmatpush.msra.mxu0 %v7068
    %7246 = vmatmul.f32.gmra.mxu0 %v6965
    %v7247 = vpop.f32.mrf.mxu0
    %v7248 = vadd.f32 %v7225, %v7247
    %7249 = vmatmul.f32.gmra.mxu0 %v6968
    %v7250 = vpop.f32.mrf.mxu0
    %v7251 = vadd.f32 %v7228, %v7250
    %7252 = vdwg.mxu0
    %7253 = vmatpush.msra.mxu0 %v7018
    %7254 = vmatpush.msra.mxu0 %v7015
    %7255 = vmatpush.msra.mxu0 %v7012
    %7256 = vmatpush.msra.mxu0 %v7009
    %7257 = vmatpush.msra.mxu0 %v7006
    %7258 = vmatpush.msra.mxu0 %v7003
    %7259 = vmatpush.msra.mxu0 %v7000
    %7260 = vmatpush.msra.mxu0 %v6997
    %7261 = vmatpush.msra.mxu0 %v6994
    %7262 = vmatpush.msra.mxu0 %v6991
    %7263 = vmatpush.msra.mxu0 %v6988
    %7264 = vmatpush.msra.mxu0 %v6985
    %7265 = vmatpush.msra.mxu0 %v6982
    %7266 = vmatpush.msra.mxu0 %v6979
    %7267 = vmatpush.msra.mxu0 %v6976
    %7268 = vmatpush.msra.mxu0 %v6973
    %7269 = vmatmul.f32.gmra.mxu0 %v6919
    %v7270 = vpop.f32.mrf.mxu0
    %v7271 = vadd.f32 0.0, %v7270
    %7272 = vmatmul.f32.gmra.mxu0 %v6922
    %v7273 = vpop.f32.mrf.mxu0
    %v7274 = vadd.f32 0.0, %v7273
    %7275 = vdwg.mxu0
    %7276 = vmatpush.msra.mxu0 %v7066
    %7277 = vmatpush.msra.mxu0 %v7063
    %7278 = vmatpush.msra.mxu0 %v7060
    %7279 = vmatpush.msra.mxu0 %v7057
    %7280 = vmatpush.msra.mxu0 %v7054
    %7281 = vmatpush.msra.mxu0 %v7051
    %7282 = vmatpush.msra.mxu0 %v7048
    %7283 = vmatpush.msra.mxu0 %v7045
    %7284 = vmatpush.msra.mxu0 %v7042
    %7285 = vmatpush.msra.mxu0 %v7039
    %7286 = vmatpush.msra.mxu0 %v7036
    %7287 = vmatpush.msra.mxu0 %v7033
    %7288 = vmatpush.msra.mxu0 %v7030
    %7289 = vmatpush.msra.mxu0 %v7027
    %7290 = vmatpush.msra.mxu0 %v7024
    %7291 = vmatpush.msra.mxu0 %v7021
    %7292 = vmatmul.f32.gmra.mxu0 %v6942
    %v7293 = vpop.f32.mrf.mxu0
    %v7294 = vadd.f32 %v7271, %v7293
    %7295 = vmatmul.f32.gmra.mxu0 %v6945
    %v7296 = vpop.f32.mrf.mxu0
    %v7297 = vadd.f32 %v7274, %v7296
    %7298 = vdwg.mxu0
    %7299 = vmatpush.msra.mxu0 %v7114
    %7300 = vmatpush.msra.mxu0 %v7111
    %7301 = vmatpush.msra.mxu0 %v7108
    %7302 = vmatpush.msra.mxu0 %v7105
    %7303 = vmatpush.msra.mxu0 %v7102
    %7304 = vmatpush.msra.mxu0 %v7099
    %7305 = vmatpush.msra.mxu0 %v7096
    %7306 = vmatpush.msra.mxu0 %v7093
    %7307 = vmatpush.msra.mxu0 %v7090
    %7308 = vmatpush.msra.mxu0 %v7087
    %7309 = vmatpush.msra.mxu0 %v7084
    %7310 = vmatpush.msra.mxu0 %v7081
    %7311 = vmatpush.msra.mxu0 %v7078
    %7312 = vmatpush.msra.mxu0 %v7075
    %7313 = vmatpush.msra.mxu0 %v7072
    %7314 = vmatpush.msra.mxu0 %v7069
    %7315 = vmatmul.f32.gmra.mxu0 %v6965
    %v7316 = vpop.f32.mrf.mxu0
    %v7317 = vadd.f32 %v7294, %v7316
    %7318 = vmatmul.f32.gmra.mxu0 %v6968
    %v7319 = vpop.f32.mrf.mxu0
    %v7320 = vadd.f32 %v7297, %v7319
    %7321 = vdwg.mxu0
    %v7322 = vadd.f32 %v6886, %v7179
    %v7323 = vadd.f32 %v6887, %v7248
    %v7324 = vadd.f32 %v6888, %v7317
    %v7325 = vadd.f32 %v6889, %v7182
    %v7326 = vadd.f32 %v6890, %v7251
    %v7327 = vadd.f32 %v6891, %v7320
    %v7328 = vadd.f32 %v7322, %v7325
    %v7329 = vrot.slane %v7328, 4
    %v7330 = vadd.f32 %v7328, %v7329
    %v7331 = vrot.slane %v7330, 2
    %v7332 = vadd.f32 %v7330, %v7331
    %v7333 = vrot.slane %v7332, 1
    %v7334 = vadd.f32 %v7332, %v7333
    %v7335 = vadd.f32 %v7323, %v7326
    %v7336 = vrot.slane %v7335, 4
    %v7337 = vadd.f32 %v7335, %v7336
    %v7338 = vrot.slane %v7337, 2
    %v7339 = vadd.f32 %v7337, %v7338
    %v7340 = vrot.slane %v7339, 1
    %v7341 = vadd.f32 %v7339, %v7340
    %v7342 = vadd.f32 %v7324, %v7327
    %v7343 = vrot.slane %v7342, 4
    %v7344 = vadd.f32 %v7342, %v7343
    %v7345 = vrot.slane %v7344, 2
    %v7346 = vadd.f32 %v7344, %v7345
    %v7347 = vrot.slane %v7346, 1
    %v7348 = vadd.f32 %v7346, %v7347
    %v7349 = vmul.f32 %v7322, %v7322
    %v7350 = vmul.f32 %v7323, %v7323
    %v7351 = vmul.f32 %v7324, %v7324
    %v7352 = vmul.f32 %v7325, %v7325
    %v7353 = vmul.f32 %v7326, %v7326
    %v7354 = vmul.f32 %v7327, %v7327
    %v7355 = vadd.f32 %v7349, %v7352
    %v7356 = vrot.slane %v7355, 4
    %v7357 = vadd.f32 %v7355, %v7356
    %v7358 = vrot.slane %v7357, 2
    %v7359 = vadd.f32 %v7357, %v7358
    %v7360 = vrot.slane %v7359, 1
    %v7361 = vadd.f32 %v7359, %v7360
    %v7362 = vadd.f32 %v7350, %v7353
    %v7363 = vrot.slane %v7362, 4
    %v7364 = vadd.f32 %v7362, %v7363
    %v7365 = vrot.slane %v7364, 2
    %v7366 = vadd.f32 %v7364, %v7365
    %v7367 = vrot.slane %v7366, 1
    %v7368 = vadd.f32 %v7366, %v7367
    %v7369 = vadd.f32 %v7351, %v7354
    %v7370 = vrot.slane %v7369, 4
    %v7371 = vadd.f32 %v7369, %v7370
    %v7372 = vrot.slane %v7371, 2
    %v7373 = vadd.f32 %v7371, %v7372
    %v7374 = vrot.slane %v7373, 1
    %v7375 = vadd.f32 %v7373, %v7374
    %v7376 = vld [vmem:[%s12] sm:$0xff]
    %v7377 = vld [vmem:[%s12 + $0x8] sm:$0xff]
    %v7378 = vld [vmem:[%s12 + $0x10] sm:$0xff]
    %v7379 = vld [vmem:[%s12 + $0x18] sm:$0xff]
    %v7380 = vld [vmem:[%s12 + $0x20] sm:$0xff]
    %v7381 = vld [vmem:[%s12 + $0x28] sm:$0xff]
    %v7382 = vld [vmem:[%s12 + $0x30] sm:$0xff]
    %v7383 = vld [vmem:[%s12 + $0x38] sm:$0xff]
    %v7384 = vld [vmem:[%s12 + $0x40] sm:$0xff]
    %v7385 = vld [vmem:[%s12 + $0x48] sm:$0xff]
    %v7386 = vld [vmem:[%s12 + $0x50] sm:$0xff]
    %v7387 = vld [vmem:[%s12 + $0x58] sm:$0xff]
    %v7388 = vld [vmem:[%s12 + $0x60] sm:$0xff]
    %v7389 = vld [vmem:[%s12 + $0x68] sm:$0xff]
    %v7390 = vld [vmem:[%s12 + $0x70] sm:$0xff]
    %v7391 = vld [vmem:[%s12 + $0x78] sm:$0xff]
    %v7392 = vld [vmem:[%s12 + $0x80] sm:$0xff]
    %v7393 = vld [vmem:[%s12 + $0x88] sm:$0xff]
    %v7394 = vld [vmem:[%s12 + $0x90] sm:$0xff]
    %v7395 = vld [vmem:[%s12 + $0x98] sm:$0xff]
    %v7396 = vld [vmem:[%s12 + $0xa0] sm:$0xff]
    %v7397 = vld [vmem:[%s12 + $0xa8] sm:$0xff]
    %v7398 = vld [vmem:[%s12 + $0xb0] sm:$0xff]
    %v7399 = vld [vmem:[%s12 + $0xb8] sm:$0xff]
    %v7400 = vld [vmem:[%s12 + $0xc0] sm:$0xff]
    %v7401 = vld [vmem:[%s12 + $0xc8] sm:$0xff]
    %v7402 = vld [vmem:[%s12 + $0xd0] sm:$0xff]
    %v7403 = vld [vmem:[%s12 + $0xd8] sm:$0xff]
    %v7404 = vld [vmem:[%s12 + $0xe0] sm:$0xff]
    %v7405 = vld [vmem:[%s12 + $0xe8] sm:$0xff]
    %v7406 = vld [vmem:[%s12 + $0xf0] sm:$0xff]
    %v7407 = vld [vmem:[%s12 + $0xf8] sm:$0xff]
    %v7408 = vld [vmem:[%s12 + $0x100] sm:$0xff]
    %v7409 = vld [vmem:[%s12 + $0x108] sm:$0xff]
    %v7410 = vld [vmem:[%s12 + $0x110] sm:$0xff]
    %v7411 = vld [vmem:[%s12 + $0x118] sm:$0xff]
    %v7412 = vld [vmem:[%s12 + $0x120] sm:$0xff]
    %v7413 = vld [vmem:[%s12 + $0x128] sm:$0xff]
    %v7414 = vld [vmem:[%s12 + $0x130] sm:$0xff]
    %v7415 = vld [vmem:[%s12 + $0x138] sm:$0xff]
    %v7416 = vld [vmem:[%s12 + $0x140] sm:$0xff]
    %v7417 = vld [vmem:[%s12 + $0x148] sm:$0xff]
    %v7418 = vld [vmem:[%s12 + $0x150] sm:$0xff]
    %v7419 = vld [vmem:[%s12 + $0x158] sm:$0xff]
    %v7420 = vld [vmem:[%s12 + $0x160] sm:$0xff]
    %v7421 = vld [vmem:[%s12 + $0x168] sm:$0xff]
    %v7422 = vld [vmem:[%s12 + $0x170] sm:$0xff]
    %v7423 = vld [vmem:[%s12 + $0x178] sm:$0xff]
    %7424 = vmatpush.msra.mxu0 %v7391
    %7425 = vmatpush.msra.mxu0 %v7390
    %7426 = vmatpush.msra.mxu0 %v7389
    %7427 = vmatpush.msra.mxu0 %v7388
    %7428 = vmatpush.msra.mxu0 %v7387
    %7429 = vmatpush.msra.mxu0 %v7386
    %7430 = vmatpush.msra.mxu0 %v7385
    %7431 = vmatpush.msra.mxu0 %v7384
    %7432 = vmatpush.msra.mxu0 %v7383
    %7433 = vmatpush.msra.mxu0 %v7382
    %7434 = vmatpush.msra.mxu0 %v7381
    %7435 = vmatpush.msra.mxu0 %v7380
    %7436 = vmatpush.msra.mxu0 %v7379
    %7437 = vmatpush.msra.mxu0 %v7378
    %7438 = vmatpush.msra.mxu0 %v7377
    %7439 = vmatpush.msra.mxu0 %v7376
    %7440 = vmatmul.f32.gmra.mxu0 %v7334
    %v7441 = vpop.f32.mrf.mxu0
    %v7442 = vadd.f32 0.0, %v7441
    %7443 = vdwg.mxu0
    %7444 = vmatpush.msra.mxu0 %v7407
    %7445 = vmatpush.msra.mxu0 %v7406
    %7446 = vmatpush.msra.mxu0 %v7405
    %7447 = vmatpush.msra.mxu0 %v7404
    %7448 = vmatpush.msra.mxu0 %v7403
    %7449 = vmatpush.msra.mxu0 %v7402
    %7450 = vmatpush.msra.mxu0 %v7401
    %7451 = vmatpush.msra.mxu0 %v7400
    %7452 = vmatpush.msra.mxu0 %v7399
    %7453 = vmatpush.msra.mxu0 %v7398
    %7454 = vmatpush.msra.mxu0 %v7397
    %7455 = vmatpush.msra.mxu0 %v7396
    %7456 = vmatpush.msra.mxu0 %v7395
    %7457 = vmatpush.msra.mxu0 %v7394
    %7458 = vmatpush.msra.mxu0 %v7393
    %7459 = vmatpush.msra.mxu0 %v7392
    %7460 = vmatmul.f32.gmra.mxu0 %v7341
    %v7461 = vpop.f32.mrf.mxu0
    %v7462 = vadd.f32 %v7442, %v7461
    %7463 = vdwg.mxu0
    %7464 = vmatpush.msra.mxu0 %v7423
    %7465 = vmatpush.msra.mxu0 %v7422
    %7466 = vmatpush.msra.mxu0 %v7421
    %7467 = vmatpush.msra.mxu0 %v7420
    %7468 = vmatpush.msra.mxu0 %v7419
    %7469 = vmatpush.msra.mxu0 %v7418
    %7470 = vmatpush.msra.mxu0 %v7417
    %7471 = vmatpush.msra.mxu0 %v7416
    %7472 = vmatpush.msra.mxu0 %v7415
    %7473 = vmatpush.msra.mxu0 %v7414
    %7474 = vmatpush.msra.mxu0 %v7413
    %7475 = vmatpush.msra.mxu0 %v7412
    %7476 = vmatpush.msra.mxu0 %v7411
    %7477 = vmatpush.msra.mxu0 %v7410
    %7478 = vmatpush.msra.mxu0 %v7409
    %7479 = vmatpush.msra.mxu0 %v7408
    %7480 = vmatmul.f32.gmra.mxu0 %v7348
    %v7481 = vpop.f32.mrf.mxu0
    %v7482 = vadd.f32 %v7462, %v7481
    %7483 = vdwg.mxu0
    %7484 = vmatpush.msra.mxu0 %v7391
    %7485 = vmatpush.msra.mxu0 %v7390
    %7486 = vmatpush.msra.mxu0 %v7389
    %7487 = vmatpush.msra.mxu0 %v7388
    %7488 = vmatpush.msra.mxu0 %v7387
    %7489 = vmatpush.msra.mxu0 %v7386
    %7490 = vmatpush.msra.mxu0 %v7385
    %7491 = vmatpush.msra.mxu0 %v7384
    %7492 = vmatpush.msra.mxu0 %v7383
    %7493 = vmatpush.msra.mxu0 %v7382
    %7494 = vmatpush.msra.mxu0 %v7381
    %7495 = vmatpush.msra.mxu0 %v7380
    %7496 = vmatpush.msra.mxu0 %v7379
    %7497 = vmatpush.msra.mxu0 %v7378
    %7498 = vmatpush.msra.mxu0 %v7377
    %7499 = vmatpush.msra.mxu0 %v7376
    %7500 = vmatmul.f32.gmra.mxu0 %v7361
    %v7501 = vpop.f32.mrf.mxu0
    %v7502 = vadd.f32 0.0, %v7501
    %7503 = vdwg.mxu0
    %7504 = vmatpush.msra.mxu0 %v7407
    %7505 = vmatpush.msra.mxu0 %v7406
    %7506 = vmatpush.msra.mxu0 %v7405
    %7507 = vmatpush.msra.mxu0 %v7404
    %7508 = vmatpush.msra.mxu0 %v7403
    %7509 = vmatpush.msra.mxu0 %v7402
    %7510 = vmatpush.msra.mxu0 %v7401
    %7511 = vmatpush.msra.mxu0 %v7400
    %7512 = vmatpush.msra.mxu0 %v7399
    %7513 = vmatpush.msra.mxu0 %v7398
    %7514 = vmatpush.msra.mxu0 %v7397
    %7515 = vmatpush.msra.mxu0 %v7396
    %7516 = vmatpush.msra.mxu0 %v7395
    %7517 = vmatpush.msra.mxu0 %v7394
    %7518 = vmatpush.msra.mxu0 %v7393
    %7519 = vmatpush.msra.mxu0 %v7392
    %7520 = vmatmul.f32.gmra.mxu0 %v7368
    %v7521 = vpop.f32.mrf.mxu0
    %v7522 = vadd.f32 %v7502, %v7521
    %7523 = vdwg.mxu0
    %7524 = vmatpush.msra.mxu0 %v7423
    %7525 = vmatpush.msra.mxu0 %v7422
    %7526 = vmatpush.msra.mxu0 %v7421
    %7527 = vmatpush.msra.mxu0 %v7420
    %7528 = vmatpush.msra.mxu0 %v7419
    %7529 = vmatpush.msra.mxu0 %v7418
    %7530 = vmatpush.msra.mxu0 %v7417
    %7531 = vmatpush.msra.mxu0 %v7416
    %7532 = vmatpush.msra.mxu0 %v7415
    %7533 = vmatpush.msra.mxu0 %v7414
    %7534 = vmatpush.msra.mxu0 %v7413
    %7535 = vmatpush.msra.mxu0 %v7412
    %7536 = vmatpush.msra.mxu0 %v7411
    %7537 = vmatpush.msra.mxu0 %v7410
    %7538 = vmatpush.msra.mxu0 %v7409
    %7539 = vmatpush.msra.mxu0 %v7408
    %7540 = vmatmul.f32.gmra.mxu0 %v7375
    %v7541 = vpop.f32.mrf.mxu0
    %v7542 = vadd.f32 %v7522, %v7541
    %7543 = vdwg.mxu0
    %v7544 = vrcp.pop 128.0
    %v7545 = vmul.f32 128.0, %v7544
    %v7546 = vsub.f32 1.0, %v7545
    %v7547 = vmul.f32 %v7544, %v7546
    %v7548 = vadd.f32 %v7544, %v7547
    %vm7549 = vweird.f32 %v7544
    %v7550 = vsel %vm7549, %v7544, %v7548
    %v7551 = vmul.f32 %v7482, %v7550
    %v7552 = vmul.f32 %v7542, %v7550
    %v7553 = vmul.f32 %v7551, %v7551
    %v7554 = vsub.f32 %v7552, %v7553
    %v7555 = vmax.f32 %v7554, 0.0
    %v7556 = vld [vmem:[#allocation26] sm:$0x1]
    %v7557 = vadd.f32 %v7555, 1e-05
    %v7558 = vrsqrt.pop %v7557
    %v7559 = vmul.f32 %v7558, %v7557
    %v7560 = vmul.f32 %v7559, %v7558
    %v7561 = vmul.f32 0.5, %v7560
    %v7562 = vsub.f32 1.5, %v7561
    %v7563 = vmul.f32 %v7558, %v7562
    %vm7564 = vweird.f32 %v7557
    %vm7565 = vweird.f32 %v7558
    %vm7566 = vmor %vm7564, %vm7565
    %v7567 = vsel %vm7566, %v7558, %v7563
    %v7568 = vmul.f32 %v7556, %v7567
    %v7569 = vld [vmem:[#allocation27] sm:$0x1]
    %v7570 = vmul.f32 %v7551, %v7568
    %v7571 = vsub.f32 %v7569, %v7570
    %v7572 = vld [vmem:[#allocation24] sm:$0xff]
    %v7573 = vld [vmem:[#allocation24 + $0x8] sm:$0xff]
    %v7574 = vld [vmem:[#allocation24 + $0x10] sm:$0xff]
    %v7575 = vld [vmem:[#allocation24 + $0x18] sm:$0xff]
    %v7576 = vld [vmem:[#allocation24 + $0x20] sm:$0xff]
    %v7577 = vld [vmem:[#allocation24 + $0x28] sm:$0xff]
    %v7578 = vld [vmem:[#allocation24 + $0x30] sm:$0xff]
    %v7579 = vld [vmem:[#allocation24 + $0x38] sm:$0xff]
    %v7580 = vld [vmem:[#allocation24 + $0x40] sm:$0xff]
    %v7581 = vld [vmem:[#allocation24 + $0x48] sm:$0xff]
    %v7582 = vld [vmem:[#allocation24 + $0x50] sm:$0xff]
    %v7583 = vld [vmem:[#allocation24 + $0x58] sm:$0xff]
    %vm7584 = vcmask 261120
    %v7586 = vsel %vm7584, %v7568, 0
    %7588 = vmatpush.msra.mxu0 0.0
    %7589 = vmatpush.msra.mxu0 0.0
    %7590 = vmatpush.msra.mxu0 0.0
    %7591 = vmatpush.msra.mxu0 0.0
    %7592 = vmatpush.msra.mxu0 0.0
    %7593 = vmatpush.msra.mxu0 0.0
    %7594 = vmatpush.msra.mxu0 0.0
    %7595 = vmatpush.msra.mxu0 0.0
    %7596 = vmatpush.msra.mxu0 0.0
    %7597 = vmatpush.msra.mxu0 0.0
    %7598 = vmatpush.msra.mxu0 0.0
    %7599 = vmatpush.msra.mxu0 0.0
    %7600 = vmatpush.msra.mxu0 %v7581
    %7601 = vmatpush.msra.mxu0 %v7578
    %7602 = vmatpush.msra.mxu0 %v7575
    %7603 = vmatpush.msra.mxu0 %v7572
    %7604 = vmatmul.f32.gmra.mxu0 %v7586
    %v7605 = vpop.f32.mrf.mxu0
    %v7606 = vadd.f32 0.0, %v7605
    %7607 = vdwg.mxu0
    %7608 = vmatpush.msra.mxu0 0.0
    %7609 = vmatpush.msra.mxu0 0.0
    %7610 = vmatpush.msra.mxu0 0.0
    %7611 = vmatpush.msra.mxu0 0.0
    %7612 = vmatpush.msra.mxu0 0.0
    %7613 = vmatpush.msra.mxu0 0.0
    %7614 = vmatpush.msra.mxu0 0.0
    %7615 = vmatpush.msra.mxu0 0.0
    %7616 = vmatpush.msra.mxu0 0.0
    %7617 = vmatpush.msra.mxu0 0.0
    %7618 = vmatpush.msra.mxu0 0.0
    %7619 = vmatpush.msra.mxu0 0.0
    %7620 = vmatpush.msra.mxu0 %v7582
    %7621 = vmatpush.msra.mxu0 %v7579
    %7622 = vmatpush.msra.mxu0 %v7576
    %7623 = vmatpush.msra.mxu0 %v7573
    %7624 = vmatmul.f32.gmra.mxu0 %v7586
    %v7625 = vpop.f32.mrf.mxu0
    %v7626 = vadd.f32 0.0, %v7625
    %7627 = vdwg.mxu0
    %7628 = vmatpush.msra.mxu0 0.0
    %7629 = vmatpush.msra.mxu0 0.0
    %7630 = vmatpush.msra.mxu0 0.0
    %7631 = vmatpush.msra.mxu0 0.0
    %7632 = vmatpush.msra.mxu0 0.0
    %7633 = vmatpush.msra.mxu0 0.0
    %7634 = vmatpush.msra.mxu0 0.0
    %7635 = vmatpush.msra.mxu0 0.0
    %7636 = vmatpush.msra.mxu0 0.0
    %7637 = vmatpush.msra.mxu0 0.0
    %7638 = vmatpush.msra.mxu0 0.0
    %7639 = vmatpush.msra.mxu0 0.0
    %7640 = vmatpush.msra.mxu0 %v7583
    %7641 = vmatpush.msra.mxu0 %v7580
    %7642 = vmatpush.msra.mxu0 %v7577
    %7643 = vmatpush.msra.mxu0 %v7574
    %7644 = vmatmul.f32.gmra.mxu0 %v7586
    %v7645 = vpop.f32.mrf.mxu0
    %v7646 = vadd.f32 0.0, %v7645
    %7647 = vdwg.mxu0
    %v7649 = vsel %vm7584, %v7571, 0
    %7651 = vmatpush.msra.mxu0 0.0
    %7652 = vmatpush.msra.mxu0 0.0
    %7653 = vmatpush.msra.mxu0 0.0
    %7654 = vmatpush.msra.mxu0 0.0
    %7655 = vmatpush.msra.mxu0 0.0
    %7656 = vmatpush.msra.mxu0 0.0
    %7657 = vmatpush.msra.mxu0 0.0
    %7658 = vmatpush.msra.mxu0 0.0
    %7659 = vmatpush.msra.mxu0 0.0
    %7660 = vmatpush.msra.mxu0 0.0
    %7661 = vmatpush.msra.mxu0 0.0
    %7662 = vmatpush.msra.mxu0 0.0
    %7663 = vmatpush.msra.mxu0 %v7581
    %7664 = vmatpush.msra.mxu0 %v7578
    %7665 = vmatpush.msra.mxu0 %v7575
    %7666 = vmatpush.msra.mxu0 %v7572
    %7667 = vmatmul.f32.gmra.mxu0 %v7649
    %v7668 = vpop.f32.mrf.mxu0
    %v7669 = vadd.f32 0.0, %v7668
    %7670 = vdwg.mxu0
    %7671 = vmatpush.msra.mxu0 0.0
    %7672 = vmatpush.msra.mxu0 0.0
    %7673 = vmatpush.msra.mxu0 0.0
    %7674 = vmatpush.msra.mxu0 0.0
    %7675 = vmatpush.msra.mxu0 0.0
    %7676 = vmatpush.msra.mxu0 0.0
    %7677 = vmatpush.msra.mxu0 0.0
    %7678 = vmatpush.msra.mxu0 0.0
    %7679 = vmatpush.msra.mxu0 0.0
    %7680 = vmatpush.msra.mxu0 0.0
    %7681 = vmatpush.msra.mxu0 0.0
    %7682 = vmatpush.msra.mxu0 0.0
    %7683 = vmatpush.msra.mxu0 %v7582
    %7684 = vmatpush.msra.mxu0 %v7579
    %7685 = vmatpush.msra.mxu0 %v7576
    %7686 = vmatpush.msra.mxu0 %v7573
    %7687 = vmatmul.f32.gmra.mxu0 %v7649
    %v7688 = vpop.f32.mrf.mxu0
    %v7689 = vadd.f32 0.0, %v7688
    %7690 = vdwg.mxu0
    %7691 = vmatpush.msra.mxu0 0.0
    %7692 = vmatpush.msra.mxu0 0.0
    %7693 = vmatpush.msra.mxu0 0.0
    %7694 = vmatpush.msra.mxu0 0.0
    %7695 = vmatpush.msra.mxu0 0.0
    %7696 = vmatpush.msra.mxu0 0.0
    %7697 = vmatpush.msra.mxu0 0.0
    %7698 = vmatpush.msra.mxu0 0.0
    %7699 = vmatpush.msra.mxu0 0.0
    %7700 = vmatpush.msra.mxu0 0.0
    %7701 = vmatpush.msra.mxu0 0.0
    %7702 = vmatpush.msra.mxu0 0.0
    %7703 = vmatpush.msra.mxu0 %v7583
    %7704 = vmatpush.msra.mxu0 %v7580
    %7705 = vmatpush.msra.mxu0 %v7577
    %7706 = vmatpush.msra.mxu0 %v7574
    %7707 = vmatmul.f32.gmra.mxu0 %v7649
    %v7708 = vpop.f32.mrf.mxu0
    %v7709 = vadd.f32 0.0, %v7708
    %7710 = vdwg.mxu0
    %v7711 = vperm.slane %v7606, 0
    %v7712 = vperm.slane %v7626, 0
    %v7713 = vperm.slane %v7646, 0
    %v7714 = vmul.f32 %v7322, %v7711
    %v7715 = vmul.f32 %v7323, %v7712
    %v7716 = vmul.f32 %v7324, %v7713
    %v7717 = vmul.f32 %v7325, %v7711
    %v7718 = vmul.f32 %v7326, %v7712
    %v7719 = vmul.f32 %v7327, %v7713
    %v7720 = vperm.slane %v7669, 0
    %v7721 = vperm.slane %v7689, 0
    %v7722 = vperm.slane %v7709, 0
    %v7723 = vadd.f32 %v7714, %v7720
    %v7724 = vadd.f32 %v7715, %v7721
    %v7725 = vadd.f32 %v7716, %v7722
    %v7726 = vadd.f32 %v7717, %v7720
    %v7727 = vadd.f32 %v7718, %v7721
    %v7728 = vadd.f32 %v7719, %v7722
    %vm7729 = vcmp.gt.f32.partialorder %v7723, 0.0
    %vm7730 = vcmp.gt.f32.partialorder %v7724, 0.0
    %vm7731 = vcmp.gt.f32.partialorder %v7725, 0.0
    %vm7732 = vcmp.gt.f32.partialorder %v7726, 0.0
    %vm7733 = vcmp.gt.f32.partialorder %v7727, 0.0
    %vm7734 = vcmp.gt.f32.partialorder %v7728, 0.0
    %v7735 = vmul.f32 %v7723, 0.01
    %v7736 = vmul.f32 %v7724, 0.01
    %v7737 = vmul.f32 %v7725, 0.01
    %v7738 = vmul.f32 %v7726, 0.01
    %v7739 = vmul.f32 %v7727, 0.01
    %v7740 = vmul.f32 %v7728, 0.01
    %v7741 = vsel %vm7729, %v7723, %v7735
    %v7742 = vsel %vm7730, %v7724, %v7736
    %v7743 = vsel %vm7731, %v7725, %v7737
    %v7744 = vsel %vm7732, %v7726, %v7738
    %v7745 = vsel %vm7733, %v7727, %v7739
    %v7746 = vsel %vm7734, %v7728, %v7740
    %v7750 = vrot.slane %v7741, 7
    %v7751 = vrot.slane %v7742, 7
    %v7752 = vrot.slane %v7743, 7
    %7756 = vst [vmem:[#allocation4] sm:$0xfe] %v7750
    %7757 = vst [vmem:[#allocation4 + $0x8] sm:$0xfe] %v7751
    %7758 = vst [vmem:[#allocation4 + $0x10] sm:$0xfe] %v7752
    %7759 = vst [vmem:[#allocation4 + $0x18] sm:$0x1] %v7750
    %7760 = vst [vmem:[#allocation4 + $0x20] sm:$0x1] %v7751
    %7761 = vst [vmem:[#allocation4 + $0x28] sm:$0x1] %v7752
    %v7765 = vrot.slane %v7744, 5
    %v7766 = vrot.slane %v7745, 5
    %v7767 = vrot.slane %v7746, 5
    %7771 = vst [vmem:[#allocation4 + $0x18] sm:$0xf8] %v7765
    %7772 = vst [vmem:[#allocation4 + $0x20] sm:$0xf8] %v7766
    %7773 = vst [vmem:[#allocation4 + $0x28] sm:$0xf8] %v7767
    %7774 = vst [vmem:[#allocation4 + $0x30] sm:$0x7] %v7765
    %7775 = vst [vmem:[#allocation4 + $0x38] sm:$0x7] %v7766
    %7776 = vst [vmem:[#allocation4 + $0x40] sm:$0x7] %v7767
    %v7777 = vld [vmem:[#allocation4] sm:$0xff]
    %v7778 = vld [vmem:[#allocation4 + $0x8] sm:$0xff]
    %v7779 = vld [vmem:[#allocation4 + $0x10] sm:$0xff]
    %v7780 = vld [vmem:[#allocation4 + $0x18] sm:$0xff]
    %v7781 = vld [vmem:[#allocation4 + $0x20] sm:$0xff]
    %v7782 = vld [vmem:[#allocation4 + $0x28] sm:$0xff]
    %v7783 = vld [vmem:[#allocation4 + $0x30] sm:$0xff]
    %v7784 = vld [vmem:[#allocation4 + $0x38] sm:$0xff]
    %v7785 = vld [vmem:[#allocation4 + $0x40] sm:$0xff]
    %v7786 = vld [vmem:[#allocation29] sm:$0xff]
    %vm7787 = vcmask 195584
    %v7789 = vsel %vm7787, %v7786, 0
    %7791 = vmatpush.msra.mxu0 0.0
    %7792 = vmatpush.msra.mxu0 0.0
    %7793 = vmatpush.msra.mxu0 0.0
    %7794 = vmatpush.msra.mxu0 0.0
    %7795 = vmatpush.msra.mxu0 0.0
    %7796 = vmatpush.msra.mxu0 0.0
    %7797 = vmatpush.msra.mxu0 0.0
    %7798 = vmatpush.msra.mxu0 0.0
    %7799 = vmatpush.msra.mxu0 0.0
    %7800 = vmatpush.msra.mxu0 0.0
    %7801 = vmatpush.msra.mxu0 0.0
    %7802 = vmatpush.msra.mxu0 0.0
    %7803 = vmatpush.msra.mxu0 0.0
    %7804 = vmatpush.msra.mxu0 %v7783
    %7805 = vmatpush.msra.mxu0 %v7780
    %7806 = vmatpush.msra.mxu0 %v7777
    %7807 = vmatmul.f32.gmra.mxu0 %v7789
    %v7808 = vpop.f32.mrf.mxu0
    %v7809 = vadd.f32 0.0, %v7808
    %7810 = vdwg.mxu0
    %7811 = vmatpush.msra.mxu0 0.0
    %7812 = vmatpush.msra.mxu0 0.0
    %7813 = vmatpush.msra.mxu0 0.0
    %7814 = vmatpush.msra.mxu0 0.0
    %7815 = vmatpush.msra.mxu0 0.0
    %7816 = vmatpush.msra.mxu0 0.0
    %7817 = vmatpush.msra.mxu0 0.0
    %7818 = vmatpush.msra.mxu0 0.0
    %7819 = vmatpush.msra.mxu0 0.0
    %7820 = vmatpush.msra.mxu0 0.0
    %7821 = vmatpush.msra.mxu0 0.0
    %7822 = vmatpush.msra.mxu0 0.0
    %7823 = vmatpush.msra.mxu0 0.0
    %7824 = vmatpush.msra.mxu0 %v7784
    %7825 = vmatpush.msra.mxu0 %v7781
    %7826 = vmatpush.msra.mxu0 %v7778
    %7827 = vmatmul.f32.gmra.mxu0 %v7789
    %v7828 = vpop.f32.mrf.mxu0
    %v7829 = vadd.f32 0.0, %v7828
    %7830 = vdwg.mxu0
    %7831 = vmatpush.msra.mxu0 0.0
    %7832 = vmatpush.msra.mxu0 0.0
    %7833 = vmatpush.msra.mxu0 0.0
    %7834 = vmatpush.msra.mxu0 0.0
    %7835 = vmatpush.msra.mxu0 0.0
    %7836 = vmatpush.msra.mxu0 0.0
    %7837 = vmatpush.msra.mxu0 0.0
    %7838 = vmatpush.msra.mxu0 0.0
    %7839 = vmatpush.msra.mxu0 0.0
    %7840 = vmatpush.msra.mxu0 0.0
    %7841 = vmatpush.msra.mxu0 0.0
    %7842 = vmatpush.msra.mxu0 0.0
    %7843 = vmatpush.msra.mxu0 0.0
    %7844 = vmatpush.msra.mxu0 %v7785
    %7845 = vmatpush.msra.mxu0 %v7782
    %7846 = vmatpush.msra.mxu0 %v7779
    %7847 = vmatmul.f32.gmra.mxu0 %v7789
    %v7848 = vpop.f32.mrf.mxu0
    %v7849 = vadd.f32 0.0, %v7848
    %7850 = vdwg.mxu0
    %v7851 = vld [vmem:[#allocation30] sm:$0xff]
    %v7852 = vld [vmem:[#allocation30 + $0x8] sm:$0xff]
    %v7853 = vld [vmem:[#allocation30 + $0x10] sm:$0xff]
    %v7854 = vld [vmem:[#allocation30 + $0x18] sm:$0xff]
    %v7855 = vld [vmem:[#allocation30 + $0x20] sm:$0xff]
    %v7856 = vld [vmem:[#allocation30 + $0x28] sm:$0xff]
    %v7857 = vld [vmem:[#allocation30 + $0x30] sm:$0xff]
    %v7858 = vld [vmem:[#allocation30 + $0x38] sm:$0xff]
    %v7859 = vld [vmem:[#allocation30 + $0x40] sm:$0xff]
    %v7860 = vld [vmem:[#allocation30 + $0x48] sm:$0xff]
    %v7861 = vld [vmem:[#allocation30 + $0x50] sm:$0xff]
    %v7862 = vld [vmem:[#allocation30 + $0x58] sm:$0xff]
    %v7863 = vld [vmem:[#allocation30 + $0x60] sm:$0xff]
    %v7864 = vld [vmem:[#allocation30 + $0x68] sm:$0xff]
    %v7865 = vld [vmem:[#allocation30 + $0x70] sm:$0xff]
    %v7866 = vld [vmem:[#allocation30 + $0x78] sm:$0xff]
    %v7867 = vld [vmem:[#allocation30 + $0x80] sm:$0xff]
    %v7868 = vld [vmem:[#allocation30 + $0x88] sm:$0xff]
    %v7869 = vld [vmem:[#allocation30 + $0x90] sm:$0xff]
    %v7870 = vld [vmem:[#allocation30 + $0x98] sm:$0xff]
    %v7871 = vld [vmem:[#allocation30 + $0xa0] sm:$0xff]
    %v7872 = vld [vmem:[#allocation30 + $0xa8] sm:$0xff]
    %v7873 = vld [vmem:[#allocation30 + $0xb0] sm:$0xff]
    %v7874 = vld [vmem:[#allocation30 + $0xb8] sm:$0xff]
    %v7875 = vld [vmem:[#allocation30 + $0xc0] sm:$0xff]
    %v7876 = vld [vmem:[#allocation30 + $0xc8] sm:$0xff]
    %v7877 = vld [vmem:[#allocation30 + $0xd0] sm:$0xff]
    %v7878 = vld [vmem:[#allocation30 + $0xd8] sm:$0xff]
    %v7879 = vld [vmem:[#allocation30 + $0xe0] sm:$0xff]
    %v7880 = vld [vmem:[#allocation30 + $0xe8] sm:$0xff]
    %v7881 = vld [vmem:[#allocation30 + $0xf0] sm:$0xff]
    %v7882 = vld [vmem:[#allocation30 + $0xf8] sm:$0xff]
    %v7883 = vld [vmem:[#allocation30 + $0x100] sm:$0xff]
    %v7884 = vld [vmem:[#allocation30 + $0x108] sm:$0xff]
    %v7885 = vld [vmem:[#allocation30 + $0x110] sm:$0xff]
    %v7886 = vld [vmem:[#allocation30 + $0x118] sm:$0xff]
    %v7887 = vld [vmem:[#allocation30 + $0x120] sm:$0xff]
    %v7888 = vld [vmem:[#allocation30 + $0x128] sm:$0xff]
    %v7889 = vld [vmem:[#allocation30 + $0x130] sm:$0xff]
    %v7890 = vld [vmem:[#allocation30 + $0x138] sm:$0xff]
    %v7891 = vld [vmem:[#allocation30 + $0x140] sm:$0xff]
    %v7892 = vld [vmem:[#allocation30 + $0x148] sm:$0xff]
    %v7893 = vld [vmem:[#allocation30 + $0x150] sm:$0xff]
    %v7894 = vld [vmem:[#allocation30 + $0x158] sm:$0xff]
    %v7895 = vld [vmem:[#allocation30 + $0x160] sm:$0xff]
    %v7896 = vld [vmem:[#allocation30 + $0x168] sm:$0xff]
    %v7897 = vld [vmem:[#allocation30 + $0x170] sm:$0xff]
    %v7898 = vld [vmem:[#allocation30 + $0x178] sm:$0xff]
    %v7899 = vld [vmem:[#allocation30 + $0x180] sm:$0xff]
    %v7900 = vld [vmem:[#allocation30 + $0x188] sm:$0xff]
    %v7901 = vld [vmem:[#allocation30 + $0x190] sm:$0xff]
    %v7902 = vld [vmem:[#allocation30 + $0x198] sm:$0xff]
    %v7903 = vld [vmem:[#allocation30 + $0x1a0] sm:$0xff]
    %v7904 = vld [vmem:[#allocation30 + $0x1a8] sm:$0xff]
    %v7905 = vld [vmem:[#allocation30 + $0x1b0] sm:$0xff]
    %v7906 = vld [vmem:[#allocation30 + $0x1b8] sm:$0xff]
    %v7907 = vld [vmem:[#allocation30 + $0x1c0] sm:$0xff]
    %v7908 = vld [vmem:[#allocation30 + $0x1c8] sm:$0xff]
    %v7909 = vld [vmem:[#allocation30 + $0x1d0] sm:$0xff]
    %v7910 = vld [vmem:[#allocation30 + $0x1d8] sm:$0xff]
    %v7911 = vld [vmem:[#allocation30 + $0x1e0] sm:$0xff]
    %v7912 = vld [vmem:[#allocation30 + $0x1e8] sm:$0xff]
    %v7913 = vld [vmem:[#allocation30 + $0x1f0] sm:$0xff]
    %v7914 = vld [vmem:[#allocation30 + $0x1f8] sm:$0xff]
    %v7915 = vld [vmem:[#allocation30 + $0x200] sm:$0xff]
    %v7916 = vld [vmem:[#allocation30 + $0x208] sm:$0xff]
    %v7917 = vld [vmem:[#allocation30 + $0x210] sm:$0xff]
    %v7918 = vld [vmem:[#allocation30 + $0x218] sm:$0xff]
    %v7919 = vld [vmem:[#allocation30 + $0x220] sm:$0xff]
    %v7920 = vld [vmem:[#allocation30 + $0x228] sm:$0xff]
    %v7921 = vld [vmem:[#allocation30 + $0x230] sm:$0xff]
    %v7922 = vld [vmem:[#allocation30 + $0x238] sm:$0xff]
    %v7923 = vld [vmem:[#allocation30 + $0x240] sm:$0xff]
    %v7924 = vld [vmem:[#allocation30 + $0x248] sm:$0xff]
    %v7925 = vld [vmem:[#allocation30 + $0x250] sm:$0xff]
    %v7926 = vld [vmem:[#allocation30 + $0x258] sm:$0xff]
    %v7927 = vld [vmem:[#allocation30 + $0x260] sm:$0xff]
    %v7928 = vld [vmem:[#allocation30 + $0x268] sm:$0xff]
    %v7929 = vld [vmem:[#allocation30 + $0x270] sm:$0xff]
    %v7930 = vld [vmem:[#allocation30 + $0x278] sm:$0xff]
    %v7931 = vld [vmem:[#allocation30 + $0x280] sm:$0xff]
    %v7932 = vld [vmem:[#allocation30 + $0x288] sm:$0xff]
    %v7933 = vld [vmem:[#allocation30 + $0x290] sm:$0xff]
    %v7934 = vld [vmem:[#allocation30 + $0x298] sm:$0xff]
    %v7935 = vld [vmem:[#allocation30 + $0x2a0] sm:$0xff]
    %v7936 = vld [vmem:[#allocation30 + $0x2a8] sm:$0xff]
    %v7937 = vld [vmem:[#allocation30 + $0x2b0] sm:$0xff]
    %v7938 = vld [vmem:[#allocation30 + $0x2b8] sm:$0xff]
    %v7939 = vld [vmem:[#allocation30 + $0x2c0] sm:$0xff]
    %v7940 = vld [vmem:[#allocation30 + $0x2c8] sm:$0xff]
    %v7941 = vld [vmem:[#allocation30 + $0x2d0] sm:$0xff]
    %v7942 = vld [vmem:[#allocation30 + $0x2d8] sm:$0xff]
    %v7943 = vld [vmem:[#allocation30 + $0x2e0] sm:$0xff]
    %v7944 = vld [vmem:[#allocation30 + $0x2e8] sm:$0xff]
    %v7945 = vld [vmem:[#allocation30 + $0x2f0] sm:$0xff]
    %v7946 = vld [vmem:[#allocation30 + $0x2f8] sm:$0xff]
    %s7947 = scalar_lea.vmem [#allocation29], 8
    %v7948 = vld [vmem:[%s7947] sm:$0xff]
    %v7950 = vsel %vm7787, %v7948, 0
    %7952 = vmatpush.msra.mxu0 0.0
    %7953 = vmatpush.msra.mxu0 0.0
    %7954 = vmatpush.msra.mxu0 0.0
    %7955 = vmatpush.msra.mxu0 0.0
    %7956 = vmatpush.msra.mxu0 0.0
    %7957 = vmatpush.msra.mxu0 0.0
    %7958 = vmatpush.msra.mxu0 0.0
    %7959 = vmatpush.msra.mxu0 0.0
    %7960 = vmatpush.msra.mxu0 0.0
    %7961 = vmatpush.msra.mxu0 0.0
    %7962 = vmatpush.msra.mxu0 0.0
    %7963 = vmatpush.msra.mxu0 0.0
    %7964 = vmatpush.msra.mxu0 0.0
    %7965 = vmatpush.msra.mxu0 %v7783
    %7966 = vmatpush.msra.mxu0 %v7780
    %7967 = vmatpush.msra.mxu0 %v7777
    %7968 = vmatmul.f32.gmra.mxu0 %v7950
    %v7969 = vpop.f32.mrf.mxu0
    %v7970 = vadd.f32 0.0, %v7969
    %7971 = vdwg.mxu0
    %7972 = vmatpush.msra.mxu0 0.0
    %7973 = vmatpush.msra.mxu0 0.0
    %7974 = vmatpush.msra.mxu0 0.0
    %7975 = vmatpush.msra.mxu0 0.0
    %7976 = vmatpush.msra.mxu0 0.0
    %7977 = vmatpush.msra.mxu0 0.0
    %7978 = vmatpush.msra.mxu0 0.0
    %7979 = vmatpush.msra.mxu0 0.0
    %7980 = vmatpush.msra.mxu0 0.0
    %7981 = vmatpush.msra.mxu0 0.0
    %7982 = vmatpush.msra.mxu0 0.0
    %7983 = vmatpush.msra.mxu0 0.0
    %7984 = vmatpush.msra.mxu0 0.0
    %7985 = vmatpush.msra.mxu0 %v7784
    %7986 = vmatpush.msra.mxu0 %v7781
    %7987 = vmatpush.msra.mxu0 %v7778
    %7988 = vmatmul.f32.gmra.mxu0 %v7950
    %v7989 = vpop.f32.mrf.mxu0
    %v7990 = vadd.f32 0.0, %v7989
    %7991 = vdwg.mxu0
    %7992 = vmatpush.msra.mxu0 0.0
    %7993 = vmatpush.msra.mxu0 0.0
    %7994 = vmatpush.msra.mxu0 0.0
    %7995 = vmatpush.msra.mxu0 0.0
    %7996 = vmatpush.msra.mxu0 0.0
    %7997 = vmatpush.msra.mxu0 0.0
    %7998 = vmatpush.msra.mxu0 0.0
    %7999 = vmatpush.msra.mxu0 0.0
    %8000 = vmatpush.msra.mxu0 0.0
    %8001 = vmatpush.msra.mxu0 0.0
    %8002 = vmatpush.msra.mxu0 0.0
    %8003 = vmatpush.msra.mxu0 0.0
    %8004 = vmatpush.msra.mxu0 0.0
    %8005 = vmatpush.msra.mxu0 %v7785
    %8006 = vmatpush.msra.mxu0 %v7782
    %8007 = vmatpush.msra.mxu0 %v7779
    %8008 = vmatmul.f32.gmra.mxu0 %v7950
    %v8009 = vpop.f32.mrf.mxu0
    %v8010 = vadd.f32 0.0, %v8009
    %8011 = vdwg.mxu0
    %s8012 = scalar_lea.vmem [#allocation30], 768
    %v8013 = vld [vmem:[%s8012] sm:$0xff]
    %v8014 = vld [vmem:[%s8012 + $0x8] sm:$0xff]
    %v8015 = vld [vmem:[%s8012 + $0x10] sm:$0xff]
    %v8016 = vld [vmem:[%s8012 + $0x18] sm:$0xff]
    %v8017 = vld [vmem:[%s8012 + $0x20] sm:$0xff]
    %v8018 = vld [vmem:[%s8012 + $0x28] sm:$0xff]
    %v8019 = vld [vmem:[%s8012 + $0x30] sm:$0xff]
    %v8020 = vld [vmem:[%s8012 + $0x38] sm:$0xff]
    %v8021 = vld [vmem:[%s8012 + $0x40] sm:$0xff]
    %v8022 = vld [vmem:[%s8012 + $0x48] sm:$0xff]
    %v8023 = vld [vmem:[%s8012 + $0x50] sm:$0xff]
    %v8024 = vld [vmem:[%s8012 + $0x58] sm:$0xff]
    %v8025 = vld [vmem:[%s8012 + $0x60] sm:$0xff]
    %v8026 = vld [vmem:[%s8012 + $0x68] sm:$0xff]
    %v8027 = vld [vmem:[%s8012 + $0x70] sm:$0xff]
    %v8028 = vld [vmem:[%s8012 + $0x78] sm:$0xff]
    %v8029 = vld [vmem:[%s8012 + $0x80] sm:$0xff]
    %v8030 = vld [vmem:[%s8012 + $0x88] sm:$0xff]
    %v8031 = vld [vmem:[%s8012 + $0x90] sm:$0xff]
    %v8032 = vld [vmem:[%s8012 + $0x98] sm:$0xff]
    %v8033 = vld [vmem:[%s8012 + $0xa0] sm:$0xff]
    %v8034 = vld [vmem:[%s8012 + $0xa8] sm:$0xff]
    %v8035 = vld [vmem:[%s8012 + $0xb0] sm:$0xff]
    %v8036 = vld [vmem:[%s8012 + $0xb8] sm:$0xff]
    %v8037 = vld [vmem:[%s8012 + $0xc0] sm:$0xff]
    %v8038 = vld [vmem:[%s8012 + $0xc8] sm:$0xff]
    %v8039 = vld [vmem:[%s8012 + $0xd0] sm:$0xff]
    %v8040 = vld [vmem:[%s8012 + $0xd8] sm:$0xff]
    %v8041 = vld [vmem:[%s8012 + $0xe0] sm:$0xff]
    %v8042 = vld [vmem:[%s8012 + $0xe8] sm:$0xff]
    %v8043 = vld [vmem:[%s8012 + $0xf0] sm:$0xff]
    %v8044 = vld [vmem:[%s8012 + $0xf8] sm:$0xff]
    %v8045 = vld [vmem:[%s8012 + $0x100] sm:$0xff]
    %v8046 = vld [vmem:[%s8012 + $0x108] sm:$0xff]
    %v8047 = vld [vmem:[%s8012 + $0x110] sm:$0xff]
    %v8048 = vld [vmem:[%s8012 + $0x118] sm:$0xff]
    %v8049 = vld [vmem:[%s8012 + $0x120] sm:$0xff]
    %v8050 = vld [vmem:[%s8012 + $0x128] sm:$0xff]
    %v8051 = vld [vmem:[%s8012 + $0x130] sm:$0xff]
    %v8052 = vld [vmem:[%s8012 + $0x138] sm:$0xff]
    %v8053 = vld [vmem:[%s8012 + $0x140] sm:$0xff]
    %v8054 = vld [vmem:[%s8012 + $0x148] sm:$0xff]
    %v8055 = vld [vmem:[%s8012 + $0x150] sm:$0xff]
    %v8056 = vld [vmem:[%s8012 + $0x158] sm:$0xff]
    %v8057 = vld [vmem:[%s8012 + $0x160] sm:$0xff]
    %v8058 = vld [vmem:[%s8012 + $0x168] sm:$0xff]
    %v8059 = vld [vmem:[%s8012 + $0x170] sm:$0xff]
    %v8060 = vld [vmem:[%s8012 + $0x178] sm:$0xff]
    %v8061 = vld [vmem:[%s8012 + $0x180] sm:$0xff]
    %v8062 = vld [vmem:[%s8012 + $0x188] sm:$0xff]
    %v8063 = vld [vmem:[%s8012 + $0x190] sm:$0xff]
    %v8064 = vld [vmem:[%s8012 + $0x198] sm:$0xff]
    %v8065 = vld [vmem:[%s8012 + $0x1a0] sm:$0xff]
    %v8066 = vld [vmem:[%s8012 + $0x1a8] sm:$0xff]
    %v8067 = vld [vmem:[%s8012 + $0x1b0] sm:$0xff]
    %v8068 = vld [vmem:[%s8012 + $0x1b8] sm:$0xff]
    %v8069 = vld [vmem:[%s8012 + $0x1c0] sm:$0xff]
    %v8070 = vld [vmem:[%s8012 + $0x1c8] sm:$0xff]
    %v8071 = vld [vmem:[%s8012 + $0x1d0] sm:$0xff]
    %v8072 = vld [vmem:[%s8012 + $0x1d8] sm:$0xff]
    %v8073 = vld [vmem:[%s8012 + $0x1e0] sm:$0xff]
    %v8074 = vld [vmem:[%s8012 + $0x1e8] sm:$0xff]
    %v8075 = vld [vmem:[%s8012 + $0x1f0] sm:$0xff]
    %v8076 = vld [vmem:[%s8012 + $0x1f8] sm:$0xff]
    %v8077 = vld [vmem:[%s8012 + $0x200] sm:$0xff]
    %v8078 = vld [vmem:[%s8012 + $0x208] sm:$0xff]
    %v8079 = vld [vmem:[%s8012 + $0x210] sm:$0xff]
    %v8080 = vld [vmem:[%s8012 + $0x218] sm:$0xff]
    %v8081 = vld [vmem:[%s8012 + $0x220] sm:$0xff]
    %v8082 = vld [vmem:[%s8012 + $0x228] sm:$0xff]
    %v8083 = vld [vmem:[%s8012 + $0x230] sm:$0xff]
    %v8084 = vld [vmem:[%s8012 + $0x238] sm:$0xff]
    %v8085 = vld [vmem:[%s8012 + $0x240] sm:$0xff]
    %v8086 = vld [vmem:[%s8012 + $0x248] sm:$0xff]
    %v8087 = vld [vmem:[%s8012 + $0x250] sm:$0xff]
    %v8088 = vld [vmem:[%s8012 + $0x258] sm:$0xff]
    %v8089 = vld [vmem:[%s8012 + $0x260] sm:$0xff]
    %v8090 = vld [vmem:[%s8012 + $0x268] sm:$0xff]
    %v8091 = vld [vmem:[%s8012 + $0x270] sm:$0xff]
    %v8092 = vld [vmem:[%s8012 + $0x278] sm:$0xff]
    %v8093 = vld [vmem:[%s8012 + $0x280] sm:$0xff]
    %v8094 = vld [vmem:[%s8012 + $0x288] sm:$0xff]
    %v8095 = vld [vmem:[%s8012 + $0x290] sm:$0xff]
    %v8096 = vld [vmem:[%s8012 + $0x298] sm:$0xff]
    %v8097 = vld [vmem:[%s8012 + $0x2a0] sm:$0xff]
    %v8098 = vld [vmem:[%s8012 + $0x2a8] sm:$0xff]
    %v8099 = vld [vmem:[%s8012 + $0x2b0] sm:$0xff]
    %v8100 = vld [vmem:[%s8012 + $0x2b8] sm:$0xff]
    %v8101 = vld [vmem:[%s8012 + $0x2c0] sm:$0xff]
    %v8102 = vld [vmem:[%s8012 + $0x2c8] sm:$0xff]
    %v8103 = vld [vmem:[%s8012 + $0x2d0] sm:$0xff]
    %v8104 = vld [vmem:[%s8012 + $0x2d8] sm:$0xff]
    %v8105 = vld [vmem:[%s8012 + $0x2e0] sm:$0xff]
    %v8106 = vld [vmem:[%s8012 + $0x2e8] sm:$0xff]
    %v8107 = vld [vmem:[%s8012 + $0x2f0] sm:$0xff]
    %v8108 = vld [vmem:[%s8012 + $0x2f8] sm:$0xff]
    %8109 = vmatpush.msra.mxu0 %v8043
    %8110 = vmatpush.msra.mxu0 %v8041
    %8111 = vmatpush.msra.mxu0 %v8039
    %8112 = vmatpush.msra.mxu0 %v8037
    %8113 = vmatpush.msra.mxu0 %v8035
    %8114 = vmatpush.msra.mxu0 %v8033
    %8115 = vmatpush.msra.mxu0 %v8031
    %8116 = vmatpush.msra.mxu0 %v8029
    %8117 = vmatpush.msra.mxu0 %v8027
    %8118 = vmatpush.msra.mxu0 %v8025
    %8119 = vmatpush.msra.mxu0 %v8023
    %8120 = vmatpush.msra.mxu0 %v8021
    %8121 = vmatpush.msra.mxu0 %v8019
    %8122 = vmatpush.msra.mxu0 %v8017
    %8123 = vmatpush.msra.mxu0 %v8015
    %8124 = vmatpush.msra.mxu0 %v8013
    %8125 = vmatmul.f32.gmra.mxu0 %v7970
    %v8126 = vpop.f32.mrf.mxu0
    %v8127 = vadd.f32 0.0, %v8126
    %8128 = vdwg.mxu0
    %8129 = vmatpush.msra.mxu0 %v8075
    %8130 = vmatpush.msra.mxu0 %v8073
    %8131 = vmatpush.msra.mxu0 %v8071
    %8132 = vmatpush.msra.mxu0 %v8069
    %8133 = vmatpush.msra.mxu0 %v8067
    %8134 = vmatpush.msra.mxu0 %v8065
    %8135 = vmatpush.msra.mxu0 %v8063
    %8136 = vmatpush.msra.mxu0 %v8061
    %8137 = vmatpush.msra.mxu0 %v8059
    %8138 = vmatpush.msra.mxu0 %v8057
    %8139 = vmatpush.msra.mxu0 %v8055
    %8140 = vmatpush.msra.mxu0 %v8053
    %8141 = vmatpush.msra.mxu0 %v8051
    %8142 = vmatpush.msra.mxu0 %v8049
    %8143 = vmatpush.msra.mxu0 %v8047
    %8144 = vmatpush.msra.mxu0 %v8045
    %8145 = vmatmul.f32.gmra.mxu0 %v7990
    %v8146 = vpop.f32.mrf.mxu0
    %v8147 = vadd.f32 %v8127, %v8146
    %8148 = vdwg.mxu0
    %8149 = vmatpush.msra.mxu0 %v8107
    %8150 = vmatpush.msra.mxu0 %v8105
    %8151 = vmatpush.msra.mxu0 %v8103
    %8152 = vmatpush.msra.mxu0 %v8101
    %8153 = vmatpush.msra.mxu0 %v8099
    %8154 = vmatpush.msra.mxu0 %v8097
    %8155 = vmatpush.msra.mxu0 %v8095
    %8156 = vmatpush.msra.mxu0 %v8093
    %8157 = vmatpush.msra.mxu0 %v8091
    %8158 = vmatpush.msra.mxu0 %v8089
    %8159 = vmatpush.msra.mxu0 %v8087
    %8160 = vmatpush.msra.mxu0 %v8085
    %8161 = vmatpush.msra.mxu0 %v8083
    %8162 = vmatpush.msra.mxu0 %v8081
    %8163 = vmatpush.msra.mxu0 %v8079
    %8164 = vmatpush.msra.mxu0 %v8077
    %8165 = vmatmul.f32.gmra.mxu0 %v8010
    %v8166 = vpop.f32.mrf.mxu0
    %v8167 = vadd.f32 %v8147, %v8166
    %8168 = vdwg.mxu0
    %8169 = vmatpush.msra.mxu0 %v8044
    %8170 = vmatpush.msra.mxu0 %v8042
    %8171 = vmatpush.msra.mxu0 %v8040
    %8172 = vmatpush.msra.mxu0 %v8038
    %8173 = vmatpush.msra.mxu0 %v8036
    %8174 = vmatpush.msra.mxu0 %v8034
    %8175 = vmatpush.msra.mxu0 %v8032
    %8176 = vmatpush.msra.mxu0 %v8030
    %8177 = vmatpush.msra.mxu0 %v8028
    %8178 = vmatpush.msra.mxu0 %v8026
    %8179 = vmatpush.msra.mxu0 %v8024
    %8180 = vmatpush.msra.mxu0 %v8022
    %8181 = vmatpush.msra.mxu0 %v8020
    %8182 = vmatpush.msra.mxu0 %v8018
    %8183 = vmatpush.msra.mxu0 %v8016
    %8184 = vmatpush.msra.mxu0 %v8014
    %8185 = vmatmul.f32.gmra.mxu0 %v7970
    %v8186 = vpop.f32.mrf.mxu0
    %v8187 = vadd.f32 0.0, %v8186
    %8188 = vdwg.mxu0
    %8189 = vmatpush.msra.mxu0 %v8076
    %8190 = vmatpush.msra.mxu0 %v8074
    %8191 = vmatpush.msra.mxu0 %v8072
    %8192 = vmatpush.msra.mxu0 %v8070
    %8193 = vmatpush.msra.mxu0 %v8068
    %8194 = vmatpush.msra.mxu0 %v8066
    %8195 = vmatpush.msra.mxu0 %v8064
    %8196 = vmatpush.msra.mxu0 %v8062
    %8197 = vmatpush.msra.mxu0 %v8060
    %8198 = vmatpush.msra.mxu0 %v8058
    %8199 = vmatpush.msra.mxu0 %v8056
    %8200 = vmatpush.msra.mxu0 %v8054
    %8201 = vmatpush.msra.mxu0 %v8052
    %8202 = vmatpush.msra.mxu0 %v8050
    %8203 = vmatpush.msra.mxu0 %v8048
    %8204 = vmatpush.msra.mxu0 %v8046
    %8205 = vmatmul.f32.gmra.mxu0 %v7990
    %v8206 = vpop.f32.mrf.mxu0
    %v8207 = vadd.f32 %v8187, %v8206
    %8208 = vdwg.mxu0
    %8209 = vmatpush.msra.mxu0 %v8108
    %8210 = vmatpush.msra.mxu0 %v8106
    %8211 = vmatpush.msra.mxu0 %v8104
    %8212 = vmatpush.msra.mxu0 %v8102
    %8213 = vmatpush.msra.mxu0 %v8100
    %8214 = vmatpush.msra.mxu0 %v8098
    %8215 = vmatpush.msra.mxu0 %v8096
    %8216 = vmatpush.msra.mxu0 %v8094
    %8217 = vmatpush.msra.mxu0 %v8092
    %8218 = vmatpush.msra.mxu0 %v8090
    %8219 = vmatpush.msra.mxu0 %v8088
    %8220 = vmatpush.msra.mxu0 %v8086
    %8221 = vmatpush.msra.mxu0 %v8084
    %8222 = vmatpush.msra.mxu0 %v8082
    %8223 = vmatpush.msra.mxu0 %v8080
    %8224 = vmatpush.msra.mxu0 %v8078
    %8225 = vmatmul.f32.gmra.mxu0 %v8010
    %v8226 = vpop.f32.mrf.mxu0
    %v8227 = vadd.f32 %v8207, %v8226
    %8228 = vdwg.mxu0
    %8229 = vmatpush.msra.mxu0 %v7881
    %8230 = vmatpush.msra.mxu0 %v7879
    %8231 = vmatpush.msra.mxu0 %v7877
    %8232 = vmatpush.msra.mxu0 %v7875
    %8233 = vmatpush.msra.mxu0 %v7873
    %8234 = vmatpush.msra.mxu0 %v7871
    %8235 = vmatpush.msra.mxu0 %v7869
    %8236 = vmatpush.msra.mxu0 %v7867
    %8237 = vmatpush.msra.mxu0 %v7865
    %8238 = vmatpush.msra.mxu0 %v7863
    %8239 = vmatpush.msra.mxu0 %v7861
    %8240 = vmatpush.msra.mxu0 %v7859
    %8241 = vmatpush.msra.mxu0 %v7857
    %8242 = vmatpush.msra.mxu0 %v7855
    %8243 = vmatpush.msra.mxu0 %v7853
    %8244 = vmatpush.msra.mxu0 %v7851
    %8245 = vmatmul.f32.gmra.mxu0 %v7809
    %v8246 = vpop.f32.mrf.mxu0
    %v8247 = vadd.f32 %v8167, %v8246
    %8248 = vdwg.mxu0
    %8249 = vmatpush.msra.mxu0 %v7913
    %8250 = vmatpush.msra.mxu0 %v7911
    %8251 = vmatpush.msra.mxu0 %v7909
    %8252 = vmatpush.msra.mxu0 %v7907
    %8253 = vmatpush.msra.mxu0 %v7905
    %8254 = vmatpush.msra.mxu0 %v7903
    %8255 = vmatpush.msra.mxu0 %v7901
    %8256 = vmatpush.msra.mxu0 %v7899
    %8257 = vmatpush.msra.mxu0 %v7897
    %8258 = vmatpush.msra.mxu0 %v7895
    %8259 = vmatpush.msra.mxu0 %v7893
    %8260 = vmatpush.msra.mxu0 %v7891
    %8261 = vmatpush.msra.mxu0 %v7889
    %8262 = vmatpush.msra.mxu0 %v7887
    %8263 = vmatpush.msra.mxu0 %v7885
    %8264 = vmatpush.msra.mxu0 %v7883
    %8265 = vmatmul.f32.gmra.mxu0 %v7829
    %v8266 = vpop.f32.mrf.mxu0
    %v8267 = vadd.f32 %v8247, %v8266
    %8268 = vdwg.mxu0
    %8269 = vmatpush.msra.mxu0 %v7945
    %8270 = vmatpush.msra.mxu0 %v7943
    %8271 = vmatpush.msra.mxu0 %v7941
    %8272 = vmatpush.msra.mxu0 %v7939
    %8273 = vmatpush.msra.mxu0 %v7937
    %8274 = vmatpush.msra.mxu0 %v7935
    %8275 = vmatpush.msra.mxu0 %v7933
    %8276 = vmatpush.msra.mxu0 %v7931
    %8277 = vmatpush.msra.mxu0 %v7929
    %8278 = vmatpush.msra.mxu0 %v7927
    %8279 = vmatpush.msra.mxu0 %v7925
    %8280 = vmatpush.msra.mxu0 %v7923
    %8281 = vmatpush.msra.mxu0 %v7921
    %8282 = vmatpush.msra.mxu0 %v7919
    %8283 = vmatpush.msra.mxu0 %v7917
    %8284 = vmatpush.msra.mxu0 %v7915
    %8285 = vmatmul.f32.gmra.mxu0 %v7849
    %v8286 = vpop.f32.mrf.mxu0
    %v8287 = vadd.f32 %v8267, %v8286
    %8288 = vdwg.mxu0
    %8289 = vmatpush.msra.mxu0 %v7882
    %8290 = vmatpush.msra.mxu0 %v7880
    %8291 = vmatpush.msra.mxu0 %v7878
    %8292 = vmatpush.msra.mxu0 %v7876
    %8293 = vmatpush.msra.mxu0 %v7874
    %8294 = vmatpush.msra.mxu0 %v7872
    %8295 = vmatpush.msra.mxu0 %v7870
    %8296 = vmatpush.msra.mxu0 %v7868
    %8297 = vmatpush.msra.mxu0 %v7866
    %8298 = vmatpush.msra.mxu0 %v7864
    %8299 = vmatpush.msra.mxu0 %v7862
    %8300 = vmatpush.msra.mxu0 %v7860
    %8301 = vmatpush.msra.mxu0 %v7858
    %8302 = vmatpush.msra.mxu0 %v7856
    %8303 = vmatpush.msra.mxu0 %v7854
    %8304 = vmatpush.msra.mxu0 %v7852
    %8305 = vmatmul.f32.gmra.mxu0 %v7809
    %v8306 = vpop.f32.mrf.mxu0
    %v8307 = vadd.f32 %v8227, %v8306
    %8308 = vdwg.mxu0
    %8309 = vmatpush.msra.mxu0 %v7914
    %8310 = vmatpush.msra.mxu0 %v7912
    %8311 = vmatpush.msra.mxu0 %v7910
    %8312 = vmatpush.msra.mxu0 %v7908
    %8313 = vmatpush.msra.mxu0 %v7906
    %8314 = vmatpush.msra.mxu0 %v7904
    %8315 = vmatpush.msra.mxu0 %v7902
    %8316 = vmatpush.msra.mxu0 %v7900
    %8317 = vmatpush.msra.mxu0 %v7898
    %8318 = vmatpush.msra.mxu0 %v7896
    %8319 = vmatpush.msra.mxu0 %v7894
    %8320 = vmatpush.msra.mxu0 %v7892
    %8321 = vmatpush.msra.mxu0 %v7890
    %8322 = vmatpush.msra.mxu0 %v7888
    %8323 = vmatpush.msra.mxu0 %v7886
    %8324 = vmatpush.msra.mxu0 %v7884
    %8325 = vmatmul.f32.gmra.mxu0 %v7829
    %v8326 = vpop.f32.mrf.mxu0
    %v8327 = vadd.f32 %v8307, %v8326
    %8328 = vdwg.mxu0
    %8329 = vmatpush.msra.mxu0 %v7946
    %8330 = vmatpush.msra.mxu0 %v7944
    %8331 = vmatpush.msra.mxu0 %v7942
    %8332 = vmatpush.msra.mxu0 %v7940
    %8333 = vmatpush.msra.mxu0 %v7938
    %8334 = vmatpush.msra.mxu0 %v7936
    %8335 = vmatpush.msra.mxu0 %v7934
    %8336 = vmatpush.msra.mxu0 %v7932
    %8337 = vmatpush.msra.mxu0 %v7930
    %8338 = vmatpush.msra.mxu0 %v7928
    %8339 = vmatpush.msra.mxu0 %v7926
    %8340 = vmatpush.msra.mxu0 %v7924
    %8341 = vmatpush.msra.mxu0 %v7922
    %8342 = vmatpush.msra.mxu0 %v7920
    %8343 = vmatpush.msra.mxu0 %v7918
    %8344 = vmatpush.msra.mxu0 %v7916
    %8345 = vmatmul.f32.gmra.mxu0 %v7849
    %v8346 = vpop.f32.mrf.mxu0
    %v8347 = vadd.f32 %v8327, %v8346
    %8348 = vdwg.mxu0
    %s8349 = scalar_lea.vmem [#allocation29], 16
    %v8350 = vld [vmem:[%s8349] sm:$0xff]
    %v8352 = vsel %vm7787, %v8350, 0
    %8354 = vmatpush.msra.mxu0 0.0
    %8355 = vmatpush.msra.mxu0 0.0
    %8356 = vmatpush.msra.mxu0 0.0
    %8357 = vmatpush.msra.mxu0 0.0
    %8358 = vmatpush.msra.mxu0 0.0
    %8359 = vmatpush.msra.mxu0 0.0
    %8360 = vmatpush.msra.mxu0 0.0
    %8361 = vmatpush.msra.mxu0 0.0
    %8362 = vmatpush.msra.mxu0 0.0
    %8363 = vmatpush.msra.mxu0 0.0
    %8364 = vmatpush.msra.mxu0 0.0
    %8365 = vmatpush.msra.mxu0 0.0
    %8366 = vmatpush.msra.mxu0 0.0
    %8367 = vmatpush.msra.mxu0 %v7783
    %8368 = vmatpush.msra.mxu0 %v7780
    %8369 = vmatpush.msra.mxu0 %v7777
    %8370 = vmatmul.f32.gmra.mxu0 %v8352
    %v8371 = vpop.f32.mrf.mxu0
    %v8372 = vadd.f32 0.0, %v8371
    %8373 = vdwg.mxu0
    %8374 = vmatpush.msra.mxu0 0.0
    %8375 = vmatpush.msra.mxu0 0.0
    %8376 = vmatpush.msra.mxu0 0.0
    %8377 = vmatpush.msra.mxu0 0.0
    %8378 = vmatpush.msra.mxu0 0.0
    %8379 = vmatpush.msra.mxu0 0.0
    %8380 = vmatpush.msra.mxu0 0.0
    %8381 = vmatpush.msra.mxu0 0.0
    %8382 = vmatpush.msra.mxu0 0.0
    %8383 = vmatpush.msra.mxu0 0.0
    %8384 = vmatpush.msra.mxu0 0.0
    %8385 = vmatpush.msra.mxu0 0.0
    %8386 = vmatpush.msra.mxu0 0.0
    %8387 = vmatpush.msra.mxu0 %v7784
    %8388 = vmatpush.msra.mxu0 %v7781
    %8389 = vmatpush.msra.mxu0 %v7778
    %8390 = vmatmul.f32.gmra.mxu0 %v8352
    %v8391 = vpop.f32.mrf.mxu0
    %v8392 = vadd.f32 0.0, %v8391
    %8393 = vdwg.mxu0
    %8394 = vmatpush.msra.mxu0 0.0
    %8395 = vmatpush.msra.mxu0 0.0
    %8396 = vmatpush.msra.mxu0 0.0
    %8397 = vmatpush.msra.mxu0 0.0
    %8398 = vmatpush.msra.mxu0 0.0
    %8399 = vmatpush.msra.mxu0 0.0
    %8400 = vmatpush.msra.mxu0 0.0
    %8401 = vmatpush.msra.mxu0 0.0
    %8402 = vmatpush.msra.mxu0 0.0
    %8403 = vmatpush.msra.mxu0 0.0
    %8404 = vmatpush.msra.mxu0 0.0
    %8405 = vmatpush.msra.mxu0 0.0
    %8406 = vmatpush.msra.mxu0 0.0
    %8407 = vmatpush.msra.mxu0 %v7785
    %8408 = vmatpush.msra.mxu0 %v7782
    %8409 = vmatpush.msra.mxu0 %v7779
    %8410 = vmatmul.f32.gmra.mxu0 %v8352
    %v8411 = vpop.f32.mrf.mxu0
    %v8412 = vadd.f32 0.0, %v8411
    %8413 = vdwg.mxu0
    %s8414 = scalar_lea.vmem [#allocation30], 1536
    %v8415 = vld [vmem:[%s8414] sm:$0xff]
    %v8416 = vld [vmem:[%s8414 + $0x8] sm:$0xff]
    %v8417 = vld [vmem:[%s8414 + $0x10] sm:$0xff]
    %v8418 = vld [vmem:[%s8414 + $0x18] sm:$0xff]
    %v8419 = vld [vmem:[%s8414 + $0x20] sm:$0xff]
    %v8420 = vld [vmem:[%s8414 + $0x28] sm:$0xff]
    %v8421 = vld [vmem:[%s8414 + $0x30] sm:$0xff]
    %v8422 = vld [vmem:[%s8414 + $0x38] sm:$0xff]
    %v8423 = vld [vmem:[%s8414 + $0x40] sm:$0xff]
    %v8424 = vld [vmem:[%s8414 + $0x48] sm:$0xff]
    %v8425 = vld [vmem:[%s8414 + $0x50] sm:$0xff]
    %v8426 = vld [vmem:[%s8414 + $0x58] sm:$0xff]
    %v8427 = vld [vmem:[%s8414 + $0x60] sm:$0xff]
    %v8428 = vld [vmem:[%s8414 + $0x68] sm:$0xff]
    %v8429 = vld [vmem:[%s8414 + $0x70] sm:$0xff]
    %v8430 = vld [vmem:[%s8414 + $0x78] sm:$0xff]
    %v8431 = vld [vmem:[%s8414 + $0x80] sm:$0xff]
    %v8432 = vld [vmem:[%s8414 + $0x88] sm:$0xff]
    %v8433 = vld [vmem:[%s8414 + $0x90] sm:$0xff]
    %v8434 = vld [vmem:[%s8414 + $0x98] sm:$0xff]
    %v8435 = vld [vmem:[%s8414 + $0xa0] sm:$0xff]
    %v8436 = vld [vmem:[%s8414 + $0xa8] sm:$0xff]
    %v8437 = vld [vmem:[%s8414 + $0xb0] sm:$0xff]
    %v8438 = vld [vmem:[%s8414 + $0xb8] sm:$0xff]
    %v8439 = vld [vmem:[%s8414 + $0xc0] sm:$0xff]
    %v8440 = vld [vmem:[%s8414 + $0xc8] sm:$0xff]
    %v8441 = vld [vmem:[%s8414 + $0xd0] sm:$0xff]
    %v8442 = vld [vmem:[%s8414 + $0xd8] sm:$0xff]
    %v8443 = vld [vmem:[%s8414 + $0xe0] sm:$0xff]
    %v8444 = vld [vmem:[%s8414 + $0xe8] sm:$0xff]
    %v8445 = vld [vmem:[%s8414 + $0xf0] sm:$0xff]
    %v8446 = vld [vmem:[%s8414 + $0xf8] sm:$0xff]
    %v8447 = vld [vmem:[%s8414 + $0x100] sm:$0xff]
    %v8448 = vld [vmem:[%s8414 + $0x108] sm:$0xff]
    %v8449 = vld [vmem:[%s8414 + $0x110] sm:$0xff]
    %v8450 = vld [vmem:[%s8414 + $0x118] sm:$0xff]
    %v8451 = vld [vmem:[%s8414 + $0x120] sm:$0xff]
    %v8452 = vld [vmem:[%s8414 + $0x128] sm:$0xff]
    %v8453 = vld [vmem:[%s8414 + $0x130] sm:$0xff]
    %v8454 = vld [vmem:[%s8414 + $0x138] sm:$0xff]
    %v8455 = vld [vmem:[%s8414 + $0x140] sm:$0xff]
    %v8456 = vld [vmem:[%s8414 + $0x148] sm:$0xff]
    %v8457 = vld [vmem:[%s8414 + $0x150] sm:$0xff]
    %v8458 = vld [vmem:[%s8414 + $0x158] sm:$0xff]
    %v8459 = vld [vmem:[%s8414 + $0x160] sm:$0xff]
    %v8460 = vld [vmem:[%s8414 + $0x168] sm:$0xff]
    %v8461 = vld [vmem:[%s8414 + $0x170] sm:$0xff]
    %v8462 = vld [vmem:[%s8414 + $0x178] sm:$0xff]
    %v8463 = vld [vmem:[%s8414 + $0x180] sm:$0xff]
    %v8464 = vld [vmem:[%s8414 + $0x188] sm:$0xff]
    %v8465 = vld [vmem:[%s8414 + $0x190] sm:$0xff]
    %v8466 = vld [vmem:[%s8414 + $0x198] sm:$0xff]
    %v8467 = vld [vmem:[%s8414 + $0x1a0] sm:$0xff]
    %v8468 = vld [vmem:[%s8414 + $0x1a8] sm:$0xff]
    %v8469 = vld [vmem:[%s8414 + $0x1b0] sm:$0xff]
    %v8470 = vld [vmem:[%s8414 + $0x1b8] sm:$0xff]
    %v8471 = vld [vmem:[%s8414 + $0x1c0] sm:$0xff]
    %v8472 = vld [vmem:[%s8414 + $0x1c8] sm:$0xff]
    %v8473 = vld [vmem:[%s8414 + $0x1d0] sm:$0xff]
    %v8474 = vld [vmem:[%s8414 + $0x1d8] sm:$0xff]
    %v8475 = vld [vmem:[%s8414 + $0x1e0] sm:$0xff]
    %v8476 = vld [vmem:[%s8414 + $0x1e8] sm:$0xff]
    %v8477 = vld [vmem:[%s8414 + $0x1f0] sm:$0xff]
    %v8478 = vld [vmem:[%s8414 + $0x1f8] sm:$0xff]
    %v8479 = vld [vmem:[%s8414 + $0x200] sm:$0xff]
    %v8480 = vld [vmem:[%s8414 + $0x208] sm:$0xff]
    %v8481 = vld [vmem:[%s8414 + $0x210] sm:$0xff]
    %v8482 = vld [vmem:[%s8414 + $0x218] sm:$0xff]
    %v8483 = vld [vmem:[%s8414 + $0x220] sm:$0xff]
    %v8484 = vld [vmem:[%s8414 + $0x228] sm:$0xff]
    %v8485 = vld [vmem:[%s8414 + $0x230] sm:$0xff]
    %v8486 = vld [vmem:[%s8414 + $0x238] sm:$0xff]
    %v8487 = vld [vmem:[%s8414 + $0x240] sm:$0xff]
    %v8488 = vld [vmem:[%s8414 + $0x248] sm:$0xff]
    %v8489 = vld [vmem:[%s8414 + $0x250] sm:$0xff]
    %v8490 = vld [vmem:[%s8414 + $0x258] sm:$0xff]
    %v8491 = vld [vmem:[%s8414 + $0x260] sm:$0xff]
    %v8492 = vld [vmem:[%s8414 + $0x268] sm:$0xff]
    %v8493 = vld [vmem:[%s8414 + $0x270] sm:$0xff]
    %v8494 = vld [vmem:[%s8414 + $0x278] sm:$0xff]
    %v8495 = vld [vmem:[%s8414 + $0x280] sm:$0xff]
    %v8496 = vld [vmem:[%s8414 + $0x288] sm:$0xff]
    %v8497 = vld [vmem:[%s8414 + $0x290] sm:$0xff]
    %v8498 = vld [vmem:[%s8414 + $0x298] sm:$0xff]
    %v8499 = vld [vmem:[%s8414 + $0x2a0] sm:$0xff]
    %v8500 = vld [vmem:[%s8414 + $0x2a8] sm:$0xff]
    %v8501 = vld [vmem:[%s8414 + $0x2b0] sm:$0xff]
    %v8502 = vld [vmem:[%s8414 + $0x2b8] sm:$0xff]
    %v8503 = vld [vmem:[%s8414 + $0x2c0] sm:$0xff]
    %v8504 = vld [vmem:[%s8414 + $0x2c8] sm:$0xff]
    %v8505 = vld [vmem:[%s8414 + $0x2d0] sm:$0xff]
    %v8506 = vld [vmem:[%s8414 + $0x2d8] sm:$0xff]
    %v8507 = vld [vmem:[%s8414 + $0x2e0] sm:$0xff]
    %v8508 = vld [vmem:[%s8414 + $0x2e8] sm:$0xff]
    %v8509 = vld [vmem:[%s8414 + $0x2f0] sm:$0xff]
    %v8510 = vld [vmem:[%s8414 + $0x2f8] sm:$0xff]
    %8511 = vmatpush.msra.mxu0 %v8445
    %8512 = vmatpush.msra.mxu0 %v8443
    %8513 = vmatpush.msra.mxu0 %v8441
    %8514 = vmatpush.msra.mxu0 %v8439
    %8515 = vmatpush.msra.mxu0 %v8437
    %8516 = vmatpush.msra.mxu0 %v8435
    %8517 = vmatpush.msra.mxu0 %v8433
    %8518 = vmatpush.msra.mxu0 %v8431
    %8519 = vmatpush.msra.mxu0 %v8429
    %8520 = vmatpush.msra.mxu0 %v8427
    %8521 = vmatpush.msra.mxu0 %v8425
    %8522 = vmatpush.msra.mxu0 %v8423
    %8523 = vmatpush.msra.mxu0 %v8421
    %8524 = vmatpush.msra.mxu0 %v8419
    %8525 = vmatpush.msra.mxu0 %v8417
    %8526 = vmatpush.msra.mxu0 %v8415
    %8527 = vmatmul.f32.gmra.mxu0 %v8372
    %v8528 = vpop.f32.mrf.mxu0
    %v8529 = vadd.f32 0.0, %v8528
    %8530 = vdwg.mxu0
    %8531 = vmatpush.msra.mxu0 %v8477
    %8532 = vmatpush.msra.mxu0 %v8475
    %8533 = vmatpush.msra.mxu0 %v8473
    %8534 = vmatpush.msra.mxu0 %v8471
    %8535 = vmatpush.msra.mxu0 %v8469
    %8536 = vmatpush.msra.mxu0 %v8467
    %8537 = vmatpush.msra.mxu0 %v8465
    %8538 = vmatpush.msra.mxu0 %v8463
    %8539 = vmatpush.msra.mxu0 %v8461
    %8540 = vmatpush.msra.mxu0 %v8459
    %8541 = vmatpush.msra.mxu0 %v8457
    %8542 = vmatpush.msra.mxu0 %v8455
    %8543 = vmatpush.msra.mxu0 %v8453
    %8544 = vmatpush.msra.mxu0 %v8451
    %8545 = vmatpush.msra.mxu0 %v8449
    %8546 = vmatpush.msra.mxu0 %v8447
    %8547 = vmatmul.f32.gmra.mxu0 %v8392
    %v8548 = vpop.f32.mrf.mxu0
    %v8549 = vadd.f32 %v8529, %v8548
    %8550 = vdwg.mxu0
    %8551 = vmatpush.msra.mxu0 %v8509
    %8552 = vmatpush.msra.mxu0 %v8507
    %8553 = vmatpush.msra.mxu0 %v8505
    %8554 = vmatpush.msra.mxu0 %v8503
    %8555 = vmatpush.msra.mxu0 %v8501
    %8556 = vmatpush.msra.mxu0 %v8499
    %8557 = vmatpush.msra.mxu0 %v8497
    %8558 = vmatpush.msra.mxu0 %v8495
    %8559 = vmatpush.msra.mxu0 %v8493
    %8560 = vmatpush.msra.mxu0 %v8491
    %8561 = vmatpush.msra.mxu0 %v8489
    %8562 = vmatpush.msra.mxu0 %v8487
    %8563 = vmatpush.msra.mxu0 %v8485
    %8564 = vmatpush.msra.mxu0 %v8483
    %8565 = vmatpush.msra.mxu0 %v8481
    %8566 = vmatpush.msra.mxu0 %v8479
    %8567 = vmatmul.f32.gmra.mxu0 %v8412
    %v8568 = vpop.f32.mrf.mxu0
    %v8569 = vadd.f32 %v8549, %v8568
    %8570 = vdwg.mxu0
    %8571 = vmatpush.msra.mxu0 %v8446
    %8572 = vmatpush.msra.mxu0 %v8444
    %8573 = vmatpush.msra.mxu0 %v8442
    %8574 = vmatpush.msra.mxu0 %v8440
    %8575 = vmatpush.msra.mxu0 %v8438
    %8576 = vmatpush.msra.mxu0 %v8436
    %8577 = vmatpush.msra.mxu0 %v8434
    %8578 = vmatpush.msra.mxu0 %v8432
    %8579 = vmatpush.msra.mxu0 %v8430
    %8580 = vmatpush.msra.mxu0 %v8428
    %8581 = vmatpush.msra.mxu0 %v8426
    %8582 = vmatpush.msra.mxu0 %v8424
    %8583 = vmatpush.msra.mxu0 %v8422
    %8584 = vmatpush.msra.mxu0 %v8420
    %8585 = vmatpush.msra.mxu0 %v8418
    %8586 = vmatpush.msra.mxu0 %v8416
    %8587 = vmatmul.f32.gmra.mxu0 %v8372
    %v8588 = vpop.f32.mrf.mxu0
    %v8589 = vadd.f32 0.0, %v8588
    %8590 = vdwg.mxu0
    %8591 = vmatpush.msra.mxu0 %v8478
    %8592 = vmatpush.msra.mxu0 %v8476
    %8593 = vmatpush.msra.mxu0 %v8474
    %8594 = vmatpush.msra.mxu0 %v8472
    %8595 = vmatpush.msra.mxu0 %v8470
    %8596 = vmatpush.msra.mxu0 %v8468
    %8597 = vmatpush.msra.mxu0 %v8466
    %8598 = vmatpush.msra.mxu0 %v8464
    %8599 = vmatpush.msra.mxu0 %v8462
    %8600 = vmatpush.msra.mxu0 %v8460
    %8601 = vmatpush.msra.mxu0 %v8458
    %8602 = vmatpush.msra.mxu0 %v8456
    %8603 = vmatpush.msra.mxu0 %v8454
    %8604 = vmatpush.msra.mxu0 %v8452
    %8605 = vmatpush.msra.mxu0 %v8450
    %8606 = vmatpush.msra.mxu0 %v8448
    %8607 = vmatmul.f32.gmra.mxu0 %v8392
    %v8608 = vpop.f32.mrf.mxu0
    %v8609 = vadd.f32 %v8589, %v8608
    %8610 = vdwg.mxu0
    %8611 = vmatpush.msra.mxu0 %v8510
    %8612 = vmatpush.msra.mxu0 %v8508
    %8613 = vmatpush.msra.mxu0 %v8506
    %8614 = vmatpush.msra.mxu0 %v8504
    %8615 = vmatpush.msra.mxu0 %v8502
    %8616 = vmatpush.msra.mxu0 %v8500
    %8617 = vmatpush.msra.mxu0 %v8498
    %8618 = vmatpush.msra.mxu0 %v8496
    %8619 = vmatpush.msra.mxu0 %v8494
    %8620 = vmatpush.msra.mxu0 %v8492
    %8621 = vmatpush.msra.mxu0 %v8490
    %8622 = vmatpush.msra.mxu0 %v8488
    %8623 = vmatpush.msra.mxu0 %v8486
    %8624 = vmatpush.msra.mxu0 %v8484
    %8625 = vmatpush.msra.mxu0 %v8482
    %8626 = vmatpush.msra.mxu0 %v8480
    %8627 = vmatmul.f32.gmra.mxu0 %v8412
    %v8628 = vpop.f32.mrf.mxu0
    %v8629 = vadd.f32 %v8609, %v8628
    %8630 = vdwg.mxu0
    %v8631 = vadd.f32 %v8287, %v8569
    %v8632 = vadd.f32 %v8347, %v8629
    %s8633 = scalar_lea.vmem [#allocation29], 24
    %v8634 = vld [vmem:[%s8633] sm:$0xff]
    %v8636 = vsel %vm7787, %v8634, 0
    %8638 = vmatpush.msra.mxu0 0.0
    %8639 = vmatpush.msra.mxu0 0.0
    %8640 = vmatpush.msra.mxu0 0.0
    %8641 = vmatpush.msra.mxu0 0.0
    %8642 = vmatpush.msra.mxu0 0.0
    %8643 = vmatpush.msra.mxu0 0.0
    %8644 = vmatpush.msra.mxu0 0.0
    %8645 = vmatpush.msra.mxu0 0.0
    %8646 = vmatpush.msra.mxu0 0.0
    %8647 = vmatpush.msra.mxu0 0.0
    %8648 = vmatpush.msra.mxu0 0.0
    %8649 = vmatpush.msra.mxu0 0.0
    %8650 = vmatpush.msra.mxu0 0.0
    %8651 = vmatpush.msra.mxu0 %v7783
    %8652 = vmatpush.msra.mxu0 %v7780
    %8653 = vmatpush.msra.mxu0 %v7777
    %8654 = vmatmul.f32.gmra.mxu0 %v8636
    %v8655 = vpop.f32.mrf.mxu0
    %v8656 = vadd.f32 0.0, %v8655
    %8657 = vdwg.mxu0
    %8658 = vmatpush.msra.mxu0 0.0
    %8659 = vmatpush.msra.mxu0 0.0
    %8660 = vmatpush.msra.mxu0 0.0
    %8661 = vmatpush.msra.mxu0 0.0
    %8662 = vmatpush.msra.mxu0 0.0
    %8663 = vmatpush.msra.mxu0 0.0
    %8664 = vmatpush.msra.mxu0 0.0
    %8665 = vmatpush.msra.mxu0 0.0
    %8666 = vmatpush.msra.mxu0 0.0
    %8667 = vmatpush.msra.mxu0 0.0
    %8668 = vmatpush.msra.mxu0 0.0
    %8669 = vmatpush.msra.mxu0 0.0
    %8670 = vmatpush.msra.mxu0 0.0
    %8671 = vmatpush.msra.mxu0 %v7784
    %8672 = vmatpush.msra.mxu0 %v7781
    %8673 = vmatpush.msra.mxu0 %v7778
    %8674 = vmatmul.f32.gmra.mxu0 %v8636
    %v8675 = vpop.f32.mrf.mxu0
    %v8676 = vadd.f32 0.0, %v8675
    %8677 = vdwg.mxu0
    %8678 = vmatpush.msra.mxu0 0.0
    %8679 = vmatpush.msra.mxu0 0.0
    %8680 = vmatpush.msra.mxu0 0.0
    %8681 = vmatpush.msra.mxu0 0.0
    %8682 = vmatpush.msra.mxu0 0.0
    %8683 = vmatpush.msra.mxu0 0.0
    %8684 = vmatpush.msra.mxu0 0.0
    %8685 = vmatpush.msra.mxu0 0.0
    %8686 = vmatpush.msra.mxu0 0.0
    %8687 = vmatpush.msra.mxu0 0.0
    %8688 = vmatpush.msra.mxu0 0.0
    %8689 = vmatpush.msra.mxu0 0.0
    %8690 = vmatpush.msra.mxu0 0.0
    %8691 = vmatpush.msra.mxu0 %v7785
    %8692 = vmatpush.msra.mxu0 %v7782
    %8693 = vmatpush.msra.mxu0 %v7779
    %8694 = vmatmul.f32.gmra.mxu0 %v8636
    %v8695 = vpop.f32.mrf.mxu0
    %v8696 = vadd.f32 0.0, %v8695
    %8697 = vdwg.mxu0
    %s8698 = scalar_lea.vmem [#allocation30], 2304
    %v8699 = vld [vmem:[%s8698] sm:$0xff]
    %v8700 = vld [vmem:[%s8698 + $0x8] sm:$0xff]
    %v8701 = vld [vmem:[%s8698 + $0x10] sm:$0xff]
    %v8702 = vld [vmem:[%s8698 + $0x18] sm:$0xff]
    %v8703 = vld [vmem:[%s8698 + $0x20] sm:$0xff]
    %v8704 = vld [vmem:[%s8698 + $0x28] sm:$0xff]
    %v8705 = vld [vmem:[%s8698 + $0x30] sm:$0xff]
    %v8706 = vld [vmem:[%s8698 + $0x38] sm:$0xff]
    %v8707 = vld [vmem:[%s8698 + $0x40] sm:$0xff]
    %v8708 = vld [vmem:[%s8698 + $0x48] sm:$0xff]
    %v8709 = vld [vmem:[%s8698 + $0x50] sm:$0xff]
    %v8710 = vld [vmem:[%s8698 + $0x58] sm:$0xff]
    %v8711 = vld [vmem:[%s8698 + $0x60] sm:$0xff]
    %v8712 = vld [vmem:[%s8698 + $0x68] sm:$0xff]
    %v8713 = vld [vmem:[%s8698 + $0x70] sm:$0xff]
    %v8714 = vld [vmem:[%s8698 + $0x78] sm:$0xff]
    %v8715 = vld [vmem:[%s8698 + $0x80] sm:$0xff]
    %v8716 = vld [vmem:[%s8698 + $0x88] sm:$0xff]
    %v8717 = vld [vmem:[%s8698 + $0x90] sm:$0xff]
    %v8718 = vld [vmem:[%s8698 + $0x98] sm:$0xff]
    %v8719 = vld [vmem:[%s8698 + $0xa0] sm:$0xff]
    %v8720 = vld [vmem:[%s8698 + $0xa8] sm:$0xff]
    %v8721 = vld [vmem:[%s8698 + $0xb0] sm:$0xff]
    %v8722 = vld [vmem:[%s8698 + $0xb8] sm:$0xff]
    %v8723 = vld [vmem:[%s8698 + $0xc0] sm:$0xff]
    %v8724 = vld [vmem:[%s8698 + $0xc8] sm:$0xff]
    %v8725 = vld [vmem:[%s8698 + $0xd0] sm:$0xff]
    %v8726 = vld [vmem:[%s8698 + $0xd8] sm:$0xff]
    %v8727 = vld [vmem:[%s8698 + $0xe0] sm:$0xff]
    %v8728 = vld [vmem:[%s8698 + $0xe8] sm:$0xff]
    %v8729 = vld [vmem:[%s8698 + $0xf0] sm:$0xff]
    %v8730 = vld [vmem:[%s8698 + $0xf8] sm:$0xff]
    %v8731 = vld [vmem:[%s8698 + $0x100] sm:$0xff]
    %v8732 = vld [vmem:[%s8698 + $0x108] sm:$0xff]
    %v8733 = vld [vmem:[%s8698 + $0x110] sm:$0xff]
    %v8734 = vld [vmem:[%s8698 + $0x118] sm:$0xff]
    %v8735 = vld [vmem:[%s8698 + $0x120] sm:$0xff]
    %v8736 = vld [vmem:[%s8698 + $0x128] sm:$0xff]
    %v8737 = vld [vmem:[%s8698 + $0x130] sm:$0xff]
    %v8738 = vld [vmem:[%s8698 + $0x138] sm:$0xff]
    %v8739 = vld [vmem:[%s8698 + $0x140] sm:$0xff]
    %v8740 = vld [vmem:[%s8698 + $0x148] sm:$0xff]
    %v8741 = vld [vmem:[%s8698 + $0x150] sm:$0xff]
    %v8742 = vld [vmem:[%s8698 + $0x158] sm:$0xff]
    %v8743 = vld [vmem:[%s8698 + $0x160] sm:$0xff]
    %v8744 = vld [vmem:[%s8698 + $0x168] sm:$0xff]
    %v8745 = vld [vmem:[%s8698 + $0x170] sm:$0xff]
    %v8746 = vld [vmem:[%s8698 + $0x178] sm:$0xff]
    %v8747 = vld [vmem:[%s8698 + $0x180] sm:$0xff]
    %v8748 = vld [vmem:[%s8698 + $0x188] sm:$0xff]
    %v8749 = vld [vmem:[%s8698 + $0x190] sm:$0xff]
    %v8750 = vld [vmem:[%s8698 + $0x198] sm:$0xff]
    %v8751 = vld [vmem:[%s8698 + $0x1a0] sm:$0xff]
    %v8752 = vld [vmem:[%s8698 + $0x1a8] sm:$0xff]
    %v8753 = vld [vmem:[%s8698 + $0x1b0] sm:$0xff]
    %v8754 = vld [vmem:[%s8698 + $0x1b8] sm:$0xff]
    %v8755 = vld [vmem:[%s8698 + $0x1c0] sm:$0xff]
    %v8756 = vld [vmem:[%s8698 + $0x1c8] sm:$0xff]
    %v8757 = vld [vmem:[%s8698 + $0x1d0] sm:$0xff]
    %v8758 = vld [vmem:[%s8698 + $0x1d8] sm:$0xff]
    %v8759 = vld [vmem:[%s8698 + $0x1e0] sm:$0xff]
    %v8760 = vld [vmem:[%s8698 + $0x1e8] sm:$0xff]
    %v8761 = vld [vmem:[%s8698 + $0x1f0] sm:$0xff]
    %v8762 = vld [vmem:[%s8698 + $0x1f8] sm:$0xff]
    %v8763 = vld [vmem:[%s8698 + $0x200] sm:$0xff]
    %v8764 = vld [vmem:[%s8698 + $0x208] sm:$0xff]
    %v8765 = vld [vmem:[%s8698 + $0x210] sm:$0xff]
    %v8766 = vld [vmem:[%s8698 + $0x218] sm:$0xff]
    %v8767 = vld [vmem:[%s8698 + $0x220] sm:$0xff]
    %v8768 = vld [vmem:[%s8698 + $0x228] sm:$0xff]
    %v8769 = vld [vmem:[%s8698 + $0x230] sm:$0xff]
    %v8770 = vld [vmem:[%s8698 + $0x238] sm:$0xff]
    %v8771 = vld [vmem:[%s8698 + $0x240] sm:$0xff]
    %v8772 = vld [vmem:[%s8698 + $0x248] sm:$0xff]
    %v8773 = vld [vmem:[%s8698 + $0x250] sm:$0xff]
    %v8774 = vld [vmem:[%s8698 + $0x258] sm:$0xff]
    %v8775 = vld [vmem:[%s8698 + $0x260] sm:$0xff]
    %v8776 = vld [vmem:[%s8698 + $0x268] sm:$0xff]
    %v8777 = vld [vmem:[%s8698 + $0x270] sm:$0xff]
    %v8778 = vld [vmem:[%s8698 + $0x278] sm:$0xff]
    %v8779 = vld [vmem:[%s8698 + $0x280] sm:$0xff]
    %v8780 = vld [vmem:[%s8698 + $0x288] sm:$0xff]
    %v8781 = vld [vmem:[%s8698 + $0x290] sm:$0xff]
    %v8782 = vld [vmem:[%s8698 + $0x298] sm:$0xff]
    %v8783 = vld [vmem:[%s8698 + $0x2a0] sm:$0xff]
    %v8784 = vld [vmem:[%s8698 + $0x2a8] sm:$0xff]
    %v8785 = vld [vmem:[%s8698 + $0x2b0] sm:$0xff]
    %v8786 = vld [vmem:[%s8698 + $0x2b8] sm:$0xff]
    %v8787 = vld [vmem:[%s8698 + $0x2c0] sm:$0xff]
    %v8788 = vld [vmem:[%s8698 + $0x2c8] sm:$0xff]
    %v8789 = vld [vmem:[%s8698 + $0x2d0] sm:$0xff]
    %v8790 = vld [vmem:[%s8698 + $0x2d8] sm:$0xff]
    %v8791 = vld [vmem:[%s8698 + $0x2e0] sm:$0xff]
    %v8792 = vld [vmem:[%s8698 + $0x2e8] sm:$0xff]
    %v8793 = vld [vmem:[%s8698 + $0x2f0] sm:$0xff]
    %v8794 = vld [vmem:[%s8698 + $0x2f8] sm:$0xff]
    %8795 = vmatpush.msra.mxu0 %v8729
    %8796 = vmatpush.msra.mxu0 %v8727
    %8797 = vmatpush.msra.mxu0 %v8725
    %8798 = vmatpush.msra.mxu0 %v8723
    %8799 = vmatpush.msra.mxu0 %v8721
    %8800 = vmatpush.msra.mxu0 %v8719
    %8801 = vmatpush.msra.mxu0 %v8717
    %8802 = vmatpush.msra.mxu0 %v8715
    %8803 = vmatpush.msra.mxu0 %v8713
    %8804 = vmatpush.msra.mxu0 %v8711
    %8805 = vmatpush.msra.mxu0 %v8709
    %8806 = vmatpush.msra.mxu0 %v8707
    %8807 = vmatpush.msra.mxu0 %v8705
    %8808 = vmatpush.msra.mxu0 %v8703
    %8809 = vmatpush.msra.mxu0 %v8701
    %8810 = vmatpush.msra.mxu0 %v8699
    %8811 = vmatmul.f32.gmra.mxu0 %v8656
    %v8812 = vpop.f32.mrf.mxu0
    %v8813 = vadd.f32 0.0, %v8812
    %8814 = vdwg.mxu0
    %8815 = vmatpush.msra.mxu0 %v8761
    %8816 = vmatpush.msra.mxu0 %v8759
    %8817 = vmatpush.msra.mxu0 %v8757
    %8818 = vmatpush.msra.mxu0 %v8755
    %8819 = vmatpush.msra.mxu0 %v8753
    %8820 = vmatpush.msra.mxu0 %v8751
    %8821 = vmatpush.msra.mxu0 %v8749
    %8822 = vmatpush.msra.mxu0 %v8747
    %8823 = vmatpush.msra.mxu0 %v8745
    %8824 = vmatpush.msra.mxu0 %v8743
    %8825 = vmatpush.msra.mxu0 %v8741
    %8826 = vmatpush.msra.mxu0 %v8739
    %8827 = vmatpush.msra.mxu0 %v8737
    %8828 = vmatpush.msra.mxu0 %v8735
    %8829 = vmatpush.msra.mxu0 %v8733
    %8830 = vmatpush.msra.mxu0 %v8731
    %8831 = vmatmul.f32.gmra.mxu0 %v8676
    %v8832 = vpop.f32.mrf.mxu0
    %v8833 = vadd.f32 %v8813, %v8832
    %8834 = vdwg.mxu0
    %8835 = vmatpush.msra.mxu0 %v8793
    %8836 = vmatpush.msra.mxu0 %v8791
    %8837 = vmatpush.msra.mxu0 %v8789
    %8838 = vmatpush.msra.mxu0 %v8787
    %8839 = vmatpush.msra.mxu0 %v8785
    %8840 = vmatpush.msra.mxu0 %v8783
    %8841 = vmatpush.msra.mxu0 %v8781
    %8842 = vmatpush.msra.mxu0 %v8779
    %8843 = vmatpush.msra.mxu0 %v8777
    %8844 = vmatpush.msra.mxu0 %v8775
    %8845 = vmatpush.msra.mxu0 %v8773
    %8846 = vmatpush.msra.mxu0 %v8771
    %8847 = vmatpush.msra.mxu0 %v8769
    %8848 = vmatpush.msra.mxu0 %v8767
    %8849 = vmatpush.msra.mxu0 %v8765
    %8850 = vmatpush.msra.mxu0 %v8763
    %8851 = vmatmul.f32.gmra.mxu0 %v8696
    %v8852 = vpop.f32.mrf.mxu0
    %v8853 = vadd.f32 %v8833, %v8852
    %8854 = vdwg.mxu0
    %8855 = vmatpush.msra.mxu0 %v8730
    %8856 = vmatpush.msra.mxu0 %v8728
    %8857 = vmatpush.msra.mxu0 %v8726
    %8858 = vmatpush.msra.mxu0 %v8724
    %8859 = vmatpush.msra.mxu0 %v8722
    %8860 = vmatpush.msra.mxu0 %v8720
    %8861 = vmatpush.msra.mxu0 %v8718
    %8862 = vmatpush.msra.mxu0 %v8716
    %8863 = vmatpush.msra.mxu0 %v8714
    %8864 = vmatpush.msra.mxu0 %v8712
    %8865 = vmatpush.msra.mxu0 %v8710
    %8866 = vmatpush.msra.mxu0 %v8708
    %8867 = vmatpush.msra.mxu0 %v8706
    %8868 = vmatpush.msra.mxu0 %v8704
    %8869 = vmatpush.msra.mxu0 %v8702
    %8870 = vmatpush.msra.mxu0 %v8700
    %8871 = vmatmul.f32.gmra.mxu0 %v8656
    %v8872 = vpop.f32.mrf.mxu0
    %v8873 = vadd.f32 0.0, %v8872
    %8874 = vdwg.mxu0
    %8875 = vmatpush.msra.mxu0 %v8762
    %8876 = vmatpush.msra.mxu0 %v8760
    %8877 = vmatpush.msra.mxu0 %v8758
    %8878 = vmatpush.msra.mxu0 %v8756
    %8879 = vmatpush.msra.mxu0 %v8754
    %8880 = vmatpush.msra.mxu0 %v8752
    %8881 = vmatpush.msra.mxu0 %v8750
    %8882 = vmatpush.msra.mxu0 %v8748
    %8883 = vmatpush.msra.mxu0 %v8746
    %8884 = vmatpush.msra.mxu0 %v8744
    %8885 = vmatpush.msra.mxu0 %v8742
    %8886 = vmatpush.msra.mxu0 %v8740
    %8887 = vmatpush.msra.mxu0 %v8738
    %8888 = vmatpush.msra.mxu0 %v8736
    %8889 = vmatpush.msra.mxu0 %v8734
    %8890 = vmatpush.msra.mxu0 %v8732
    %8891 = vmatmul.f32.gmra.mxu0 %v8676
    %v8892 = vpop.f32.mrf.mxu0
    %v8893 = vadd.f32 %v8873, %v8892
    %8894 = vdwg.mxu0
    %8895 = vmatpush.msra.mxu0 %v8794
    %8896 = vmatpush.msra.mxu0 %v8792
    %8897 = vmatpush.msra.mxu0 %v8790
    %8898 = vmatpush.msra.mxu0 %v8788
    %8899 = vmatpush.msra.mxu0 %v8786
    %8900 = vmatpush.msra.mxu0 %v8784
    %8901 = vmatpush.msra.mxu0 %v8782
    %8902 = vmatpush.msra.mxu0 %v8780
    %8903 = vmatpush.msra.mxu0 %v8778
    %8904 = vmatpush.msra.mxu0 %v8776
    %8905 = vmatpush.msra.mxu0 %v8774
    %8906 = vmatpush.msra.mxu0 %v8772
    %8907 = vmatpush.msra.mxu0 %v8770
    %8908 = vmatpush.msra.mxu0 %v8768
    %8909 = vmatpush.msra.mxu0 %v8766
    %8910 = vmatpush.msra.mxu0 %v8764
    %8911 = vmatmul.f32.gmra.mxu0 %v8696
    %v8912 = vpop.f32.mrf.mxu0
    %v8913 = vadd.f32 %v8893, %v8912
    %8914 = vdwg.mxu0
    %v8915 = vadd.f32 %v8631, %v8853
    %v8916 = vadd.f32 %v8632, %v8913
    %v8917 = vrot.slane %v8915, 4
    %v8918 = vadd.f32 %v8915, %v8917
    %v8919 = vrot.slane %v8918, 2
    %v8920 = vadd.f32 %v8918, %v8919
    %v8921 = vrot.slane %v8920, 1
    %v8922 = vadd.f32 %v8920, %v8921
    %v8923 = vrot.slane %v8916, 4
    %v8924 = vadd.f32 %v8916, %v8923
    %v8925 = vrot.slane %v8924, 2
    %v8926 = vadd.f32 %v8924, %v8925
    %v8927 = vrot.slane %v8926, 1
    %v8928 = vadd.f32 %v8926, %v8927
    %v8929 = vmul.f32 %v8915, %v8915
    %v8930 = vmul.f32 %v8916, %v8916
    %v8931 = vrot.slane %v8929, 4
    %v8932 = vadd.f32 %v8929, %v8931
    %v8933 = vrot.slane %v8932, 2
    %v8934 = vadd.f32 %v8932, %v8933
    %v8935 = vrot.slane %v8934, 1
    %v8936 = vadd.f32 %v8934, %v8935
    %v8937 = vrot.slane %v8930, 4
    %v8938 = vadd.f32 %v8930, %v8937
    %v8939 = vrot.slane %v8938, 2
    %v8940 = vadd.f32 %v8938, %v8939
    %v8941 = vrot.slane %v8940, 1
    %v8942 = vadd.f32 %v8940, %v8941
    %v8943 = vld [vmem:[%s18] sm:$0xff]
    %v8944 = vld [vmem:[%s18 + $0x8] sm:$0xff]
    %v8945 = vld [vmem:[%s18 + $0x10] sm:$0xff]
    %v8946 = vld [vmem:[%s18 + $0x18] sm:$0xff]
    %v8947 = vld [vmem:[%s18 + $0x20] sm:$0xff]
    %v8948 = vld [vmem:[%s18 + $0x28] sm:$0xff]
    %v8949 = vld [vmem:[%s18 + $0x30] sm:$0xff]
    %v8950 = vld [vmem:[%s18 + $0x38] sm:$0xff]
    %v8951 = vld [vmem:[%s18 + $0x40] sm:$0xff]
    %v8952 = vld [vmem:[%s18 + $0x48] sm:$0xff]
    %v8953 = vld [vmem:[%s18 + $0x50] sm:$0xff]
    %v8954 = vld [vmem:[%s18 + $0x58] sm:$0xff]
    %v8955 = vld [vmem:[%s18 + $0x60] sm:$0xff]
    %v8956 = vld [vmem:[%s18 + $0x68] sm:$0xff]
    %v8957 = vld [vmem:[%s18 + $0x70] sm:$0xff]
    %v8958 = vld [vmem:[%s18 + $0x78] sm:$0xff]
    %v8959 = vld [vmem:[%s18 + $0x80] sm:$0xff]
    %v8960 = vld [vmem:[%s18 + $0x88] sm:$0xff]
    %v8961 = vld [vmem:[%s18 + $0x90] sm:$0xff]
    %v8962 = vld [vmem:[%s18 + $0x98] sm:$0xff]
    %v8963 = vld [vmem:[%s18 + $0xa0] sm:$0xff]
    %v8964 = vld [vmem:[%s18 + $0xa8] sm:$0xff]
    %v8965 = vld [vmem:[%s18 + $0xb0] sm:$0xff]
    %v8966 = vld [vmem:[%s18 + $0xb8] sm:$0xff]
    %v8967 = vld [vmem:[%s18 + $0xc0] sm:$0xff]
    %v8968 = vld [vmem:[%s18 + $0xc8] sm:$0xff]
    %v8969 = vld [vmem:[%s18 + $0xd0] sm:$0xff]
    %v8970 = vld [vmem:[%s18 + $0xd8] sm:$0xff]
    %v8971 = vld [vmem:[%s18 + $0xe0] sm:$0xff]
    %v8972 = vld [vmem:[%s18 + $0xe8] sm:$0xff]
    %v8973 = vld [vmem:[%s18 + $0xf0] sm:$0xff]
    %v8974 = vld [vmem:[%s18 + $0xf8] sm:$0xff]
    %8975 = vmatpush.msra.mxu0 %v8958
    %8976 = vmatpush.msra.mxu0 %v8957
    %8977 = vmatpush.msra.mxu0 %v8956
    %8978 = vmatpush.msra.mxu0 %v8955
    %8979 = vmatpush.msra.mxu0 %v8954
    %8980 = vmatpush.msra.mxu0 %v8953
    %8981 = vmatpush.msra.mxu0 %v8952
    %8982 = vmatpush.msra.mxu0 %v8951
    %8983 = vmatpush.msra.mxu0 %v8950
    %8984 = vmatpush.msra.mxu0 %v8949
    %8985 = vmatpush.msra.mxu0 %v8948
    %8986 = vmatpush.msra.mxu0 %v8947
    %8987 = vmatpush.msra.mxu0 %v8946
    %8988 = vmatpush.msra.mxu0 %v8945
    %8989 = vmatpush.msra.mxu0 %v8944
    %8990 = vmatpush.msra.mxu0 %v8943
    %8991 = vmatmul.f32.gmra.mxu0 %v8922
    %v8992 = vpop.f32.mrf.mxu0
    %v8993 = vadd.f32 0.0, %v8992
    %8994 = vdwg.mxu0
    %8995 = vmatpush.msra.mxu0 %v8974
    %8996 = vmatpush.msra.mxu0 %v8973
    %8997 = vmatpush.msra.mxu0 %v8972
    %8998 = vmatpush.msra.mxu0 %v8971
    %8999 = vmatpush.msra.mxu0 %v8970
    %9000 = vmatpush.msra.mxu0 %v8969
    %9001 = vmatpush.msra.mxu0 %v8968
    %9002 = vmatpush.msra.mxu0 %v8967
    %9003 = vmatpush.msra.mxu0 %v8966
    %9004 = vmatpush.msra.mxu0 %v8965
    %9005 = vmatpush.msra.mxu0 %v8964
    %9006 = vmatpush.msra.mxu0 %v8963
    %9007 = vmatpush.msra.mxu0 %v8962
    %9008 = vmatpush.msra.mxu0 %v8961
    %9009 = vmatpush.msra.mxu0 %v8960
    %9010 = vmatpush.msra.mxu0 %v8959
    %9011 = vmatmul.f32.gmra.mxu0 %v8928
    %v9012 = vpop.f32.mrf.mxu0
    %v9013 = vadd.f32 %v8993, %v9012
    %9014 = vdwg.mxu0
    %9015 = vmatpush.msra.mxu0 %v8958
    %9016 = vmatpush.msra.mxu0 %v8957
    %9017 = vmatpush.msra.mxu0 %v8956
    %9018 = vmatpush.msra.mxu0 %v8955
    %9019 = vmatpush.msra.mxu0 %v8954
    %9020 = vmatpush.msra.mxu0 %v8953
    %9021 = vmatpush.msra.mxu0 %v8952
    %9022 = vmatpush.msra.mxu0 %v8951
    %9023 = vmatpush.msra.mxu0 %v8950
    %9024 = vmatpush.msra.mxu0 %v8949
    %9025 = vmatpush.msra.mxu0 %v8948
    %9026 = vmatpush.msra.mxu0 %v8947
    %9027 = vmatpush.msra.mxu0 %v8946
    %9028 = vmatpush.msra.mxu0 %v8945
    %9029 = vmatpush.msra.mxu0 %v8944
    %9030 = vmatpush.msra.mxu0 %v8943
    %9031 = vmatmul.f32.gmra.mxu0 %v8936
    %v9032 = vpop.f32.mrf.mxu0
    %v9033 = vadd.f32 0.0, %v9032
    %9034 = vdwg.mxu0
    %9035 = vmatpush.msra.mxu0 %v8974
    %9036 = vmatpush.msra.mxu0 %v8973
    %9037 = vmatpush.msra.mxu0 %v8972
    %9038 = vmatpush.msra.mxu0 %v8971
    %9039 = vmatpush.msra.mxu0 %v8970
    %9040 = vmatpush.msra.mxu0 %v8969
    %9041 = vmatpush.msra.mxu0 %v8968
    %9042 = vmatpush.msra.mxu0 %v8967
    %9043 = vmatpush.msra.mxu0 %v8966
    %9044 = vmatpush.msra.mxu0 %v8965
    %9045 = vmatpush.msra.mxu0 %v8964
    %9046 = vmatpush.msra.mxu0 %v8963
    %9047 = vmatpush.msra.mxu0 %v8962
    %9048 = vmatpush.msra.mxu0 %v8961
    %9049 = vmatpush.msra.mxu0 %v8960
    %9050 = vmatpush.msra.mxu0 %v8959
    %9051 = vmatmul.f32.gmra.mxu0 %v8942
    %v9052 = vpop.f32.mrf.mxu0
    %v9053 = vadd.f32 %v9033, %v9052
    %9054 = vdwg.mxu0
    %v9055 = vrcp.pop 32.0
    %v9056 = vmul.f32 32.0, %v9055
    %v9057 = vsub.f32 1.0, %v9056
    %v9058 = vmul.f32 %v9055, %v9057
    %v9059 = vadd.f32 %v9055, %v9058
    %vm9060 = vweird.f32 %v9055
    %v9061 = vsel %vm9060, %v9055, %v9059
    %v9062 = vmul.f32 %v9013, %v9061
    %v9063 = vmul.f32 %v9053, %v9061
    %v9064 = vmul.f32 %v9062, %v9062
    %v9065 = vsub.f32 %v9063, %v9064
    %v9066 = vmax.f32 %v9065, 0.0
    %v9067 = vld [vmem:[#allocation33] sm:$0x1]
    %v9068 = vadd.f32 %v9066, 1e-05
    %v9069 = vrsqrt.pop %v9068
    %v9070 = vmul.f32 %v9069, %v9068
    %v9071 = vmul.f32 %v9070, %v9069
    %v9072 = vmul.f32 0.5, %v9071
    %v9073 = vsub.f32 1.5, %v9072
    %v9074 = vmul.f32 %v9069, %v9073
    %vm9075 = vweird.f32 %v9068
    %vm9076 = vweird.f32 %v9069
    %vm9077 = vmor %vm9075, %vm9076
    %v9078 = vsel %vm9077, %v9069, %v9074
    %v9079 = vmul.f32 %v9067, %v9078
    %v9080 = vld [vmem:[#allocation35] sm:$0x1]
    %v9081 = vmul.f32 %v9062, %v9079
    %v9082 = vsub.f32 %v9080, %v9081
    %v9083 = vld [vmem:[#allocation32] sm:$0xff]
    %v9084 = vld [vmem:[#allocation32 + $0x8] sm:$0xff]
    %v9085 = vld [vmem:[#allocation32 + $0x10] sm:$0xff]
    %v9086 = vld [vmem:[#allocation32 + $0x18] sm:$0xff]
    %v9087 = vld [vmem:[#allocation32 + $0x20] sm:$0xff]
    %v9088 = vld [vmem:[#allocation32 + $0x28] sm:$0xff]
    %v9089 = vld [vmem:[#allocation32 + $0x30] sm:$0xff]
    %v9090 = vld [vmem:[#allocation32 + $0x38] sm:$0xff]
    %v9091 = vld [vmem:[#allocation32 + $0x40] sm:$0xff]
    %v9092 = vld [vmem:[#allocation32 + $0x48] sm:$0xff]
    %v9093 = vld [vmem:[#allocation32 + $0x50] sm:$0xff]
    %v9094 = vld [vmem:[#allocation32 + $0x58] sm:$0xff]
    %v9095 = vld [vmem:[#allocation32 + $0x60] sm:$0xff]
    %v9096 = vld [vmem:[#allocation32 + $0x68] sm:$0xff]
    %v9097 = vld [vmem:[#allocation32 + $0x70] sm:$0xff]
    %v9098 = vld [vmem:[#allocation32 + $0x78] sm:$0xff]
    %vm9099 = vcmask 523264
    %v9101 = vsel %vm9099, %v9079, 0
    %9103 = vmatpush.msra.mxu0 0.0
    %9104 = vmatpush.msra.mxu0 0.0
    %9105 = vmatpush.msra.mxu0 0.0
    %9106 = vmatpush.msra.mxu0 0.0
    %9107 = vmatpush.msra.mxu0 0.0
    %9108 = vmatpush.msra.mxu0 0.0
    %9109 = vmatpush.msra.mxu0 0.0
    %9110 = vmatpush.msra.mxu0 0.0
    %9111 = vmatpush.msra.mxu0 %v9097
    %9112 = vmatpush.msra.mxu0 %v9095
    %9113 = vmatpush.msra.mxu0 %v9093
    %9114 = vmatpush.msra.mxu0 %v9091
    %9115 = vmatpush.msra.mxu0 %v9089
    %9116 = vmatpush.msra.mxu0 %v9087
    %9117 = vmatpush.msra.mxu0 %v9085
    %9118 = vmatpush.msra.mxu0 %v9083
    %9119 = vmatmul.f32.gmra.mxu0 %v9101
    %v9120 = vpop.f32.mrf.mxu0
    %v9121 = vadd.f32 0.0, %v9120
    %9122 = vdwg.mxu0
    %9123 = vmatpush.msra.mxu0 0.0
    %9124 = vmatpush.msra.mxu0 0.0
    %9125 = vmatpush.msra.mxu0 0.0
    %9126 = vmatpush.msra.mxu0 0.0
    %9127 = vmatpush.msra.mxu0 0.0
    %9128 = vmatpush.msra.mxu0 0.0
    %9129 = vmatpush.msra.mxu0 0.0
    %9130 = vmatpush.msra.mxu0 0.0
    %9131 = vmatpush.msra.mxu0 %v9098
    %9132 = vmatpush.msra.mxu0 %v9096
    %9133 = vmatpush.msra.mxu0 %v9094
    %9134 = vmatpush.msra.mxu0 %v9092
    %9135 = vmatpush.msra.mxu0 %v9090
    %9136 = vmatpush.msra.mxu0 %v9088
    %9137 = vmatpush.msra.mxu0 %v9086
    %9138 = vmatpush.msra.mxu0 %v9084
    %9139 = vmatmul.f32.gmra.mxu0 %v9101
    %v9140 = vpop.f32.mrf.mxu0
    %v9141 = vadd.f32 0.0, %v9140
    %9142 = vdwg.mxu0
    %v9144 = vsel %vm9099, %v9082, 0
    %9146 = vmatpush.msra.mxu0 0.0
    %9147 = vmatpush.msra.mxu0 0.0
    %9148 = vmatpush.msra.mxu0 0.0
    %9149 = vmatpush.msra.mxu0 0.0
    %9150 = vmatpush.msra.mxu0 0.0
    %9151 = vmatpush.msra.mxu0 0.0
    %9152 = vmatpush.msra.mxu0 0.0
    %9153 = vmatpush.msra.mxu0 0.0
    %9154 = vmatpush.msra.mxu0 %v9097
    %9155 = vmatpush.msra.mxu0 %v9095
    %9156 = vmatpush.msra.mxu0 %v9093
    %9157 = vmatpush.msra.mxu0 %v9091
    %9158 = vmatpush.msra.mxu0 %v9089
    %9159 = vmatpush.msra.mxu0 %v9087
    %9160 = vmatpush.msra.mxu0 %v9085
    %9161 = vmatpush.msra.mxu0 %v9083
    %9162 = vmatmul.f32.gmra.mxu0 %v9144
    %v9163 = vpop.f32.mrf.mxu0
    %v9164 = vadd.f32 0.0, %v9163
    %9165 = vdwg.mxu0
    %9166 = vmatpush.msra.mxu0 0.0
    %9167 = vmatpush.msra.mxu0 0.0
    %9168 = vmatpush.msra.mxu0 0.0
    %9169 = vmatpush.msra.mxu0 0.0
    %9170 = vmatpush.msra.mxu0 0.0
    %9171 = vmatpush.msra.mxu0 0.0
    %9172 = vmatpush.msra.mxu0 0.0
    %9173 = vmatpush.msra.mxu0 0.0
    %9174 = vmatpush.msra.mxu0 %v9098
    %9175 = vmatpush.msra.mxu0 %v9096
    %9176 = vmatpush.msra.mxu0 %v9094
    %9177 = vmatpush.msra.mxu0 %v9092
    %9178 = vmatpush.msra.mxu0 %v9090
    %9179 = vmatpush.msra.mxu0 %v9088
    %9180 = vmatpush.msra.mxu0 %v9086
    %9181 = vmatpush.msra.mxu0 %v9084
    %9182 = vmatmul.f32.gmra.mxu0 %v9144
    %v9183 = vpop.f32.mrf.mxu0
    %v9184 = vadd.f32 0.0, %v9183
    %9185 = vdwg.mxu0
    %v9186 = vperm.slane %v9121, 0
    %v9187 = vperm.slane %v9141, 0
    %v9188 = vmul.f32 %v8915, %v9186
    %v9189 = vmul.f32 %v8916, %v9187
    %v9190 = vperm.slane %v9164, 0
    %v9191 = vperm.slane %v9184, 0
    %v9192 = vadd.f32 %v9188, %v9190
    %v9193 = vadd.f32 %v9189, %v9191
    %vm9194 = vcmp.gt.f32.partialorder %v9192, 0.0
    %vm9195 = vcmp.gt.f32.partialorder %v9193, 0.0
    %v9196 = vmul.f32 %v9192, 0.01
    %v9197 = vmul.f32 %v9193, 0.01
    %v9198 = vsel %vm9194, %v9192, %v9196
    %v9199 = vsel %vm9195, %v9193, %v9197
    %9200 = vst [vmem:[#allocation5] sm:$0xf] %v9198
    %9201 = vst [vmem:[#allocation5 + $0x8] sm:$0xf] %v9199
    %9202 = vst [vmem:[#allocation5] sm:$0xf0] %v9198
    %9203 = vst [vmem:[#allocation5 + $0x8] sm:$0xf0] %v9199
    %v9204 = vld [vmem:[#allocation5] sm:$0xff]
    %v9205 = vld [vmem:[#allocation5 + $0x8] sm:$0xff]
    %v9206 = vld [vmem:[#allocation36] sm:$0x3]
    %v9208 = vsel %vm510, %v9206, 0
    %9210 = vmatpush.msra.mxu0 0.0
    %9211 = vmatpush.msra.mxu0 0.0
    %9212 = vmatpush.msra.mxu0 0.0
    %9213 = vmatpush.msra.mxu0 0.0
    %9214 = vmatpush.msra.mxu0 0.0
    %9215 = vmatpush.msra.mxu0 0.0
    %9216 = vmatpush.msra.mxu0 0.0
    %9217 = vmatpush.msra.mxu0 0.0
    %9218 = vmatpush.msra.mxu0 0.0
    %9219 = vmatpush.msra.mxu0 0.0
    %9220 = vmatpush.msra.mxu0 0.0
    %9221 = vmatpush.msra.mxu0 0.0
    %9222 = vmatpush.msra.mxu0 0.0
    %9223 = vmatpush.msra.mxu0 0.0
    %9224 = vmatpush.msra.mxu0 0.0
    %9225 = vmatpush.msra.mxu0 %v9204
    %9226 = vmatmul.f32.gmra.mxu0 %v9208
    %v9227 = vpop.f32.mrf.mxu0
    %v9228 = vadd.f32 0.0, %v9227
    %9229 = vdwg.mxu0
    %9230 = vmatpush.msra.mxu0 0.0
    %9231 = vmatpush.msra.mxu0 0.0
    %9232 = vmatpush.msra.mxu0 0.0
    %9233 = vmatpush.msra.mxu0 0.0
    %9234 = vmatpush.msra.mxu0 0.0
    %9235 = vmatpush.msra.mxu0 0.0
    %9236 = vmatpush.msra.mxu0 0.0
    %9237 = vmatpush.msra.mxu0 0.0
    %9238 = vmatpush.msra.mxu0 0.0
    %9239 = vmatpush.msra.mxu0 0.0
    %9240 = vmatpush.msra.mxu0 0.0
    %9241 = vmatpush.msra.mxu0 0.0
    %9242 = vmatpush.msra.mxu0 0.0
    %9243 = vmatpush.msra.mxu0 0.0
    %9244 = vmatpush.msra.mxu0 0.0
    %9245 = vmatpush.msra.mxu0 %v9205
    %9246 = vmatmul.f32.gmra.mxu0 %v9208
    %v9247 = vpop.f32.mrf.mxu0
    %v9248 = vadd.f32 0.0, %v9247
    %9249 = vdwg.mxu0
    %v9250 = vld [vmem:[#allocation38] sm:$0xff]
    %v9251 = vld [vmem:[#allocation38 + $0x8] sm:$0xff]
    %v9252 = vld [vmem:[#allocation38 + $0x10] sm:$0xff]
    %v9253 = vld [vmem:[#allocation38 + $0x18] sm:$0xff]
    %v9254 = vld [vmem:[#allocation38 + $0x20] sm:$0xff]
    %v9255 = vld [vmem:[#allocation38 + $0x28] sm:$0xff]
    %v9256 = vld [vmem:[#allocation38 + $0x30] sm:$0xff]
    %v9257 = vld [vmem:[#allocation38 + $0x38] sm:$0xff]
    %v9258 = vld [vmem:[#allocation38 + $0x40] sm:$0xff]
    %v9259 = vld [vmem:[#allocation38 + $0x48] sm:$0xff]
    %v9260 = vld [vmem:[#allocation38 + $0x50] sm:$0xff]
    %v9261 = vld [vmem:[#allocation38 + $0x58] sm:$0xff]
    %v9262 = vld [vmem:[#allocation38 + $0x60] sm:$0xff]
    %v9263 = vld [vmem:[#allocation38 + $0x68] sm:$0xff]
    %v9264 = vld [vmem:[#allocation38 + $0x70] sm:$0xff]
    %v9265 = vld [vmem:[#allocation38 + $0x78] sm:$0xff]
    %v9266 = vld [vmem:[#allocation38 + $0x80] sm:$0xff]
    %v9267 = vld [vmem:[#allocation38 + $0x88] sm:$0xff]
    %v9268 = vld [vmem:[#allocation38 + $0x90] sm:$0xff]
    %v9269 = vld [vmem:[#allocation38 + $0x98] sm:$0xff]
    %v9270 = vld [vmem:[#allocation38 + $0xa0] sm:$0xff]
    %v9271 = vld [vmem:[#allocation38 + $0xa8] sm:$0xff]
    %v9272 = vld [vmem:[#allocation38 + $0xb0] sm:$0xff]
    %v9273 = vld [vmem:[#allocation38 + $0xb8] sm:$0xff]
    %v9274 = vld [vmem:[#allocation38 + $0xc0] sm:$0xff]
    %v9275 = vld [vmem:[#allocation38 + $0xc8] sm:$0xff]
    %v9276 = vld [vmem:[#allocation38 + $0xd0] sm:$0xff]
    %v9277 = vld [vmem:[#allocation38 + $0xd8] sm:$0xff]
    %v9278 = vld [vmem:[#allocation38 + $0xe0] sm:$0xff]
    %v9279 = vld [vmem:[#allocation38 + $0xe8] sm:$0xff]
    %v9280 = vld [vmem:[#allocation38 + $0xf0] sm:$0xff]
    %v9281 = vld [vmem:[#allocation38 + $0xf8] sm:$0xff]
    %s9282 = scalar_lea.vmem [#allocation36], 2
    %v9283 = vld [vmem:[%s9282] sm:$0x3]
    %v9285 = vsel %vm510, %v9283, 0
    %9287 = vmatpush.msra.mxu0 0.0
    %9288 = vmatpush.msra.mxu0 0.0
    %9289 = vmatpush.msra.mxu0 0.0
    %9290 = vmatpush.msra.mxu0 0.0
    %9291 = vmatpush.msra.mxu0 0.0
    %9292 = vmatpush.msra.mxu0 0.0
    %9293 = vmatpush.msra.mxu0 0.0
    %9294 = vmatpush.msra.mxu0 0.0
    %9295 = vmatpush.msra.mxu0 0.0
    %9296 = vmatpush.msra.mxu0 0.0
    %9297 = vmatpush.msra.mxu0 0.0
    %9298 = vmatpush.msra.mxu0 0.0
    %9299 = vmatpush.msra.mxu0 0.0
    %9300 = vmatpush.msra.mxu0 0.0
    %9301 = vmatpush.msra.mxu0 0.0
    %9302 = vmatpush.msra.mxu0 %v9204
    %9303 = vmatmul.f32.gmra.mxu0 %v9285
    %v9304 = vpop.f32.mrf.mxu0
    %v9305 = vadd.f32 0.0, %v9304
    %9306 = vdwg.mxu0
    %9307 = vmatpush.msra.mxu0 0.0
    %9308 = vmatpush.msra.mxu0 0.0
    %9309 = vmatpush.msra.mxu0 0.0
    %9310 = vmatpush.msra.mxu0 0.0
    %9311 = vmatpush.msra.mxu0 0.0
    %9312 = vmatpush.msra.mxu0 0.0
    %9313 = vmatpush.msra.mxu0 0.0
    %9314 = vmatpush.msra.mxu0 0.0
    %9315 = vmatpush.msra.mxu0 0.0
    %9316 = vmatpush.msra.mxu0 0.0
    %9317 = vmatpush.msra.mxu0 0.0
    %9318 = vmatpush.msra.mxu0 0.0
    %9319 = vmatpush.msra.mxu0 0.0
    %9320 = vmatpush.msra.mxu0 0.0
    %9321 = vmatpush.msra.mxu0 0.0
    %9322 = vmatpush.msra.mxu0 %v9205
    %9323 = vmatmul.f32.gmra.mxu0 %v9285
    %v9324 = vpop.f32.mrf.mxu0
    %v9325 = vadd.f32 0.0, %v9324
    %9326 = vdwg.mxu0
    %s9327 = scalar_lea.vmem [#allocation38], 256
    %v9328 = vld [vmem:[%s9327] sm:$0xff]
    %v9329 = vld [vmem:[%s9327 + $0x8] sm:$0xff]
    %v9330 = vld [vmem:[%s9327 + $0x10] sm:$0xff]
    %v9331 = vld [vmem:[%s9327 + $0x18] sm:$0xff]
    %v9332 = vld [vmem:[%s9327 + $0x20] sm:$0xff]
    %v9333 = vld [vmem:[%s9327 + $0x28] sm:$0xff]
    %v9334 = vld [vmem:[%s9327 + $0x30] sm:$0xff]
    %v9335 = vld [vmem:[%s9327 + $0x38] sm:$0xff]
    %v9336 = vld [vmem:[%s9327 + $0x40] sm:$0xff]
    %v9337 = vld [vmem:[%s9327 + $0x48] sm:$0xff]
    %v9338 = vld [vmem:[%s9327 + $0x50] sm:$0xff]
    %v9339 = vld [vmem:[%s9327 + $0x58] sm:$0xff]
    %v9340 = vld [vmem:[%s9327 + $0x60] sm:$0xff]
    %v9341 = vld [vmem:[%s9327 + $0x68] sm:$0xff]
    %v9342 = vld [vmem:[%s9327 + $0x70] sm:$0xff]
    %v9343 = vld [vmem:[%s9327 + $0x78] sm:$0xff]
    %v9344 = vld [vmem:[%s9327 + $0x80] sm:$0xff]
    %v9345 = vld [vmem:[%s9327 + $0x88] sm:$0xff]
    %v9346 = vld [vmem:[%s9327 + $0x90] sm:$0xff]
    %v9347 = vld [vmem:[%s9327 + $0x98] sm:$0xff]
    %v9348 = vld [vmem:[%s9327 + $0xa0] sm:$0xff]
    %v9349 = vld [vmem:[%s9327 + $0xa8] sm:$0xff]
    %v9350 = vld [vmem:[%s9327 + $0xb0] sm:$0xff]
    %v9351 = vld [vmem:[%s9327 + $0xb8] sm:$0xff]
    %v9352 = vld [vmem:[%s9327 + $0xc0] sm:$0xff]
    %v9353 = vld [vmem:[%s9327 + $0xc8] sm:$0xff]
    %v9354 = vld [vmem:[%s9327 + $0xd0] sm:$0xff]
    %v9355 = vld [vmem:[%s9327 + $0xd8] sm:$0xff]
    %v9356 = vld [vmem:[%s9327 + $0xe0] sm:$0xff]
    %v9357 = vld [vmem:[%s9327 + $0xe8] sm:$0xff]
    %v9358 = vld [vmem:[%s9327 + $0xf0] sm:$0xff]
    %v9359 = vld [vmem:[%s9327 + $0xf8] sm:$0xff]
    %9360 = vmatpush.msra.mxu0 %v9343
    %9361 = vmatpush.msra.mxu0 %v9342
    %9362 = vmatpush.msra.mxu0 %v9341
    %9363 = vmatpush.msra.mxu0 %v9340
    %9364 = vmatpush.msra.mxu0 %v9339
    %9365 = vmatpush.msra.mxu0 %v9338
    %9366 = vmatpush.msra.mxu0 %v9337
    %9367 = vmatpush.msra.mxu0 %v9336
    %9368 = vmatpush.msra.mxu0 %v9335
    %9369 = vmatpush.msra.mxu0 %v9334
    %9370 = vmatpush.msra.mxu0 %v9333
    %9371 = vmatpush.msra.mxu0 %v9332
    %9372 = vmatpush.msra.mxu0 %v9331
    %9373 = vmatpush.msra.mxu0 %v9330
    %9374 = vmatpush.msra.mxu0 %v9329
    %9375 = vmatpush.msra.mxu0 %v9328
    %9376 = vmatmul.f32.gmra.mxu0 %v9305
    %v9377 = vpop.f32.mrf.mxu0
    %v9378 = vadd.f32 0.0, %v9377
    %9379 = vdwg.mxu0
    %9380 = vmatpush.msra.mxu0 %v9359
    %9381 = vmatpush.msra.mxu0 %v9358
    %9382 = vmatpush.msra.mxu0 %v9357
    %9383 = vmatpush.msra.mxu0 %v9356
    %9384 = vmatpush.msra.mxu0 %v9355
    %9385 = vmatpush.msra.mxu0 %v9354
    %9386 = vmatpush.msra.mxu0 %v9353
    %9387 = vmatpush.msra.mxu0 %v9352
    %9388 = vmatpush.msra.mxu0 %v9351
    %9389 = vmatpush.msra.mxu0 %v9350
    %9390 = vmatpush.msra.mxu0 %v9349
    %9391 = vmatpush.msra.mxu0 %v9348
    %9392 = vmatpush.msra.mxu0 %v9347
    %9393 = vmatpush.msra.mxu0 %v9346
    %9394 = vmatpush.msra.mxu0 %v9345
    %9395 = vmatpush.msra.mxu0 %v9344
    %9396 = vmatmul.f32.gmra.mxu0 %v9325
    %v9397 = vpop.f32.mrf.mxu0
    %v9398 = vadd.f32 %v9378, %v9397
    %9399 = vdwg.mxu0
    %9400 = vmatpush.msra.mxu0 %v9265
    %9401 = vmatpush.msra.mxu0 %v9264
    %9402 = vmatpush.msra.mxu0 %v9263
    %9403 = vmatpush.msra.mxu0 %v9262
    %9404 = vmatpush.msra.mxu0 %v9261
    %9405 = vmatpush.msra.mxu0 %v9260
    %9406 = vmatpush.msra.mxu0 %v9259
    %9407 = vmatpush.msra.mxu0 %v9258
    %9408 = vmatpush.msra.mxu0 %v9257
    %9409 = vmatpush.msra.mxu0 %v9256
    %9410 = vmatpush.msra.mxu0 %v9255
    %9411 = vmatpush.msra.mxu0 %v9254
    %9412 = vmatpush.msra.mxu0 %v9253
    %9413 = vmatpush.msra.mxu0 %v9252
    %9414 = vmatpush.msra.mxu0 %v9251
    %9415 = vmatpush.msra.mxu0 %v9250
    %9416 = vmatmul.f32.gmra.mxu0 %v9228
    %v9417 = vpop.f32.mrf.mxu0
    %v9418 = vadd.f32 %v9398, %v9417
    %9419 = vdwg.mxu0
    %9420 = vmatpush.msra.mxu0 %v9281
    %9421 = vmatpush.msra.mxu0 %v9280
    %9422 = vmatpush.msra.mxu0 %v9279
    %9423 = vmatpush.msra.mxu0 %v9278
    %9424 = vmatpush.msra.mxu0 %v9277
    %9425 = vmatpush.msra.mxu0 %v9276
    %9426 = vmatpush.msra.mxu0 %v9275
    %9427 = vmatpush.msra.mxu0 %v9274
    %9428 = vmatpush.msra.mxu0 %v9273
    %9429 = vmatpush.msra.mxu0 %v9272
    %9430 = vmatpush.msra.mxu0 %v9271
    %9431 = vmatpush.msra.mxu0 %v9270
    %9432 = vmatpush.msra.mxu0 %v9269
    %9433 = vmatpush.msra.mxu0 %v9268
    %9434 = vmatpush.msra.mxu0 %v9267
    %9435 = vmatpush.msra.mxu0 %v9266
    %9436 = vmatmul.f32.gmra.mxu0 %v9248
    %v9437 = vpop.f32.mrf.mxu0
    %v9438 = vadd.f32 %v9418, %v9437
    %9439 = vdwg.mxu0
    %s9440 = scalar_lea.vmem [#allocation36], 4
    %v9441 = vld [vmem:[%s9440] sm:$0x3]
    %v9443 = vsel %vm510, %v9441, 0
    %9445 = vmatpush.msra.mxu0 0.0
    %9446 = vmatpush.msra.mxu0 0.0
    %9447 = vmatpush.msra.mxu0 0.0
    %9448 = vmatpush.msra.mxu0 0.0
    %9449 = vmatpush.msra.mxu0 0.0
    %9450 = vmatpush.msra.mxu0 0.0
    %9451 = vmatpush.msra.mxu0 0.0
    %9452 = vmatpush.msra.mxu0 0.0
    %9453 = vmatpush.msra.mxu0 0.0
    %9454 = vmatpush.msra.mxu0 0.0
    %9455 = vmatpush.msra.mxu0 0.0
    %9456 = vmatpush.msra.mxu0 0.0
    %9457 = vmatpush.msra.mxu0 0.0
    %9458 = vmatpush.msra.mxu0 0.0
    %9459 = vmatpush.msra.mxu0 0.0
    %9460 = vmatpush.msra.mxu0 %v9204
    %9461 = vmatmul.f32.gmra.mxu0 %v9443
    %v9462 = vpop.f32.mrf.mxu0
    %v9463 = vadd.f32 0.0, %v9462
    %9464 = vdwg.mxu0
    %9465 = vmatpush.msra.mxu0 0.0
    %9466 = vmatpush.msra.mxu0 0.0
    %9467 = vmatpush.msra.mxu0 0.0
    %9468 = vmatpush.msra.mxu0 0.0
    %9469 = vmatpush.msra.mxu0 0.0
    %9470 = vmatpush.msra.mxu0 0.0
    %9471 = vmatpush.msra.mxu0 0.0
    %9472 = vmatpush.msra.mxu0 0.0
    %9473 = vmatpush.msra.mxu0 0.0
    %9474 = vmatpush.msra.mxu0 0.0
    %9475 = vmatpush.msra.mxu0 0.0
    %9476 = vmatpush.msra.mxu0 0.0
    %9477 = vmatpush.msra.mxu0 0.0
    %9478 = vmatpush.msra.mxu0 0.0
    %9479 = vmatpush.msra.mxu0 0.0
    %9480 = vmatpush.msra.mxu0 %v9205
    %9481 = vmatmul.f32.gmra.mxu0 %v9443
    %v9482 = vpop.f32.mrf.mxu0
    %v9483 = vadd.f32 0.0, %v9482
    %9484 = vdwg.mxu0
    %s9485 = scalar_lea.vmem [#allocation38], 512
    %v9486 = vld [vmem:[%s9485] sm:$0xff]
    %v9487 = vld [vmem:[%s9485 + $0x8] sm:$0xff]
    %v9488 = vld [vmem:[%s9485 + $0x10] sm:$0xff]
    %v9489 = vld [vmem:[%s9485 + $0x18] sm:$0xff]
    %v9490 = vld [vmem:[%s9485 + $0x20] sm:$0xff]
    %v9491 = vld [vmem:[%s9485 + $0x28] sm:$0xff]
    %v9492 = vld [vmem:[%s9485 + $0x30] sm:$0xff]
    %v9493 = vld [vmem:[%s9485 + $0x38] sm:$0xff]
    %v9494 = vld [vmem:[%s9485 + $0x40] sm:$0xff]
    %v9495 = vld [vmem:[%s9485 + $0x48] sm:$0xff]
    %v9496 = vld [vmem:[%s9485 + $0x50] sm:$0xff]
    %v9497 = vld [vmem:[%s9485 + $0x58] sm:$0xff]
    %v9498 = vld [vmem:[%s9485 + $0x60] sm:$0xff]
    %v9499 = vld [vmem:[%s9485 + $0x68] sm:$0xff]
    %v9500 = vld [vmem:[%s9485 + $0x70] sm:$0xff]
    %v9501 = vld [vmem:[%s9485 + $0x78] sm:$0xff]
    %v9502 = vld [vmem:[%s9485 + $0x80] sm:$0xff]
    %v9503 = vld [vmem:[%s9485 + $0x88] sm:$0xff]
    %v9504 = vld [vmem:[%s9485 + $0x90] sm:$0xff]
    %v9505 = vld [vmem:[%s9485 + $0x98] sm:$0xff]
    %v9506 = vld [vmem:[%s9485 + $0xa0] sm:$0xff]
    %v9507 = vld [vmem:[%s9485 + $0xa8] sm:$0xff]
    %v9508 = vld [vmem:[%s9485 + $0xb0] sm:$0xff]
    %v9509 = vld [vmem:[%s9485 + $0xb8] sm:$0xff]
    %v9510 = vld [vmem:[%s9485 + $0xc0] sm:$0xff]
    %v9511 = vld [vmem:[%s9485 + $0xc8] sm:$0xff]
    %v9512 = vld [vmem:[%s9485 + $0xd0] sm:$0xff]
    %v9513 = vld [vmem:[%s9485 + $0xd8] sm:$0xff]
    %v9514 = vld [vmem:[%s9485 + $0xe0] sm:$0xff]
    %v9515 = vld [vmem:[%s9485 + $0xe8] sm:$0xff]
    %v9516 = vld [vmem:[%s9485 + $0xf0] sm:$0xff]
    %v9517 = vld [vmem:[%s9485 + $0xf8] sm:$0xff]
    %9518 = vmatpush.msra.mxu0 %v9501
    %9519 = vmatpush.msra.mxu0 %v9500
    %9520 = vmatpush.msra.mxu0 %v9499
    %9521 = vmatpush.msra.mxu0 %v9498
    %9522 = vmatpush.msra.mxu0 %v9497
    %9523 = vmatpush.msra.mxu0 %v9496
    %9524 = vmatpush.msra.mxu0 %v9495
    %9525 = vmatpush.msra.mxu0 %v9494
    %9526 = vmatpush.msra.mxu0 %v9493
    %9527 = vmatpush.msra.mxu0 %v9492
    %9528 = vmatpush.msra.mxu0 %v9491
    %9529 = vmatpush.msra.mxu0 %v9490
    %9530 = vmatpush.msra.mxu0 %v9489
    %9531 = vmatpush.msra.mxu0 %v9488
    %9532 = vmatpush.msra.mxu0 %v9487
    %9533 = vmatpush.msra.mxu0 %v9486
    %9534 = vmatmul.f32.gmra.mxu0 %v9463
    %v9535 = vpop.f32.mrf.mxu0
    %v9536 = vadd.f32 0.0, %v9535
    %9537 = vdwg.mxu0
    %9538 = vmatpush.msra.mxu0 %v9517
    %9539 = vmatpush.msra.mxu0 %v9516
    %9540 = vmatpush.msra.mxu0 %v9515
    %9541 = vmatpush.msra.mxu0 %v9514
    %9542 = vmatpush.msra.mxu0 %v9513
    %9543 = vmatpush.msra.mxu0 %v9512
    %9544 = vmatpush.msra.mxu0 %v9511
    %9545 = vmatpush.msra.mxu0 %v9510
    %9546 = vmatpush.msra.mxu0 %v9509
    %9547 = vmatpush.msra.mxu0 %v9508
    %9548 = vmatpush.msra.mxu0 %v9507
    %9549 = vmatpush.msra.mxu0 %v9506
    %9550 = vmatpush.msra.mxu0 %v9505
    %9551 = vmatpush.msra.mxu0 %v9504
    %9552 = vmatpush.msra.mxu0 %v9503
    %9553 = vmatpush.msra.mxu0 %v9502
    %9554 = vmatmul.f32.gmra.mxu0 %v9483
    %v9555 = vpop.f32.mrf.mxu0
    %v9556 = vadd.f32 %v9536, %v9555
    %9557 = vdwg.mxu0
    %v9558 = vadd.f32 %v9438, %v9556
    %s9559 = scalar_lea.vmem [#allocation36], 6
    %v9560 = vld [vmem:[%s9559] sm:$0x3]
    %v9562 = vsel %vm510, %v9560, 0
    %9564 = vmatpush.msra.mxu0 0.0
    %9565 = vmatpush.msra.mxu0 0.0
    %9566 = vmatpush.msra.mxu0 0.0
    %9567 = vmatpush.msra.mxu0 0.0
    %9568 = vmatpush.msra.mxu0 0.0
    %9569 = vmatpush.msra.mxu0 0.0
    %9570 = vmatpush.msra.mxu0 0.0
    %9571 = vmatpush.msra.mxu0 0.0
    %9572 = vmatpush.msra.mxu0 0.0
    %9573 = vmatpush.msra.mxu0 0.0
    %9574 = vmatpush.msra.mxu0 0.0
    %9575 = vmatpush.msra.mxu0 0.0
    %9576 = vmatpush.msra.mxu0 0.0
    %9577 = vmatpush.msra.mxu0 0.0
    %9578 = vmatpush.msra.mxu0 0.0
    %9579 = vmatpush.msra.mxu0 %v9204
    %9580 = vmatmul.f32.gmra.mxu0 %v9562
    %v9581 = vpop.f32.mrf.mxu0
    %v9582 = vadd.f32 0.0, %v9581
    %9583 = vdwg.mxu0
    %9584 = vmatpush.msra.mxu0 0.0
    %9585 = vmatpush.msra.mxu0 0.0
    %9586 = vmatpush.msra.mxu0 0.0
    %9587 = vmatpush.msra.mxu0 0.0
    %9588 = vmatpush.msra.mxu0 0.0
    %9589 = vmatpush.msra.mxu0 0.0
    %9590 = vmatpush.msra.mxu0 0.0
    %9591 = vmatpush.msra.mxu0 0.0
    %9592 = vmatpush.msra.mxu0 0.0
    %9593 = vmatpush.msra.mxu0 0.0
    %9594 = vmatpush.msra.mxu0 0.0
    %9595 = vmatpush.msra.mxu0 0.0
    %9596 = vmatpush.msra.mxu0 0.0
    %9597 = vmatpush.msra.mxu0 0.0
    %9598 = vmatpush.msra.mxu0 0.0
    %9599 = vmatpush.msra.mxu0 %v9205
    %9600 = vmatmul.f32.gmra.mxu0 %v9562
    %v9601 = vpop.f32.mrf.mxu0
    %v9602 = vadd.f32 0.0, %v9601
    %9603 = vdwg.mxu0
    %s9604 = scalar_lea.vmem [#allocation38], 768
    %v9605 = vld [vmem:[%s9604] sm:$0xff]
    %v9606 = vld [vmem:[%s9604 + $0x8] sm:$0xff]
    %v9607 = vld [vmem:[%s9604 + $0x10] sm:$0xff]
    %v9608 = vld [vmem:[%s9604 + $0x18] sm:$0xff]
    %v9609 = vld [vmem:[%s9604 + $0x20] sm:$0xff]
    %v9610 = vld [vmem:[%s9604 + $0x28] sm:$0xff]
    %v9611 = vld [vmem:[%s9604 + $0x30] sm:$0xff]
    %v9612 = vld [vmem:[%s9604 + $0x38] sm:$0xff]
    %v9613 = vld [vmem:[%s9604 + $0x40] sm:$0xff]
    %v9614 = vld [vmem:[%s9604 + $0x48] sm:$0xff]
    %v9615 = vld [vmem:[%s9604 + $0x50] sm:$0xff]
    %v9616 = vld [vmem:[%s9604 + $0x58] sm:$0xff]
    %v9617 = vld [vmem:[%s9604 + $0x60] sm:$0xff]
    %v9618 = vld [vmem:[%s9604 + $0x68] sm:$0xff]
    %v9619 = vld [vmem:[%s9604 + $0x70] sm:$0xff]
    %v9620 = vld [vmem:[%s9604 + $0x78] sm:$0xff]
    %v9621 = vld [vmem:[%s9604 + $0x80] sm:$0xff]
    %v9622 = vld [vmem:[%s9604 + $0x88] sm:$0xff]
    %v9623 = vld [vmem:[%s9604 + $0x90] sm:$0xff]
    %v9624 = vld [vmem:[%s9604 + $0x98] sm:$0xff]
    %v9625 = vld [vmem:[%s9604 + $0xa0] sm:$0xff]
    %v9626 = vld [vmem:[%s9604 + $0xa8] sm:$0xff]
    %v9627 = vld [vmem:[%s9604 + $0xb0] sm:$0xff]
    %v9628 = vld [vmem:[%s9604 + $0xb8] sm:$0xff]
    %v9629 = vld [vmem:[%s9604 + $0xc0] sm:$0xff]
    %v9630 = vld [vmem:[%s9604 + $0xc8] sm:$0xff]
    %v9631 = vld [vmem:[%s9604 + $0xd0] sm:$0xff]
    %v9632 = vld [vmem:[%s9604 + $0xd8] sm:$0xff]
    %v9633 = vld [vmem:[%s9604 + $0xe0] sm:$0xff]
    %v9634 = vld [vmem:[%s9604 + $0xe8] sm:$0xff]
    %v9635 = vld [vmem:[%s9604 + $0xf0] sm:$0xff]
    %v9636 = vld [vmem:[%s9604 + $0xf8] sm:$0xff]
    %9637 = vmatpush.msra.mxu0 %v9620
    %9638 = vmatpush.msra.mxu0 %v9619
    %9639 = vmatpush.msra.mxu0 %v9618
    %9640 = vmatpush.msra.mxu0 %v9617
    %9641 = vmatpush.msra.mxu0 %v9616
    %9642 = vmatpush.msra.mxu0 %v9615
    %9643 = vmatpush.msra.mxu0 %v9614
    %9644 = vmatpush.msra.mxu0 %v9613
    %9645 = vmatpush.msra.mxu0 %v9612
    %9646 = vmatpush.msra.mxu0 %v9611
    %9647 = vmatpush.msra.mxu0 %v9610
    %9648 = vmatpush.msra.mxu0 %v9609
    %9649 = vmatpush.msra.mxu0 %v9608
    %9650 = vmatpush.msra.mxu0 %v9607
    %9651 = vmatpush.msra.mxu0 %v9606
    %9652 = vmatpush.msra.mxu0 %v9605
    %9653 = vmatmul.f32.gmra.mxu0 %v9582
    %v9654 = vpop.f32.mrf.mxu0
    %v9655 = vadd.f32 0.0, %v9654
    %9656 = vdwg.mxu0
    %9657 = vmatpush.msra.mxu0 %v9636
    %9658 = vmatpush.msra.mxu0 %v9635
    %9659 = vmatpush.msra.mxu0 %v9634
    %9660 = vmatpush.msra.mxu0 %v9633
    %9661 = vmatpush.msra.mxu0 %v9632
    %9662 = vmatpush.msra.mxu0 %v9631
    %9663 = vmatpush.msra.mxu0 %v9630
    %9664 = vmatpush.msra.mxu0 %v9629
    %9665 = vmatpush.msra.mxu0 %v9628
    %9666 = vmatpush.msra.mxu0 %v9627
    %9667 = vmatpush.msra.mxu0 %v9626
    %9668 = vmatpush.msra.mxu0 %v9625
    %9669 = vmatpush.msra.mxu0 %v9624
    %9670 = vmatpush.msra.mxu0 %v9623
    %9671 = vmatpush.msra.mxu0 %v9622
    %9672 = vmatpush.msra.mxu0 %v9621
    %9673 = vmatmul.f32.gmra.mxu0 %v9602
    %v9674 = vpop.f32.mrf.mxu0
    %v9675 = vadd.f32 %v9655, %v9674
    %9676 = vdwg.mxu0
    %v9677 = vadd.f32 %v9558, %v9675
    %v9678 = vld [vmem:[#allocation39] sm:$0x1]
    %v9680 = vperm.slane %v9678, 0
    %v9682 = vadd.f32 %v9677, %v9680
    %v9683 = vxor.u32 %v9682, 2147483648
    %v9684 = vmul.f32 %v9683, 1.442695
    %v9685 = vpow.pop %v9684
    %v9686 = vadd.f32 %v9685, 1.0
    %v9687 = vrcp.pop %v9686
    %v9688 = vmul.f32 %v9686, %v9687
    %v9689 = vsub.f32 1.0, %v9688
    %v9690 = vmul.f32 %v9687, %v9689
    %v9691 = vadd.f32 %v9687, %v9690
    %vm9692 = vweird.f32 %v9686
    %vm9693 = vweird.f32 %v9687
    %vm9694 = vmor %vm9692, %vm9693
    %v9695 = vsel %vm9694, %v9687, %v9691
    %v9696 = vand.u32 2147483647, %v9686
    %vm9697 = vcmp.eq.f32.partialorder %v9696, 8.507059e+37
    %v9698 = vand.u32 %v9686, 2147483648
    %v9699 = vor.u32 1.1754944e-38, %v9698
    %v9700 = vsel %vm9697, %v9699, %v9695
    %v9701 = vmul.f32 1.0, %v9700
    %9702 = vst [vmem:[#allocation41] sm:$0x3] %v9701
    // Predicated region
    $region190: #{tpu_custom_call.1} parent=1 // pred_check
      _
    $region191: #{tpu_custom_call.1} parent=1 // pred_check_branch
      %9704 = sbr.rel (0) target = $region193
    $region192: #{tpu_custom_call.1} parent=1 // pred_region
      %9706 = vsyncadd [#allocation8], 0
      %s9708 = sshll.u32 [#allocation41], 4
      %s9709 = int_to_ptr.vmem [resolvable:$true] %s9708
      %s9710 = sshll.u32 %s25, 4
      %s9711 = int_to_ptr.hbm [resolvable:$true] %s9710
      %9713 = dma.vmem_to_hbm [thread:$0]  %s9709, 32, %s9711, [#allocation8]
    $region193: #{tpu_custom_call.1} parent=1 // pred_fallthru
      _
    // Predicated region
    $region194: #{tpu_custom_call.1} parent=1 // pred_check
      _
    $region195: #{tpu_custom_call.1} parent=1 // pred_check_branch
      %9715 = sbr.rel (0) target = $region197
    $region196: #{tpu_custom_call.1} parent=1 // pred_region
      %9717 = dma.done [#allocation8], 32
    $region197: #{tpu_custom_call.1} parent=1 // pred_fallthru
      _
    %9718 = vsyncpa [#allocation7], 1
    %9719 = vsyncpa [#allocation10], 1
    %9720 = vsyncpa [#allocation13], 1
    %9721 = vsyncpa [#allocation16], 1
    %9722 = vsyncpa [#allocation19], 1
    %9723 = vsyncpa [#allocation22], 1
    %9724 = vsyncpa [#allocation25], 1
    %9725 = vsyncpa [#allocation28], 1
    %9726 = vsyncpa [#allocation31], 1
    %9727 = vsyncpa [#allocation34], 1
    %9728 = vsyncpa [#allocation37], 1
    %9729 = vsyncpa [#allocation40], 1
    %9730 = vsyncpa [#allocation8], 1

</llo_original>
